<compile_context>
chip_gen: v7x
topology: tpu7x:2x2x1
jax: 0.10.0
libtpu: 0.0.40
codegen_flags: <defaults>
</compile_context>

<pallas_src>
import jax
import jax.numpy as jnp
from jax.experimental import pallas as pl
from jax.experimental.pallas import tpu as pltpu

# ---- fixed architecture constants of the PyTorch CNN module ----
OC1, OC2 = 16, 64          # Conv2d_1 / Conv2d_2 output channels
KH = KW = 3                # conv kernel size
FC_HIDDEN, NUM_CLASSES = 512, 7
POOL_H, POOL_W = 6, 6      # spatial size after conv2+pool (Linear_1 expects 64*6*6)

_VMEM_LIMIT = 32 * 1024 * 1024   # tiles are tiny; safe on v5e/v6e/v7x (<=32 MiB scoped)


def _round_up(x, m):
    return (x + m - 1) // m * m


def _num_m_blocks():
    """2 'parallel' M blocks on v7x (2 TensorCores/chip); 1 on v5e/v6e."""
    try:
        kind = jax.devices()[0].device_kind.lower()
    except Exception:
        return 1
    return 2 if ("v7" in kind or "tpu7" in kind or "7x" in kind) else 1


# ----------------------------- Pallas kernels -----------------------------

def _conv_pool_kernel(xa_ref, xb_ref, xc_ref, xd_ref, w_ref, b_ref, o_ref):
    """Fused conv-as-matmul + bias + ReLU + 2x2 max-pool epilogue.

    Each x?_ref holds the im2col patches of one of the four positions of a
    2x2 pooling window; MaxPool2d(2,2) is the elementwise max of the four
    conv results, so the pre-pool activation never hits HBM.
    Accumulate/bias/ReLU in f32; output written lane-dense as bf16.
    """
    w = w_ref[...]
    b = b_ref[...]

    def branch(x_ref):
        acc = jnp.dot(x_ref[...], w, preferred_element_type=jnp.float32)
        return jnp.maximum(acc + b, 0.0)

    pooled = jnp.maximum(jnp.maximum(branch(xa_ref), branch(xb_ref)),
                         jnp.maximum(branch(xc_ref), branch(xd_ref)))
    o_ref[...] = pooled.astype(o_ref.dtype)


def _fc_head_kernel(x_ref, w1_ref, b1_ref, w2_ref, b2_ref, o_ref):
    """Fused Linear_1 + ReLU (+ eval-mode Dropout = identity) + Linear_2 + ReLU."""
    h = jnp.dot(x_ref[...], w1_ref[...], preferred_element_type=jnp.float32)
    h = jnp.maximum(h + b1_ref[...], 0.0)
    # TODO(synk): Dropout(0.5) is identity in eval mode; train-mode masking
    # would use pltpu.prng_seed + pltpu.prng_random_bits here.
    o = jnp.dot(h.astype(w2_ref.dtype), w2_ref[...],
                preferred_element_type=jnp.float32)
    o_ref[...] = jnp.maximum(o + b2_ref[...], 0.0)


# --------------------------- Pallas-call wrappers ---------------------------

def conv_relu_pool(x_nhwc, w_pad, b_pad, n_out, kh, kw, *, n_blocks):
    """valid conv (stride 1) + bias + ReLU + MaxPool2d(2,2), one fused kernel.

    Returns (B, OH//2, OW//2, n_out) bf16.
    """
    B, H, W, C = x_nhwc.shape
    OH, OW = H - kh + 1, W - kw + 1
    PH, PW = OH // 2, OW // 2                       # floor semantics like PyTorch
    K = kh * kw * C
    Kp = _round_up(K, 128)
    Np = w_pad.shape[1]

    # im2col (XLA glue): (B, OH, OW, K), K index = (dy*kw + dx)*C + c
    cols = [x_nhwc[:, i:i + OH, j:j + OW, :] for i in range(kh) for j in range(kw)]
    patches = jnp.stack(cols, axis=3).reshape(B, OH, OW, K)
    patches = patches[:, :2 * PH, :2 * PW, :]       # drop odd tail (no-op here)

    Mout = B * PH * PW
    Mp = _round_up(Mout, 8 * n_blocks)
    tm = Mp // n_blocks

    def pos(dy, dx):
        p = patches[:, dy::2, dx::2, :].reshape(Mout, K)
        p = jnp.pad(p, ((0, Mp - Mout), (0, Kp - K)))
        return p.astype(jnp.bfloat16)

    xa, xb, xc, xd = pos(0, 0), pos(0, 1), pos(1, 0), pos(1, 1)

    x_spec = pl.BlockSpec((tm, Kp), lambda i: (i, 0))
    out = pl.pallas_call(
        _conv_pool_kernel,
        out_shape=jax.ShapeDtypeStruct((Mp, Np), jnp.bfloat16),
        grid_spec=pltpu.PrefetchScalarGridSpec(
            num_scalar_prefetch=0,
            grid=(n_blocks,),
            in_specs=[x_spec, x_spec, x_spec, x_spec,
                      pl.BlockSpec((Kp, Np), lambda i: (0, 0)),
                      pl.BlockSpec((1, Np), lambda i: (0, 0))],
            out_specs=pl.BlockSpec((tm, Np), lambda i: (i, 0)),
        ),
        compiler_params=pltpu.CompilerParams(
            dimension_semantics=("parallel",),
            vmem_limit_bytes=_VMEM_LIMIT,
        ),
    )(xa, xb, xc, xd, w_pad, b_pad)
    return out[:Mout, :n_out].reshape(B, PH, PW, n_out)


def fc_head(x, w1p, b1p, w2p, b2p, n_out, *, n_blocks):
    """Fused Linear_1+ReLU+Linear_2+ReLU; weights stay VMEM-resident across M."""
    M, K = x.shape
    K1, H1 = w1p.shape
    N2 = w2p.shape[1]
    Mp = _round_up(M, 8 * n_blocks)
    tm = Mp // n_blocks
    xp = jnp.pad(x, ((0, Mp - M), (0, K1 - K))).astype(jnp.bfloat16)
    out = pl.pallas_call(
        _fc_head_kernel,
        out_shape=jax.ShapeDtypeStruct((Mp, N2), jnp.float32),
        grid_spec=pltpu.PrefetchScalarGridSpec(
            num_scalar_prefetch=0,
            grid=(n_blocks,),
            in_specs=[pl.BlockSpec((tm, K1), lambda i: (i, 0)),
                      pl.BlockSpec((K1, H1), lambda i: (0, 0)),
                      pl.BlockSpec((1, H1), lambda i: (0, 0)),
                      pl.BlockSpec((H1, N2), lambda i: (0, 0)),
                      pl.BlockSpec((1, N2), lambda i: (0, 0))],
            out_specs=pl.BlockSpec((tm, N2), lambda i: (i, 0)),
        ),
        compiler_params=pltpu.CompilerParams(
            dimension_semantics=("parallel",),
            vmem_limit_bytes=_VMEM_LIMIT,
        ),
    )(xp, w1p, b1p, w2p, b2p)
    return out[:M, :n_out]


# ----------------------------- weight prep ---------------------------------

def _conv_weight_to_matrix(w_oihw):
    """PyTorch (OC, C, KH, KW) -> (KH*KW*C, OC), matching im2col K ordering."""
    OC, C, kh, kw = w_oihw.shape
    return jnp.transpose(w_oihw, (2, 3, 1, 0)).reshape(kh * kw * C, OC)


def _fc1_weight_nhwc(wl1, c, h, w):
    """(512, C*H*W) Linear weight -> (H*W*C, 512) rows permuted so the
    NHWC-flattened activation can be used directly (NCHW flatten folded here)."""
    n_hidden = wl1.shape[0]
    wt = wl1.T.reshape(c, h, w, n_hidden)
    return jnp.transpose(wt, (1, 2, 0, 3)).reshape(h * w * c, n_hidden)


def _prep_matmul_weight(w_kn, bias):
    """Pad (K, N) weight to 128-multiples, cast bf16; bias -> (1, Np) f32."""
    K, N = w_kn.shape
    Kp, Np = _round_up(K, 128), _round_up(N, 128)
    wp = jnp.pad(w_kn, ((0, Kp - K), (0, Np - N))).astype(jnp.bfloat16)
    bp = jnp.pad(bias.astype(jnp.float32), (0, Np - N)).reshape(1, Np)
    return wp, bp


def prepare_params(params):
    """One-time weight prep: layouts, transposes/permutations, 128-pad, bf16."""
    w1, b1, w2, b2, wl1, bl1, wl2, bl2 = params
    c1_w, c1_b = _prep_matmul_weight(_conv_weight_to_matrix(w1), b1)
    c2_w, c2_b = _prep_matmul_weight(_conv_weight_to_matrix(w2), b2)
    fc1_w, fc1_b = _prep_matmul_weight(_fc1_weight_nhwc(wl1, OC2, POOL_H, POOL_W), bl1)
    fc2_w, fc2_b = _prep_matmul_weight(wl2.T, bl2)
    return dict(c1_w=c1_w, c1_b=c1_b, c2_w=c2_w, c2_b=c2_b,
                fc1_w=fc1_w, fc1_b=fc1_b, fc2_w=fc2_w, fc2_b=fc2_b)


# ------------------------------- forward ------------------------------------

@jax.jit
def cnn_forward(x_nchw, p):
    """Forward pass of the PyTorch `CNN` module (inference / eval mode)."""
    nb = _num_m_blocks()
    x = jnp.transpose(x_nchw, (0, 2, 3, 1))                       # NCHW -> NHWC
    x = conv_relu_pool(x, p["c1_w"], p["c1_b"], OC1, KH, KW, n_blocks=nb)  # (B,14,14,16)
    x = conv_relu_pool(x, p["c2_w"], p["c2_b"], OC2, KH, KW, n_blocks=nb)  # (B, 6, 6,64)
    B = x.shape[0]
    x = x.reshape(B, -1)   # NHWC flatten; fc1 weight rows were pre-permuted to match
    return fc_head(x, p["fc1_w"], p["fc1_b"], p["fc2_w"], p["fc2_b"],
                   NUM_CLASSES, n_blocks=nb)                      # (B, 7)


# ------------------------------- main ---------------------------------------

if __name__ == "__main__":
    key = jax.random.PRNGKey(0)
    ks = jax.random.split(key, 9)

    # Input spatial size must be 30x30 so the flatten matches 64*6*6.
    x = jax.random.normal(ks[0], (2, 4, 30, 30), dtype=jnp.float32)

    # Deterministic synthetic parameters (PyTorch layout shapes).
    w1 = jax.random.normal(ks[1], (16, 4, 3, 3), dtype=jnp.float32) * 0.1
    b1 = jax.random.normal(ks[2], (16,), dtype=jnp.float32) * 0.1
    w2 = jax.random.normal(ks[3], (64, 16, 3, 3), dtype=jnp.float32) * 0.05
    b2 = jax.random.normal(ks[4], (64,), dtype=jnp.float32) * 0.05
    wl1 = jax.random.normal(ks[5], (512, 64 * 6 * 6), dtype=jnp.float32) * 0.02
    bl1 = jax.random.normal(ks[6], (512,), dtype=jnp.float32) * 0.02
    wl2 = jax.random.normal(ks[7], (7, 512), dtype=jnp.float32) * 0.05
    bl2 = jax.random.normal(ks[8], (7,), dtype=jnp.float32) * 0.05

    params = prepare_params((w1, b1, w2, b2, wl1, bl1, wl2, bl2))

    out = cnn_forward(x, params)
    out = jax.block_until_ready(out)
    assert out.shape == (2, 7), out.shape
    assert bool(jnp.all(jnp.isfinite(out)))
    assert bool(jnp.all(out >= 0.0))   # final ReLU (present in the reference)
    print("KERNEL_OK")
</pallas_src>

<mosaic_0001>
module attributes {stable_mosaic.version = 11 : i64} {
  func.func @_conv_pool_kernel(%arg0: i32, %arg1: memref<392x128xbf16, #tpu.memory_space<vmem>>, %arg2: memref<392x128xbf16, #tpu.memory_space<vmem>>, %arg3: memref<392x128xbf16, #tpu.memory_space<vmem>>, %arg4: memref<392x128xbf16, #tpu.memory_space<vmem>>, %arg5: memref<128x128xbf16, #tpu.memory_space<vmem>>, %arg6: memref<1x128xf32, #tpu.memory_space<vmem>>, %arg7: memref<392x128xbf16, #tpu.memory_space<vmem>>) attributes {dimension_semantics = [#tpu.dimension_semantics<parallel>], iteration_bounds = array<i64: 1>, scalar_prefetch = 0 : i64, scratch_operands = 0 : i64, tpu.core_type = #tpu.core_type<tc>, window_params = [{transform_indices = @transform_0, window_bounds = array<i64: 392, 128>}, {transform_indices = @transform_1, window_bounds = array<i64: 392, 128>}, {transform_indices = @transform_2, window_bounds = array<i64: 392, 128>}, {transform_indices = @transform_3, window_bounds = array<i64: 392, 128>}, {pipeline_mode = #tpu.pipeline_mode<synchronous>, transform_indices = @transform_4, window_bounds = array<i64: 128, 128>}, {pipeline_mode = #tpu.pipeline_mode<synchronous>, transform_indices = @transform_5, window_bounds = array<i64: 1, 128>}, {transform_indices = @transform_6, window_bounds = array<i64: 392, 128>}]} {
    %c0 = arith.constant 0 : index
    %c0_0 = arith.constant 0 : index
    %0 = vector.load %arg5[%c0, %c0_0] : memref<128x128xbf16, #tpu.memory_space<vmem>>, vector<128x128xbf16>
    %c0_1 = arith.constant 0 : index
    %c0_2 = arith.constant 0 : index
    %1 = vector.load %arg6[%c0_1, %c0_2] : memref<1x128xf32, #tpu.memory_space<vmem>>, vector<1x128xf32>
    %c0_3 = arith.constant 0 : index
    %c0_4 = arith.constant 0 : index
    %2 = vector.load %arg1[%c0_3, %c0_4] : memref<392x128xbf16, #tpu.memory_space<vmem>>, vector<392x128xbf16>
    %cst = arith.constant dense<0.000000e+00> : vector<392x128xf32>
    %3 = tpu.matmul %2, %0, %cst {dimension_numbers = #tpu.dot_dimension_numbers<[1], [0], [0], [1], [0, 0, 1, 1], [], []>} : vector<392x128xbf16>, vector<128x128xbf16>, vector<392x128xf32> -> vector<392x128xf32>
    %4 = vector.broadcast %1 : vector<1x128xf32> to vector<392x128xf32>
    %5 = arith.addf %3, %4 : vector<392x128xf32>
    %cst_5 = arith.constant 0.000000e+00 : f32
    %6 = vector.broadcast %cst_5 : f32 to vector<392x128xf32>
    %7 = arith.maximumf %5, %6 : vector<392x128xf32>
    %c0_6 = arith.constant 0 : index
    %c0_7 = arith.constant 0 : index
    %8 = vector.load %arg2[%c0_6, %c0_7] : memref<392x128xbf16, #tpu.memory_space<vmem>>, vector<392x128xbf16>
    %cst_8 = arith.constant dense<0.000000e+00> : vector<392x128xf32>
    %9 = tpu.matmul %8, %0, %cst_8 {dimension_numbers = #tpu.dot_dimension_numbers<[1], [0], [0], [1], [0, 0, 1, 1], [], []>} : vector<392x128xbf16>, vector<128x128xbf16>, vector<392x128xf32> -> vector<392x128xf32>
    %10 = vector.broadcast %1 : vector<1x128xf32> to vector<392x128xf32>
    %11 = arith.addf %9, %10 : vector<392x128xf32>
    %cst_9 = arith.constant 0.000000e+00 : f32
    %12 = vector.broadcast %cst_9 : f32 to vector<392x128xf32>
    %13 = arith.maximumf %11, %12 : vector<392x128xf32>
    %14 = arith.maximumf %7, %13 : vector<392x128xf32>
    %c0_10 = arith.constant 0 : index
    %c0_11 = arith.constant 0 : index
    %15 = vector.load %arg3[%c0_10, %c0_11] : memref<392x128xbf16, #tpu.memory_space<vmem>>, vector<392x128xbf16>
    %cst_12 = arith.constant dense<0.000000e+00> : vector<392x128xf32>
    %16 = tpu.matmul %15, %0, %cst_12 {dimension_numbers = #tpu.dot_dimension_numbers<[1], [0], [0], [1], [0, 0, 1, 1], [], []>} : vector<392x128xbf16>, vector<128x128xbf16>, vector<392x128xf32> -> vector<392x128xf32>
    %17 = vector.broadcast %1 : vector<1x128xf32> to vector<392x128xf32>
    %18 = arith.addf %16, %17 : vector<392x128xf32>
    %cst_13 = arith.constant 0.000000e+00 : f32
    %19 = vector.broadcast %cst_13 : f32 to vector<392x128xf32>
    %20 = arith.maximumf %18, %19 : vector<392x128xf32>
    %c0_14 = arith.constant 0 : index
    %c0_15 = arith.constant 0 : index
    %21 = vector.load %arg4[%c0_14, %c0_15] : memref<392x128xbf16, #tpu.memory_space<vmem>>, vector<392x128xbf16>
    %cst_16 = arith.constant dense<0.000000e+00> : vector<392x128xf32>
    %22 = tpu.matmul %21, %0, %cst_16 {dimension_numbers = #tpu.dot_dimension_numbers<[1], [0], [0], [1], [0, 0, 1, 1], [], []>} : vector<392x128xbf16>, vector<128x128xbf16>, vector<392x128xf32> -> vector<392x128xf32>
    %23 = vector.broadcast %1 : vector<1x128xf32> to vector<392x128xf32>
    %24 = arith.addf %22, %23 : vector<392x128xf32>
    %cst_17 = arith.constant 0.000000e+00 : f32
    %25 = vector.broadcast %cst_17 : f32 to vector<392x128xf32>
    %26 = arith.maximumf %24, %25 : vector<392x128xf32>
    %27 = arith.maximumf %20, %26 : vector<392x128xf32>
    %28 = arith.maximumf %14, %27 : vector<392x128xf32>
    %29 = arith.truncf %28 : vector<392x128xf32> to vector<392x128xbf16>
    %c0_18 = arith.constant 0 : index
    %c0_19 = arith.constant 0 : index
    %30 = vector.load %arg7[%c0_18, %c0_19] : memref<392x128xbf16, #tpu.memory_space<vmem>>, vector<392x128xbf16>
    tpu.vector_store %arg7[%c0_18, %c0_19], %29 {strides = array<i32>} : memref<392x128xbf16, #tpu.memory_space<vmem>>, vector<392x128xbf16>,
    return
  }
  func.func @transform_0(%arg0: i32) -> (i32, i32) {
    %c0_i32 = arith.constant 0 : i32
    %c0_i32_0 = arith.constant 0 : i32
    return %arg0, %c0_i32 : i32, i32
  }
  func.func @transform_1(%arg0: i32) -> (i32, i32) {
    %c0_i32 = arith.constant 0 : i32
    %c0_i32_0 = arith.constant 0 : i32
    return %arg0, %c0_i32 : i32, i32
  }
  func.func @transform_2(%arg0: i32) -> (i32, i32) {
    %c0_i32 = arith.constant 0 : i32
    %c0_i32_0 = arith.constant 0 : i32
    return %arg0, %c0_i32 : i32, i32
  }
  func.func @transform_3(%arg0: i32) -> (i32, i32) {
    %c0_i32 = arith.constant 0 : i32
    %c0_i32_0 = arith.constant 0 : i32
    return %arg0, %c0_i32 : i32, i32
  }
  func.func @transform_4(%arg0: i32) -> (i32, i32) {
    %c0_i32 = arith.constant 0 : i32
    %c0_i32_0 = arith.constant 0 : i32
    %c0_i32_1 = arith.constant 0 : i32
    return %c0_i32, %c0_i32_0 : i32, i32
  }
  func.func @transform_5(%arg0: i32) -> (i32, i32) {
    %c0_i32 = arith.constant 0 : i32
    %c0_i32_0 = arith.constant 0 : i32
    %c0_i32_1 = arith.constant 0 : i32
    return %c0_i32, %c0_i32_0 : i32, i32
  }
  func.func @transform_6(%arg0: i32) -> (i32, i32) {
    %c0_i32 = arith.constant 0 : i32
    %c0_i32_0 = arith.constant 0 : i32
    return %arg0, %c0_i32 : i32, i32
  }
}

module attributes {stable_mosaic.version = 11 : i64} {
  func.func @_fc_head_kernel(%arg0: i32, %arg1: memref<8x2304xbf16, #tpu.memory_space<vmem>>, %arg2: memref<2304x512xbf16, #tpu.memory_space<vmem>>, %arg3: memref<1x512xf32, #tpu.memory_space<vmem>>, %arg4: memref<512x128xbf16, #tpu.memory_space<vmem>>, %arg5: memref<1x128xf32, #tpu.memory_space<vmem>>, %arg6: memref<8x128xf32, #tpu.memory_space<vmem>>) attributes {dimension_semantics = [#tpu.dimension_semantics<parallel>], iteration_bounds = array<i64: 1>, scalar_prefetch = 0 : i64, scratch_operands = 0 : i64, tpu.core_type = #tpu.core_type<tc>, window_params = [{transform_indices = @transform_0, window_bounds = array<i64: 8, 2304>}, {pipeline_mode = #tpu.pipeline_mode<synchronous>, transform_indices = @transform_1, window_bounds = array<i64: 2304, 512>}, {pipeline_mode = #tpu.pipeline_mode<synchronous>, transform_indices = @transform_2, window_bounds = array<i64: 1, 512>}, {pipeline_mode = #tpu.pipeline_mode<synchronous>, transform_indices = @transform_3, window_bounds = array<i64: 512, 128>}, {pipeline_mode = #tpu.pipeline_mode<synchronous>, transform_indices = @transform_4, window_bounds = array<i64: 1, 128>}, {transform_indices = @transform_5, window_bounds = array<i64: 8, 128>}]} {
    %c0 = arith.constant 0 : index
    %c0_0 = arith.constant 0 : index
    %0 = vector.load %arg1[%c0, %c0_0] : memref<8x2304xbf16, #tpu.memory_space<vmem>>, vector<8x2304xbf16>
    %c0_1 = arith.constant 0 : index
    %c0_2 = arith.constant 0 : index
    %1 = vector.load %arg2[%c0_1, %c0_2] : memref<2304x512xbf16, #tpu.memory_space<vmem>>, vector<2304x512xbf16>
    %cst = arith.constant dense<0.000000e+00> : vector<8x512xf32>
    %2 = tpu.matmul %0, %1, %cst {dimension_numbers = #tpu.dot_dimension_numbers<[1], [0], [0], [1], [0, 0, 1, 1], [], []>} : vector<8x2304xbf16>, vector<2304x512xbf16>, vector<8x512xf32> -> vector<8x512xf32>
    %c0_3 = arith.constant 0 : index
    %c0_4 = arith.constant 0 : index
    %3 = vector.load %arg3[%c0_3, %c0_4] : memref<1x512xf32, #tpu.memory_space<vmem>>, vector<1x512xf32>
    %4 = vector.broadcast %3 : vector<1x512xf32> to vector<8x512xf32>
    %5 = arith.addf %2, %4 : vector<8x512xf32>
    %cst_5 = arith.constant 0.000000e+00 : f32
    %6 = vector.broadcast %cst_5 : f32 to vector<8x512xf32>
    %7 = arith.maximumf %5, %6 : vector<8x512xf32>
    %8 = arith.truncf %7 : vector<8x512xf32> to vector<8x512xbf16>
    %c0_6 = arith.constant 0 : index
    %c0_7 = arith.constant 0 : index
    %9 = vector.load %arg4[%c0_6, %c0_7] : memref<512x128xbf16, #tpu.memory_space<vmem>>, vector<512x128xbf16>
    %cst_8 = arith.constant dense<0.000000e+00> : vector<8x128xf32>
    %10 = tpu.matmul %8, %9, %cst_8 {dimension_numbers = #tpu.dot_dimension_numbers<[1], [0], [0], [1], [0, 0, 1, 1], [], []>} : vector<8x512xbf16>, vector<512x128xbf16>, vector<8x128xf32> -> vector<8x128xf32>
    %c0_9 = arith.constant 0 : index
    %c0_10 = arith.constant 0 : index
    %11 = vector.load %arg5[%c0_9, %c0_10] : memref<1x128xf32, #tpu.memory_space<vmem>>, vector<1x128xf32>
    %12 = vector.broadcast %11 : vector<1x128xf32> to vector<8x128xf32>
    %13 = arith.addf %10, %12 : vector<8x128xf32>
    %cst_11 = arith.constant 0.000000e+00 : f32
    %14 = vector.broadcast %cst_11 : f32 to vector<8x128xf32>
    %15 = arith.maximumf %13, %14 : vector<8x128xf32>
    %c0_12 = arith.constant 0 : index
    %c0_13 = arith.constant 0 : index
    %16 = vector.load %arg6[%c0_12, %c0_13] : memref<8x128xf32, #tpu.memory_space<vmem>>, vector<8x128xf32>
    tpu.vector_store %arg6[%c0_12, %c0_13], %15 {strides = array<i32>} : memref<8x128xf32, #tpu.memory_space<vmem>>, vector<8x128xf32>,
    return
  }
  func.func @transform_0(%arg0: i32) -> (i32, i32) {
    %c0_i32 = arith.constant 0 : i32
    %c0_i32_0 = arith.constant 0 : i32
    return %arg0, %c0_i32 : i32, i32
  }
  func.func @transform_1(%arg0: i32) -> (i32, i32) {
    %c0_i32 = arith.constant 0 : i32
    %c0_i32_0 = arith.constant 0 : i32
    %c0_i32_1 = arith.constant 0 : i32
    return %c0_i32, %c0_i32_0 : i32, i32
  }
  func.func @transform_2(%arg0: i32) -> (i32, i32) {
    %c0_i32 = arith.constant 0 : i32
    %c0_i32_0 = arith.constant 0 : i32
    %c0_i32_1 = arith.constant 0 : i32
    return %c0_i32, %c0_i32_0 : i32, i32
  }
  func.func @transform_3(%arg0: i32) -> (i32, i32) {
    %c0_i32 = arith.constant 0 : i32
    %c0_i32_0 = arith.constant 0 : i32
    %c0_i32_1 = arith.constant 0 : i32
    return %c0_i32, %c0_i32_0 : i32, i32
  }
  func.func @transform_4(%arg0: i32) -> (i32, i32) {
    %c0_i32 = arith.constant 0 : i32
    %c0_i32_0 = arith.constant 0 : i32
    %c0_i32_1 = arith.constant 0 : i32
    return %c0_i32, %c0_i32_0 : i32, i32
  }
  func.func @transform_5(%arg0: i32) -> (i32, i32) {
    %c0_i32 = arith.constant 0 : i32
    %c0_i32_0 = arith.constant 0 : i32
    return %arg0, %c0_i32 : i32, i32
  }
}

module attributes {stable_mosaic.version = 11 : i64} {
  func.func @_conv_pool_kernel(%arg0: i32, %arg1: memref<72x256xbf16, #tpu.memory_space<vmem>>, %arg2: memref<72x256xbf16, #tpu.memory_space<vmem>>, %arg3: memref<72x256xbf16, #tpu.memory_space<vmem>>, %arg4: memref<72x256xbf16, #tpu.memory_space<vmem>>, %arg5: memref<256x128xbf16, #tpu.memory_space<vmem>>, %arg6: memref<1x128xf32, #tpu.memory_space<vmem>>, %arg7: memref<72x128xbf16, #tpu.memory_space<vmem>>) attributes {dimension_semantics = [#tpu.dimension_semantics<parallel>], iteration_bounds = array<i64: 1>, scalar_prefetch = 0 : i64, scratch_operands = 0 : i64, tpu.core_type = #tpu.core_type<tc>, window_params = [{transform_indices = @transform_0, window_bounds = array<i64: 72, 256>}, {transform_indices = @transform_1, window_bounds = array<i64: 72, 256>}, {transform_indices = @transform_2, window_bounds = array<i64: 72, 256>}, {transform_indices = @transform_3, window_bounds = array<i64: 72, 256>}, {pipeline_mode = #tpu.pipeline_mode<synchronous>, transform_indices = @transform_4, window_bounds = array<i64: 256, 128>}, {pipeline_mode = #tpu.pipeline_mode<synchronous>, transform_indices = @transform_5, window_bounds = array<i64: 1, 128>}, {transform_indices = @transform_6, window_bounds = array<i64: 72, 128>}]} {
    %c0 = arith.constant 0 : index
    %c0_0 = arith.constant 0 : index
    %0 = vector.load %arg5[%c0, %c0_0] : memref<256x128xbf16, #tpu.memory_space<vmem>>, vector<256x128xbf16>
    %c0_1 = arith.constant 0 : index
    %c0_2 = arith.constant 0 : index
    %1 = vector.load %arg6[%c0_1, %c0_2] : memref<1x128xf32, #tpu.memory_space<vmem>>, vector<1x128xf32>
    %c0_3 = arith.constant 0 : index
    %c0_4 = arith.constant 0 : index
    %2 = vector.load %arg1[%c0_3, %c0_4] : memref<72x256xbf16, #tpu.memory_space<vmem>>, vector<72x256xbf16>
    %cst = arith.constant dense<0.000000e+00> : vector<72x128xf32>
    %3 = tpu.matmul %2, %0, %cst {dimension_numbers = #tpu.dot_dimension_numbers<[1], [0], [0], [1], [0, 0, 1, 1], [], []>} : vector<72x256xbf16>, vector<256x128xbf16>, vector<72x128xf32> -> vector<72x128xf32>
    %4 = vector.broadcast %1 : vector<1x128xf32> to vector<72x128xf32>
    %5 = arith.addf %3, %4 : vector<72x128xf32>
    %cst_5 = arith.constant 0.000000e+00 : f32
    %6 = vector.broadcast %cst_5 : f32 to vector<72x128xf32>
    %7 = arith.maximumf %5, %6 : vector<72x128xf32>
    %c0_6 = arith.constant 0 : index
    %c0_7 = arith.constant 0 : index
    %8 = vector.load %arg2[%c0_6, %c0_7] : memref<72x256xbf16, #tpu.memory_space<vmem>>, vector<72x256xbf16>
    %cst_8 = arith.constant dense<0.000000e+00> : vector<72x128xf32>
    %9 = tpu.matmul %8, %0, %cst_8 {dimension_numbers = #tpu.dot_dimension_numbers<[1], [0], [0], [1], [0, 0, 1, 1], [], []>} : vector<72x256xbf16>, vector<256x128xbf16>, vector<72x128xf32> -> vector<72x128xf32>
    %10 = vector.broadcast %1 : vector<1x128xf32> to vector<72x128xf32>
    %11 = arith.addf %9, %10 : vector<72x128xf32>
    %cst_9 = arith.constant 0.000000e+00 : f32
    %12 = vector.broadcast %cst_9 : f32 to vector<72x128xf32>
    %13 = arith.maximumf %11, %12 : vector<72x128xf32>
    %14 = arith.maximumf %7, %13 : vector<72x128xf32>
    %c0_10 = arith.constant 0 : index
    %c0_11 = arith.constant 0 : index
    %15 = vector.load %arg3[%c0_10, %c0_11] : memref<72x256xbf16, #tpu.memory_space<vmem>>, vector<72x256xbf16>
    %cst_12 = arith.constant dense<0.000000e+00> : vector<72x128xf32>
    %16 = tpu.matmul %15, %0, %cst_12 {dimension_numbers = #tpu.dot_dimension_numbers<[1], [0], [0], [1], [0, 0, 1, 1], [], []>} : vector<72x256xbf16>, vector<256x128xbf16>, vector<72x128xf32> -> vector<72x128xf32>
    %17 = vector.broadcast %1 : vector<1x128xf32> to vector<72x128xf32>
    %18 = arith.addf %16, %17 : vector<72x128xf32>
    %cst_13 = arith.constant 0.000000e+00 : f32
    %19 = vector.broadcast %cst_13 : f32 to vector<72x128xf32>
    %20 = arith.maximumf %18, %19 : vector<72x128xf32>
    %c0_14 = arith.constant 0 : index
    %c0_15 = arith.constant 0 : index
    %21 = vector.load %arg4[%c0_14, %c0_15] : memref<72x256xbf16, #tpu.memory_space<vmem>>, vector<72x256xbf16>
    %cst_16 = arith.constant dense<0.000000e+00> : vector<72x128xf32>
    %22 = tpu.matmul %21, %0, %cst_16 {dimension_numbers = #tpu.dot_dimension_numbers<[1], [0], [0], [1], [0, 0, 1, 1], [], []>} : vector<72x256xbf16>, vector<256x128xbf16>, vector<72x128xf32> -> vector<72x128xf32>
    %23 = vector.broadcast %1 : vector<1x128xf32> to vector<72x128xf32>
    %24 = arith.addf %22, %23 : vector<72x128xf32>
    %cst_17 = arith.constant 0.000000e+00 : f32
    %25 = vector.broadcast %cst_17 : f32 to vector<72x128xf32>
    %26 = arith.maximumf %24, %25 : vector<72x128xf32>
    %27 = arith.maximumf %20, %26 : vector<72x128xf32>
    %28 = arith.maximumf %14, %27 : vector<72x128xf32>
    %29 = arith.truncf %28 : vector<72x128xf32> to vector<72x128xbf16>
    %c0_18 = arith.constant 0 : index
    %c0_19 = arith.constant 0 : index
    %30 = vector.load %arg7[%c0_18, %c0_19] : memref<72x128xbf16, #tpu.memory_space<vmem>>, vector<72x128xbf16>
    tpu.vector_store %arg7[%c0_18, %c0_19], %29 {strides = array<i32>} : memref<72x128xbf16, #tpu.memory_space<vmem>>, vector<72x128xbf16>,
    return
  }
  func.func @transform_0(%arg0: i32) -> (i32, i32) {
    %c0_i32 = arith.constant 0 : i32
    %c0_i32_0 = arith.constant 0 : i32
    return %arg0, %c0_i32 : i32, i32
  }
  func.func @transform_1(%arg0: i32) -> (i32, i32) {
    %c0_i32 = arith.constant 0 : i32
    %c0_i32_0 = arith.constant 0 : i32
    return %arg0, %c0_i32 : i32, i32
  }
  func.func @transform_2(%arg0: i32) -> (i32, i32) {
    %c0_i32 = arith.constant 0 : i32
    %c0_i32_0 = arith.constant 0 : i32
    return %arg0, %c0_i32 : i32, i32
  }
  func.func @transform_3(%arg0: i32) -> (i32, i32) {
    %c0_i32 = arith.constant 0 : i32
    %c0_i32_0 = arith.constant 0 : i32
    return %arg0, %c0_i32 : i32, i32
  }
  func.func @transform_4(%arg0: i32) -> (i32, i32) {
    %c0_i32 = arith.constant 0 : i32
    %c0_i32_0 = arith.constant 0 : i32
    %c0_i32_1 = arith.constant 0 : i32
    return %c0_i32, %c0_i32_0 : i32, i32
  }
  func.func @transform_5(%arg0: i32) -> (i32, i32) {
    %c0_i32 = arith.constant 0 : i32
    %c0_i32_0 = arith.constant 0 : i32
    %c0_i32_1 = arith.constant 0 : i32
    return %c0_i32, %c0_i32_0 : i32, i32
  }
  func.func @transform_6(%arg0: i32) -> (i32, i32) {
    %c0_i32 = arith.constant 0 : i32
    %c0_i32_0 = arith.constant 0 : i32
    return %arg0, %c0_i32 : i32, i32
  }
}

</mosaic_0001>

<llo_original>
// kernel: cnn_forward.3
$region0: #{cnn_forward.3}
  #allocation0 [shape = 'u32[]', space=smem, size = 0x4, offset = 0x4, fixed_abs, tag = 'smem constant byte address 0x4 - core index']
  #allocation1 [shape = 'u32[144,128]{1,0:T(1,128)}', space=vmem, size = 0x12000, scoped, tag = 'internal scratch']
  %s0 = inlined_call_operand.vmem [shape: bf16[392,128], index: 0, kind: input, shape index: {}]
  %s1 = inlined_call_operand.vmem [shape: bf16[392,128], index: 1, kind: input, shape index: {}]
  %s2 = inlined_call_operand.vmem [shape: bf16[392,128], index: 2, kind: input, shape index: {}]
  %s3 = inlined_call_operand.vmem [shape: bf16[392,128], index: 3, kind: input, shape index: {}]
  %s4 = inlined_call_operand.vmem [shape: bf16[128,128], index: 4, kind: input, shape index: {}]
  %s5 = inlined_call_operand.vmem [shape: f32[1,128], index: 5, kind: input, shape index: {}]
  %s6 = inlined_call_operand.vmem [shape: bf16[392,128], index: 6, kind: output, shape index: {}]
  %s7 = sld [smem:[#allocation0]]
  $region34: #{cnn_forward.3} parent=0
    _
  %s9 = ssub.s32 1, %s7
  %s10 = scalar_select 0, %s9, %s7
  // Predicated region
  $region2: #{cnn_forward.3} parent=0 // pred_check
    _
  $region3: #{cnn_forward.3} parent=0 // pred_check_branch
    %12 = sbr.rel (0) target = $region5
  $region4: #{cnn_forward.3} parent=0 // pred_region
    _
  $region5: #{cnn_forward.3} parent=0 // pred_fallthru
    _
  // Predicated region
  $region6: #{cnn_forward.3} parent=0 // pred_check
    _
  $region7: #{cnn_forward.3} parent=0 // pred_check_branch
    %14 = sbr.rel (0) target = $region9
  $region8: #{cnn_forward.3} parent=0 // pred_region
    _
  $region9: #{cnn_forward.3} parent=0 // pred_fallthru
    _
  // Predicated region
  $region10: #{cnn_forward.3} parent=0 // pred_check
    _
  $region11: #{cnn_forward.3} parent=0 // pred_check_branch
    %16 = sbr.rel (0) target = $region13
  $region12: #{cnn_forward.3} parent=0 // pred_region
    _
  $region13: #{cnn_forward.3} parent=0 // pred_fallthru
    _
  // Predicated region
  $region14: #{cnn_forward.3} parent=0 // pred_check
    _
  $region15: #{cnn_forward.3} parent=0 // pred_check_branch
    %18 = sbr.rel (0) target = $region17
  $region16: #{cnn_forward.3} parent=0 // pred_region
    _
  $region17: #{cnn_forward.3} parent=0 // pred_fallthru
    _
  // Predicated region
  $region18: #{cnn_forward.3} parent=0 // pred_check
    _
  $region19: #{cnn_forward.3} parent=0 // pred_check_branch
    %20 = sbr.rel (0) target = $region21
  $region20: #{cnn_forward.3} parent=0 // pred_region
    _
  $region21: #{cnn_forward.3} parent=0 // pred_fallthru
    _
  // Predicated region
  $region22: #{cnn_forward.3} parent=0 // pred_check
    _
  $region23: #{cnn_forward.3} parent=0 // pred_check_branch
    %22 = sbr.rel (0) target = $region25
  $region24: #{cnn_forward.3} parent=0 // pred_region
    _
  $region25: #{cnn_forward.3} parent=0 // pred_fallthru
    _
  %v24 = vld [vmem:[%s4] sm:$0xf]
  %v25 = vld [vmem:[%s4 + $0x4] sm:$0xf]
  %v26 = vld [vmem:[%s4 + $0x8] sm:$0xf]
  %v27 = vld [vmem:[%s4 + $0xc] sm:$0xf]
  %v28 = vld [vmem:[%s4 + $0x10] sm:$0xf]
  %v29 = vld [vmem:[%s4 + $0x14] sm:$0xf]
  %v30 = vld [vmem:[%s4 + $0x18] sm:$0xf]
  %v31 = vld [vmem:[%s4 + $0x1c] sm:$0xf]
  %v32 = vld [vmem:[%s4 + $0x20] sm:$0xf]
  %v33 = vld [vmem:[%s4 + $0x24] sm:$0xf]
  %v34 = vld [vmem:[%s4 + $0x28] sm:$0xf]
  %v35 = vld [vmem:[%s4 + $0x2c] sm:$0xf]
  %v36 = vld [vmem:[%s4 + $0x30] sm:$0xf]
  %v37 = vld [vmem:[%s4 + $0x34] sm:$0xf]
  %v38 = vld [vmem:[%s4 + $0x38] sm:$0xf]
  %v39 = vld [vmem:[%s4 + $0x3c] sm:$0xf]
  %v40 = vld [vmem:[%s5] sm:$0x1]
  %v41 = vld [vmem:[%s0] sm:$0xf]
  %v42 = vld [vmem:[%s0 + $0x4] sm:$0xf]
  %v43 = vld [vmem:[%s0 + $0x8] sm:$0xf]
  %v44 = vld [vmem:[%s0 + $0xc] sm:$0xf]
  %v45 = vld [vmem:[%s0 + $0x10] sm:$0xf]
  %v46 = vld [vmem:[%s0 + $0x14] sm:$0xf]
  %v47 = vld [vmem:[%s0 + $0x18] sm:$0xf]
  %v48 = vld [vmem:[%s0 + $0x1c] sm:$0xf]
  %v49 = vld [vmem:[%s0 + $0x20] sm:$0xf]
  %v50 = vld [vmem:[%s0 + $0x24] sm:$0xf]
  %v51 = vld [vmem:[%s0 + $0x28] sm:$0xf]
  %v52 = vld [vmem:[%s0 + $0x2c] sm:$0xf]
  %v53 = vld [vmem:[%s0 + $0x30] sm:$0xf]
  %v54 = vld [vmem:[%s0 + $0x34] sm:$0xf]
  %v55 = vld [vmem:[%s0 + $0x38] sm:$0xf]
  %v56 = vld [vmem:[%s0 + $0x3c] sm:$0xf]
  %v57 = vld [vmem:[%s0 + $0x40] sm:$0xf]
  %v58 = vld [vmem:[%s0 + $0x44] sm:$0xf]
  %v59 = vld [vmem:[%s0 + $0x48] sm:$0xf]
  %v60 = vld [vmem:[%s0 + $0x4c] sm:$0xf]
  %v61 = vld [vmem:[%s0 + $0x50] sm:$0xf]
  %v62 = vld [vmem:[%s0 + $0x54] sm:$0xf]
  %v63 = vld [vmem:[%s0 + $0x58] sm:$0xf]
  %v64 = vld [vmem:[%s0 + $0x5c] sm:$0xf]
  %v65 = vld [vmem:[%s0 + $0x60] sm:$0xf]
  %v66 = vld [vmem:[%s0 + $0x64] sm:$0xf]
  %v67 = vld [vmem:[%s0 + $0x68] sm:$0xf]
  %v68 = vld [vmem:[%s0 + $0x6c] sm:$0xf]
  %v69 = vld [vmem:[%s0 + $0x70] sm:$0xf]
  %v70 = vld [vmem:[%s0 + $0x74] sm:$0xf]
  %v71 = vld [vmem:[%s0 + $0x78] sm:$0xf]
  %v72 = vld [vmem:[%s0 + $0x7c] sm:$0xf]
  %v73 = vld [vmem:[%s0 + $0x80] sm:$0xf]
  %v74 = vld [vmem:[%s0 + $0x84] sm:$0xf]
  %v75 = vld [vmem:[%s0 + $0x88] sm:$0xf]
  %v76 = vld [vmem:[%s0 + $0x8c] sm:$0xf]
  %v77 = vld [vmem:[%s0 + $0x90] sm:$0xf]
  %v78 = vld [vmem:[%s0 + $0x94] sm:$0xf]
  %v79 = vld [vmem:[%s0 + $0x98] sm:$0xf]
  %v80 = vld [vmem:[%s0 + $0x9c] sm:$0xf]
  %v81 = vld [vmem:[%s0 + $0xa0] sm:$0xf]
  %v82 = vld [vmem:[%s0 + $0xa4] sm:$0xf]
  %v83 = vld [vmem:[%s0 + $0xa8] sm:$0xf]
  %v84 = vld [vmem:[%s0 + $0xac] sm:$0xf]
  %v85 = vld [vmem:[%s0 + $0xb0] sm:$0xf]
  %v86 = vld [vmem:[%s0 + $0xb4] sm:$0xf]
  %v87 = vld [vmem:[%s0 + $0xb8] sm:$0xf]
  %v88 = vld [vmem:[%s0 + $0xbc] sm:$0xf]
  %v89 = vld [vmem:[%s0 + $0xc0] sm:$0xf]
  %v91 = vlaneseq
  %v92 = vshrl.u32 %v91, 7
  %v93 = vsub.s32 0, %v92
  %v94 = vrot.slane %v40, %v93
  %v145 = vunpack.c.l.b16 %v41
  %v146 = vunpack.c.l.b16 %v42
  %v147 = vunpack.c.l.b16 %v43
  %v148 = vunpack.c.l.b16 %v44
  %v149 = vunpack.c.l.b16 %v45
  %v150 = vunpack.c.l.b16 %v46
  %v151 = vunpack.c.l.b16 %v47
  %v152 = vunpack.c.l.b16 %v48
  %v153 = vunpack.c.l.b16 %v49
  %v154 = vunpack.c.l.b16 %v50
  %v155 = vunpack.c.l.b16 %v51
  %v156 = vunpack.c.l.b16 %v52
  %v157 = vunpack.c.l.b16 %v53
  %v158 = vunpack.c.l.b16 %v54
  %v159 = vunpack.c.l.b16 %v55
  %v160 = vunpack.c.l.b16 %v56
  %v161 = vunpack.c.l.b16 %v57
  %v162 = vunpack.c.l.b16 %v58
  %v163 = vunpack.c.l.b16 %v59
  %v164 = vunpack.c.l.b16 %v60
  %v165 = vunpack.c.l.b16 %v61
  %v166 = vunpack.c.l.b16 %v62
  %v167 = vunpack.c.l.b16 %v63
  %v168 = vunpack.c.l.b16 %v64
  %v169 = vunpack.c.l.b16 %v65
  %v170 = vunpack.c.l.b16 %v66
  %v171 = vunpack.c.l.b16 %v67
  %v172 = vunpack.c.l.b16 %v68
  %v173 = vunpack.c.l.b16 %v69
  %v174 = vunpack.c.l.b16 %v70
  %v175 = vunpack.c.l.b16 %v71
  %v176 = vunpack.c.l.b16 %v72
  %v177 = vunpack.c.l.b16 %v73
  %v178 = vunpack.c.l.b16 %v74
  %v179 = vunpack.c.l.b16 %v75
  %v180 = vunpack.c.l.b16 %v76
  %v181 = vunpack.c.l.b16 %v77
  %v182 = vunpack.c.l.b16 %v78
  %v183 = vunpack.c.l.b16 %v79
  %v184 = vunpack.c.l.b16 %v80
  %v185 = vunpack.c.l.b16 %v81
  %v186 = vunpack.c.l.b16 %v82
  %v187 = vunpack.c.l.b16 %v83
  %v188 = vunpack.c.l.b16 %v84
  %v189 = vunpack.c.l.b16 %v85
  %v190 = vunpack.c.l.b16 %v86
  %v191 = vunpack.c.l.b16 %v87
  %v192 = vunpack.c.l.b16 %v88
  %v193 = vunpack.c.l.b16 %v89
  %v194 = vpack.c.b16 %v146, %v145
  %v195 = vpack.c.b16 %v148, %v147
  %v196 = vpack.c.b16 %v150, %v149
  %v197 = vpack.c.b16 %v152, %v151
  %v198 = vpack.c.b16 %v154, %v153
  %v199 = vpack.c.b16 %v156, %v155
  %v200 = vpack.c.b16 %v158, %v157
  %v201 = vpack.c.b16 %v160, %v159
  %v202 = vpack.c.b16 %v162, %v161
  %v203 = vpack.c.b16 %v164, %v163
  %v204 = vpack.c.b16 %v166, %v165
  %v205 = vpack.c.b16 %v168, %v167
  %v206 = vpack.c.b16 %v170, %v169
  %v207 = vpack.c.b16 %v172, %v171
  %v208 = vpack.c.b16 %v174, %v173
  %v209 = vpack.c.b16 %v176, %v175
  %v210 = vpack.c.b16 %v178, %v177
  %v211 = vpack.c.b16 %v180, %v179
  %v212 = vpack.c.b16 %v182, %v181
  %v213 = vpack.c.b16 %v184, %v183
  %v214 = vpack.c.b16 %v186, %v185
  %v215 = vpack.c.b16 %v188, %v187
  %v216 = vpack.c.b16 %v190, %v189
  %v217 = vpack.c.b16 %v192, %v191
  %v218 = vpack.c.b16 %v193, %v193
  %v260 = vunpack.c.l.b16 %v24
  %v261 = vunpack.c.l.b16 %v25
  %v262 = vunpack.c.l.b16 %v26
  %v263 = vunpack.c.l.b16 %v27
  %v264 = vunpack.c.l.b16 %v28
  %v265 = vunpack.c.l.b16 %v29
  %v266 = vunpack.c.l.b16 %v30
  %v267 = vunpack.c.l.b16 %v31
  %v268 = vunpack.c.l.b16 %v32
  %v269 = vunpack.c.l.b16 %v33
  %v270 = vunpack.c.l.b16 %v34
  %v271 = vunpack.c.l.b16 %v35
  %v272 = vunpack.c.l.b16 %v36
  %v273 = vunpack.c.l.b16 %v37
  %v274 = vunpack.c.l.b16 %v38
  %v275 = vunpack.c.l.b16 %v39
  %v276 = vpack.c.b16 %v261, %v260
  %v277 = vpack.c.b16 %v263, %v262
  %v278 = vpack.c.b16 %v265, %v264
  %v279 = vpack.c.b16 %v267, %v266
  %v280 = vpack.c.b16 %v269, %v268
  %v281 = vpack.c.b16 %v271, %v270
  %v282 = vpack.c.b16 %v273, %v272
  %v283 = vpack.c.b16 %v275, %v274
  %292 = vmatprep.subr.bf16.mxu0 0
  %293 = vmatpush1.bf16.msra.mxu0 %v276
  %294 = vmatprep.subr.bf16.mxu0 0
  %295 = vmatpush1.bf16.msra.mxu0 %v277
  %296 = vmatprep.subr.bf16.mxu0 0
  %297 = vmatpush1.bf16.msra.mxu0 %v278
  %298 = vmatprep.subr.bf16.mxu0 0
  %299 = vmatpush1.bf16.msra.mxu0 %v279
  %300 = vmatprep.subr.bf16.mxu0 0
  %301 = vmatpush1.bf16.msra.mxu0 %v280
  %302 = vmatprep.subr.bf16.mxu0 0
  %303 = vmatpush1.bf16.msra.mxu0 %v281
  %304 = vmatprep.subr.bf16.mxu0 0
  %305 = vmatpush1.bf16.msra.mxu0 %v282
  %306 = vmatprep.subr.bf16.mxu0 0
  %307 = vmatpush1.bf16.msra.mxu0 %v283
  %308 = vmatprep.subr.bf16.mxu0 0
  %309 = vmatpush1.bf16.msra.mxu0 0
  %310 = vmatprep.subr.bf16.mxu0 0
  %311 = vmatpush1.bf16.msra.mxu0 0
  %312 = vmatprep.subr.bf16.mxu0 0
  %313 = vmatpush1.bf16.msra.mxu0 0
  %314 = vmatprep.subr.bf16.mxu0 0
  %315 = vmatpush1.bf16.msra.mxu0 0
  %316 = vmatprep.subr.bf16.mxu0 0
  %317 = vmatpush1.bf16.msra.mxu0 0
  %318 = vmatprep.subr.bf16.mxu0 0
  %319 = vmatpush1.bf16.msra.mxu0 0
  %320 = vmatprep.subr.bf16.mxu0 0
  %321 = vmatpush1.bf16.msra.mxu0 0
  %322 = vmatprep.subr.bf16.mxu0 0
  %323 = vmatpush1.bf16.msra.mxu0 0
  %324 = vmatprep.mubr.bf16.mxu0 0
  %325 = vmatmul.mubr.bf16.gmra.mrb[0].mxu0 %v194
  %v326 = vpop.f32.mrb[0].mxu0
  %v327 = vadd.f32 %v94, %v326
  %v328 = vpop.f32.mrb[0].mxu0
  %v329 = vpop.f32.mrb[0].mxu0
  %v330 = vadd.f32 %v94, %v329
  %v331 = vpop.f32.mrb[0].mxu0
  %332 = vmatprep.mubr.bf16.mxu0 0
  %333 = vmatmul.mubr.bf16.gmra.mrb[0].mxu0 %v195
  %v334 = vpop.f32.mrb[0].mxu0
  %v335 = vadd.f32 %v94, %v334
  %v336 = vpop.f32.mrb[0].mxu0
  %v337 = vpop.f32.mrb[0].mxu0
  %v338 = vadd.f32 %v94, %v337
  %v339 = vpop.f32.mrb[0].mxu0
  %340 = vmatprep.mubr.bf16.mxu0 0
  %341 = vmatmul.mubr.bf16.gmra.mrb[0].mxu0 %v196
  %v342 = vpop.f32.mrb[0].mxu0
  %v343 = vadd.f32 %v94, %v342
  %v344 = vpop.f32.mrb[0].mxu0
  %v345 = vpop.f32.mrb[0].mxu0
  %v346 = vadd.f32 %v94, %v345
  %v347 = vpop.f32.mrb[0].mxu0
  %348 = vmatprep.mubr.bf16.mxu0 0
  %349 = vmatmul.mubr.bf16.gmra.mrb[0].mxu0 %v197
  %v350 = vpop.f32.mrb[0].mxu0
  %v351 = vadd.f32 %v94, %v350
  %v352 = vpop.f32.mrb[0].mxu0
  %v353 = vpop.f32.mrb[0].mxu0
  %v354 = vadd.f32 %v94, %v353
  %v355 = vpop.f32.mrb[0].mxu0
  %356 = vmatprep.mubr.bf16.mxu0 0
  %357 = vmatmul.mubr.bf16.gmra.mrb[0].mxu0 %v198
  %v358 = vpop.f32.mrb[0].mxu0
  %v359 = vadd.f32 %v94, %v358
  %v360 = vpop.f32.mrb[0].mxu0
  %v361 = vpop.f32.mrb[0].mxu0
  %v362 = vadd.f32 %v94, %v361
  %v363 = vpop.f32.mrb[0].mxu0
  %364 = vmatprep.mubr.bf16.mxu0 0
  %365 = vmatmul.mubr.bf16.gmra.mrb[0].mxu0 %v199
  %v366 = vpop.f32.mrb[0].mxu0
  %v367 = vadd.f32 %v94, %v366
  %v368 = vpop.f32.mrb[0].mxu0
  %v369 = vpop.f32.mrb[0].mxu0
  %v370 = vadd.f32 %v94, %v369
  %v371 = vpop.f32.mrb[0].mxu0
  %372 = vmatprep.mubr.bf16.mxu0 0
  %373 = vmatmul.mubr.bf16.gmra.mrb[0].mxu0 %v200
  %v374 = vpop.f32.mrb[0].mxu0
  %v375 = vadd.f32 %v94, %v374
  %v376 = vpop.f32.mrb[0].mxu0
  %v377 = vpop.f32.mrb[0].mxu0
  %v378 = vadd.f32 %v94, %v377
  %v379 = vpop.f32.mrb[0].mxu0
  %380 = vmatprep.mubr.bf16.mxu0 0
  %381 = vmatmul.mubr.bf16.gmra.mrb[0].mxu0 %v201
  %v382 = vpop.f32.mrb[0].mxu0
  %v383 = vadd.f32 %v94, %v382
  %v384 = vpop.f32.mrb[0].mxu0
  %v385 = vpop.f32.mrb[0].mxu0
  %v386 = vadd.f32 %v94, %v385
  %v387 = vpop.f32.mrb[0].mxu0
  %388 = vmatprep.mubr.bf16.mxu0 0
  %389 = vmatmul.mubr.bf16.gmra.mrb[0].mxu0 %v202
  %v390 = vpop.f32.mrb[0].mxu0
  %v391 = vadd.f32 %v94, %v390
  %v392 = vpop.f32.mrb[0].mxu0
  %v393 = vpop.f32.mrb[0].mxu0
  %v394 = vadd.f32 %v94, %v393
  %v395 = vpop.f32.mrb[0].mxu0
  %396 = vmatprep.mubr.bf16.mxu0 0
  %397 = vmatmul.mubr.bf16.gmra.mrb[0].mxu0 %v203
  %v398 = vpop.f32.mrb[0].mxu0
  %v399 = vadd.f32 %v94, %v398
  %v400 = vpop.f32.mrb[0].mxu0
  %v401 = vpop.f32.mrb[0].mxu0
  %v402 = vadd.f32 %v94, %v401
  %v403 = vpop.f32.mrb[0].mxu0
  %404 = vmatprep.mubr.bf16.mxu0 0
  %405 = vmatmul.mubr.bf16.gmra.mrb[0].mxu0 %v204
  %v406 = vpop.f32.mrb[0].mxu0
  %v407 = vadd.f32 %v94, %v406
  %v408 = vpop.f32.mrb[0].mxu0
  %v409 = vpop.f32.mrb[0].mxu0
  %v410 = vadd.f32 %v94, %v409
  %v411 = vpop.f32.mrb[0].mxu0
  %412 = vmatprep.mubr.bf16.mxu0 0
  %413 = vmatmul.mubr.bf16.gmra.mrb[0].mxu0 %v205
  %v414 = vpop.f32.mrb[0].mxu0
  %v415 = vadd.f32 %v94, %v414
  %v416 = vpop.f32.mrb[0].mxu0
  %v417 = vpop.f32.mrb[0].mxu0
  %v418 = vadd.f32 %v94, %v417
  %v419 = vpop.f32.mrb[0].mxu0
  %420 = vmatprep.mubr.bf16.mxu0 0
  %421 = vmatmul.mubr.bf16.gmra.mrb[0].mxu0 %v206
  %v422 = vpop.f32.mrb[0].mxu0
  %v423 = vadd.f32 %v94, %v422
  %v424 = vpop.f32.mrb[0].mxu0
  %v425 = vpop.f32.mrb[0].mxu0
  %v426 = vadd.f32 %v94, %v425
  %v427 = vpop.f32.mrb[0].mxu0
  %428 = vmatprep.mubr.bf16.mxu0 0
  %429 = vmatmul.mubr.bf16.gmra.mrb[0].mxu0 %v207
  %v430 = vpop.f32.mrb[0].mxu0
  %v431 = vadd.f32 %v94, %v430
  %v432 = vpop.f32.mrb[0].mxu0
  %v433 = vpop.f32.mrb[0].mxu0
  %v434 = vadd.f32 %v94, %v433
  %v435 = vpop.f32.mrb[0].mxu0
  %436 = vmatprep.mubr.bf16.mxu0 0
  %437 = vmatmul.mubr.bf16.gmra.mrb[0].mxu0 %v208
  %v438 = vpop.f32.mrb[0].mxu0
  %v439 = vadd.f32 %v94, %v438
  %v440 = vpop.f32.mrb[0].mxu0
  %v441 = vpop.f32.mrb[0].mxu0
  %v442 = vadd.f32 %v94, %v441
  %v443 = vpop.f32.mrb[0].mxu0
  %444 = vmatprep.mubr.bf16.mxu0 0
  %445 = vmatmul.mubr.bf16.gmra.mrb[0].mxu0 %v209
  %v446 = vpop.f32.mrb[0].mxu0
  %v447 = vadd.f32 %v94, %v446
  %v448 = vpop.f32.mrb[0].mxu0
  %v449 = vpop.f32.mrb[0].mxu0
  %v450 = vadd.f32 %v94, %v449
  %v451 = vpop.f32.mrb[0].mxu0
  %452 = vmatprep.mubr.bf16.mxu0 0
  %453 = vmatmul.mubr.bf16.gmra.mrb[0].mxu0 %v210
  %v454 = vpop.f32.mrb[0].mxu0
  %v455 = vadd.f32 %v94, %v454
  %v456 = vpop.f32.mrb[0].mxu0
  %v457 = vpop.f32.mrb[0].mxu0
  %v458 = vadd.f32 %v94, %v457
  %v459 = vpop.f32.mrb[0].mxu0
  %460 = vmatprep.mubr.bf16.mxu0 0
  %461 = vmatmul.mubr.bf16.gmra.mrb[0].mxu0 %v211
  %v462 = vpop.f32.mrb[0].mxu0
  %v463 = vadd.f32 %v94, %v462
  %v464 = vpop.f32.mrb[0].mxu0
  %v465 = vpop.f32.mrb[0].mxu0
  %v466 = vadd.f32 %v94, %v465
  %v467 = vpop.f32.mrb[0].mxu0
  %468 = vmatprep.mubr.bf16.mxu0 0
  %469 = vmatmul.mubr.bf16.gmra.mrb[0].mxu0 %v212
  %v470 = vpop.f32.mrb[0].mxu0
  %v471 = vadd.f32 %v94, %v470
  %v472 = vpop.f32.mrb[0].mxu0
  %v473 = vpop.f32.mrb[0].mxu0
  %v474 = vadd.f32 %v94, %v473
  %v475 = vpop.f32.mrb[0].mxu0
  %476 = vmatprep.mubr.bf16.mxu0 0
  %477 = vmatmul.mubr.bf16.gmra.mrb[0].mxu0 %v213
  %v478 = vpop.f32.mrb[0].mxu0
  %v479 = vadd.f32 %v94, %v478
  %v480 = vpop.f32.mrb[0].mxu0
  %v481 = vpop.f32.mrb[0].mxu0
  %v482 = vadd.f32 %v94, %v481
  %v483 = vpop.f32.mrb[0].mxu0
  %484 = vmatprep.mubr.bf16.mxu0 0
  %485 = vmatmul.mubr.bf16.gmra.mrb[0].mxu0 %v214
  %v486 = vpop.f32.mrb[0].mxu0
  %v487 = vadd.f32 %v94, %v486
  %v488 = vpop.f32.mrb[0].mxu0
  %v489 = vpop.f32.mrb[0].mxu0
  %v490 = vadd.f32 %v94, %v489
  %v491 = vpop.f32.mrb[0].mxu0
  %492 = vmatprep.mubr.bf16.mxu0 0
  %493 = vmatmul.mubr.bf16.gmra.mrb[0].mxu0 %v215
  %v494 = vpop.f32.mrb[0].mxu0
  %v495 = vadd.f32 %v94, %v494
  %v496 = vpop.f32.mrb[0].mxu0
  %v497 = vpop.f32.mrb[0].mxu0
  %v498 = vadd.f32 %v94, %v497
  %v499 = vpop.f32.mrb[0].mxu0
  %500 = vmatprep.mubr.bf16.mxu0 0
  %501 = vmatmul.mubr.bf16.gmra.mrb[0].mxu0 %v216
  %v502 = vpop.f32.mrb[0].mxu0
  %v503 = vadd.f32 %v94, %v502
  %v504 = vpop.f32.mrb[0].mxu0
  %v505 = vpop.f32.mrb[0].mxu0
  %v506 = vadd.f32 %v94, %v505
  %v507 = vpop.f32.mrb[0].mxu0
  %508 = vmatprep.mubr.bf16.mxu0 0
  %509 = vmatmul.mubr.bf16.gmra.mrb[0].mxu0 %v217
  %v510 = vpop.f32.mrb[0].mxu0
  %v511 = vadd.f32 %v94, %v510
  %v512 = vpop.f32.mrb[0].mxu0
  %v513 = vpop.f32.mrb[0].mxu0
  %v514 = vadd.f32 %v94, %v513
  %v515 = vpop.f32.mrb[0].mxu0
  %516 = vmatprep.mubr.bf16.mxu0 0
  %517 = vmatmul.mubr.bf16.gmra.mrb[0].mxu0 %v218
  %v518 = vpop.f32.mrb[0].mxu0
  %v519 = vadd.f32 %v94, %v518
  %v520 = vpop.f32.mrb[0].mxu0
  %v521 = vpop.f32.mrb[0].mxu0
  %v522 = vpop.f32.mrb[0].mxu0
  %523 = vdwg.mxu0
  %v524 = vmax.f32 %v327, 0.0
  %v525 = vmax.f32 %v330, 0.0
  %v526 = vmax.f32 %v335, 0.0
  %v527 = vmax.f32 %v338, 0.0
  %v528 = vmax.f32 %v343, 0.0
  %v529 = vmax.f32 %v346, 0.0
  %v530 = vmax.f32 %v351, 0.0
  %v531 = vmax.f32 %v354, 0.0
  %v532 = vmax.f32 %v359, 0.0
  %v533 = vmax.f32 %v362, 0.0
  %v534 = vmax.f32 %v367, 0.0
  %v535 = vmax.f32 %v370, 0.0
  %v536 = vmax.f32 %v375, 0.0
  %v537 = vmax.f32 %v378, 0.0
  %v538 = vmax.f32 %v383, 0.0
  %v539 = vmax.f32 %v386, 0.0
  %v540 = vmax.f32 %v391, 0.0
  %v541 = vmax.f32 %v394, 0.0
  %v542 = vmax.f32 %v399, 0.0
  %v543 = vmax.f32 %v402, 0.0
  %v544 = vmax.f32 %v407, 0.0
  %v545 = vmax.f32 %v410, 0.0
  %v546 = vmax.f32 %v415, 0.0
  %v547 = vmax.f32 %v418, 0.0
  %v548 = vmax.f32 %v423, 0.0
  %v549 = vmax.f32 %v426, 0.0
  %v550 = vmax.f32 %v431, 0.0
  %v551 = vmax.f32 %v434, 0.0
  %v552 = vmax.f32 %v439, 0.0
  %v553 = vmax.f32 %v442, 0.0
  %v554 = vmax.f32 %v447, 0.0
  %v555 = vmax.f32 %v450, 0.0
  %v556 = vmax.f32 %v455, 0.0
  %v557 = vmax.f32 %v458, 0.0
  %v558 = vmax.f32 %v463, 0.0
  %v559 = vmax.f32 %v466, 0.0
  %v560 = vmax.f32 %v471, 0.0
  %v561 = vmax.f32 %v474, 0.0
  %v562 = vmax.f32 %v479, 0.0
  %v563 = vmax.f32 %v482, 0.0
  %v564 = vmax.f32 %v487, 0.0
  %v565 = vmax.f32 %v490, 0.0
  %v566 = vmax.f32 %v495, 0.0
  %v567 = vmax.f32 %v498, 0.0
  %v568 = vmax.f32 %v503, 0.0
  %v569 = vmax.f32 %v506, 0.0
  %v570 = vmax.f32 %v511, 0.0
  %v571 = vmax.f32 %v514, 0.0
  %v572 = vmax.f32 %v519, 0.0
  %v573 = vld [vmem:[%s1] sm:$0xf]
  %v574 = vld [vmem:[%s1 + $0x4] sm:$0xf]
  %v575 = vld [vmem:[%s1 + $0x8] sm:$0xf]
  %v576 = vld [vmem:[%s1 + $0xc] sm:$0xf]
  %v577 = vld [vmem:[%s1 + $0x10] sm:$0xf]
  %v578 = vld [vmem:[%s1 + $0x14] sm:$0xf]
  %v579 = vld [vmem:[%s1 + $0x18] sm:$0xf]
  %v580 = vld [vmem:[%s1 + $0x1c] sm:$0xf]
  %v581 = vld [vmem:[%s1 + $0x20] sm:$0xf]
  %v582 = vld [vmem:[%s1 + $0x24] sm:$0xf]
  %v583 = vld [vmem:[%s1 + $0x28] sm:$0xf]
  %v584 = vld [vmem:[%s1 + $0x2c] sm:$0xf]
  %v585 = vld [vmem:[%s1 + $0x30] sm:$0xf]
  %v586 = vld [vmem:[%s1 + $0x34] sm:$0xf]
  %v587 = vld [vmem:[%s1 + $0x38] sm:$0xf]
  %v588 = vld [vmem:[%s1 + $0x3c] sm:$0xf]
  %v589 = vld [vmem:[%s1 + $0x40] sm:$0xf]
  %v590 = vld [vmem:[%s1 + $0x44] sm:$0xf]
  %v591 = vld [vmem:[%s1 + $0x48] sm:$0xf]
  %v592 = vld [vmem:[%s1 + $0x4c] sm:$0xf]
  %v593 = vld [vmem:[%s1 + $0x50] sm:$0xf]
  %v594 = vld [vmem:[%s1 + $0x54] sm:$0xf]
  %v595 = vld [vmem:[%s1 + $0x58] sm:$0xf]
  %v596 = vld [vmem:[%s1 + $0x5c] sm:$0xf]
  %v597 = vld [vmem:[%s1 + $0x60] sm:$0xf]
  %v598 = vld [vmem:[%s1 + $0x64] sm:$0xf]
  %v599 = vld [vmem:[%s1 + $0x68] sm:$0xf]
  %v600 = vld [vmem:[%s1 + $0x6c] sm:$0xf]
  %v601 = vld [vmem:[%s1 + $0x70] sm:$0xf]
  %v602 = vld [vmem:[%s1 + $0x74] sm:$0xf]
  %v603 = vld [vmem:[%s1 + $0x78] sm:$0xf]
  %v604 = vld [vmem:[%s1 + $0x7c] sm:$0xf]
  %v605 = vld [vmem:[%s1 + $0x80] sm:$0xf]
  %v606 = vld [vmem:[%s1 + $0x84] sm:$0xf]
  %v607 = vld [vmem:[%s1 + $0x88] sm:$0xf]
  %v608 = vld [vmem:[%s1 + $0x8c] sm:$0xf]
  %v609 = vld [vmem:[%s1 + $0x90] sm:$0xf]
  %v610 = vld [vmem:[%s1 + $0x94] sm:$0xf]
  %v611 = vld [vmem:[%s1 + $0x98] sm:$0xf]
  %v612 = vld [vmem:[%s1 + $0x9c] sm:$0xf]
  %v613 = vld [vmem:[%s1 + $0xa0] sm:$0xf]
  %v614 = vld [vmem:[%s1 + $0xa4] sm:$0xf]
  %v615 = vld [vmem:[%s1 + $0xa8] sm:$0xf]
  %v616 = vld [vmem:[%s1 + $0xac] sm:$0xf]
  %v617 = vld [vmem:[%s1 + $0xb0] sm:$0xf]
  %v618 = vld [vmem:[%s1 + $0xb4] sm:$0xf]
  %v619 = vld [vmem:[%s1 + $0xb8] sm:$0xf]
  %v620 = vld [vmem:[%s1 + $0xbc] sm:$0xf]
  %v621 = vld [vmem:[%s1 + $0xc0] sm:$0xf]
  %v671 = vunpack.c.l.b16 %v573
  %v672 = vunpack.c.l.b16 %v574
  %v673 = vunpack.c.l.b16 %v575
  %v674 = vunpack.c.l.b16 %v576
  %v675 = vunpack.c.l.b16 %v577
  %v676 = vunpack.c.l.b16 %v578
  %v677 = vunpack.c.l.b16 %v579
  %v678 = vunpack.c.l.b16 %v580
  %v679 = vunpack.c.l.b16 %v581
  %v680 = vunpack.c.l.b16 %v582
  %v681 = vunpack.c.l.b16 %v583
  %v682 = vunpack.c.l.b16 %v584
  %v683 = vunpack.c.l.b16 %v585
  %v684 = vunpack.c.l.b16 %v586
  %v685 = vunpack.c.l.b16 %v587
  %v686 = vunpack.c.l.b16 %v588
  %v687 = vunpack.c.l.b16 %v589
  %v688 = vunpack.c.l.b16 %v590
  %v689 = vunpack.c.l.b16 %v591
  %v690 = vunpack.c.l.b16 %v592
  %v691 = vunpack.c.l.b16 %v593
  %v692 = vunpack.c.l.b16 %v594
  %v693 = vunpack.c.l.b16 %v595
  %v694 = vunpack.c.l.b16 %v596
  %v695 = vunpack.c.l.b16 %v597
  %v696 = vunpack.c.l.b16 %v598
  %v697 = vunpack.c.l.b16 %v599
  %v698 = vunpack.c.l.b16 %v600
  %v699 = vunpack.c.l.b16 %v601
  %v700 = vunpack.c.l.b16 %v602
  %v701 = vunpack.c.l.b16 %v603
  %v702 = vunpack.c.l.b16 %v604
  %v703 = vunpack.c.l.b16 %v605
  %v704 = vunpack.c.l.b16 %v606
  %v705 = vunpack.c.l.b16 %v607
  %v706 = vunpack.c.l.b16 %v608
  %v707 = vunpack.c.l.b16 %v609
  %v708 = vunpack.c.l.b16 %v610
  %v709 = vunpack.c.l.b16 %v611
  %v710 = vunpack.c.l.b16 %v612
  %v711 = vunpack.c.l.b16 %v613
  %v712 = vunpack.c.l.b16 %v614
  %v713 = vunpack.c.l.b16 %v615
  %v714 = vunpack.c.l.b16 %v616
  %v715 = vunpack.c.l.b16 %v617
  %v716 = vunpack.c.l.b16 %v618
  %v717 = vunpack.c.l.b16 %v619
  %v718 = vunpack.c.l.b16 %v620
  %v719 = vunpack.c.l.b16 %v621
  %v720 = vpack.c.b16 %v672, %v671
  %v721 = vpack.c.b16 %v674, %v673
  %v722 = vpack.c.b16 %v676, %v675
  %v723 = vpack.c.b16 %v678, %v677
  %v724 = vpack.c.b16 %v680, %v679
  %v725 = vpack.c.b16 %v682, %v681
  %v726 = vpack.c.b16 %v684, %v683
  %v727 = vpack.c.b16 %v686, %v685
  %v728 = vpack.c.b16 %v688, %v687
  %v729 = vpack.c.b16 %v690, %v689
  %v730 = vpack.c.b16 %v692, %v691
  %v731 = vpack.c.b16 %v694, %v693
  %v732 = vpack.c.b16 %v696, %v695
  %v733 = vpack.c.b16 %v698, %v697
  %v734 = vpack.c.b16 %v700, %v699
  %v735 = vpack.c.b16 %v702, %v701
  %v736 = vpack.c.b16 %v704, %v703
  %v737 = vpack.c.b16 %v706, %v705
  %v738 = vpack.c.b16 %v708, %v707
  %v739 = vpack.c.b16 %v710, %v709
  %v740 = vpack.c.b16 %v712, %v711
  %v741 = vpack.c.b16 %v714, %v713
  %v742 = vpack.c.b16 %v716, %v715
  %v743 = vpack.c.b16 %v718, %v717
  %v744 = vpack.c.b16 %v719, %v719
  %770 = vmatprep.subr.bf16.mxu0 0
  %771 = vmatpush1.bf16.msra.mxu0 %v276
  %772 = vmatprep.subr.bf16.mxu0 0
  %773 = vmatpush1.bf16.msra.mxu0 %v277
  %774 = vmatprep.subr.bf16.mxu0 0
  %775 = vmatpush1.bf16.msra.mxu0 %v278
  %776 = vmatprep.subr.bf16.mxu0 0
  %777 = vmatpush1.bf16.msra.mxu0 %v279
  %778 = vmatprep.subr.bf16.mxu0 0
  %779 = vmatpush1.bf16.msra.mxu0 %v280
  %780 = vmatprep.subr.bf16.mxu0 0
  %781 = vmatpush1.bf16.msra.mxu0 %v281
  %782 = vmatprep.subr.bf16.mxu0 0
  %783 = vmatpush1.bf16.msra.mxu0 %v282
  %784 = vmatprep.subr.bf16.mxu0 0
  %785 = vmatpush1.bf16.msra.mxu0 %v283
  %786 = vmatprep.subr.bf16.mxu0 0
  %787 = vmatpush1.bf16.msra.mxu0 0
  %788 = vmatprep.subr.bf16.mxu0 0
  %789 = vmatpush1.bf16.msra.mxu0 0
  %790 = vmatprep.subr.bf16.mxu0 0
  %791 = vmatpush1.bf16.msra.mxu0 0
  %792 = vmatprep.subr.bf16.mxu0 0
  %793 = vmatpush1.bf16.msra.mxu0 0
  %794 = vmatprep.subr.bf16.mxu0 0
  %795 = vmatpush1.bf16.msra.mxu0 0
  %796 = vmatprep.subr.bf16.mxu0 0
  %797 = vmatpush1.bf16.msra.mxu0 0
  %798 = vmatprep.subr.bf16.mxu0 0
  %799 = vmatpush1.bf16.msra.mxu0 0
  %800 = vmatprep.subr.bf16.mxu0 0
  %801 = vmatpush1.bf16.msra.mxu0 0
  %802 = vmatprep.mubr.bf16.mxu0 0
  %803 = vmatmul.mubr.bf16.gmra.mrb[0].mxu0 %v720
  %v804 = vpop.f32.mrb[0].mxu0
  %v805 = vadd.f32 %v94, %v804
  %v806 = vpop.f32.mrb[0].mxu0
  %v807 = vpop.f32.mrb[0].mxu0
  %v808 = vadd.f32 %v94, %v807
  %v809 = vpop.f32.mrb[0].mxu0
  %810 = vmatprep.mubr.bf16.mxu0 0
  %811 = vmatmul.mubr.bf16.gmra.mrb[0].mxu0 %v721
  %v812 = vpop.f32.mrb[0].mxu0
  %v813 = vadd.f32 %v94, %v812
  %v814 = vpop.f32.mrb[0].mxu0
  %v815 = vpop.f32.mrb[0].mxu0
  %v816 = vadd.f32 %v94, %v815
  %v817 = vpop.f32.mrb[0].mxu0
  %818 = vmatprep.mubr.bf16.mxu0 0
  %819 = vmatmul.mubr.bf16.gmra.mrb[0].mxu0 %v722
  %v820 = vpop.f32.mrb[0].mxu0
  %v821 = vadd.f32 %v94, %v820
  %v822 = vpop.f32.mrb[0].mxu0
  %v823 = vpop.f32.mrb[0].mxu0
  %v824 = vadd.f32 %v94, %v823
  %v825 = vpop.f32.mrb[0].mxu0
  %826 = vmatprep.mubr.bf16.mxu0 0
  %827 = vmatmul.mubr.bf16.gmra.mrb[0].mxu0 %v723
  %v828 = vpop.f32.mrb[0].mxu0
  %v829 = vadd.f32 %v94, %v828
  %v830 = vpop.f32.mrb[0].mxu0
  %v831 = vpop.f32.mrb[0].mxu0
  %v832 = vadd.f32 %v94, %v831
  %v833 = vpop.f32.mrb[0].mxu0
  %834 = vmatprep.mubr.bf16.mxu0 0
  %835 = vmatmul.mubr.bf16.gmra.mrb[0].mxu0 %v724
  %v836 = vpop.f32.mrb[0].mxu0
  %v837 = vadd.f32 %v94, %v836
  %v838 = vpop.f32.mrb[0].mxu0
  %v839 = vpop.f32.mrb[0].mxu0
  %v840 = vadd.f32 %v94, %v839
  %v841 = vpop.f32.mrb[0].mxu0
  %842 = vmatprep.mubr.bf16.mxu0 0
  %843 = vmatmul.mubr.bf16.gmra.mrb[0].mxu0 %v725
  %v844 = vpop.f32.mrb[0].mxu0
  %v845 = vadd.f32 %v94, %v844
  %v846 = vpop.f32.mrb[0].mxu0
  %v847 = vpop.f32.mrb[0].mxu0
  %v848 = vadd.f32 %v94, %v847
  %v849 = vpop.f32.mrb[0].mxu0
  %850 = vmatprep.mubr.bf16.mxu0 0
  %851 = vmatmul.mubr.bf16.gmra.mrb[0].mxu0 %v726
  %v852 = vpop.f32.mrb[0].mxu0
  %v853 = vadd.f32 %v94, %v852
  %v854 = vpop.f32.mrb[0].mxu0
  %v855 = vpop.f32.mrb[0].mxu0
  %v856 = vadd.f32 %v94, %v855
  %v857 = vpop.f32.mrb[0].mxu0
  %858 = vmatprep.mubr.bf16.mxu0 0
  %859 = vmatmul.mubr.bf16.gmra.mrb[0].mxu0 %v727
  %v860 = vpop.f32.mrb[0].mxu0
  %v861 = vadd.f32 %v94, %v860
  %v862 = vpop.f32.mrb[0].mxu0
  %v863 = vpop.f32.mrb[0].mxu0
  %v864 = vadd.f32 %v94, %v863
  %v865 = vpop.f32.mrb[0].mxu0
  %866 = vmatprep.mubr.bf16.mxu0 0
  %867 = vmatmul.mubr.bf16.gmra.mrb[0].mxu0 %v728
  %v868 = vpop.f32.mrb[0].mxu0
  %v869 = vadd.f32 %v94, %v868
  %v870 = vpop.f32.mrb[0].mxu0
  %v871 = vpop.f32.mrb[0].mxu0
  %v872 = vadd.f32 %v94, %v871
  %v873 = vpop.f32.mrb[0].mxu0
  %874 = vmatprep.mubr.bf16.mxu0 0
  %875 = vmatmul.mubr.bf16.gmra.mrb[0].mxu0 %v729
  %v876 = vpop.f32.mrb[0].mxu0
  %v877 = vadd.f32 %v94, %v876
  %v878 = vpop.f32.mrb[0].mxu0
  %v879 = vpop.f32.mrb[0].mxu0
  %v880 = vadd.f32 %v94, %v879
  %v881 = vpop.f32.mrb[0].mxu0
  %882 = vmatprep.mubr.bf16.mxu0 0
  %883 = vmatmul.mubr.bf16.gmra.mrb[0].mxu0 %v730
  %v884 = vpop.f32.mrb[0].mxu0
  %v885 = vadd.f32 %v94, %v884
  %v886 = vpop.f32.mrb[0].mxu0
  %v887 = vpop.f32.mrb[0].mxu0
  %v888 = vadd.f32 %v94, %v887
  %v889 = vpop.f32.mrb[0].mxu0
  %890 = vmatprep.mubr.bf16.mxu0 0
  %891 = vmatmul.mubr.bf16.gmra.mrb[0].mxu0 %v731
  %v892 = vpop.f32.mrb[0].mxu0
  %v893 = vadd.f32 %v94, %v892
  %v894 = vpop.f32.mrb[0].mxu0
  %v895 = vpop.f32.mrb[0].mxu0
  %v896 = vadd.f32 %v94, %v895
  %v897 = vpop.f32.mrb[0].mxu0
  %898 = vmatprep.mubr.bf16.mxu0 0
  %899 = vmatmul.mubr.bf16.gmra.mrb[0].mxu0 %v732
  %v900 = vpop.f32.mrb[0].mxu0
  %v901 = vadd.f32 %v94, %v900
  %v902 = vpop.f32.mrb[0].mxu0
  %v903 = vpop.f32.mrb[0].mxu0
  %v904 = vadd.f32 %v94, %v903
  %v905 = vpop.f32.mrb[0].mxu0
  %906 = vmatprep.mubr.bf16.mxu0 0
  %907 = vmatmul.mubr.bf16.gmra.mrb[0].mxu0 %v733
  %v908 = vpop.f32.mrb[0].mxu0
  %v909 = vadd.f32 %v94, %v908
  %v910 = vpop.f32.mrb[0].mxu0
  %v911 = vpop.f32.mrb[0].mxu0
  %v912 = vadd.f32 %v94, %v911
  %v913 = vpop.f32.mrb[0].mxu0
  %914 = vmatprep.mubr.bf16.mxu0 0
  %915 = vmatmul.mubr.bf16.gmra.mrb[0].mxu0 %v734
  %v916 = vpop.f32.mrb[0].mxu0
  %v917 = vadd.f32 %v94, %v916
  %v918 = vpop.f32.mrb[0].mxu0
  %v919 = vpop.f32.mrb[0].mxu0
  %v920 = vadd.f32 %v94, %v919
  %v921 = vpop.f32.mrb[0].mxu0
  %922 = vmatprep.mubr.bf16.mxu0 0
  %923 = vmatmul.mubr.bf16.gmra.mrb[0].mxu0 %v735
  %v924 = vpop.f32.mrb[0].mxu0
  %v925 = vadd.f32 %v94, %v924
  %v926 = vpop.f32.mrb[0].mxu0
  %v927 = vpop.f32.mrb[0].mxu0
  %v928 = vadd.f32 %v94, %v927
  %v929 = vpop.f32.mrb[0].mxu0
  %930 = vmatprep.mubr.bf16.mxu0 0
  %931 = vmatmul.mubr.bf16.gmra.mrb[0].mxu0 %v736
  %v932 = vpop.f32.mrb[0].mxu0
  %v933 = vadd.f32 %v94, %v932
  %v934 = vpop.f32.mrb[0].mxu0
  %v935 = vpop.f32.mrb[0].mxu0
  %v936 = vadd.f32 %v94, %v935
  %v937 = vpop.f32.mrb[0].mxu0
  %938 = vmatprep.mubr.bf16.mxu0 0
  %939 = vmatmul.mubr.bf16.gmra.mrb[0].mxu0 %v737
  %v940 = vpop.f32.mrb[0].mxu0
  %v941 = vadd.f32 %v94, %v940
  %v942 = vpop.f32.mrb[0].mxu0
  %v943 = vpop.f32.mrb[0].mxu0
  %v944 = vadd.f32 %v94, %v943
  %v945 = vpop.f32.mrb[0].mxu0
  %946 = vmatprep.mubr.bf16.mxu0 0
  %947 = vmatmul.mubr.bf16.gmra.mrb[0].mxu0 %v738
  %v948 = vpop.f32.mrb[0].mxu0
  %v949 = vadd.f32 %v94, %v948
  %v950 = vpop.f32.mrb[0].mxu0
  %v951 = vpop.f32.mrb[0].mxu0
  %v952 = vadd.f32 %v94, %v951
  %v953 = vpop.f32.mrb[0].mxu0
  %954 = vmatprep.mubr.bf16.mxu0 0
  %955 = vmatmul.mubr.bf16.gmra.mrb[0].mxu0 %v739
  %v956 = vpop.f32.mrb[0].mxu0
  %v957 = vadd.f32 %v94, %v956
  %v958 = vpop.f32.mrb[0].mxu0
  %v959 = vpop.f32.mrb[0].mxu0
  %v960 = vadd.f32 %v94, %v959
  %v961 = vpop.f32.mrb[0].mxu0
  %962 = vmatprep.mubr.bf16.mxu0 0
  %963 = vmatmul.mubr.bf16.gmra.mrb[0].mxu0 %v740
  %v964 = vpop.f32.mrb[0].mxu0
  %v965 = vadd.f32 %v94, %v964
  %v966 = vpop.f32.mrb[0].mxu0
  %v967 = vpop.f32.mrb[0].mxu0
  %v968 = vadd.f32 %v94, %v967
  %v969 = vpop.f32.mrb[0].mxu0
  %970 = vmatprep.mubr.bf16.mxu0 0
  %971 = vmatmul.mubr.bf16.gmra.mrb[0].mxu0 %v741
  %v972 = vpop.f32.mrb[0].mxu0
  %v973 = vadd.f32 %v94, %v972
  %v974 = vpop.f32.mrb[0].mxu0
  %v975 = vpop.f32.mrb[0].mxu0
  %v976 = vadd.f32 %v94, %v975
  %v977 = vpop.f32.mrb[0].mxu0
  %978 = vmatprep.mubr.bf16.mxu0 0
  %979 = vmatmul.mubr.bf16.gmra.mrb[0].mxu0 %v742
  %v980 = vpop.f32.mrb[0].mxu0
  %v981 = vadd.f32 %v94, %v980
  %v982 = vpop.f32.mrb[0].mxu0
  %v983 = vpop.f32.mrb[0].mxu0
  %v984 = vadd.f32 %v94, %v983
  %v985 = vpop.f32.mrb[0].mxu0
  %986 = vmatprep.mubr.bf16.mxu0 0
  %987 = vmatmul.mubr.bf16.gmra.mrb[0].mxu0 %v743
  %v988 = vpop.f32.mrb[0].mxu0
  %v989 = vadd.f32 %v94, %v988
  %v990 = vpop.f32.mrb[0].mxu0
  %v991 = vpop.f32.mrb[0].mxu0
  %v992 = vadd.f32 %v94, %v991
  %v993 = vpop.f32.mrb[0].mxu0
  %994 = vmatprep.mubr.bf16.mxu0 0
  %995 = vmatmul.mubr.bf16.gmra.mrb[0].mxu0 %v744
  %v996 = vpop.f32.mrb[0].mxu0
  %v997 = vadd.f32 %v94, %v996
  %v998 = vpop.f32.mrb[0].mxu0
  %v999 = vpop.f32.mrb[0].mxu0
  %v1000 = vpop.f32.mrb[0].mxu0
  %1001 = vdwg.mxu0
  %v1002 = vmax.f32 %v805, 0.0
  %v1003 = vmax.f32 %v808, 0.0
  %v1004 = vmax.f32 %v813, 0.0
  %v1005 = vmax.f32 %v816, 0.0
  %v1006 = vmax.f32 %v821, 0.0
  %v1007 = vmax.f32 %v824, 0.0
  %v1008 = vmax.f32 %v829, 0.0
  %v1009 = vmax.f32 %v832, 0.0
  %v1010 = vmax.f32 %v837, 0.0
  %v1011 = vmax.f32 %v840, 0.0
  %v1012 = vmax.f32 %v845, 0.0
  %v1013 = vmax.f32 %v848, 0.0
  %v1014 = vmax.f32 %v853, 0.0
  %v1015 = vmax.f32 %v856, 0.0
  %v1016 = vmax.f32 %v861, 0.0
  %v1017 = vmax.f32 %v864, 0.0
  %v1018 = vmax.f32 %v869, 0.0
  %v1019 = vmax.f32 %v872, 0.0
  %v1020 = vmax.f32 %v877, 0.0
  %v1021 = vmax.f32 %v880, 0.0
  %v1022 = vmax.f32 %v885, 0.0
  %v1023 = vmax.f32 %v888, 0.0
  %v1024 = vmax.f32 %v893, 0.0
  %v1025 = vmax.f32 %v896, 0.0
  %v1026 = vmax.f32 %v901, 0.0
  %v1027 = vmax.f32 %v904, 0.0
  %v1028 = vmax.f32 %v909, 0.0
  %v1029 = vmax.f32 %v912, 0.0
  %v1030 = vmax.f32 %v917, 0.0
  %v1031 = vmax.f32 %v920, 0.0
  %v1032 = vmax.f32 %v925, 0.0
  %v1033 = vmax.f32 %v928, 0.0
  %v1034 = vmax.f32 %v933, 0.0
  %v1035 = vmax.f32 %v936, 0.0
  %v1036 = vmax.f32 %v941, 0.0
  %v1037 = vmax.f32 %v944, 0.0
  %v1038 = vmax.f32 %v949, 0.0
  %v1039 = vmax.f32 %v952, 0.0
  %v1040 = vmax.f32 %v957, 0.0
  %v1041 = vmax.f32 %v960, 0.0
  %v1042 = vmax.f32 %v965, 0.0
  %v1043 = vmax.f32 %v968, 0.0
  %v1044 = vmax.f32 %v973, 0.0
  %v1045 = vmax.f32 %v976, 0.0
  %v1046 = vmax.f32 %v981, 0.0
  %v1047 = vmax.f32 %v984, 0.0
  %v1048 = vmax.f32 %v989, 0.0
  %v1049 = vmax.f32 %v992, 0.0
  %v1050 = vmax.f32 %v997, 0.0
  %v1051 = vmax.f32 %v524, %v1002
  %v1052 = vmax.f32 %v525, %v1003
  %v1053 = vmax.f32 %v526, %v1004
  %v1054 = vmax.f32 %v527, %v1005
  %v1055 = vmax.f32 %v528, %v1006
  %v1056 = vmax.f32 %v529, %v1007
  %v1057 = vmax.f32 %v530, %v1008
  %v1058 = vmax.f32 %v531, %v1009
  %v1059 = vmax.f32 %v532, %v1010
  %v1060 = vmax.f32 %v533, %v1011
  %v1061 = vmax.f32 %v534, %v1012
  %v1062 = vmax.f32 %v535, %v1013
  %v1063 = vmax.f32 %v536, %v1014
  %v1064 = vmax.f32 %v537, %v1015
  %v1065 = vmax.f32 %v538, %v1016
  %v1066 = vmax.f32 %v539, %v1017
  %v1067 = vmax.f32 %v540, %v1018
  %v1068 = vmax.f32 %v541, %v1019
  %v1069 = vmax.f32 %v542, %v1020
  %v1070 = vmax.f32 %v543, %v1021
  %v1071 = vmax.f32 %v544, %v1022
  %v1072 = vmax.f32 %v545, %v1023
  %v1073 = vmax.f32 %v546, %v1024
  %v1074 = vmax.f32 %v547, %v1025
  %v1075 = vmax.f32 %v548, %v1026
  %v1076 = vmax.f32 %v549, %v1027
  %v1077 = vmax.f32 %v550, %v1028
  %v1078 = vmax.f32 %v551, %v1029
  %v1079 = vmax.f32 %v552, %v1030
  %v1080 = vmax.f32 %v553, %v1031
  %v1081 = vmax.f32 %v554, %v1032
  %v1082 = vmax.f32 %v555, %v1033
  %v1083 = vmax.f32 %v556, %v1034
  %v1084 = vmax.f32 %v557, %v1035
  %v1085 = vmax.f32 %v558, %v1036
  %v1086 = vmax.f32 %v559, %v1037
  %v1087 = vmax.f32 %v560, %v1038
  %v1088 = vmax.f32 %v561, %v1039
  %v1089 = vmax.f32 %v562, %v1040
  %v1090 = vmax.f32 %v563, %v1041
  %v1091 = vmax.f32 %v564, %v1042
  %v1092 = vmax.f32 %v565, %v1043
  %v1093 = vmax.f32 %v566, %v1044
  %v1094 = vmax.f32 %v567, %v1045
  %v1095 = vmax.f32 %v568, %v1046
  %v1096 = vmax.f32 %v569, %v1047
  %v1097 = vmax.f32 %v570, %v1048
  %v1098 = vmax.f32 %v571, %v1049
  %v1099 = vmax.f32 %v572, %v1050
  %v1100 = vld [vmem:[%s2] sm:$0xf]
  %v1101 = vld [vmem:[%s2 + $0x4] sm:$0xf]
  %v1102 = vld [vmem:[%s2 + $0x8] sm:$0xf]
  %v1103 = vld [vmem:[%s2 + $0xc] sm:$0xf]
  %v1104 = vld [vmem:[%s2 + $0x10] sm:$0xf]
  %v1105 = vld [vmem:[%s2 + $0x14] sm:$0xf]
  %v1106 = vld [vmem:[%s2 + $0x18] sm:$0xf]
  %v1107 = vld [vmem:[%s2 + $0x1c] sm:$0xf]
  %v1108 = vld [vmem:[%s2 + $0x20] sm:$0xf]
  %v1109 = vld [vmem:[%s2 + $0x24] sm:$0xf]
  %v1110 = vld [vmem:[%s2 + $0x28] sm:$0xf]
  %v1111 = vld [vmem:[%s2 + $0x2c] sm:$0xf]
  %v1112 = vld [vmem:[%s2 + $0x30] sm:$0xf]
  %v1113 = vld [vmem:[%s2 + $0x34] sm:$0xf]
  %v1114 = vld [vmem:[%s2 + $0x38] sm:$0xf]
  %v1115 = vld [vmem:[%s2 + $0x3c] sm:$0xf]
  %v1116 = vld [vmem:[%s2 + $0x40] sm:$0xf]
  %v1117 = vld [vmem:[%s2 + $0x44] sm:$0xf]
  %v1118 = vld [vmem:[%s2 + $0x48] sm:$0xf]
  %v1119 = vld [vmem:[%s2 + $0x4c] sm:$0xf]
  %v1120 = vld [vmem:[%s2 + $0x50] sm:$0xf]
  %v1121 = vld [vmem:[%s2 + $0x54] sm:$0xf]
  %v1122 = vld [vmem:[%s2 + $0x58] sm:$0xf]
  %v1123 = vld [vmem:[%s2 + $0x5c] sm:$0xf]
  %v1124 = vld [vmem:[%s2 + $0x60] sm:$0xf]
  %v1125 = vld [vmem:[%s2 + $0x64] sm:$0xf]
  %v1126 = vld [vmem:[%s2 + $0x68] sm:$0xf]
  %v1127 = vld [vmem:[%s2 + $0x6c] sm:$0xf]
  %v1128 = vld [vmem:[%s2 + $0x70] sm:$0xf]
  %v1129 = vld [vmem:[%s2 + $0x74] sm:$0xf]
  %v1130 = vld [vmem:[%s2 + $0x78] sm:$0xf]
  %v1131 = vld [vmem:[%s2 + $0x7c] sm:$0xf]
  %v1132 = vld [vmem:[%s2 + $0x80] sm:$0xf]
  %v1133 = vld [vmem:[%s2 + $0x84] sm:$0xf]
  %v1134 = vld [vmem:[%s2 + $0x88] sm:$0xf]
  %v1135 = vld [vmem:[%s2 + $0x8c] sm:$0xf]
  %v1136 = vld [vmem:[%s2 + $0x90] sm:$0xf]
  %v1137 = vld [vmem:[%s2 + $0x94] sm:$0xf]
  %v1138 = vld [vmem:[%s2 + $0x98] sm:$0xf]
  %v1139 = vld [vmem:[%s2 + $0x9c] sm:$0xf]
  %v1140 = vld [vmem:[%s2 + $0xa0] sm:$0xf]
  %v1141 = vld [vmem:[%s2 + $0xa4] sm:$0xf]
  %v1142 = vld [vmem:[%s2 + $0xa8] sm:$0xf]
  %v1143 = vld [vmem:[%s2 + $0xac] sm:$0xf]
  %v1144 = vld [vmem:[%s2 + $0xb0] sm:$0xf]
  %v1145 = vld [vmem:[%s2 + $0xb4] sm:$0xf]
  %v1146 = vld [vmem:[%s2 + $0xb8] sm:$0xf]
  %v1147 = vld [vmem:[%s2 + $0xbc] sm:$0xf]
  %v1148 = vld [vmem:[%s2 + $0xc0] sm:$0xf]
  %v1198 = vunpack.c.l.b16 %v1100
  %v1199 = vunpack.c.l.b16 %v1101
  %v1200 = vunpack.c.l.b16 %v1102
  %v1201 = vunpack.c.l.b16 %v1103
  %v1202 = vunpack.c.l.b16 %v1104
  %v1203 = vunpack.c.l.b16 %v1105
  %v1204 = vunpack.c.l.b16 %v1106
  %v1205 = vunpack.c.l.b16 %v1107
  %v1206 = vunpack.c.l.b16 %v1108
  %v1207 = vunpack.c.l.b16 %v1109
  %v1208 = vunpack.c.l.b16 %v1110
  %v1209 = vunpack.c.l.b16 %v1111
  %v1210 = vunpack.c.l.b16 %v1112
  %v1211 = vunpack.c.l.b16 %v1113
  %v1212 = vunpack.c.l.b16 %v1114
  %v1213 = vunpack.c.l.b16 %v1115
  %v1214 = vunpack.c.l.b16 %v1116
  %v1215 = vunpack.c.l.b16 %v1117
  %v1216 = vunpack.c.l.b16 %v1118
  %v1217 = vunpack.c.l.b16 %v1119
  %v1218 = vunpack.c.l.b16 %v1120
  %v1219 = vunpack.c.l.b16 %v1121
  %v1220 = vunpack.c.l.b16 %v1122
  %v1221 = vunpack.c.l.b16 %v1123
  %v1222 = vunpack.c.l.b16 %v1124
  %v1223 = vunpack.c.l.b16 %v1125
  %v1224 = vunpack.c.l.b16 %v1126
  %v1225 = vunpack.c.l.b16 %v1127
  %v1226 = vunpack.c.l.b16 %v1128
  %v1227 = vunpack.c.l.b16 %v1129
  %v1228 = vunpack.c.l.b16 %v1130
  %v1229 = vunpack.c.l.b16 %v1131
  %v1230 = vunpack.c.l.b16 %v1132
  %v1231 = vunpack.c.l.b16 %v1133
  %v1232 = vunpack.c.l.b16 %v1134
  %v1233 = vunpack.c.l.b16 %v1135
  %v1234 = vunpack.c.l.b16 %v1136
  %v1235 = vunpack.c.l.b16 %v1137
  %v1236 = vunpack.c.l.b16 %v1138
  %v1237 = vunpack.c.l.b16 %v1139
  %v1238 = vunpack.c.l.b16 %v1140
  %v1239 = vunpack.c.l.b16 %v1141
  %v1240 = vunpack.c.l.b16 %v1142
  %v1241 = vunpack.c.l.b16 %v1143
  %v1242 = vunpack.c.l.b16 %v1144
  %v1243 = vunpack.c.l.b16 %v1145
  %v1244 = vunpack.c.l.b16 %v1146
  %v1245 = vunpack.c.l.b16 %v1147
  %v1246 = vunpack.c.l.b16 %v1148
  %v1247 = vpack.c.b16 %v1199, %v1198
  %v1248 = vpack.c.b16 %v1201, %v1200
  %v1249 = vpack.c.b16 %v1203, %v1202
  %v1250 = vpack.c.b16 %v1205, %v1204
  %v1251 = vpack.c.b16 %v1207, %v1206
  %v1252 = vpack.c.b16 %v1209, %v1208
  %v1253 = vpack.c.b16 %v1211, %v1210
  %v1254 = vpack.c.b16 %v1213, %v1212
  %v1255 = vpack.c.b16 %v1215, %v1214
  %v1256 = vpack.c.b16 %v1217, %v1216
  %v1257 = vpack.c.b16 %v1219, %v1218
  %v1258 = vpack.c.b16 %v1221, %v1220
  %v1259 = vpack.c.b16 %v1223, %v1222
  %v1260 = vpack.c.b16 %v1225, %v1224
  %v1261 = vpack.c.b16 %v1227, %v1226
  %v1262 = vpack.c.b16 %v1229, %v1228
  %v1263 = vpack.c.b16 %v1231, %v1230
  %v1264 = vpack.c.b16 %v1233, %v1232
  %v1265 = vpack.c.b16 %v1235, %v1234
  %v1266 = vpack.c.b16 %v1237, %v1236
  %v1267 = vpack.c.b16 %v1239, %v1238
  %v1268 = vpack.c.b16 %v1241, %v1240
  %v1269 = vpack.c.b16 %v1243, %v1242
  %v1270 = vpack.c.b16 %v1245, %v1244
  %v1271 = vpack.c.b16 %v1246, %v1246
  %1297 = vmatprep.subr.bf16.mxu0 0
  %1298 = vmatpush1.bf16.msra.mxu0 %v276
  %1299 = vmatprep.subr.bf16.mxu0 0
  %1300 = vmatpush1.bf16.msra.mxu0 %v277
  %1301 = vmatprep.subr.bf16.mxu0 0
  %1302 = vmatpush1.bf16.msra.mxu0 %v278
  %1303 = vmatprep.subr.bf16.mxu0 0
  %1304 = vmatpush1.bf16.msra.mxu0 %v279
  %1305 = vmatprep.subr.bf16.mxu0 0
  %1306 = vmatpush1.bf16.msra.mxu0 %v280
  %1307 = vmatprep.subr.bf16.mxu0 0
  %1308 = vmatpush1.bf16.msra.mxu0 %v281
  %1309 = vmatprep.subr.bf16.mxu0 0
  %1310 = vmatpush1.bf16.msra.mxu0 %v282
  %1311 = vmatprep.subr.bf16.mxu0 0
  %1312 = vmatpush1.bf16.msra.mxu0 %v283
  %1313 = vmatprep.subr.bf16.mxu0 0
  %1314 = vmatpush1.bf16.msra.mxu0 0
  %1315 = vmatprep.subr.bf16.mxu0 0
  %1316 = vmatpush1.bf16.msra.mxu0 0
  %1317 = vmatprep.subr.bf16.mxu0 0
  %1318 = vmatpush1.bf16.msra.mxu0 0
  %1319 = vmatprep.subr.bf16.mxu0 0
  %1320 = vmatpush1.bf16.msra.mxu0 0
  %1321 = vmatprep.subr.bf16.mxu0 0
  %1322 = vmatpush1.bf16.msra.mxu0 0
  %1323 = vmatprep.subr.bf16.mxu0 0
  %1324 = vmatpush1.bf16.msra.mxu0 0
  %1325 = vmatprep.subr.bf16.mxu0 0
  %1326 = vmatpush1.bf16.msra.mxu0 0
  %1327 = vmatprep.subr.bf16.mxu0 0
  %1328 = vmatpush1.bf16.msra.mxu0 0
  %1329 = vmatprep.mubr.bf16.mxu0 0
  %1330 = vmatmul.mubr.bf16.gmra.mrb[0].mxu0 %v1247
  %v1331 = vpop.f32.mrb[0].mxu0
  %v1332 = vadd.f32 %v94, %v1331
  %v1333 = vpop.f32.mrb[0].mxu0
  %v1334 = vpop.f32.mrb[0].mxu0
  %v1335 = vadd.f32 %v94, %v1334
  %v1336 = vpop.f32.mrb[0].mxu0
  %1337 = vmatprep.mubr.bf16.mxu0 0
  %1338 = vmatmul.mubr.bf16.gmra.mrb[0].mxu0 %v1248
  %v1339 = vpop.f32.mrb[0].mxu0
  %v1340 = vadd.f32 %v94, %v1339
  %v1341 = vpop.f32.mrb[0].mxu0
  %v1342 = vpop.f32.mrb[0].mxu0
  %v1343 = vadd.f32 %v94, %v1342
  %v1344 = vpop.f32.mrb[0].mxu0
  %1345 = vmatprep.mubr.bf16.mxu0 0
  %1346 = vmatmul.mubr.bf16.gmra.mrb[0].mxu0 %v1249
  %v1347 = vpop.f32.mrb[0].mxu0
  %v1348 = vadd.f32 %v94, %v1347
  %v1349 = vpop.f32.mrb[0].mxu0
  %v1350 = vpop.f32.mrb[0].mxu0
  %v1351 = vadd.f32 %v94, %v1350
  %v1352 = vpop.f32.mrb[0].mxu0
  %1353 = vmatprep.mubr.bf16.mxu0 0
  %1354 = vmatmul.mubr.bf16.gmra.mrb[0].mxu0 %v1250
  %v1355 = vpop.f32.mrb[0].mxu0
  %v1356 = vadd.f32 %v94, %v1355
  %v1357 = vpop.f32.mrb[0].mxu0
  %v1358 = vpop.f32.mrb[0].mxu0
  %v1359 = vadd.f32 %v94, %v1358
  %v1360 = vpop.f32.mrb[0].mxu0
  %1361 = vmatprep.mubr.bf16.mxu0 0
  %1362 = vmatmul.mubr.bf16.gmra.mrb[0].mxu0 %v1251
  %v1363 = vpop.f32.mrb[0].mxu0
  %v1364 = vadd.f32 %v94, %v1363
  %v1365 = vpop.f32.mrb[0].mxu0
  %v1366 = vpop.f32.mrb[0].mxu0
  %v1367 = vadd.f32 %v94, %v1366
  %v1368 = vpop.f32.mrb[0].mxu0
  %1369 = vmatprep.mubr.bf16.mxu0 0
  %1370 = vmatmul.mubr.bf16.gmra.mrb[0].mxu0 %v1252
  %v1371 = vpop.f32.mrb[0].mxu0
  %v1372 = vadd.f32 %v94, %v1371
  %v1373 = vpop.f32.mrb[0].mxu0
  %v1374 = vpop.f32.mrb[0].mxu0
  %v1375 = vadd.f32 %v94, %v1374
  %v1376 = vpop.f32.mrb[0].mxu0
  %1377 = vmatprep.mubr.bf16.mxu0 0
  %1378 = vmatmul.mubr.bf16.gmra.mrb[0].mxu0 %v1253
  %v1379 = vpop.f32.mrb[0].mxu0
  %v1380 = vadd.f32 %v94, %v1379
  %v1381 = vpop.f32.mrb[0].mxu0
  %v1382 = vpop.f32.mrb[0].mxu0
  %v1383 = vadd.f32 %v94, %v1382
  %v1384 = vpop.f32.mrb[0].mxu0
  %1385 = vmatprep.mubr.bf16.mxu0 0
  %1386 = vmatmul.mubr.bf16.gmra.mrb[0].mxu0 %v1254
  %v1387 = vpop.f32.mrb[0].mxu0
  %v1388 = vadd.f32 %v94, %v1387
  %v1389 = vpop.f32.mrb[0].mxu0
  %v1390 = vpop.f32.mrb[0].mxu0
  %v1391 = vadd.f32 %v94, %v1390
  %v1392 = vpop.f32.mrb[0].mxu0
  %1393 = vmatprep.mubr.bf16.mxu0 0
  %1394 = vmatmul.mubr.bf16.gmra.mrb[0].mxu0 %v1255
  %v1395 = vpop.f32.mrb[0].mxu0
  %v1396 = vadd.f32 %v94, %v1395
  %v1397 = vpop.f32.mrb[0].mxu0
  %v1398 = vpop.f32.mrb[0].mxu0
  %v1399 = vadd.f32 %v94, %v1398
  %v1400 = vpop.f32.mrb[0].mxu0
  %1401 = vmatprep.mubr.bf16.mxu0 0
  %1402 = vmatmul.mubr.bf16.gmra.mrb[0].mxu0 %v1256
  %v1403 = vpop.f32.mrb[0].mxu0
  %v1404 = vadd.f32 %v94, %v1403
  %v1405 = vpop.f32.mrb[0].mxu0
  %v1406 = vpop.f32.mrb[0].mxu0
  %v1407 = vadd.f32 %v94, %v1406
  %v1408 = vpop.f32.mrb[0].mxu0
  %1409 = vmatprep.mubr.bf16.mxu0 0
  %1410 = vmatmul.mubr.bf16.gmra.mrb[0].mxu0 %v1257
  %v1411 = vpop.f32.mrb[0].mxu0
  %v1412 = vadd.f32 %v94, %v1411
  %v1413 = vpop.f32.mrb[0].mxu0
  %v1414 = vpop.f32.mrb[0].mxu0
  %v1415 = vadd.f32 %v94, %v1414
  %v1416 = vpop.f32.mrb[0].mxu0
  %1417 = vmatprep.mubr.bf16.mxu0 0
  %1418 = vmatmul.mubr.bf16.gmra.mrb[0].mxu0 %v1258
  %v1419 = vpop.f32.mrb[0].mxu0
  %v1420 = vadd.f32 %v94, %v1419
  %v1421 = vpop.f32.mrb[0].mxu0
  %v1422 = vpop.f32.mrb[0].mxu0
  %v1423 = vadd.f32 %v94, %v1422
  %v1424 = vpop.f32.mrb[0].mxu0
  %1425 = vmatprep.mubr.bf16.mxu0 0
  %1426 = vmatmul.mubr.bf16.gmra.mrb[0].mxu0 %v1259
  %v1427 = vpop.f32.mrb[0].mxu0
  %v1428 = vadd.f32 %v94, %v1427
  %v1429 = vpop.f32.mrb[0].mxu0
  %v1430 = vpop.f32.mrb[0].mxu0
  %v1431 = vadd.f32 %v94, %v1430
  %v1432 = vpop.f32.mrb[0].mxu0
  %1433 = vmatprep.mubr.bf16.mxu0 0
  %1434 = vmatmul.mubr.bf16.gmra.mrb[0].mxu0 %v1260
  %v1435 = vpop.f32.mrb[0].mxu0
  %v1436 = vadd.f32 %v94, %v1435
  %v1437 = vpop.f32.mrb[0].mxu0
  %v1438 = vpop.f32.mrb[0].mxu0
  %v1439 = vadd.f32 %v94, %v1438
  %v1440 = vpop.f32.mrb[0].mxu0
  %1441 = vmatprep.mubr.bf16.mxu0 0
  %1442 = vmatmul.mubr.bf16.gmra.mrb[0].mxu0 %v1261
  %v1443 = vpop.f32.mrb[0].mxu0
  %v1444 = vadd.f32 %v94, %v1443
  %v1445 = vpop.f32.mrb[0].mxu0
  %v1446 = vpop.f32.mrb[0].mxu0
  %v1447 = vadd.f32 %v94, %v1446
  %v1448 = vpop.f32.mrb[0].mxu0
  %1449 = vmatprep.mubr.bf16.mxu0 0
  %1450 = vmatmul.mubr.bf16.gmra.mrb[0].mxu0 %v1262
  %v1451 = vpop.f32.mrb[0].mxu0
  %v1452 = vadd.f32 %v94, %v1451
  %v1453 = vpop.f32.mrb[0].mxu0
  %v1454 = vpop.f32.mrb[0].mxu0
  %v1455 = vadd.f32 %v94, %v1454
  %v1456 = vpop.f32.mrb[0].mxu0
  %1457 = vmatprep.mubr.bf16.mxu0 0
  %1458 = vmatmul.mubr.bf16.gmra.mrb[0].mxu0 %v1263
  %v1459 = vpop.f32.mrb[0].mxu0
  %v1460 = vadd.f32 %v94, %v1459
  %v1461 = vpop.f32.mrb[0].mxu0
  %v1462 = vpop.f32.mrb[0].mxu0
  %v1463 = vadd.f32 %v94, %v1462
  %v1464 = vpop.f32.mrb[0].mxu0
  %1465 = vmatprep.mubr.bf16.mxu0 0
  %1466 = vmatmul.mubr.bf16.gmra.mrb[0].mxu0 %v1264
  %v1467 = vpop.f32.mrb[0].mxu0
  %v1468 = vadd.f32 %v94, %v1467
  %v1469 = vpop.f32.mrb[0].mxu0
  %v1470 = vpop.f32.mrb[0].mxu0
  %v1471 = vadd.f32 %v94, %v1470
  %v1472 = vpop.f32.mrb[0].mxu0
  %1473 = vmatprep.mubr.bf16.mxu0 0
  %1474 = vmatmul.mubr.bf16.gmra.mrb[0].mxu0 %v1265
  %v1475 = vpop.f32.mrb[0].mxu0
  %v1476 = vadd.f32 %v94, %v1475
  %v1477 = vpop.f32.mrb[0].mxu0
  %v1478 = vpop.f32.mrb[0].mxu0
  %v1479 = vadd.f32 %v94, %v1478
  %v1480 = vpop.f32.mrb[0].mxu0
  %1481 = vmatprep.mubr.bf16.mxu0 0
  %1482 = vmatmul.mubr.bf16.gmra.mrb[0].mxu0 %v1266
  %v1483 = vpop.f32.mrb[0].mxu0
  %v1484 = vadd.f32 %v94, %v1483
  %v1485 = vpop.f32.mrb[0].mxu0
  %v1486 = vpop.f32.mrb[0].mxu0
  %v1487 = vadd.f32 %v94, %v1486
  %v1488 = vpop.f32.mrb[0].mxu0
  %1489 = vmatprep.mubr.bf16.mxu0 0
  %1490 = vmatmul.mubr.bf16.gmra.mrb[0].mxu0 %v1267
  %v1491 = vpop.f32.mrb[0].mxu0
  %v1492 = vadd.f32 %v94, %v1491
  %v1493 = vpop.f32.mrb[0].mxu0
  %v1494 = vpop.f32.mrb[0].mxu0
  %v1495 = vadd.f32 %v94, %v1494
  %v1496 = vpop.f32.mrb[0].mxu0
  %1497 = vmatprep.mubr.bf16.mxu0 0
  %1498 = vmatmul.mubr.bf16.gmra.mrb[0].mxu0 %v1268
  %v1499 = vpop.f32.mrb[0].mxu0
  %v1500 = vadd.f32 %v94, %v1499
  %v1501 = vpop.f32.mrb[0].mxu0
  %v1502 = vpop.f32.mrb[0].mxu0
  %v1503 = vadd.f32 %v94, %v1502
  %v1504 = vpop.f32.mrb[0].mxu0
  %1505 = vmatprep.mubr.bf16.mxu0 0
  %1506 = vmatmul.mubr.bf16.gmra.mrb[0].mxu0 %v1269
  %v1507 = vpop.f32.mrb[0].mxu0
  %v1508 = vadd.f32 %v94, %v1507
  %v1509 = vpop.f32.mrb[0].mxu0
  %v1510 = vpop.f32.mrb[0].mxu0
  %v1511 = vadd.f32 %v94, %v1510
  %v1512 = vpop.f32.mrb[0].mxu0
  %1513 = vmatprep.mubr.bf16.mxu0 0
  %1514 = vmatmul.mubr.bf16.gmra.mrb[0].mxu0 %v1270
  %v1515 = vpop.f32.mrb[0].mxu0
  %v1516 = vadd.f32 %v94, %v1515
  %v1517 = vpop.f32.mrb[0].mxu0
  %v1518 = vpop.f32.mrb[0].mxu0
  %v1519 = vadd.f32 %v94, %v1518
  %v1520 = vpop.f32.mrb[0].mxu0
  %1521 = vmatprep.mubr.bf16.mxu0 0
  %1522 = vmatmul.mubr.bf16.gmra.mrb[0].mxu0 %v1271
  %v1523 = vpop.f32.mrb[0].mxu0
  %v1524 = vadd.f32 %v94, %v1523
  %v1525 = vpop.f32.mrb[0].mxu0
  %v1526 = vpop.f32.mrb[0].mxu0
  %v1527 = vpop.f32.mrb[0].mxu0
  %1528 = vdwg.mxu0
  %v1529 = vmax.f32 %v1332, 0.0
  %v1530 = vmax.f32 %v1335, 0.0
  %v1531 = vmax.f32 %v1340, 0.0
  %v1532 = vmax.f32 %v1343, 0.0
  %v1533 = vmax.f32 %v1348, 0.0
  %v1534 = vmax.f32 %v1351, 0.0
  %v1535 = vmax.f32 %v1356, 0.0
  %v1536 = vmax.f32 %v1359, 0.0
  %v1537 = vmax.f32 %v1364, 0.0
  %v1538 = vmax.f32 %v1367, 0.0
  %v1539 = vmax.f32 %v1372, 0.0
  %v1540 = vmax.f32 %v1375, 0.0
  %v1541 = vmax.f32 %v1380, 0.0
  %v1542 = vmax.f32 %v1383, 0.0
  %v1543 = vmax.f32 %v1388, 0.0
  %v1544 = vmax.f32 %v1391, 0.0
  %v1545 = vmax.f32 %v1396, 0.0
  %v1546 = vmax.f32 %v1399, 0.0
  %v1547 = vmax.f32 %v1404, 0.0
  %v1548 = vmax.f32 %v1407, 0.0
  %v1549 = vmax.f32 %v1412, 0.0
  %v1550 = vmax.f32 %v1415, 0.0
  %v1551 = vmax.f32 %v1420, 0.0
  %v1552 = vmax.f32 %v1423, 0.0
  %v1553 = vmax.f32 %v1428, 0.0
  %v1554 = vmax.f32 %v1431, 0.0
  %v1555 = vmax.f32 %v1436, 0.0
  %v1556 = vmax.f32 %v1439, 0.0
  %v1557 = vmax.f32 %v1444, 0.0
  %v1558 = vmax.f32 %v1447, 0.0
  %v1559 = vmax.f32 %v1452, 0.0
  %v1560 = vmax.f32 %v1455, 0.0
  %v1561 = vmax.f32 %v1460, 0.0
  %v1562 = vmax.f32 %v1463, 0.0
  %v1563 = vmax.f32 %v1468, 0.0
  %v1564 = vmax.f32 %v1471, 0.0
  %v1565 = vmax.f32 %v1476, 0.0
  %v1566 = vmax.f32 %v1479, 0.0
  %v1567 = vmax.f32 %v1484, 0.0
  %v1568 = vmax.f32 %v1487, 0.0
  %v1569 = vmax.f32 %v1492, 0.0
  %v1570 = vmax.f32 %v1495, 0.0
  %v1571 = vmax.f32 %v1500, 0.0
  %v1572 = vmax.f32 %v1503, 0.0
  %v1573 = vmax.f32 %v1508, 0.0
  %v1574 = vmax.f32 %v1511, 0.0
  %v1575 = vmax.f32 %v1516, 0.0
  %v1576 = vmax.f32 %v1519, 0.0
  %v1577 = vmax.f32 %v1524, 0.0
  %v1578 = vld [vmem:[%s3] sm:$0xf]
  %v1579 = vld [vmem:[%s3 + $0x4] sm:$0xf]
  %v1580 = vld [vmem:[%s3 + $0x8] sm:$0xf]
  %v1581 = vld [vmem:[%s3 + $0xc] sm:$0xf]
  %v1582 = vld [vmem:[%s3 + $0x10] sm:$0xf]
  %v1583 = vld [vmem:[%s3 + $0x14] sm:$0xf]
  %v1584 = vld [vmem:[%s3 + $0x18] sm:$0xf]
  %v1585 = vld [vmem:[%s3 + $0x1c] sm:$0xf]
  %v1586 = vld [vmem:[%s3 + $0x20] sm:$0xf]
  %v1587 = vld [vmem:[%s3 + $0x24] sm:$0xf]
  %v1588 = vld [vmem:[%s3 + $0x28] sm:$0xf]
  %v1589 = vld [vmem:[%s3 + $0x2c] sm:$0xf]
  %v1590 = vld [vmem:[%s3 + $0x30] sm:$0xf]
  %v1591 = vld [vmem:[%s3 + $0x34] sm:$0xf]
  %v1592 = vld [vmem:[%s3 + $0x38] sm:$0xf]
  %v1593 = vld [vmem:[%s3 + $0x3c] sm:$0xf]
  %v1594 = vld [vmem:[%s3 + $0x40] sm:$0xf]
  %v1595 = vld [vmem:[%s3 + $0x44] sm:$0xf]
  %v1596 = vld [vmem:[%s3 + $0x48] sm:$0xf]
  %v1597 = vld [vmem:[%s3 + $0x4c] sm:$0xf]
  %v1598 = vld [vmem:[%s3 + $0x50] sm:$0xf]
  %v1599 = vld [vmem:[%s3 + $0x54] sm:$0xf]
  %v1600 = vld [vmem:[%s3 + $0x58] sm:$0xf]
  %v1601 = vld [vmem:[%s3 + $0x5c] sm:$0xf]
  %v1602 = vld [vmem:[%s3 + $0x60] sm:$0xf]
  %v1603 = vld [vmem:[%s3 + $0x64] sm:$0xf]
  %v1604 = vld [vmem:[%s3 + $0x68] sm:$0xf]
  %v1605 = vld [vmem:[%s3 + $0x6c] sm:$0xf]
  %v1606 = vld [vmem:[%s3 + $0x70] sm:$0xf]
  %v1607 = vld [vmem:[%s3 + $0x74] sm:$0xf]
  %v1608 = vld [vmem:[%s3 + $0x78] sm:$0xf]
  %v1609 = vld [vmem:[%s3 + $0x7c] sm:$0xf]
  %v1610 = vld [vmem:[%s3 + $0x80] sm:$0xf]
  %v1611 = vld [vmem:[%s3 + $0x84] sm:$0xf]
  %v1612 = vld [vmem:[%s3 + $0x88] sm:$0xf]
  %v1613 = vld [vmem:[%s3 + $0x8c] sm:$0xf]
  %v1614 = vld [vmem:[%s3 + $0x90] sm:$0xf]
  %v1615 = vld [vmem:[%s3 + $0x94] sm:$0xf]
  %v1616 = vld [vmem:[%s3 + $0x98] sm:$0xf]
  %v1617 = vld [vmem:[%s3 + $0x9c] sm:$0xf]
  %v1618 = vld [vmem:[%s3 + $0xa0] sm:$0xf]
  %v1619 = vld [vmem:[%s3 + $0xa4] sm:$0xf]
  %v1620 = vld [vmem:[%s3 + $0xa8] sm:$0xf]
  %v1621 = vld [vmem:[%s3 + $0xac] sm:$0xf]
  %v1622 = vld [vmem:[%s3 + $0xb0] sm:$0xf]
  %v1623 = vld [vmem:[%s3 + $0xb4] sm:$0xf]
  %v1624 = vld [vmem:[%s3 + $0xb8] sm:$0xf]
  %v1625 = vld [vmem:[%s3 + $0xbc] sm:$0xf]
  %v1626 = vld [vmem:[%s3 + $0xc0] sm:$0xf]
  %v1676 = vunpack.c.l.b16 %v1578
  %v1677 = vunpack.c.l.b16 %v1579
  %v1678 = vunpack.c.l.b16 %v1580
  %v1679 = vunpack.c.l.b16 %v1581
  %v1680 = vunpack.c.l.b16 %v1582
  %v1681 = vunpack.c.l.b16 %v1583
  %v1682 = vunpack.c.l.b16 %v1584
  %v1683 = vunpack.c.l.b16 %v1585
  %v1684 = vunpack.c.l.b16 %v1586
  %v1685 = vunpack.c.l.b16 %v1587
  %v1686 = vunpack.c.l.b16 %v1588
  %v1687 = vunpack.c.l.b16 %v1589
  %v1688 = vunpack.c.l.b16 %v1590
  %v1689 = vunpack.c.l.b16 %v1591
  %v1690 = vunpack.c.l.b16 %v1592
  %v1691 = vunpack.c.l.b16 %v1593
  %v1692 = vunpack.c.l.b16 %v1594
  %v1693 = vunpack.c.l.b16 %v1595
  %v1694 = vunpack.c.l.b16 %v1596
  %v1695 = vunpack.c.l.b16 %v1597
  %v1696 = vunpack.c.l.b16 %v1598
  %v1697 = vunpack.c.l.b16 %v1599
  %v1698 = vunpack.c.l.b16 %v1600
  %v1699 = vunpack.c.l.b16 %v1601
  %v1700 = vunpack.c.l.b16 %v1602
  %v1701 = vunpack.c.l.b16 %v1603
  %v1702 = vunpack.c.l.b16 %v1604
  %v1703 = vunpack.c.l.b16 %v1605
  %v1704 = vunpack.c.l.b16 %v1606
  %v1705 = vunpack.c.l.b16 %v1607
  %v1706 = vunpack.c.l.b16 %v1608
  %v1707 = vunpack.c.l.b16 %v1609
  %v1708 = vunpack.c.l.b16 %v1610
  %v1709 = vunpack.c.l.b16 %v1611
  %v1710 = vunpack.c.l.b16 %v1612
  %v1711 = vunpack.c.l.b16 %v1613
  %v1712 = vunpack.c.l.b16 %v1614
  %v1713 = vunpack.c.l.b16 %v1615
  %v1714 = vunpack.c.l.b16 %v1616
  %v1715 = vunpack.c.l.b16 %v1617
  %v1716 = vunpack.c.l.b16 %v1618
  %v1717 = vunpack.c.l.b16 %v1619
  %v1718 = vunpack.c.l.b16 %v1620
  %v1719 = vunpack.c.l.b16 %v1621
  %v1720 = vunpack.c.l.b16 %v1622
  %v1721 = vunpack.c.l.b16 %v1623
  %v1722 = vunpack.c.l.b16 %v1624
  %v1723 = vunpack.c.l.b16 %v1625
  %v1724 = vunpack.c.l.b16 %v1626
  %v1725 = vpack.c.b16 %v1677, %v1676
  %v1726 = vpack.c.b16 %v1679, %v1678
  %v1727 = vpack.c.b16 %v1681, %v1680
  %v1728 = vpack.c.b16 %v1683, %v1682
  %v1729 = vpack.c.b16 %v1685, %v1684
  %v1730 = vpack.c.b16 %v1687, %v1686
  %v1731 = vpack.c.b16 %v1689, %v1688
  %v1732 = vpack.c.b16 %v1691, %v1690
  %v1733 = vpack.c.b16 %v1693, %v1692
  %v1734 = vpack.c.b16 %v1695, %v1694
  %v1735 = vpack.c.b16 %v1697, %v1696
  %v1736 = vpack.c.b16 %v1699, %v1698
  %v1737 = vpack.c.b16 %v1701, %v1700
  %v1738 = vpack.c.b16 %v1703, %v1702
  %v1739 = vpack.c.b16 %v1705, %v1704
  %v1740 = vpack.c.b16 %v1707, %v1706
  %v1741 = vpack.c.b16 %v1709, %v1708
  %v1742 = vpack.c.b16 %v1711, %v1710
  %v1743 = vpack.c.b16 %v1713, %v1712
  %v1744 = vpack.c.b16 %v1715, %v1714
  %v1745 = vpack.c.b16 %v1717, %v1716
  %v1746 = vpack.c.b16 %v1719, %v1718
  %v1747 = vpack.c.b16 %v1721, %v1720
  %v1748 = vpack.c.b16 %v1723, %v1722
  %v1749 = vpack.c.b16 %v1724, %v1724
  %1775 = vmatprep.subr.bf16.mxu0 0
  %1776 = vmatpush1.bf16.msra.mxu0 %v276
  %1777 = vmatprep.subr.bf16.mxu0 0
  %1778 = vmatpush1.bf16.msra.mxu0 %v277
  %1779 = vmatprep.subr.bf16.mxu0 0
  %1780 = vmatpush1.bf16.msra.mxu0 %v278
  %1781 = vmatprep.subr.bf16.mxu0 0
  %1782 = vmatpush1.bf16.msra.mxu0 %v279
  %1783 = vmatprep.subr.bf16.mxu0 0
  %1784 = vmatpush1.bf16.msra.mxu0 %v280
  %1785 = vmatprep.subr.bf16.mxu0 0
  %1786 = vmatpush1.bf16.msra.mxu0 %v281
  %1787 = vmatprep.subr.bf16.mxu0 0
  %1788 = vmatpush1.bf16.msra.mxu0 %v282
  %1789 = vmatprep.subr.bf16.mxu0 0
  %1790 = vmatpush1.bf16.msra.mxu0 %v283
  %1791 = vmatprep.subr.bf16.mxu0 0
  %1792 = vmatpush1.bf16.msra.mxu0 0
  %1793 = vmatprep.subr.bf16.mxu0 0
  %1794 = vmatpush1.bf16.msra.mxu0 0
  %1795 = vmatprep.subr.bf16.mxu0 0
  %1796 = vmatpush1.bf16.msra.mxu0 0
  %1797 = vmatprep.subr.bf16.mxu0 0
  %1798 = vmatpush1.bf16.msra.mxu0 0
  %1799 = vmatprep.subr.bf16.mxu0 0
  %1800 = vmatpush1.bf16.msra.mxu0 0
  %1801 = vmatprep.subr.bf16.mxu0 0
  %1802 = vmatpush1.bf16.msra.mxu0 0
  %1803 = vmatprep.subr.bf16.mxu0 0
  %1804 = vmatpush1.bf16.msra.mxu0 0
  %1805 = vmatprep.subr.bf16.mxu0 0
  %1806 = vmatpush1.bf16.msra.mxu0 0
  %1807 = vmatprep.mubr.bf16.mxu0 0
  %1808 = vmatmul.mubr.bf16.gmra.mrb[0].mxu0 %v1725
  %v1809 = vpop.f32.mrb[0].mxu0
  %v1810 = vadd.f32 %v94, %v1809
  %v1811 = vpop.f32.mrb[0].mxu0
  %v1812 = vpop.f32.mrb[0].mxu0
  %v1813 = vadd.f32 %v94, %v1812
  %v1814 = vpop.f32.mrb[0].mxu0
  %1815 = vmatprep.mubr.bf16.mxu0 0
  %1816 = vmatmul.mubr.bf16.gmra.mrb[0].mxu0 %v1726
  %v1817 = vpop.f32.mrb[0].mxu0
  %v1818 = vadd.f32 %v94, %v1817
  %v1819 = vpop.f32.mrb[0].mxu0
  %v1820 = vpop.f32.mrb[0].mxu0
  %v1821 = vadd.f32 %v94, %v1820
  %v1822 = vpop.f32.mrb[0].mxu0
  %1823 = vmatprep.mubr.bf16.mxu0 0
  %1824 = vmatmul.mubr.bf16.gmra.mrb[0].mxu0 %v1727
  %v1825 = vpop.f32.mrb[0].mxu0
  %v1826 = vadd.f32 %v94, %v1825
  %v1827 = vpop.f32.mrb[0].mxu0
  %v1828 = vpop.f32.mrb[0].mxu0
  %v1829 = vadd.f32 %v94, %v1828
  %v1830 = vpop.f32.mrb[0].mxu0
  %1831 = vmatprep.mubr.bf16.mxu0 0
  %1832 = vmatmul.mubr.bf16.gmra.mrb[0].mxu0 %v1728
  %v1833 = vpop.f32.mrb[0].mxu0
  %v1834 = vadd.f32 %v94, %v1833
  %v1835 = vpop.f32.mrb[0].mxu0
  %v1836 = vpop.f32.mrb[0].mxu0
  %v1837 = vadd.f32 %v94, %v1836
  %v1838 = vpop.f32.mrb[0].mxu0
  %1839 = vmatprep.mubr.bf16.mxu0 0
  %1840 = vmatmul.mubr.bf16.gmra.mrb[0].mxu0 %v1729
  %v1841 = vpop.f32.mrb[0].mxu0
  %v1842 = vadd.f32 %v94, %v1841
  %v1843 = vpop.f32.mrb[0].mxu0
  %v1844 = vpop.f32.mrb[0].mxu0
  %v1845 = vadd.f32 %v94, %v1844
  %v1846 = vpop.f32.mrb[0].mxu0
  %1847 = vmatprep.mubr.bf16.mxu0 0
  %1848 = vmatmul.mubr.bf16.gmra.mrb[0].mxu0 %v1730
  %v1849 = vpop.f32.mrb[0].mxu0
  %v1850 = vadd.f32 %v94, %v1849
  %v1851 = vpop.f32.mrb[0].mxu0
  %v1852 = vpop.f32.mrb[0].mxu0
  %v1853 = vadd.f32 %v94, %v1852
  %v1854 = vpop.f32.mrb[0].mxu0
  %1855 = vmatprep.mubr.bf16.mxu0 0
  %1856 = vmatmul.mubr.bf16.gmra.mrb[0].mxu0 %v1731
  %v1857 = vpop.f32.mrb[0].mxu0
  %v1858 = vadd.f32 %v94, %v1857
  %v1859 = vpop.f32.mrb[0].mxu0
  %v1860 = vpop.f32.mrb[0].mxu0
  %v1861 = vadd.f32 %v94, %v1860
  %v1862 = vpop.f32.mrb[0].mxu0
  %1863 = vmatprep.mubr.bf16.mxu0 0
  %1864 = vmatmul.mubr.bf16.gmra.mrb[0].mxu0 %v1732
  %v1865 = vpop.f32.mrb[0].mxu0
  %v1866 = vadd.f32 %v94, %v1865
  %v1867 = vpop.f32.mrb[0].mxu0
  %v1868 = vpop.f32.mrb[0].mxu0
  %v1869 = vadd.f32 %v94, %v1868
  %v1870 = vpop.f32.mrb[0].mxu0
  %1871 = vmatprep.mubr.bf16.mxu0 0
  %1872 = vmatmul.mubr.bf16.gmra.mrb[0].mxu0 %v1733
  %v1873 = vpop.f32.mrb[0].mxu0
  %v1874 = vadd.f32 %v94, %v1873
  %v1875 = vpop.f32.mrb[0].mxu0
  %v1876 = vpop.f32.mrb[0].mxu0
  %v1877 = vadd.f32 %v94, %v1876
  %v1878 = vpop.f32.mrb[0].mxu0
  %1879 = vmatprep.mubr.bf16.mxu0 0
  %1880 = vmatmul.mubr.bf16.gmra.mrb[0].mxu0 %v1734
  %v1881 = vpop.f32.mrb[0].mxu0
  %v1882 = vadd.f32 %v94, %v1881
  %v1883 = vpop.f32.mrb[0].mxu0
  %v1884 = vpop.f32.mrb[0].mxu0
  %v1885 = vadd.f32 %v94, %v1884
  %v1886 = vpop.f32.mrb[0].mxu0
  %1887 = vmatprep.mubr.bf16.mxu0 0
  %1888 = vmatmul.mubr.bf16.gmra.mrb[0].mxu0 %v1735
  %v1889 = vpop.f32.mrb[0].mxu0
  %v1890 = vadd.f32 %v94, %v1889
  %v1891 = vpop.f32.mrb[0].mxu0
  %v1892 = vpop.f32.mrb[0].mxu0
  %v1893 = vadd.f32 %v94, %v1892
  %v1894 = vpop.f32.mrb[0].mxu0
  %1895 = vmatprep.mubr.bf16.mxu0 0
  %1896 = vmatmul.mubr.bf16.gmra.mrb[0].mxu0 %v1736
  %v1897 = vpop.f32.mrb[0].mxu0
  %v1898 = vadd.f32 %v94, %v1897
  %v1899 = vpop.f32.mrb[0].mxu0
  %v1900 = vpop.f32.mrb[0].mxu0
  %v1901 = vadd.f32 %v94, %v1900
  %v1902 = vpop.f32.mrb[0].mxu0
  %1903 = vmatprep.mubr.bf16.mxu0 0
  %1904 = vmatmul.mubr.bf16.gmra.mrb[0].mxu0 %v1737
  %v1905 = vpop.f32.mrb[0].mxu0
  %v1906 = vadd.f32 %v94, %v1905
  %v1907 = vpop.f32.mrb[0].mxu0
  %v1908 = vpop.f32.mrb[0].mxu0
  %v1909 = vadd.f32 %v94, %v1908
  %v1910 = vpop.f32.mrb[0].mxu0
  %1911 = vmatprep.mubr.bf16.mxu0 0
  %1912 = vmatmul.mubr.bf16.gmra.mrb[0].mxu0 %v1738
  %v1913 = vpop.f32.mrb[0].mxu0
  %v1914 = vadd.f32 %v94, %v1913
  %v1915 = vpop.f32.mrb[0].mxu0
  %v1916 = vpop.f32.mrb[0].mxu0
  %v1917 = vadd.f32 %v94, %v1916
  %v1918 = vpop.f32.mrb[0].mxu0
  %1919 = vmatprep.mubr.bf16.mxu0 0
  %1920 = vmatmul.mubr.bf16.gmra.mrb[0].mxu0 %v1739
  %v1921 = vpop.f32.mrb[0].mxu0
  %v1922 = vadd.f32 %v94, %v1921
  %v1923 = vpop.f32.mrb[0].mxu0
  %v1924 = vpop.f32.mrb[0].mxu0
  %v1925 = vadd.f32 %v94, %v1924
  %v1926 = vpop.f32.mrb[0].mxu0
  %1927 = vmatprep.mubr.bf16.mxu0 0
  %1928 = vmatmul.mubr.bf16.gmra.mrb[0].mxu0 %v1740
  %v1929 = vpop.f32.mrb[0].mxu0
  %v1930 = vadd.f32 %v94, %v1929
  %v1931 = vpop.f32.mrb[0].mxu0
  %v1932 = vpop.f32.mrb[0].mxu0
  %v1933 = vadd.f32 %v94, %v1932
  %v1934 = vpop.f32.mrb[0].mxu0
  %1935 = vmatprep.mubr.bf16.mxu0 0
  %1936 = vmatmul.mubr.bf16.gmra.mrb[0].mxu0 %v1741
  %v1937 = vpop.f32.mrb[0].mxu0
  %v1938 = vadd.f32 %v94, %v1937
  %v1939 = vpop.f32.mrb[0].mxu0
  %v1940 = vpop.f32.mrb[0].mxu0
  %v1941 = vadd.f32 %v94, %v1940
  %v1942 = vpop.f32.mrb[0].mxu0
  %1943 = vmatprep.mubr.bf16.mxu0 0
  %1944 = vmatmul.mubr.bf16.gmra.mrb[0].mxu0 %v1742
  %v1945 = vpop.f32.mrb[0].mxu0
  %v1946 = vadd.f32 %v94, %v1945
  %v1947 = vpop.f32.mrb[0].mxu0
  %v1948 = vpop.f32.mrb[0].mxu0
  %v1949 = vadd.f32 %v94, %v1948
  %v1950 = vpop.f32.mrb[0].mxu0
  %1951 = vmatprep.mubr.bf16.mxu0 0
  %1952 = vmatmul.mubr.bf16.gmra.mrb[0].mxu0 %v1743
  %v1953 = vpop.f32.mrb[0].mxu0
  %v1954 = vadd.f32 %v94, %v1953
  %v1955 = vpop.f32.mrb[0].mxu0
  %v1956 = vpop.f32.mrb[0].mxu0
  %v1957 = vadd.f32 %v94, %v1956
  %v1958 = vpop.f32.mrb[0].mxu0
  %1959 = vmatprep.mubr.bf16.mxu0 0
  %1960 = vmatmul.mubr.bf16.gmra.mrb[0].mxu0 %v1744
  %v1961 = vpop.f32.mrb[0].mxu0
  %v1962 = vadd.f32 %v94, %v1961
  %v1963 = vpop.f32.mrb[0].mxu0
  %v1964 = vpop.f32.mrb[0].mxu0
  %v1965 = vadd.f32 %v94, %v1964
  %v1966 = vpop.f32.mrb[0].mxu0
  %1967 = vmatprep.mubr.bf16.mxu0 0
  %1968 = vmatmul.mubr.bf16.gmra.mrb[0].mxu0 %v1745
  %v1969 = vpop.f32.mrb[0].mxu0
  %v1970 = vadd.f32 %v94, %v1969
  %v1971 = vpop.f32.mrb[0].mxu0
  %v1972 = vpop.f32.mrb[0].mxu0
  %v1973 = vadd.f32 %v94, %v1972
  %v1974 = vpop.f32.mrb[0].mxu0
  %1975 = vmatprep.mubr.bf16.mxu0 0
  %1976 = vmatmul.mubr.bf16.gmra.mrb[0].mxu0 %v1746
  %v1977 = vpop.f32.mrb[0].mxu0
  %v1978 = vadd.f32 %v94, %v1977
  %v1979 = vpop.f32.mrb[0].mxu0
  %v1980 = vpop.f32.mrb[0].mxu0
  %v1981 = vadd.f32 %v94, %v1980
  %v1982 = vpop.f32.mrb[0].mxu0
  %1983 = vmatprep.mubr.bf16.mxu0 0
  %1984 = vmatmul.mubr.bf16.gmra.mrb[0].mxu0 %v1747
  %v1985 = vpop.f32.mrb[0].mxu0
  %v1986 = vadd.f32 %v94, %v1985
  %v1987 = vpop.f32.mrb[0].mxu0
  %v1988 = vpop.f32.mrb[0].mxu0
  %v1989 = vadd.f32 %v94, %v1988
  %v1990 = vpop.f32.mrb[0].mxu0
  %1991 = vmatprep.mubr.bf16.mxu0 0
  %1992 = vmatmul.mubr.bf16.gmra.mrb[0].mxu0 %v1748
  %v1993 = vpop.f32.mrb[0].mxu0
  %v1994 = vadd.f32 %v94, %v1993
  %v1995 = vpop.f32.mrb[0].mxu0
  %v1996 = vpop.f32.mrb[0].mxu0
  %v1997 = vadd.f32 %v94, %v1996
  %v1998 = vpop.f32.mrb[0].mxu0
  %1999 = vmatprep.mubr.bf16.mxu0 0
  %2000 = vmatmul.mubr.bf16.gmra.mrb[0].mxu0 %v1749
  %v2001 = vpop.f32.mrb[0].mxu0
  %v2002 = vadd.f32 %v94, %v2001
  %v2003 = vpop.f32.mrb[0].mxu0
  %v2004 = vpop.f32.mrb[0].mxu0
  %v2005 = vpop.f32.mrb[0].mxu0
  %2006 = vdwg.mxu0
  %v2007 = vmax.f32 %v1810, 0.0
  %v2008 = vmax.f32 %v1813, 0.0
  %v2009 = vmax.f32 %v1818, 0.0
  %v2010 = vmax.f32 %v1821, 0.0
  %v2011 = vmax.f32 %v1826, 0.0
  %v2012 = vmax.f32 %v1829, 0.0
  %v2013 = vmax.f32 %v1834, 0.0
  %v2014 = vmax.f32 %v1837, 0.0
  %v2015 = vmax.f32 %v1842, 0.0
  %v2016 = vmax.f32 %v1845, 0.0
  %v2017 = vmax.f32 %v1850, 0.0
  %v2018 = vmax.f32 %v1853, 0.0
  %v2019 = vmax.f32 %v1858, 0.0
  %v2020 = vmax.f32 %v1861, 0.0
  %v2021 = vmax.f32 %v1866, 0.0
  %v2022 = vmax.f32 %v1869, 0.0
  %v2023 = vmax.f32 %v1874, 0.0
  %v2024 = vmax.f32 %v1877, 0.0
  %v2025 = vmax.f32 %v1882, 0.0
  %v2026 = vmax.f32 %v1885, 0.0
  %v2027 = vmax.f32 %v1890, 0.0
  %v2028 = vmax.f32 %v1893, 0.0
  %v2029 = vmax.f32 %v1898, 0.0
  %v2030 = vmax.f32 %v1901, 0.0
  %v2031 = vmax.f32 %v1906, 0.0
  %v2032 = vmax.f32 %v1909, 0.0
  %v2033 = vmax.f32 %v1914, 0.0
  %v2034 = vmax.f32 %v1917, 0.0
  %v2035 = vmax.f32 %v1922, 0.0
  %v2036 = vmax.f32 %v1925, 0.0
  %v2037 = vmax.f32 %v1930, 0.0
  %v2038 = vmax.f32 %v1933, 0.0
  %v2039 = vmax.f32 %v1938, 0.0
  %v2040 = vmax.f32 %v1941, 0.0
  %v2041 = vmax.f32 %v1946, 0.0
  %v2042 = vmax.f32 %v1949, 0.0
  %v2043 = vmax.f32 %v1954, 0.0
  %v2044 = vmax.f32 %v1957, 0.0
  %v2045 = vmax.f32 %v1962, 0.0
  %v2046 = vmax.f32 %v1965, 0.0
  %v2047 = vmax.f32 %v1970, 0.0
  %v2048 = vmax.f32 %v1973, 0.0
  %v2049 = vmax.f32 %v1978, 0.0
  %v2050 = vmax.f32 %v1981, 0.0
  %v2051 = vmax.f32 %v1986, 0.0
  %v2052 = vmax.f32 %v1989, 0.0
  %v2053 = vmax.f32 %v1994, 0.0
  %v2054 = vmax.f32 %v1997, 0.0
  %v2055 = vmax.f32 %v2002, 0.0
  %v2056 = vmax.f32 %v1529, %v2007
  %v2057 = vmax.f32 %v1530, %v2008
  %v2058 = vmax.f32 %v1531, %v2009
  %v2059 = vmax.f32 %v1532, %v2010
  %v2060 = vmax.f32 %v1533, %v2011
  %v2061 = vmax.f32 %v1534, %v2012
  %v2062 = vmax.f32 %v1535, %v2013
  %v2063 = vmax.f32 %v1536, %v2014
  %v2064 = vmax.f32 %v1537, %v2015
  %v2065 = vmax.f32 %v1538, %v2016
  %v2066 = vmax.f32 %v1539, %v2017
  %v2067 = vmax.f32 %v1540, %v2018
  %v2068 = vmax.f32 %v1541, %v2019
  %v2069 = vmax.f32 %v1542, %v2020
  %v2070 = vmax.f32 %v1543, %v2021
  %v2071 = vmax.f32 %v1544, %v2022
  %v2072 = vmax.f32 %v1545, %v2023
  %v2073 = vmax.f32 %v1546, %v2024
  %v2074 = vmax.f32 %v1547, %v2025
  %v2075 = vmax.f32 %v1548, %v2026
  %v2076 = vmax.f32 %v1549, %v2027
  %v2077 = vmax.f32 %v1550, %v2028
  %v2078 = vmax.f32 %v1551, %v2029
  %v2079 = vmax.f32 %v1552, %v2030
  %v2080 = vmax.f32 %v1553, %v2031
  %v2081 = vmax.f32 %v1554, %v2032
  %v2082 = vmax.f32 %v1555, %v2033
  %v2083 = vmax.f32 %v1556, %v2034
  %v2084 = vmax.f32 %v1557, %v2035
  %v2085 = vmax.f32 %v1558, %v2036
  %v2086 = vmax.f32 %v1559, %v2037
  %v2087 = vmax.f32 %v1560, %v2038
  %v2088 = vmax.f32 %v1561, %v2039
  %v2089 = vmax.f32 %v1562, %v2040
  %v2090 = vmax.f32 %v1563, %v2041
  %v2091 = vmax.f32 %v1564, %v2042
  %v2092 = vmax.f32 %v1565, %v2043
  %v2093 = vmax.f32 %v1566, %v2044
  %v2094 = vmax.f32 %v1567, %v2045
  %v2095 = vmax.f32 %v1568, %v2046
  %v2096 = vmax.f32 %v1569, %v2047
  %v2097 = vmax.f32 %v1570, %v2048
  %v2098 = vmax.f32 %v1571, %v2049
  %v2099 = vmax.f32 %v1572, %v2050
  %v2100 = vmax.f32 %v1573, %v2051
  %v2101 = vmax.f32 %v1574, %v2052
  %v2102 = vmax.f32 %v1575, %v2053
  %v2103 = vmax.f32 %v1576, %v2054
  %v2104 = vmax.f32 %v1577, %v2055
  %v2105 = vmax.f32 %v1051, %v2056
  %v2106 = vmax.f32 %v1052, %v2057
  %v2107 = vmax.f32 %v1053, %v2058
  %v2108 = vmax.f32 %v1054, %v2059
  %v2109 = vmax.f32 %v1055, %v2060
  %v2110 = vmax.f32 %v1056, %v2061
  %v2111 = vmax.f32 %v1057, %v2062
  %v2112 = vmax.f32 %v1058, %v2063
  %v2113 = vmax.f32 %v1059, %v2064
  %v2114 = vmax.f32 %v1060, %v2065
  %v2115 = vmax.f32 %v1061, %v2066
  %v2116 = vmax.f32 %v1062, %v2067
  %v2117 = vmax.f32 %v1063, %v2068
  %v2118 = vmax.f32 %v1064, %v2069
  %v2119 = vmax.f32 %v1065, %v2070
  %v2120 = vmax.f32 %v1066, %v2071
  %v2121 = vmax.f32 %v1067, %v2072
  %v2122 = vmax.f32 %v1068, %v2073
  %v2123 = vmax.f32 %v1069, %v2074
  %v2124 = vmax.f32 %v1070, %v2075
  %v2125 = vmax.f32 %v1071, %v2076
  %v2126 = vmax.f32 %v1072, %v2077
  %v2127 = vmax.f32 %v1073, %v2078
  %v2128 = vmax.f32 %v1074, %v2079
  %v2129 = vmax.f32 %v1075, %v2080
  %v2130 = vmax.f32 %v1076, %v2081
  %v2131 = vmax.f32 %v1077, %v2082
  %v2132 = vmax.f32 %v1078, %v2083
  %v2133 = vmax.f32 %v1079, %v2084
  %v2134 = vmax.f32 %v1080, %v2085
  %v2135 = vmax.f32 %v1081, %v2086
  %v2136 = vmax.f32 %v1082, %v2087
  %v2137 = vmax.f32 %v1083, %v2088
  %v2138 = vmax.f32 %v1084, %v2089
  %v2139 = vmax.f32 %v1085, %v2090
  %v2140 = vmax.f32 %v1086, %v2091
  %v2141 = vmax.f32 %v1087, %v2092
  %v2142 = vmax.f32 %v1088, %v2093
  %v2143 = vmax.f32 %v1089, %v2094
  %v2144 = vmax.f32 %v1090, %v2095
  %v2145 = vmax.f32 %v1091, %v2096
  %v2146 = vmax.f32 %v1092, %v2097
  %v2147 = vmax.f32 %v1093, %v2098
  %v2148 = vmax.f32 %v1094, %v2099
  %v2149 = vmax.f32 %v1095, %v2100
  %v2150 = vmax.f32 %v1096, %v2101
  %v2151 = vmax.f32 %v1097, %v2102
  %v2152 = vmax.f32 %v1098, %v2103
  %v2153 = vmax.f32 %v1099, %v2104
  %v2154 = vpack.c.bf16 %v2106, %v2105
  %v2155 = vpack.c.bf16 %v2108, %v2107
  %v2156 = vpack.c.bf16 %v2110, %v2109
  %v2157 = vpack.c.bf16 %v2112, %v2111
  %v2158 = vpack.c.bf16 %v2114, %v2113
  %v2159 = vpack.c.bf16 %v2116, %v2115
  %v2160 = vpack.c.bf16 %v2118, %v2117
  %v2161 = vpack.c.bf16 %v2120, %v2119
  %v2162 = vpack.c.bf16 %v2122, %v2121
  %v2163 = vpack.c.bf16 %v2124, %v2123
  %v2164 = vpack.c.bf16 %v2126, %v2125
  %v2165 = vpack.c.bf16 %v2128, %v2127
  %v2166 = vpack.c.bf16 %v2130, %v2129
  %v2167 = vpack.c.bf16 %v2132, %v2131
  %v2168 = vpack.c.bf16 %v2134, %v2133
  %v2169 = vpack.c.bf16 %v2136, %v2135
  %v2170 = vpack.c.bf16 %v2138, %v2137
  %v2171 = vpack.c.bf16 %v2140, %v2139
  %v2172 = vpack.c.bf16 %v2142, %v2141
  %v2173 = vpack.c.bf16 %v2144, %v2143
  %v2174 = vpack.c.bf16 %v2146, %v2145
  %v2175 = vpack.c.bf16 %v2148, %v2147
  %v2176 = vpack.c.bf16 %v2150, %v2149
  %v2177 = vpack.c.bf16 %v2152, %v2151
  %v2178 = vpack.c.bf16 %v2153, %v2153
  %v2204 = vunpack.c.l.b16 %v2154
  %v2205 = vunpack.c.h.b16 %v2154
  %v2206 = vunpack.c.l.b16 %v2155
  %v2207 = vunpack.c.h.b16 %v2155
  %v2208 = vunpack.c.l.b16 %v2156
  %v2209 = vunpack.c.h.b16 %v2156
  %v2210 = vunpack.c.l.b16 %v2157
  %v2211 = vunpack.c.h.b16 %v2157
  %v2212 = vunpack.c.l.b16 %v2158
  %v2213 = vunpack.c.h.b16 %v2158
  %v2214 = vunpack.c.l.b16 %v2159
  %v2215 = vunpack.c.h.b16 %v2159
  %v2216 = vunpack.c.l.b16 %v2160
  %v2217 = vunpack.c.h.b16 %v2160
  %v2218 = vunpack.c.l.b16 %v2161
  %v2219 = vunpack.c.h.b16 %v2161
  %v2220 = vunpack.c.l.b16 %v2162
  %v2221 = vunpack.c.h.b16 %v2162
  %v2222 = vunpack.c.l.b16 %v2163
  %v2223 = vunpack.c.h.b16 %v2163
  %v2224 = vunpack.c.l.b16 %v2164
  %v2225 = vunpack.c.h.b16 %v2164
  %v2226 = vunpack.c.l.b16 %v2165
  %v2227 = vunpack.c.h.b16 %v2165
  %v2228 = vunpack.c.l.b16 %v2166
  %v2229 = vunpack.c.h.b16 %v2166
  %v2230 = vunpack.c.l.b16 %v2167
  %v2231 = vunpack.c.h.b16 %v2167
  %v2232 = vunpack.c.l.b16 %v2168
  %v2233 = vunpack.c.h.b16 %v2168
  %v2234 = vunpack.c.l.b16 %v2169
  %v2235 = vunpack.c.h.b16 %v2169
  %v2236 = vunpack.c.l.b16 %v2170
  %v2237 = vunpack.c.h.b16 %v2170
  %v2238 = vunpack.c.l.b16 %v2171
  %v2239 = vunpack.c.h.b16 %v2171
  %v2240 = vunpack.c.l.b16 %v2172
  %v2241 = vunpack.c.h.b16 %v2172
  %v2242 = vunpack.c.l.b16 %v2173
  %v2243 = vunpack.c.h.b16 %v2173
  %v2244 = vunpack.c.l.b16 %v2174
  %v2245 = vunpack.c.h.b16 %v2174
  %v2246 = vunpack.c.l.b16 %v2175
  %v2247 = vunpack.c.h.b16 %v2175
  %v2248 = vunpack.c.l.b16 %v2176
  %v2249 = vunpack.c.h.b16 %v2176
  %v2250 = vunpack.c.l.b16 %v2177
  %v2251 = vunpack.c.h.b16 %v2177
  %v2252 = vunpack.c.l.b16 %v2178
  %v2253 = vpack.c.b16 %v2204, %v2204
  %v2254 = vpack.c.b16 %v2205, %v2205
  %v2255 = vpack.c.b16 %v2206, %v2206
  %v2256 = vpack.c.b16 %v2207, %v2207
  %v2257 = vpack.c.b16 %v2208, %v2208
  %v2258 = vpack.c.b16 %v2209, %v2209
  %v2259 = vpack.c.b16 %v2210, %v2210
  %v2260 = vpack.c.b16 %v2211, %v2211
  %v2261 = vpack.c.b16 %v2212, %v2212
  %v2262 = vpack.c.b16 %v2213, %v2213
  %v2263 = vpack.c.b16 %v2214, %v2214
  %v2264 = vpack.c.b16 %v2215, %v2215
  %v2265 = vpack.c.b16 %v2216, %v2216
  %v2266 = vpack.c.b16 %v2217, %v2217
  %v2267 = vpack.c.b16 %v2218, %v2218
  %v2268 = vpack.c.b16 %v2219, %v2219
  %v2269 = vpack.c.b16 %v2220, %v2220
  %v2270 = vpack.c.b16 %v2221, %v2221
  %v2271 = vpack.c.b16 %v2222, %v2222
  %v2272 = vpack.c.b16 %v2223, %v2223
  %v2273 = vpack.c.b16 %v2224, %v2224
  %v2274 = vpack.c.b16 %v2225, %v2225
  %v2275 = vpack.c.b16 %v2226, %v2226
  %v2276 = vpack.c.b16 %v2227, %v2227
  %v2277 = vpack.c.b16 %v2228, %v2228
  %v2278 = vpack.c.b16 %v2229, %v2229
  %v2279 = vpack.c.b16 %v2230, %v2230
  %v2280 = vpack.c.b16 %v2231, %v2231
  %v2281 = vpack.c.b16 %v2232, %v2232
  %v2282 = vpack.c.b16 %v2233, %v2233
  %v2283 = vpack.c.b16 %v2234, %v2234
  %v2284 = vpack.c.b16 %v2235, %v2235
  %v2285 = vpack.c.b16 %v2236, %v2236
  %v2286 = vpack.c.b16 %v2237, %v2237
  %v2287 = vpack.c.b16 %v2238, %v2238
  %v2288 = vpack.c.b16 %v2239, %v2239
  %v2289 = vpack.c.b16 %v2240, %v2240
  %v2290 = vpack.c.b16 %v2241, %v2241
  %v2291 = vpack.c.b16 %v2242, %v2242
  %v2292 = vpack.c.b16 %v2243, %v2243
  %v2293 = vpack.c.b16 %v2244, %v2244
  %v2294 = vpack.c.b16 %v2245, %v2245
  %v2295 = vpack.c.b16 %v2246, %v2246
  %v2296 = vpack.c.b16 %v2247, %v2247
  %v2297 = vpack.c.b16 %v2248, %v2248
  %v2298 = vpack.c.b16 %v2249, %v2249
  %v2299 = vpack.c.b16 %v2250, %v2250
  %v2300 = vpack.c.b16 %v2251, %v2251
  %v2301 = vpack.c.b16 %v2252, %v2252
  %2351 = vst [vmem:[%s6] sm:$0xf] %v2253
  %2352 = vst [vmem:[%s6 + $0x4] sm:$0xf] %v2254
  %2353 = vst [vmem:[%s6 + $0x8] sm:$0xf] %v2255
  %2354 = vst [vmem:[%s6 + $0xc] sm:$0xf] %v2256
  %2355 = vst [vmem:[%s6 + $0x10] sm:$0xf] %v2257
  %2356 = vst [vmem:[%s6 + $0x14] sm:$0xf] %v2258
  %2357 = vst [vmem:[%s6 + $0x18] sm:$0xf] %v2259
  %2358 = vst [vmem:[%s6 + $0x1c] sm:$0xf] %v2260
  %2359 = vst [vmem:[%s6 + $0x20] sm:$0xf] %v2261
  %2360 = vst [vmem:[%s6 + $0x24] sm:$0xf] %v2262
  %2361 = vst [vmem:[%s6 + $0x28] sm:$0xf] %v2263
  %2362 = vst [vmem:[%s6 + $0x2c] sm:$0xf] %v2264
  %2363 = vst [vmem:[%s6 + $0x30] sm:$0xf] %v2265
  %2364 = vst [vmem:[%s6 + $0x34] sm:$0xf] %v2266
  %2365 = vst [vmem:[%s6 + $0x38] sm:$0xf] %v2267
  %2366 = vst [vmem:[%s6 + $0x3c] sm:$0xf] %v2268
  %2367 = vst [vmem:[%s6 + $0x40] sm:$0xf] %v2269
  %2368 = vst [vmem:[%s6 + $0x44] sm:$0xf] %v2270
  %2369 = vst [vmem:[%s6 + $0x48] sm:$0xf] %v2271
  %2370 = vst [vmem:[%s6 + $0x4c] sm:$0xf] %v2272
  %2371 = vst [vmem:[%s6 + $0x50] sm:$0xf] %v2273
  %2372 = vst [vmem:[%s6 + $0x54] sm:$0xf] %v2274
  %2373 = vst [vmem:[%s6 + $0x58] sm:$0xf] %v2275
  %2374 = vst [vmem:[%s6 + $0x5c] sm:$0xf] %v2276
  %2375 = vst [vmem:[%s6 + $0x60] sm:$0xf] %v2277
  %2376 = vst [vmem:[%s6 + $0x64] sm:$0xf] %v2278
  %2377 = vst [vmem:[%s6 + $0x68] sm:$0xf] %v2279
  %2378 = vst [vmem:[%s6 + $0x6c] sm:$0xf] %v2280
  %2379 = vst [vmem:[%s6 + $0x70] sm:$0xf] %v2281
  %2380 = vst [vmem:[%s6 + $0x74] sm:$0xf] %v2282
  %2381 = vst [vmem:[%s6 + $0x78] sm:$0xf] %v2283
  %2382 = vst [vmem:[%s6 + $0x7c] sm:$0xf] %v2284
  %2383 = vst [vmem:[%s6 + $0x80] sm:$0xf] %v2285
  %2384 = vst [vmem:[%s6 + $0x84] sm:$0xf] %v2286
  %2385 = vst [vmem:[%s6 + $0x88] sm:$0xf] %v2287
  %2386 = vst [vmem:[%s6 + $0x8c] sm:$0xf] %v2288
  %2387 = vst [vmem:[%s6 + $0x90] sm:$0xf] %v2289
  %2388 = vst [vmem:[%s6 + $0x94] sm:$0xf] %v2290
  %2389 = vst [vmem:[%s6 + $0x98] sm:$0xf] %v2291
  %2390 = vst [vmem:[%s6 + $0x9c] sm:$0xf] %v2292
  %2391 = vst [vmem:[%s6 + $0xa0] sm:$0xf] %v2293
  %2392 = vst [vmem:[%s6 + $0xa4] sm:$0xf] %v2294
  %2393 = vst [vmem:[%s6 + $0xa8] sm:$0xf] %v2295
  %2394 = vst [vmem:[%s6 + $0xac] sm:$0xf] %v2296
  %2395 = vst [vmem:[%s6 + $0xb0] sm:$0xf] %v2297
  %2396 = vst [vmem:[%s6 + $0xb4] sm:$0xf] %v2298
  %2397 = vst [vmem:[%s6 + $0xb8] sm:$0xf] %v2299
  %2398 = vst [vmem:[%s6 + $0xbc] sm:$0xf] %v2300
  %2399 = vst [vmem:[%s6 + $0xc0] sm:$0xf] %v2301
  // Predicated region
  $region26: #{cnn_forward.3} parent=0 // pred_check
    _
  $region27: #{cnn_forward.3} parent=0 // pred_check_branch
    %2401 = sbr.rel (0) target = $region29
  $region28: #{cnn_forward.3} parent=0 // pred_region
    _
  $region29: #{cnn_forward.3} parent=0 // pred_fallthru
    _
  // Predicated region
  $region30: #{cnn_forward.3} parent=0 // pred_check
    _
  $region31: #{cnn_forward.3} parent=0 // pred_check_branch
    %2403 = sbr.rel (0) target = $region33
  $region32: #{cnn_forward.3} parent=0 // pred_region
    _
  $region33: #{cnn_forward.3} parent=0 // pred_fallthru
    _

// kernel: cnn_forward.4
$region0: #{cnn_forward.4}
  #allocation0 [shape = 'u32[]', space=smem, size = 0x4, offset = 0x4, fixed_abs, tag = 'smem constant byte address 0x4 - core index']
  #allocation1 [shape = 'u32[144,128]{1,0:T(1,128)}', space=vmem, size = 0x12000, scoped, tag = 'internal scratch']
  %s0 = inlined_call_operand.vmem [shape: bf16[72,256], index: 0, kind: input, shape index: {}]
  %s1 = inlined_call_operand.vmem [shape: bf16[72,256], index: 1, kind: input, shape index: {}]
  %s2 = inlined_call_operand.vmem [shape: bf16[72,256], index: 2, kind: input, shape index: {}]
  %s3 = inlined_call_operand.vmem [shape: bf16[72,256], index: 3, kind: input, shape index: {}]
  %s4 = inlined_call_operand.vmem [shape: bf16[256,128], index: 4, kind: input, shape index: {}]
  %s5 = inlined_call_operand.vmem [shape: f32[1,128], index: 5, kind: input, shape index: {}]
  %s6 = inlined_call_operand.vmem [shape: bf16[72,128], index: 6, kind: output, shape index: {}]
  %s7 = sld [smem:[#allocation0]]
  $region34: #{cnn_forward.4} parent=0
    _
  %s9 = ssub.s32 1, %s7
  %s10 = scalar_select 0, %s9, %s7
  // Predicated region
  $region2: #{cnn_forward.4} parent=0 // pred_check
    _
  $region3: #{cnn_forward.4} parent=0 // pred_check_branch
    %12 = sbr.rel (0) target = $region5
  $region4: #{cnn_forward.4} parent=0 // pred_region
    _
  $region5: #{cnn_forward.4} parent=0 // pred_fallthru
    _
  // Predicated region
  $region6: #{cnn_forward.4} parent=0 // pred_check
    _
  $region7: #{cnn_forward.4} parent=0 // pred_check_branch
    %14 = sbr.rel (0) target = $region9
  $region8: #{cnn_forward.4} parent=0 // pred_region
    _
  $region9: #{cnn_forward.4} parent=0 // pred_fallthru
    _
  // Predicated region
  $region10: #{cnn_forward.4} parent=0 // pred_check
    _
  $region11: #{cnn_forward.4} parent=0 // pred_check_branch
    %16 = sbr.rel (0) target = $region13
  $region12: #{cnn_forward.4} parent=0 // pred_region
    _
  $region13: #{cnn_forward.4} parent=0 // pred_fallthru
    _
  // Predicated region
  $region14: #{cnn_forward.4} parent=0 // pred_check
    _
  $region15: #{cnn_forward.4} parent=0 // pred_check_branch
    %18 = sbr.rel (0) target = $region17
  $region16: #{cnn_forward.4} parent=0 // pred_region
    _
  $region17: #{cnn_forward.4} parent=0 // pred_fallthru
    _
  // Predicated region
  $region18: #{cnn_forward.4} parent=0 // pred_check
    _
  $region19: #{cnn_forward.4} parent=0 // pred_check_branch
    %20 = sbr.rel (0) target = $region21
  $region20: #{cnn_forward.4} parent=0 // pred_region
    _
  $region21: #{cnn_forward.4} parent=0 // pred_fallthru
    _
  // Predicated region
  $region22: #{cnn_forward.4} parent=0 // pred_check
    _
  $region23: #{cnn_forward.4} parent=0 // pred_check_branch
    %22 = sbr.rel (0) target = $region25
  $region24: #{cnn_forward.4} parent=0 // pred_region
    _
  $region25: #{cnn_forward.4} parent=0 // pred_fallthru
    _
  %v24 = vld [vmem:[%s4] sm:$0xf]
  %v25 = vld [vmem:[%s4 + $0x4] sm:$0xf]
  %v26 = vld [vmem:[%s4 + $0x8] sm:$0xf]
  %v27 = vld [vmem:[%s4 + $0xc] sm:$0xf]
  %v28 = vld [vmem:[%s4 + $0x10] sm:$0xf]
  %v29 = vld [vmem:[%s4 + $0x14] sm:$0xf]
  %v30 = vld [vmem:[%s4 + $0x18] sm:$0xf]
  %v31 = vld [vmem:[%s4 + $0x1c] sm:$0xf]
  %v32 = vld [vmem:[%s4 + $0x20] sm:$0xf]
  %v33 = vld [vmem:[%s4 + $0x24] sm:$0xf]
  %v34 = vld [vmem:[%s4 + $0x28] sm:$0xf]
  %v35 = vld [vmem:[%s4 + $0x2c] sm:$0xf]
  %v36 = vld [vmem:[%s4 + $0x30] sm:$0xf]
  %v37 = vld [vmem:[%s4 + $0x34] sm:$0xf]
  %v38 = vld [vmem:[%s4 + $0x38] sm:$0xf]
  %v39 = vld [vmem:[%s4 + $0x3c] sm:$0xf]
  %v40 = vld [vmem:[%s4 + $0x40] sm:$0xf]
  %v41 = vld [vmem:[%s4 + $0x44] sm:$0xf]
  %v42 = vld [vmem:[%s4 + $0x48] sm:$0xf]
  %v43 = vld [vmem:[%s4 + $0x4c] sm:$0xf]
  %v44 = vld [vmem:[%s4 + $0x50] sm:$0xf]
  %v45 = vld [vmem:[%s4 + $0x54] sm:$0xf]
  %v46 = vld [vmem:[%s4 + $0x58] sm:$0xf]
  %v47 = vld [vmem:[%s4 + $0x5c] sm:$0xf]
  %v48 = vld [vmem:[%s4 + $0x60] sm:$0xf]
  %v49 = vld [vmem:[%s4 + $0x64] sm:$0xf]
  %v50 = vld [vmem:[%s4 + $0x68] sm:$0xf]
  %v51 = vld [vmem:[%s4 + $0x6c] sm:$0xf]
  %v52 = vld [vmem:[%s4 + $0x70] sm:$0xf]
  %v53 = vld [vmem:[%s4 + $0x74] sm:$0xf]
  %v54 = vld [vmem:[%s4 + $0x78] sm:$0xf]
  %v55 = vld [vmem:[%s4 + $0x7c] sm:$0xf]
  %v56 = vld [vmem:[%s5] sm:$0x1]
  %v57 = vld [vmem:[%s0] sm:$0xff]
  %v58 = vld [vmem:[%s0 + $0x8] sm:$0xff]
  %v59 = vld [vmem:[%s0 + $0x10] sm:$0xff]
  %v60 = vld [vmem:[%s0 + $0x18] sm:$0xff]
  %v61 = vld [vmem:[%s0 + $0x20] sm:$0xff]
  %v62 = vld [vmem:[%s0 + $0x28] sm:$0xff]
  %v63 = vld [vmem:[%s0 + $0x30] sm:$0xff]
  %v64 = vld [vmem:[%s0 + $0x38] sm:$0xff]
  %v65 = vld [vmem:[%s0 + $0x40] sm:$0xff]
  %v67 = vlaneseq
  %v68 = vshrl.u32 %v67, 7
  %v69 = vsub.s32 0, %v68
  %v70 = vrot.slane %v56, %v69
  %v81 = vunpack.c.l.b16 %v57
  %v82 = vunpack.c.h.b16 %v57
  %v83 = vunpack.c.l.b16 %v58
  %v84 = vunpack.c.h.b16 %v58
  %v85 = vunpack.c.l.b16 %v59
  %v86 = vunpack.c.h.b16 %v59
  %v87 = vunpack.c.l.b16 %v60
  %v88 = vunpack.c.h.b16 %v60
  %v89 = vunpack.c.l.b16 %v61
  %v90 = vunpack.c.h.b16 %v61
  %v91 = vunpack.c.l.b16 %v62
  %v92 = vunpack.c.h.b16 %v62
  %v93 = vunpack.c.l.b16 %v63
  %v94 = vunpack.c.h.b16 %v63
  %v95 = vunpack.c.l.b16 %v64
  %v96 = vunpack.c.h.b16 %v64
  %v97 = vunpack.c.l.b16 %v65
  %v98 = vunpack.c.h.b16 %v65
  %v99 = vpack.c.b16 %v83, %v81
  %v100 = vpack.c.b16 %v84, %v82
  %v101 = vpack.c.b16 %v87, %v85
  %v102 = vpack.c.b16 %v88, %v86
  %v103 = vpack.c.b16 %v91, %v89
  %v104 = vpack.c.b16 %v92, %v90
  %v105 = vpack.c.b16 %v95, %v93
  %v106 = vpack.c.b16 %v96, %v94
  %v107 = vpack.c.b16 %v97, %v97
  %v108 = vpack.c.b16 %v98, %v98
  %v151 = vunpack.c.l.b16 %v24
  %v152 = vunpack.c.l.b16 %v25
  %v153 = vunpack.c.l.b16 %v26
  %v154 = vunpack.c.l.b16 %v27
  %v155 = vunpack.c.l.b16 %v28
  %v156 = vunpack.c.l.b16 %v29
  %v157 = vunpack.c.l.b16 %v30
  %v158 = vunpack.c.l.b16 %v31
  %v159 = vunpack.c.l.b16 %v32
  %v160 = vunpack.c.l.b16 %v33
  %v161 = vunpack.c.l.b16 %v34
  %v162 = vunpack.c.l.b16 %v35
  %v163 = vunpack.c.l.b16 %v36
  %v164 = vunpack.c.l.b16 %v37
  %v165 = vunpack.c.l.b16 %v38
  %v166 = vunpack.c.l.b16 %v39
  %v167 = vunpack.c.l.b16 %v40
  %v168 = vunpack.c.l.b16 %v41
  %v169 = vunpack.c.l.b16 %v42
  %v170 = vunpack.c.l.b16 %v43
  %v171 = vunpack.c.l.b16 %v44
  %v172 = vunpack.c.l.b16 %v45
  %v173 = vunpack.c.l.b16 %v46
  %v174 = vunpack.c.l.b16 %v47
  %v175 = vunpack.c.l.b16 %v48
  %v176 = vunpack.c.l.b16 %v49
  %v177 = vunpack.c.l.b16 %v50
  %v178 = vunpack.c.l.b16 %v51
  %v179 = vunpack.c.l.b16 %v52
  %v180 = vunpack.c.l.b16 %v53
  %v181 = vunpack.c.l.b16 %v54
  %v182 = vunpack.c.l.b16 %v55
  %v183 = vpack.c.b16 %v152, %v151
  %v184 = vpack.c.b16 %v154, %v153
  %v185 = vpack.c.b16 %v156, %v155
  %v186 = vpack.c.b16 %v158, %v157
  %v187 = vpack.c.b16 %v160, %v159
  %v188 = vpack.c.b16 %v162, %v161
  %v189 = vpack.c.b16 %v164, %v163
  %v190 = vpack.c.b16 %v166, %v165
  %v191 = vpack.c.b16 %v168, %v167
  %v192 = vpack.c.b16 %v170, %v169
  %v193 = vpack.c.b16 %v172, %v171
  %v194 = vpack.c.b16 %v174, %v173
  %v195 = vpack.c.b16 %v176, %v175
  %v196 = vpack.c.b16 %v178, %v177
  %v197 = vpack.c.b16 %v180, %v179
  %v198 = vpack.c.b16 %v182, %v181
  %215 = vmatprep.subr.bf16.mxu0 0
  %216 = vmatpush1.bf16.msra.mxu0 %v183
  %217 = vmatprep.subr.bf16.mxu0 0
  %218 = vmatpush1.bf16.msra.mxu0 %v184
  %219 = vmatprep.subr.bf16.mxu0 0
  %220 = vmatpush1.bf16.msra.mxu0 %v185
  %221 = vmatprep.subr.bf16.mxu0 0
  %222 = vmatpush1.bf16.msra.mxu0 %v186
  %223 = vmatprep.subr.bf16.mxu0 0
  %224 = vmatpush1.bf16.msra.mxu0 %v187
  %225 = vmatprep.subr.bf16.mxu0 0
  %226 = vmatpush1.bf16.msra.mxu0 %v188
  %227 = vmatprep.subr.bf16.mxu0 0
  %228 = vmatpush1.bf16.msra.mxu0 %v189
  %229 = vmatprep.subr.bf16.mxu0 0
  %230 = vmatpush1.bf16.msra.mxu0 %v190
  %231 = vmatprep.subr.bf16.mxu0 0
  %232 = vmatpush1.bf16.msra.mxu0 %v191
  %233 = vmatprep.subr.bf16.mxu0 0
  %234 = vmatpush1.bf16.msra.mxu0 %v192
  %235 = vmatprep.subr.bf16.mxu0 0
  %236 = vmatpush1.bf16.msra.mxu0 %v193
  %237 = vmatprep.subr.bf16.mxu0 0
  %238 = vmatpush1.bf16.msra.mxu0 %v194
  %239 = vmatprep.subr.bf16.mxu0 0
  %240 = vmatpush1.bf16.msra.mxu0 %v195
  %241 = vmatprep.subr.bf16.mxu0 0
  %242 = vmatpush1.bf16.msra.mxu0 %v196
  %243 = vmatprep.subr.bf16.mxu0 0
  %244 = vmatpush1.bf16.msra.mxu0 %v197
  %245 = vmatprep.subr.bf16.mxu0 0
  %246 = vmatpush1.bf16.msra.mxu0 %v198
  %247 = vmatprep.mubr.bf16.mxu0 %v100
  %248 = vmatmul.mubr.bf16.gmra.mrb[0].mxu0 %v99
  %v249 = vpop.f32.mrb[0].mxu0
  %v250 = vadd.f32 %v70, %v249
  %v251 = vpop.f32.mrb[0].mxu0
  %v252 = vpop.f32.mrb[0].mxu0
  %v253 = vadd.f32 %v70, %v252
  %v254 = vpop.f32.mrb[0].mxu0
  %255 = vmatprep.mubr.bf16.mxu0 %v102
  %256 = vmatmul.mubr.bf16.gmra.mrb[0].mxu0 %v101
  %v257 = vpop.f32.mrb[0].mxu0
  %v258 = vadd.f32 %v70, %v257
  %v259 = vpop.f32.mrb[0].mxu0
  %v260 = vpop.f32.mrb[0].mxu0
  %v261 = vadd.f32 %v70, %v260
  %v262 = vpop.f32.mrb[0].mxu0
  %263 = vmatprep.mubr.bf16.mxu0 %v104
  %264 = vmatmul.mubr.bf16.gmra.mrb[0].mxu0 %v103
  %v265 = vpop.f32.mrb[0].mxu0
  %v266 = vadd.f32 %v70, %v265
  %v267 = vpop.f32.mrb[0].mxu0
  %v268 = vpop.f32.mrb[0].mxu0
  %v269 = vadd.f32 %v70, %v268
  %v270 = vpop.f32.mrb[0].mxu0
  %271 = vmatprep.mubr.bf16.mxu0 %v106
  %272 = vmatmul.mubr.bf16.gmra.mrb[0].mxu0 %v105
  %v273 = vpop.f32.mrb[0].mxu0
  %v274 = vadd.f32 %v70, %v273
  %v275 = vpop.f32.mrb[0].mxu0
  %v276 = vpop.f32.mrb[0].mxu0
  %v277 = vadd.f32 %v70, %v276
  %v278 = vpop.f32.mrb[0].mxu0
  %279 = vmatprep.mubr.bf16.mxu0 %v108
  %280 = vmatmul.mubr.bf16.gmra.mrb[0].mxu0 %v107
  %v281 = vpop.f32.mrb[0].mxu0
  %v282 = vadd.f32 %v70, %v281
  %v283 = vpop.f32.mrb[0].mxu0
  %v284 = vpop.f32.mrb[0].mxu0
  %v285 = vpop.f32.mrb[0].mxu0
  %286 = vdwg.mxu0
  %v287 = vmax.f32 %v250, 0.0
  %v288 = vmax.f32 %v253, 0.0
  %v289 = vmax.f32 %v258, 0.0
  %v290 = vmax.f32 %v261, 0.0
  %v291 = vmax.f32 %v266, 0.0
  %v292 = vmax.f32 %v269, 0.0
  %v293 = vmax.f32 %v274, 0.0
  %v294 = vmax.f32 %v277, 0.0
  %v295 = vmax.f32 %v282, 0.0
  %v296 = vld [vmem:[%s1] sm:$0xff]
  %v297 = vld [vmem:[%s1 + $0x8] sm:$0xff]
  %v298 = vld [vmem:[%s1 + $0x10] sm:$0xff]
  %v299 = vld [vmem:[%s1 + $0x18] sm:$0xff]
  %v300 = vld [vmem:[%s1 + $0x20] sm:$0xff]
  %v301 = vld [vmem:[%s1 + $0x28] sm:$0xff]
  %v302 = vld [vmem:[%s1 + $0x30] sm:$0xff]
  %v303 = vld [vmem:[%s1 + $0x38] sm:$0xff]
  %v304 = vld [vmem:[%s1 + $0x40] sm:$0xff]
  %v314 = vunpack.c.l.b16 %v296
  %v315 = vunpack.c.h.b16 %v296
  %v316 = vunpack.c.l.b16 %v297
  %v317 = vunpack.c.h.b16 %v297
  %v318 = vunpack.c.l.b16 %v298
  %v319 = vunpack.c.h.b16 %v298
  %v320 = vunpack.c.l.b16 %v299
  %v321 = vunpack.c.h.b16 %v299
  %v322 = vunpack.c.l.b16 %v300
  %v323 = vunpack.c.h.b16 %v300
  %v324 = vunpack.c.l.b16 %v301
  %v325 = vunpack.c.h.b16 %v301
  %v326 = vunpack.c.l.b16 %v302
  %v327 = vunpack.c.h.b16 %v302
  %v328 = vunpack.c.l.b16 %v303
  %v329 = vunpack.c.h.b16 %v303
  %v330 = vunpack.c.l.b16 %v304
  %v331 = vunpack.c.h.b16 %v304
  %v332 = vpack.c.b16 %v316, %v314
  %v333 = vpack.c.b16 %v317, %v315
  %v334 = vpack.c.b16 %v320, %v318
  %v335 = vpack.c.b16 %v321, %v319
  %v336 = vpack.c.b16 %v324, %v322
  %v337 = vpack.c.b16 %v325, %v323
  %v338 = vpack.c.b16 %v328, %v326
  %v339 = vpack.c.b16 %v329, %v327
  %v340 = vpack.c.b16 %v330, %v330
  %v341 = vpack.c.b16 %v331, %v331
  %352 = vmatprep.subr.bf16.mxu0 0
  %353 = vmatpush1.bf16.msra.mxu0 %v183
  %354 = vmatprep.subr.bf16.mxu0 0
  %355 = vmatpush1.bf16.msra.mxu0 %v184
  %356 = vmatprep.subr.bf16.mxu0 0
  %357 = vmatpush1.bf16.msra.mxu0 %v185
  %358 = vmatprep.subr.bf16.mxu0 0
  %359 = vmatpush1.bf16.msra.mxu0 %v186
  %360 = vmatprep.subr.bf16.mxu0 0
  %361 = vmatpush1.bf16.msra.mxu0 %v187
  %362 = vmatprep.subr.bf16.mxu0 0
  %363 = vmatpush1.bf16.msra.mxu0 %v188
  %364 = vmatprep.subr.bf16.mxu0 0
  %365 = vmatpush1.bf16.msra.mxu0 %v189
  %366 = vmatprep.subr.bf16.mxu0 0
  %367 = vmatpush1.bf16.msra.mxu0 %v190
  %368 = vmatprep.subr.bf16.mxu0 0
  %369 = vmatpush1.bf16.msra.mxu0 %v191
  %370 = vmatprep.subr.bf16.mxu0 0
  %371 = vmatpush1.bf16.msra.mxu0 %v192
  %372 = vmatprep.subr.bf16.mxu0 0
  %373 = vmatpush1.bf16.msra.mxu0 %v193
  %374 = vmatprep.subr.bf16.mxu0 0
  %375 = vmatpush1.bf16.msra.mxu0 %v194
  %376 = vmatprep.subr.bf16.mxu0 0
  %377 = vmatpush1.bf16.msra.mxu0 %v195
  %378 = vmatprep.subr.bf16.mxu0 0
  %379 = vmatpush1.bf16.msra.mxu0 %v196
  %380 = vmatprep.subr.bf16.mxu0 0
  %381 = vmatpush1.bf16.msra.mxu0 %v197
  %382 = vmatprep.subr.bf16.mxu0 0
  %383 = vmatpush1.bf16.msra.mxu0 %v198
  %384 = vmatprep.mubr.bf16.mxu0 %v333
  %385 = vmatmul.mubr.bf16.gmra.mrb[0].mxu0 %v332
  %v386 = vpop.f32.mrb[0].mxu0
  %v387 = vadd.f32 %v70, %v386
  %v388 = vpop.f32.mrb[0].mxu0
  %v389 = vpop.f32.mrb[0].mxu0
  %v390 = vadd.f32 %v70, %v389
  %v391 = vpop.f32.mrb[0].mxu0
  %392 = vmatprep.mubr.bf16.mxu0 %v335
  %393 = vmatmul.mubr.bf16.gmra.mrb[0].mxu0 %v334
  %v394 = vpop.f32.mrb[0].mxu0
  %v395 = vadd.f32 %v70, %v394
  %v396 = vpop.f32.mrb[0].mxu0
  %v397 = vpop.f32.mrb[0].mxu0
  %v398 = vadd.f32 %v70, %v397
  %v399 = vpop.f32.mrb[0].mxu0
  %400 = vmatprep.mubr.bf16.mxu0 %v337
  %401 = vmatmul.mubr.bf16.gmra.mrb[0].mxu0 %v336
  %v402 = vpop.f32.mrb[0].mxu0
  %v403 = vadd.f32 %v70, %v402
  %v404 = vpop.f32.mrb[0].mxu0
  %v405 = vpop.f32.mrb[0].mxu0
  %v406 = vadd.f32 %v70, %v405
  %v407 = vpop.f32.mrb[0].mxu0
  %408 = vmatprep.mubr.bf16.mxu0 %v339
  %409 = vmatmul.mubr.bf16.gmra.mrb[0].mxu0 %v338
  %v410 = vpop.f32.mrb[0].mxu0
  %v411 = vadd.f32 %v70, %v410
  %v412 = vpop.f32.mrb[0].mxu0
  %v413 = vpop.f32.mrb[0].mxu0
  %v414 = vadd.f32 %v70, %v413
  %v415 = vpop.f32.mrb[0].mxu0
  %416 = vmatprep.mubr.bf16.mxu0 %v341
  %417 = vmatmul.mubr.bf16.gmra.mrb[0].mxu0 %v340
  %v418 = vpop.f32.mrb[0].mxu0
  %v419 = vadd.f32 %v70, %v418
  %v420 = vpop.f32.mrb[0].mxu0
  %v421 = vpop.f32.mrb[0].mxu0
  %v422 = vpop.f32.mrb[0].mxu0
  %423 = vdwg.mxu0
  %v424 = vmax.f32 %v387, 0.0
  %v425 = vmax.f32 %v390, 0.0
  %v426 = vmax.f32 %v395, 0.0
  %v427 = vmax.f32 %v398, 0.0
  %v428 = vmax.f32 %v403, 0.0
  %v429 = vmax.f32 %v406, 0.0
  %v430 = vmax.f32 %v411, 0.0
  %v431 = vmax.f32 %v414, 0.0
  %v432 = vmax.f32 %v419, 0.0
  %v433 = vmax.f32 %v287, %v424
  %v434 = vmax.f32 %v288, %v425
  %v435 = vmax.f32 %v289, %v426
  %v436 = vmax.f32 %v290, %v427
  %v437 = vmax.f32 %v291, %v428
  %v438 = vmax.f32 %v292, %v429
  %v439 = vmax.f32 %v293, %v430
  %v440 = vmax.f32 %v294, %v431
  %v441 = vmax.f32 %v295, %v432
  %v442 = vld [vmem:[%s2] sm:$0xff]
  %v443 = vld [vmem:[%s2 + $0x8] sm:$0xff]
  %v444 = vld [vmem:[%s2 + $0x10] sm:$0xff]
  %v445 = vld [vmem:[%s2 + $0x18] sm:$0xff]
  %v446 = vld [vmem:[%s2 + $0x20] sm:$0xff]
  %v447 = vld [vmem:[%s2 + $0x28] sm:$0xff]
  %v448 = vld [vmem:[%s2 + $0x30] sm:$0xff]
  %v449 = vld [vmem:[%s2 + $0x38] sm:$0xff]
  %v450 = vld [vmem:[%s2 + $0x40] sm:$0xff]
  %v460 = vunpack.c.l.b16 %v442
  %v461 = vunpack.c.h.b16 %v442
  %v462 = vunpack.c.l.b16 %v443
  %v463 = vunpack.c.h.b16 %v443
  %v464 = vunpack.c.l.b16 %v444
  %v465 = vunpack.c.h.b16 %v444
  %v466 = vunpack.c.l.b16 %v445
  %v467 = vunpack.c.h.b16 %v445
  %v468 = vunpack.c.l.b16 %v446
  %v469 = vunpack.c.h.b16 %v446
  %v470 = vunpack.c.l.b16 %v447
  %v471 = vunpack.c.h.b16 %v447
  %v472 = vunpack.c.l.b16 %v448
  %v473 = vunpack.c.h.b16 %v448
  %v474 = vunpack.c.l.b16 %v449
  %v475 = vunpack.c.h.b16 %v449
  %v476 = vunpack.c.l.b16 %v450
  %v477 = vunpack.c.h.b16 %v450
  %v478 = vpack.c.b16 %v462, %v460
  %v479 = vpack.c.b16 %v463, %v461
  %v480 = vpack.c.b16 %v466, %v464
  %v481 = vpack.c.b16 %v467, %v465
  %v482 = vpack.c.b16 %v470, %v468
  %v483 = vpack.c.b16 %v471, %v469
  %v484 = vpack.c.b16 %v474, %v472
  %v485 = vpack.c.b16 %v475, %v473
  %v486 = vpack.c.b16 %v476, %v476
  %v487 = vpack.c.b16 %v477, %v477
  %498 = vmatprep.subr.bf16.mxu0 0
  %499 = vmatpush1.bf16.msra.mxu0 %v183
  %500 = vmatprep.subr.bf16.mxu0 0
  %501 = vmatpush1.bf16.msra.mxu0 %v184
  %502 = vmatprep.subr.bf16.mxu0 0
  %503 = vmatpush1.bf16.msra.mxu0 %v185
  %504 = vmatprep.subr.bf16.mxu0 0
  %505 = vmatpush1.bf16.msra.mxu0 %v186
  %506 = vmatprep.subr.bf16.mxu0 0
  %507 = vmatpush1.bf16.msra.mxu0 %v187
  %508 = vmatprep.subr.bf16.mxu0 0
  %509 = vmatpush1.bf16.msra.mxu0 %v188
  %510 = vmatprep.subr.bf16.mxu0 0
  %511 = vmatpush1.bf16.msra.mxu0 %v189
  %512 = vmatprep.subr.bf16.mxu0 0
  %513 = vmatpush1.bf16.msra.mxu0 %v190
  %514 = vmatprep.subr.bf16.mxu0 0
  %515 = vmatpush1.bf16.msra.mxu0 %v191
  %516 = vmatprep.subr.bf16.mxu0 0
  %517 = vmatpush1.bf16.msra.mxu0 %v192
  %518 = vmatprep.subr.bf16.mxu0 0
  %519 = vmatpush1.bf16.msra.mxu0 %v193
  %520 = vmatprep.subr.bf16.mxu0 0
  %521 = vmatpush1.bf16.msra.mxu0 %v194
  %522 = vmatprep.subr.bf16.mxu0 0
  %523 = vmatpush1.bf16.msra.mxu0 %v195
  %524 = vmatprep.subr.bf16.mxu0 0
  %525 = vmatpush1.bf16.msra.mxu0 %v196
  %526 = vmatprep.subr.bf16.mxu0 0
  %527 = vmatpush1.bf16.msra.mxu0 %v197
  %528 = vmatprep.subr.bf16.mxu0 0
  %529 = vmatpush1.bf16.msra.mxu0 %v198
  %530 = vmatprep.mubr.bf16.mxu0 %v479
  %531 = vmatmul.mubr.bf16.gmra.mrb[0].mxu0 %v478
  %v532 = vpop.f32.mrb[0].mxu0
  %v533 = vadd.f32 %v70, %v532
  %v534 = vpop.f32.mrb[0].mxu0
  %v535 = vpop.f32.mrb[0].mxu0
  %v536 = vadd.f32 %v70, %v535
  %v537 = vpop.f32.mrb[0].mxu0
  %538 = vmatprep.mubr.bf16.mxu0 %v481
  %539 = vmatmul.mubr.bf16.gmra.mrb[0].mxu0 %v480
  %v540 = vpop.f32.mrb[0].mxu0
  %v541 = vadd.f32 %v70, %v540
  %v542 = vpop.f32.mrb[0].mxu0
  %v543 = vpop.f32.mrb[0].mxu0
  %v544 = vadd.f32 %v70, %v543
  %v545 = vpop.f32.mrb[0].mxu0
  %546 = vmatprep.mubr.bf16.mxu0 %v483
  %547 = vmatmul.mubr.bf16.gmra.mrb[0].mxu0 %v482
  %v548 = vpop.f32.mrb[0].mxu0
  %v549 = vadd.f32 %v70, %v548
  %v550 = vpop.f32.mrb[0].mxu0
  %v551 = vpop.f32.mrb[0].mxu0
  %v552 = vadd.f32 %v70, %v551
  %v553 = vpop.f32.mrb[0].mxu0
  %554 = vmatprep.mubr.bf16.mxu0 %v485
  %555 = vmatmul.mubr.bf16.gmra.mrb[0].mxu0 %v484
  %v556 = vpop.f32.mrb[0].mxu0
  %v557 = vadd.f32 %v70, %v556
  %v558 = vpop.f32.mrb[0].mxu0
  %v559 = vpop.f32.mrb[0].mxu0
  %v560 = vadd.f32 %v70, %v559
  %v561 = vpop.f32.mrb[0].mxu0
  %562 = vmatprep.mubr.bf16.mxu0 %v487
  %563 = vmatmul.mubr.bf16.gmra.mrb[0].mxu0 %v486
  %v564 = vpop.f32.mrb[0].mxu0
  %v565 = vadd.f32 %v70, %v564
  %v566 = vpop.f32.mrb[0].mxu0
  %v567 = vpop.f32.mrb[0].mxu0
  %v568 = vpop.f32.mrb[0].mxu0
  %569 = vdwg.mxu0
  %v570 = vmax.f32 %v533, 0.0
  %v571 = vmax.f32 %v536, 0.0
  %v572 = vmax.f32 %v541, 0.0
  %v573 = vmax.f32 %v544, 0.0
  %v574 = vmax.f32 %v549, 0.0
  %v575 = vmax.f32 %v552, 0.0
  %v576 = vmax.f32 %v557, 0.0
  %v577 = vmax.f32 %v560, 0.0
  %v578 = vmax.f32 %v565, 0.0
  %v579 = vld [vmem:[%s3] sm:$0xff]
  %v580 = vld [vmem:[%s3 + $0x8] sm:$0xff]
  %v581 = vld [vmem:[%s3 + $0x10] sm:$0xff]
  %v582 = vld [vmem:[%s3 + $0x18] sm:$0xff]
  %v583 = vld [vmem:[%s3 + $0x20] sm:$0xff]
  %v584 = vld [vmem:[%s3 + $0x28] sm:$0xff]
  %v585 = vld [vmem:[%s3 + $0x30] sm:$0xff]
  %v586 = vld [vmem:[%s3 + $0x38] sm:$0xff]
  %v587 = vld [vmem:[%s3 + $0x40] sm:$0xff]
  %v597 = vunpack.c.l.b16 %v579
  %v598 = vunpack.c.h.b16 %v579
  %v599 = vunpack.c.l.b16 %v580
  %v600 = vunpack.c.h.b16 %v580
  %v601 = vunpack.c.l.b16 %v581
  %v602 = vunpack.c.h.b16 %v581
  %v603 = vunpack.c.l.b16 %v582
  %v604 = vunpack.c.h.b16 %v582
  %v605 = vunpack.c.l.b16 %v583
  %v606 = vunpack.c.h.b16 %v583
  %v607 = vunpack.c.l.b16 %v584
  %v608 = vunpack.c.h.b16 %v584
  %v609 = vunpack.c.l.b16 %v585
  %v610 = vunpack.c.h.b16 %v585
  %v611 = vunpack.c.l.b16 %v586
  %v612 = vunpack.c.h.b16 %v586
  %v613 = vunpack.c.l.b16 %v587
  %v614 = vunpack.c.h.b16 %v587
  %v615 = vpack.c.b16 %v599, %v597
  %v616 = vpack.c.b16 %v600, %v598
  %v617 = vpack.c.b16 %v603, %v601
  %v618 = vpack.c.b16 %v604, %v602
  %v619 = vpack.c.b16 %v607, %v605
  %v620 = vpack.c.b16 %v608, %v606
  %v621 = vpack.c.b16 %v611, %v609
  %v622 = vpack.c.b16 %v612, %v610
  %v623 = vpack.c.b16 %v613, %v613
  %v624 = vpack.c.b16 %v614, %v614
  %635 = vmatprep.subr.bf16.mxu0 0
  %636 = vmatpush1.bf16.msra.mxu0 %v183
  %637 = vmatprep.subr.bf16.mxu0 0
  %638 = vmatpush1.bf16.msra.mxu0 %v184
  %639 = vmatprep.subr.bf16.mxu0 0
  %640 = vmatpush1.bf16.msra.mxu0 %v185
  %641 = vmatprep.subr.bf16.mxu0 0
  %642 = vmatpush1.bf16.msra.mxu0 %v186
  %643 = vmatprep.subr.bf16.mxu0 0
  %644 = vmatpush1.bf16.msra.mxu0 %v187
  %645 = vmatprep.subr.bf16.mxu0 0
  %646 = vmatpush1.bf16.msra.mxu0 %v188
  %647 = vmatprep.subr.bf16.mxu0 0
  %648 = vmatpush1.bf16.msra.mxu0 %v189
  %649 = vmatprep.subr.bf16.mxu0 0
  %650 = vmatpush1.bf16.msra.mxu0 %v190
  %651 = vmatprep.subr.bf16.mxu0 0
  %652 = vmatpush1.bf16.msra.mxu0 %v191
  %653 = vmatprep.subr.bf16.mxu0 0
  %654 = vmatpush1.bf16.msra.mxu0 %v192
  %655 = vmatprep.subr.bf16.mxu0 0
  %656 = vmatpush1.bf16.msra.mxu0 %v193
  %657 = vmatprep.subr.bf16.mxu0 0
  %658 = vmatpush1.bf16.msra.mxu0 %v194
  %659 = vmatprep.subr.bf16.mxu0 0
  %660 = vmatpush1.bf16.msra.mxu0 %v195
  %661 = vmatprep.subr.bf16.mxu0 0
  %662 = vmatpush1.bf16.msra.mxu0 %v196
  %663 = vmatprep.subr.bf16.mxu0 0
  %664 = vmatpush1.bf16.msra.mxu0 %v197
  %665 = vmatprep.subr.bf16.mxu0 0
  %666 = vmatpush1.bf16.msra.mxu0 %v198
  %667 = vmatprep.mubr.bf16.mxu0 %v616
  %668 = vmatmul.mubr.bf16.gmra.mrb[0].mxu0 %v615
  %v669 = vpop.f32.mrb[0].mxu0
  %v670 = vadd.f32 %v70, %v669
  %v671 = vpop.f32.mrb[0].mxu0
  %v672 = vpop.f32.mrb[0].mxu0
  %v673 = vadd.f32 %v70, %v672
  %v674 = vpop.f32.mrb[0].mxu0
  %675 = vmatprep.mubr.bf16.mxu0 %v618
  %676 = vmatmul.mubr.bf16.gmra.mrb[0].mxu0 %v617
  %v677 = vpop.f32.mrb[0].mxu0
  %v678 = vadd.f32 %v70, %v677
  %v679 = vpop.f32.mrb[0].mxu0
  %v680 = vpop.f32.mrb[0].mxu0
  %v681 = vadd.f32 %v70, %v680
  %v682 = vpop.f32.mrb[0].mxu0
  %683 = vmatprep.mubr.bf16.mxu0 %v620
  %684 = vmatmul.mubr.bf16.gmra.mrb[0].mxu0 %v619
  %v685 = vpop.f32.mrb[0].mxu0
  %v686 = vadd.f32 %v70, %v685
  %v687 = vpop.f32.mrb[0].mxu0
  %v688 = vpop.f32.mrb[0].mxu0
  %v689 = vadd.f32 %v70, %v688
  %v690 = vpop.f32.mrb[0].mxu0
  %691 = vmatprep.mubr.bf16.mxu0 %v622
  %692 = vmatmul.mubr.bf16.gmra.mrb[0].mxu0 %v621
  %v693 = vpop.f32.mrb[0].mxu0
  %v694 = vadd.f32 %v70, %v693
  %v695 = vpop.f32.mrb[0].mxu0
  %v696 = vpop.f32.mrb[0].mxu0
  %v697 = vadd.f32 %v70, %v696
  %v698 = vpop.f32.mrb[0].mxu0
  %699 = vmatprep.mubr.bf16.mxu0 %v624
  %700 = vmatmul.mubr.bf16.gmra.mrb[0].mxu0 %v623
  %v701 = vpop.f32.mrb[0].mxu0
  %v702 = vadd.f32 %v70, %v701
  %v703 = vpop.f32.mrb[0].mxu0
  %v704 = vpop.f32.mrb[0].mxu0
  %v705 = vpop.f32.mrb[0].mxu0
  %706 = vdwg.mxu0
  %v707 = vmax.f32 %v670, 0.0
  %v708 = vmax.f32 %v673, 0.0
  %v709 = vmax.f32 %v678, 0.0
  %v710 = vmax.f32 %v681, 0.0
  %v711 = vmax.f32 %v686, 0.0
  %v712 = vmax.f32 %v689, 0.0
  %v713 = vmax.f32 %v694, 0.0
  %v714 = vmax.f32 %v697, 0.0
  %v715 = vmax.f32 %v702, 0.0
  %v716 = vmax.f32 %v570, %v707
  %v717 = vmax.f32 %v571, %v708
  %v718 = vmax.f32 %v572, %v709
  %v719 = vmax.f32 %v573, %v710
  %v720 = vmax.f32 %v574, %v711
  %v721 = vmax.f32 %v575, %v712
  %v722 = vmax.f32 %v576, %v713
  %v723 = vmax.f32 %v577, %v714
  %v724 = vmax.f32 %v578, %v715
  %v725 = vmax.f32 %v433, %v716
  %v726 = vmax.f32 %v434, %v717
  %v727 = vmax.f32 %v435, %v718
  %v728 = vmax.f32 %v436, %v719
  %v729 = vmax.f32 %v437, %v720
  %v730 = vmax.f32 %v438, %v721
  %v731 = vmax.f32 %v439, %v722
  %v732 = vmax.f32 %v440, %v723
  %v733 = vmax.f32 %v441, %v724
  %v734 = vpack.c.bf16 %v726, %v725
  %v735 = vpack.c.bf16 %v728, %v727
  %v736 = vpack.c.bf16 %v730, %v729
  %v737 = vpack.c.bf16 %v732, %v731
  %v738 = vpack.c.bf16 %v733, %v733
  %v744 = vunpack.c.l.b16 %v734
  %v745 = vunpack.c.h.b16 %v734
  %v746 = vunpack.c.l.b16 %v735
  %v747 = vunpack.c.h.b16 %v735
  %v748 = vunpack.c.l.b16 %v736
  %v749 = vunpack.c.h.b16 %v736
  %v750 = vunpack.c.l.b16 %v737
  %v751 = vunpack.c.h.b16 %v737
  %v752 = vunpack.c.l.b16 %v738
  %v753 = vpack.c.b16 %v744, %v744
  %v754 = vpack.c.b16 %v745, %v745
  %v755 = vpack.c.b16 %v746, %v746
  %v756 = vpack.c.b16 %v747, %v747
  %v757 = vpack.c.b16 %v748, %v748
  %v758 = vpack.c.b16 %v749, %v749
  %v759 = vpack.c.b16 %v750, %v750
  %v760 = vpack.c.b16 %v751, %v751
  %v761 = vpack.c.b16 %v752, %v752
  %771 = vst [vmem:[%s6] sm:$0xf] %v753
  %772 = vst [vmem:[%s6 + $0x4] sm:$0xf] %v754
  %773 = vst [vmem:[%s6 + $0x8] sm:$0xf] %v755
  %774 = vst [vmem:[%s6 + $0xc] sm:$0xf] %v756
  %775 = vst [vmem:[%s6 + $0x10] sm:$0xf] %v757
  %776 = vst [vmem:[%s6 + $0x14] sm:$0xf] %v758
  %777 = vst [vmem:[%s6 + $0x18] sm:$0xf] %v759
  %778 = vst [vmem:[%s6 + $0x1c] sm:$0xf] %v760
  %779 = vst [vmem:[%s6 + $0x20] sm:$0xf] %v761
  // Predicated region
  $region26: #{cnn_forward.4} parent=0 // pred_check
    _
  $region27: #{cnn_forward.4} parent=0 // pred_check_branch
    %781 = sbr.rel (0) target = $region29
  $region28: #{cnn_forward.4} parent=0 // pred_region
    _
  $region29: #{cnn_forward.4} parent=0 // pred_fallthru
    _
  // Predicated region
  $region30: #{cnn_forward.4} parent=0 // pred_check
    _
  $region31: #{cnn_forward.4} parent=0 // pred_check_branch
    %783 = sbr.rel (0) target = $region33
  $region32: #{cnn_forward.4} parent=0 // pred_region
    _
  $region33: #{cnn_forward.4} parent=0 // pred_fallthru
    _

// kernel: cnn_forward.5
$region0: #{cnn_forward.5}
  #allocation0 [shape = 'u32[]', space=smem, size = 0x4, offset = 0x4, fixed_abs, tag = 'smem constant byte address 0x4 - core index']
  #allocation1 [shape = 'u32[144,128]{1,0:T(1,128)}', space=vmem, size = 0x12000, scoped, tag = 'internal scratch']
  %s0 = inlined_call_operand.vmem [shape: bf16[8,2304], index: 0, kind: input, shape index: {}]
  %s1 = inlined_call_operand.vmem [shape: bf16[2304,512], index: 1, kind: input, shape index: {}]
  %s2 = inlined_call_operand.vmem [shape: f32[1,512], index: 2, kind: input, shape index: {}]
  %s3 = inlined_call_operand.vmem [shape: bf16[512,128], index: 3, kind: input, shape index: {}]
  %s4 = inlined_call_operand.vmem [shape: f32[1,128], index: 4, kind: input, shape index: {}]
  %s5 = inlined_call_operand.vmem [shape: f32[8,128], index: 5, kind: output, shape index: {}]
  %s6 = sld [smem:[#allocation0]]
  $region30: #{cnn_forward.5} parent=0
    _
  %s8 = ssub.s32 1, %s6
  %s9 = scalar_select 0, %s8, %s6
  // Predicated region
  $region2: #{cnn_forward.5} parent=0 // pred_check
    _
  $region3: #{cnn_forward.5} parent=0 // pred_check_branch
    %11 = sbr.rel (0) target = $region5
  $region4: #{cnn_forward.5} parent=0 // pred_region
    _
  $region5: #{cnn_forward.5} parent=0 // pred_fallthru
    _
  // Predicated region
  $region6: #{cnn_forward.5} parent=0 // pred_check
    _
  $region7: #{cnn_forward.5} parent=0 // pred_check_branch
    %13 = sbr.rel (0) target = $region9
  $region8: #{cnn_forward.5} parent=0 // pred_region
    _
  $region9: #{cnn_forward.5} parent=0 // pred_fallthru
    _
  // Predicated region
  $region10: #{cnn_forward.5} parent=0 // pred_check
    _
  $region11: #{cnn_forward.5} parent=0 // pred_check_branch
    %15 = sbr.rel (0) target = $region13
  $region12: #{cnn_forward.5} parent=0 // pred_region
    _
  $region13: #{cnn_forward.5} parent=0 // pred_fallthru
    _
  // Predicated region
  $region14: #{cnn_forward.5} parent=0 // pred_check
    _
  $region15: #{cnn_forward.5} parent=0 // pred_check_branch
    %17 = sbr.rel (0) target = $region17
  $region16: #{cnn_forward.5} parent=0 // pred_region
    _
  $region17: #{cnn_forward.5} parent=0 // pred_fallthru
    _
  // Predicated region
  $region18: #{cnn_forward.5} parent=0 // pred_check
    _
  $region19: #{cnn_forward.5} parent=0 // pred_check_branch
    %19 = sbr.rel (0) target = $region21
  $region20: #{cnn_forward.5} parent=0 // pred_region
    _
  $region21: #{cnn_forward.5} parent=0 // pred_fallthru
    _
  %v21 = vld [vmem:[%s0] sm:$0xff]
  %v22 = vld [vmem:[%s0 + $0x8] sm:$0xff]
  %v23 = vld [vmem:[%s0 + $0x10] sm:$0xff]
  %v24 = vld [vmem:[%s0 + $0x18] sm:$0xff]
  %v25 = vld [vmem:[%s0 + $0x20] sm:$0xff]
  %v26 = vld [vmem:[%s0 + $0x28] sm:$0xff]
  %v27 = vld [vmem:[%s0 + $0x30] sm:$0xff]
  %v28 = vld [vmem:[%s0 + $0x38] sm:$0xff]
  %v29 = vld [vmem:[%s0 + $0x40] sm:$0xff]
  %v30 = vld [vmem:[%s1] sm:$0xff]
  %v31 = vld [vmem:[%s1 + $0x8] sm:$0xff]
  %v32 = vld [vmem:[%s1 + $0x10] sm:$0xff]
  %v33 = vld [vmem:[%s1 + $0x18] sm:$0xff]
  %v34 = vld [vmem:[%s1 + $0x20] sm:$0xff]
  %v35 = vld [vmem:[%s1 + $0x28] sm:$0xff]
  %v36 = vld [vmem:[%s1 + $0x30] sm:$0xff]
  %v37 = vld [vmem:[%s1 + $0x38] sm:$0xff]
  %v38 = vld [vmem:[%s1 + $0x40] sm:$0xff]
  %v39 = vld [vmem:[%s1 + $0x48] sm:$0xff]
  %v40 = vld [vmem:[%s1 + $0x50] sm:$0xff]
  %v41 = vld [vmem:[%s1 + $0x58] sm:$0xff]
  %v42 = vld [vmem:[%s1 + $0x60] sm:$0xff]
  %v43 = vld [vmem:[%s1 + $0x68] sm:$0xff]
  %v44 = vld [vmem:[%s1 + $0x70] sm:$0xff]
  %v45 = vld [vmem:[%s1 + $0x78] sm:$0xff]
  %v46 = vld [vmem:[%s1 + $0x80] sm:$0xff]
  %v47 = vld [vmem:[%s1 + $0x88] sm:$0xff]
  %v48 = vld [vmem:[%s1 + $0x90] sm:$0xff]
  %v49 = vld [vmem:[%s1 + $0x98] sm:$0xff]
  %v50 = vld [vmem:[%s1 + $0xa0] sm:$0xff]
  %v51 = vld [vmem:[%s1 + $0xa8] sm:$0xff]
  %v52 = vld [vmem:[%s1 + $0xb0] sm:$0xff]
  %v53 = vld [vmem:[%s1 + $0xb8] sm:$0xff]
  %v54 = vld [vmem:[%s1 + $0xc0] sm:$0xff]
  %v55 = vld [vmem:[%s1 + $0xc8] sm:$0xff]
  %v56 = vld [vmem:[%s1 + $0xd0] sm:$0xff]
  %v57 = vld [vmem:[%s1 + $0xd8] sm:$0xff]
  %v58 = vld [vmem:[%s1 + $0xe0] sm:$0xff]
  %v59 = vld [vmem:[%s1 + $0xe8] sm:$0xff]
  %v60 = vld [vmem:[%s1 + $0xf0] sm:$0xff]
  %v61 = vld [vmem:[%s1 + $0xf8] sm:$0xff]
  %v62 = vld [vmem:[%s1 + $0x100] sm:$0xff]
  %v63 = vld [vmem:[%s1 + $0x108] sm:$0xff]
  %v64 = vld [vmem:[%s1 + $0x110] sm:$0xff]
  %v65 = vld [vmem:[%s1 + $0x118] sm:$0xff]
  %v66 = vld [vmem:[%s1 + $0x120] sm:$0xff]
  %v67 = vld [vmem:[%s1 + $0x128] sm:$0xff]
  %v68 = vld [vmem:[%s1 + $0x130] sm:$0xff]
  %v69 = vld [vmem:[%s1 + $0x138] sm:$0xff]
  %v70 = vld [vmem:[%s1 + $0x140] sm:$0xff]
  %v71 = vld [vmem:[%s1 + $0x148] sm:$0xff]
  %v72 = vld [vmem:[%s1 + $0x150] sm:$0xff]
  %v73 = vld [vmem:[%s1 + $0x158] sm:$0xff]
  %v74 = vld [vmem:[%s1 + $0x160] sm:$0xff]
  %v75 = vld [vmem:[%s1 + $0x168] sm:$0xff]
  %v76 = vld [vmem:[%s1 + $0x170] sm:$0xff]
  %v77 = vld [vmem:[%s1 + $0x178] sm:$0xff]
  %v78 = vld [vmem:[%s1 + $0x180] sm:$0xff]
  %v79 = vld [vmem:[%s1 + $0x188] sm:$0xff]
  %v80 = vld [vmem:[%s1 + $0x190] sm:$0xff]
  %v81 = vld [vmem:[%s1 + $0x198] sm:$0xff]
  %v82 = vld [vmem:[%s1 + $0x1a0] sm:$0xff]
  %v83 = vld [vmem:[%s1 + $0x1a8] sm:$0xff]
  %v84 = vld [vmem:[%s1 + $0x1b0] sm:$0xff]
  %v85 = vld [vmem:[%s1 + $0x1b8] sm:$0xff]
  %v86 = vld [vmem:[%s1 + $0x1c0] sm:$0xff]
  %v87 = vld [vmem:[%s1 + $0x1c8] sm:$0xff]
  %v88 = vld [vmem:[%s1 + $0x1d0] sm:$0xff]
  %v89 = vld [vmem:[%s1 + $0x1d8] sm:$0xff]
  %v90 = vld [vmem:[%s1 + $0x1e0] sm:$0xff]
  %v91 = vld [vmem:[%s1 + $0x1e8] sm:$0xff]
  %v92 = vld [vmem:[%s1 + $0x1f0] sm:$0xff]
  %v93 = vld [vmem:[%s1 + $0x1f8] sm:$0xff]
  %v94 = vld [vmem:[%s1 + $0x200] sm:$0xff]
  %v95 = vld [vmem:[%s1 + $0x208] sm:$0xff]
  %v96 = vld [vmem:[%s1 + $0x210] sm:$0xff]
  %v97 = vld [vmem:[%s1 + $0x218] sm:$0xff]
  %v98 = vld [vmem:[%s1 + $0x220] sm:$0xff]
  %v99 = vld [vmem:[%s1 + $0x228] sm:$0xff]
  %v100 = vld [vmem:[%s1 + $0x230] sm:$0xff]
  %v101 = vld [vmem:[%s1 + $0x238] sm:$0xff]
  %v102 = vld [vmem:[%s1 + $0x240] sm:$0xff]
  %v103 = vld [vmem:[%s1 + $0x248] sm:$0xff]
  %v104 = vld [vmem:[%s1 + $0x250] sm:$0xff]
  %v105 = vld [vmem:[%s1 + $0x258] sm:$0xff]
  %v106 = vld [vmem:[%s1 + $0x260] sm:$0xff]
  %v107 = vld [vmem:[%s1 + $0x268] sm:$0xff]
  %v108 = vld [vmem:[%s1 + $0x270] sm:$0xff]
  %v109 = vld [vmem:[%s1 + $0x278] sm:$0xff]
  %v110 = vld [vmem:[%s1 + $0x280] sm:$0xff]
  %v111 = vld [vmem:[%s1 + $0x288] sm:$0xff]
  %v112 = vld [vmem:[%s1 + $0x290] sm:$0xff]
  %v113 = vld [vmem:[%s1 + $0x298] sm:$0xff]
  %v114 = vld [vmem:[%s1 + $0x2a0] sm:$0xff]
  %v115 = vld [vmem:[%s1 + $0x2a8] sm:$0xff]
  %v116 = vld [vmem:[%s1 + $0x2b0] sm:$0xff]
  %v117 = vld [vmem:[%s1 + $0x2b8] sm:$0xff]
  %v118 = vld [vmem:[%s1 + $0x2c0] sm:$0xff]
  %v119 = vld [vmem:[%s1 + $0x2c8] sm:$0xff]
  %v120 = vld [vmem:[%s1 + $0x2d0] sm:$0xff]
  %v121 = vld [vmem:[%s1 + $0x2d8] sm:$0xff]
  %v122 = vld [vmem:[%s1 + $0x2e0] sm:$0xff]
  %v123 = vld [vmem:[%s1 + $0x2e8] sm:$0xff]
  %v124 = vld [vmem:[%s1 + $0x2f0] sm:$0xff]
  %v125 = vld [vmem:[%s1 + $0x2f8] sm:$0xff]
  %v126 = vld [vmem:[%s1 + $0x300] sm:$0xff]
  %v127 = vld [vmem:[%s1 + $0x308] sm:$0xff]
  %v128 = vld [vmem:[%s1 + $0x310] sm:$0xff]
  %v129 = vld [vmem:[%s1 + $0x318] sm:$0xff]
  %v130 = vld [vmem:[%s1 + $0x320] sm:$0xff]
  %v131 = vld [vmem:[%s1 + $0x328] sm:$0xff]
  %v132 = vld [vmem:[%s1 + $0x330] sm:$0xff]
  %v133 = vld [vmem:[%s1 + $0x338] sm:$0xff]
  %v134 = vld [vmem:[%s1 + $0x340] sm:$0xff]
  %v135 = vld [vmem:[%s1 + $0x348] sm:$0xff]
  %v136 = vld [vmem:[%s1 + $0x350] sm:$0xff]
  %v137 = vld [vmem:[%s1 + $0x358] sm:$0xff]
  %v138 = vld [vmem:[%s1 + $0x360] sm:$0xff]
  %v139 = vld [vmem:[%s1 + $0x368] sm:$0xff]
  %v140 = vld [vmem:[%s1 + $0x370] sm:$0xff]
  %v141 = vld [vmem:[%s1 + $0x378] sm:$0xff]
  %v142 = vld [vmem:[%s1 + $0x380] sm:$0xff]
  %v143 = vld [vmem:[%s1 + $0x388] sm:$0xff]
  %v144 = vld [vmem:[%s1 + $0x390] sm:$0xff]
  %v145 = vld [vmem:[%s1 + $0x398] sm:$0xff]
  %v146 = vld [vmem:[%s1 + $0x3a0] sm:$0xff]
  %v147 = vld [vmem:[%s1 + $0x3a8] sm:$0xff]
  %v148 = vld [vmem:[%s1 + $0x3b0] sm:$0xff]
  %v149 = vld [vmem:[%s1 + $0x3b8] sm:$0xff]
  %v150 = vld [vmem:[%s1 + $0x3c0] sm:$0xff]
  %v151 = vld [vmem:[%s1 + $0x3c8] sm:$0xff]
  %v152 = vld [vmem:[%s1 + $0x3d0] sm:$0xff]
  %v153 = vld [vmem:[%s1 + $0x3d8] sm:$0xff]
  %v154 = vld [vmem:[%s1 + $0x3e0] sm:$0xff]
  %v155 = vld [vmem:[%s1 + $0x3e8] sm:$0xff]
  %v156 = vld [vmem:[%s1 + $0x3f0] sm:$0xff]
  %v157 = vld [vmem:[%s1 + $0x3f8] sm:$0xff]
  %v158 = vld [vmem:[%s1 + $0x400] sm:$0xff]
  %v159 = vld [vmem:[%s1 + $0x408] sm:$0xff]
  %v160 = vld [vmem:[%s1 + $0x410] sm:$0xff]
  %v161 = vld [vmem:[%s1 + $0x418] sm:$0xff]
  %v162 = vld [vmem:[%s1 + $0x420] sm:$0xff]
  %v163 = vld [vmem:[%s1 + $0x428] sm:$0xff]
  %v164 = vld [vmem:[%s1 + $0x430] sm:$0xff]
  %v165 = vld [vmem:[%s1 + $0x438] sm:$0xff]
  %v166 = vld [vmem:[%s1 + $0x440] sm:$0xff]
  %v167 = vld [vmem:[%s1 + $0x448] sm:$0xff]
  %v168 = vld [vmem:[%s1 + $0x450] sm:$0xff]
  %v169 = vld [vmem:[%s1 + $0x458] sm:$0xff]
  %v170 = vld [vmem:[%s1 + $0x460] sm:$0xff]
  %v171 = vld [vmem:[%s1 + $0x468] sm:$0xff]
  %v172 = vld [vmem:[%s1 + $0x470] sm:$0xff]
  %v173 = vld [vmem:[%s1 + $0x478] sm:$0xff]
  %v174 = vld [vmem:[%s1 + $0x480] sm:$0xff]
  %v175 = vld [vmem:[%s1 + $0x488] sm:$0xff]
  %v176 = vld [vmem:[%s1 + $0x490] sm:$0xff]
  %v177 = vld [vmem:[%s1 + $0x498] sm:$0xff]
  %v178 = vld [vmem:[%s1 + $0x4a0] sm:$0xff]
  %v179 = vld [vmem:[%s1 + $0x4a8] sm:$0xff]
  %v180 = vld [vmem:[%s1 + $0x4b0] sm:$0xff]
  %v181 = vld [vmem:[%s1 + $0x4b8] sm:$0xff]
  %v182 = vld [vmem:[%s1 + $0x4c0] sm:$0xff]
  %v183 = vld [vmem:[%s1 + $0x4c8] sm:$0xff]
  %v184 = vld [vmem:[%s1 + $0x4d0] sm:$0xff]
  %v185 = vld [vmem:[%s1 + $0x4d8] sm:$0xff]
  %v186 = vld [vmem:[%s1 + $0x4e0] sm:$0xff]
  %v187 = vld [vmem:[%s1 + $0x4e8] sm:$0xff]
  %v188 = vld [vmem:[%s1 + $0x4f0] sm:$0xff]
  %v189 = vld [vmem:[%s1 + $0x4f8] sm:$0xff]
  %v190 = vld [vmem:[%s1 + $0x500] sm:$0xff]
  %v191 = vld [vmem:[%s1 + $0x508] sm:$0xff]
  %v192 = vld [vmem:[%s1 + $0x510] sm:$0xff]
  %v193 = vld [vmem:[%s1 + $0x518] sm:$0xff]
  %v194 = vld [vmem:[%s1 + $0x520] sm:$0xff]
  %v195 = vld [vmem:[%s1 + $0x528] sm:$0xff]
  %v196 = vld [vmem:[%s1 + $0x530] sm:$0xff]
  %v197 = vld [vmem:[%s1 + $0x538] sm:$0xff]
  %v198 = vld [vmem:[%s1 + $0x540] sm:$0xff]
  %v199 = vld [vmem:[%s1 + $0x548] sm:$0xff]
  %v200 = vld [vmem:[%s1 + $0x550] sm:$0xff]
  %v201 = vld [vmem:[%s1 + $0x558] sm:$0xff]
  %v202 = vld [vmem:[%s1 + $0x560] sm:$0xff]
  %v203 = vld [vmem:[%s1 + $0x568] sm:$0xff]
  %v204 = vld [vmem:[%s1 + $0x570] sm:$0xff]
  %v205 = vld [vmem:[%s1 + $0x578] sm:$0xff]
  %v206 = vld [vmem:[%s1 + $0x580] sm:$0xff]
  %v207 = vld [vmem:[%s1 + $0x588] sm:$0xff]
  %v208 = vld [vmem:[%s1 + $0x590] sm:$0xff]
  %v209 = vld [vmem:[%s1 + $0x598] sm:$0xff]
  %v210 = vld [vmem:[%s1 + $0x5a0] sm:$0xff]
  %v211 = vld [vmem:[%s1 + $0x5a8] sm:$0xff]
  %v212 = vld [vmem:[%s1 + $0x5b0] sm:$0xff]
  %v213 = vld [vmem:[%s1 + $0x5b8] sm:$0xff]
  %v214 = vld [vmem:[%s1 + $0x5c0] sm:$0xff]
  %v215 = vld [vmem:[%s1 + $0x5c8] sm:$0xff]
  %v216 = vld [vmem:[%s1 + $0x5d0] sm:$0xff]
  %v217 = vld [vmem:[%s1 + $0x5d8] sm:$0xff]
  %v218 = vld [vmem:[%s1 + $0x5e0] sm:$0xff]
  %v219 = vld [vmem:[%s1 + $0x5e8] sm:$0xff]
  %v220 = vld [vmem:[%s1 + $0x5f0] sm:$0xff]
  %v221 = vld [vmem:[%s1 + $0x5f8] sm:$0xff]
  %v222 = vld [vmem:[%s1 + $0x600] sm:$0xff]
  %v223 = vld [vmem:[%s1 + $0x608] sm:$0xff]
  %v224 = vld [vmem:[%s1 + $0x610] sm:$0xff]
  %v225 = vld [vmem:[%s1 + $0x618] sm:$0xff]
  %v226 = vld [vmem:[%s1 + $0x620] sm:$0xff]
  %v227 = vld [vmem:[%s1 + $0x628] sm:$0xff]
  %v228 = vld [vmem:[%s1 + $0x630] sm:$0xff]
  %v229 = vld [vmem:[%s1 + $0x638] sm:$0xff]
  %v230 = vld [vmem:[%s1 + $0x640] sm:$0xff]
  %v231 = vld [vmem:[%s1 + $0x648] sm:$0xff]
  %v232 = vld [vmem:[%s1 + $0x650] sm:$0xff]
  %v233 = vld [vmem:[%s1 + $0x658] sm:$0xff]
  %v234 = vld [vmem:[%s1 + $0x660] sm:$0xff]
  %v235 = vld [vmem:[%s1 + $0x668] sm:$0xff]
  %v236 = vld [vmem:[%s1 + $0x670] sm:$0xff]
  %v237 = vld [vmem:[%s1 + $0x678] sm:$0xff]
  %v238 = vld [vmem:[%s1 + $0x680] sm:$0xff]
  %v239 = vld [vmem:[%s1 + $0x688] sm:$0xff]
  %v240 = vld [vmem:[%s1 + $0x690] sm:$0xff]
  %v241 = vld [vmem:[%s1 + $0x698] sm:$0xff]
  %v242 = vld [vmem:[%s1 + $0x6a0] sm:$0xff]
  %v243 = vld [vmem:[%s1 + $0x6a8] sm:$0xff]
  %v244 = vld [vmem:[%s1 + $0x6b0] sm:$0xff]
  %v245 = vld [vmem:[%s1 + $0x6b8] sm:$0xff]
  %v246 = vld [vmem:[%s1 + $0x6c0] sm:$0xff]
  %v247 = vld [vmem:[%s1 + $0x6c8] sm:$0xff]
  %v248 = vld [vmem:[%s1 + $0x6d0] sm:$0xff]
  %v249 = vld [vmem:[%s1 + $0x6d8] sm:$0xff]
  %v250 = vld [vmem:[%s1 + $0x6e0] sm:$0xff]
  %v251 = vld [vmem:[%s1 + $0x6e8] sm:$0xff]
  %v252 = vld [vmem:[%s1 + $0x6f0] sm:$0xff]
  %v253 = vld [vmem:[%s1 + $0x6f8] sm:$0xff]
  %v254 = vld [vmem:[%s1 + $0x700] sm:$0xff]
  %v255 = vld [vmem:[%s1 + $0x708] sm:$0xff]
  %v256 = vld [vmem:[%s1 + $0x710] sm:$0xff]
  %v257 = vld [vmem:[%s1 + $0x718] sm:$0xff]
  %v258 = vld [vmem:[%s1 + $0x720] sm:$0xff]
  %v259 = vld [vmem:[%s1 + $0x728] sm:$0xff]
  %v260 = vld [vmem:[%s1 + $0x730] sm:$0xff]
  %v261 = vld [vmem:[%s1 + $0x738] sm:$0xff]
  %v262 = vld [vmem:[%s1 + $0x740] sm:$0xff]
  %v263 = vld [vmem:[%s1 + $0x748] sm:$0xff]
  %v264 = vld [vmem:[%s1 + $0x750] sm:$0xff]
  %v265 = vld [vmem:[%s1 + $0x758] sm:$0xff]
  %v266 = vld [vmem:[%s1 + $0x760] sm:$0xff]
  %v267 = vld [vmem:[%s1 + $0x768] sm:$0xff]
  %v268 = vld [vmem:[%s1 + $0x770] sm:$0xff]
  %v269 = vld [vmem:[%s1 + $0x778] sm:$0xff]
  %v270 = vld [vmem:[%s1 + $0x780] sm:$0xff]
  %v271 = vld [vmem:[%s1 + $0x788] sm:$0xff]
  %v272 = vld [vmem:[%s1 + $0x790] sm:$0xff]
  %v273 = vld [vmem:[%s1 + $0x798] sm:$0xff]
  %v274 = vld [vmem:[%s1 + $0x7a0] sm:$0xff]
  %v275 = vld [vmem:[%s1 + $0x7a8] sm:$0xff]
  %v276 = vld [vmem:[%s1 + $0x7b0] sm:$0xff]
  %v277 = vld [vmem:[%s1 + $0x7b8] sm:$0xff]
  %v278 = vld [vmem:[%s1 + $0x7c0] sm:$0xff]
  %v279 = vld [vmem:[%s1 + $0x7c8] sm:$0xff]
  %v280 = vld [vmem:[%s1 + $0x7d0] sm:$0xff]
  %v281 = vld [vmem:[%s1 + $0x7d8] sm:$0xff]
  %v282 = vld [vmem:[%s1 + $0x7e0] sm:$0xff]
  %v283 = vld [vmem:[%s1 + $0x7e8] sm:$0xff]
  %v284 = vld [vmem:[%s1 + $0x7f0] sm:$0xff]
  %v285 = vld [vmem:[%s1 + $0x7f8] sm:$0xff]
  %v286 = vld [vmem:[%s1 + $0x800] sm:$0xff]
  %v287 = vld [vmem:[%s1 + $0x808] sm:$0xff]
  %v288 = vld [vmem:[%s1 + $0x810] sm:$0xff]
  %v289 = vld [vmem:[%s1 + $0x818] sm:$0xff]
  %v290 = vld [vmem:[%s1 + $0x820] sm:$0xff]
  %v291 = vld [vmem:[%s1 + $0x828] sm:$0xff]
  %v292 = vld [vmem:[%s1 + $0x830] sm:$0xff]
  %v293 = vld [vmem:[%s1 + $0x838] sm:$0xff]
  %v294 = vld [vmem:[%s1 + $0x840] sm:$0xff]
  %v295 = vld [vmem:[%s1 + $0x848] sm:$0xff]
  %v296 = vld [vmem:[%s1 + $0x850] sm:$0xff]
  %v297 = vld [vmem:[%s1 + $0x858] sm:$0xff]
  %v298 = vld [vmem:[%s1 + $0x860] sm:$0xff]
  %v299 = vld [vmem:[%s1 + $0x868] sm:$0xff]
  %v300 = vld [vmem:[%s1 + $0x870] sm:$0xff]
  %v301 = vld [vmem:[%s1 + $0x878] sm:$0xff]
  %v302 = vld [vmem:[%s1 + $0x880] sm:$0xff]
  %v303 = vld [vmem:[%s1 + $0x888] sm:$0xff]
  %v304 = vld [vmem:[%s1 + $0x890] sm:$0xff]
  %v305 = vld [vmem:[%s1 + $0x898] sm:$0xff]
  %v306 = vld [vmem:[%s1 + $0x8a0] sm:$0xff]
  %v307 = vld [vmem:[%s1 + $0x8a8] sm:$0xff]
  %v308 = vld [vmem:[%s1 + $0x8b0] sm:$0xff]
  %v309 = vld [vmem:[%s1 + $0x8b8] sm:$0xff]
  %v310 = vld [vmem:[%s1 + $0x8c0] sm:$0xff]
  %v311 = vld [vmem:[%s1 + $0x8c8] sm:$0xff]
  %v312 = vld [vmem:[%s1 + $0x8d0] sm:$0xff]
  %v313 = vld [vmem:[%s1 + $0x8d8] sm:$0xff]
  %v314 = vld [vmem:[%s1 + $0x8e0] sm:$0xff]
  %v315 = vld [vmem:[%s1 + $0x8e8] sm:$0xff]
  %v316 = vld [vmem:[%s1 + $0x8f0] sm:$0xff]
  %v317 = vld [vmem:[%s1 + $0x8f8] sm:$0xff]
  %v318 = vld [vmem:[%s1 + $0x900] sm:$0xff]
  %v319 = vld [vmem:[%s1 + $0x908] sm:$0xff]
  %v320 = vld [vmem:[%s1 + $0x910] sm:$0xff]
  %v321 = vld [vmem:[%s1 + $0x918] sm:$0xff]
  %v322 = vld [vmem:[%s1 + $0x920] sm:$0xff]
  %v323 = vld [vmem:[%s1 + $0x928] sm:$0xff]
  %v324 = vld [vmem:[%s1 + $0x930] sm:$0xff]
  %v325 = vld [vmem:[%s1 + $0x938] sm:$0xff]
  %v326 = vld [vmem:[%s1 + $0x940] sm:$0xff]
  %v327 = vld [vmem:[%s1 + $0x948] sm:$0xff]
  %v328 = vld [vmem:[%s1 + $0x950] sm:$0xff]
  %v329 = vld [vmem:[%s1 + $0x958] sm:$0xff]
  %v330 = vld [vmem:[%s1 + $0x960] sm:$0xff]
  %v331 = vld [vmem:[%s1 + $0x968] sm:$0xff]
  %v332 = vld [vmem:[%s1 + $0x970] sm:$0xff]
  %v333 = vld [vmem:[%s1 + $0x978] sm:$0xff]
  %v334 = vld [vmem:[%s1 + $0x980] sm:$0xff]
  %v335 = vld [vmem:[%s1 + $0x988] sm:$0xff]
  %v336 = vld [vmem:[%s1 + $0x990] sm:$0xff]
  %v337 = vld [vmem:[%s1 + $0x998] sm:$0xff]
  %v338 = vld [vmem:[%s1 + $0x9a0] sm:$0xff]
  %v339 = vld [vmem:[%s1 + $0x9a8] sm:$0xff]
  %v340 = vld [vmem:[%s1 + $0x9b0] sm:$0xff]
  %v341 = vld [vmem:[%s1 + $0x9b8] sm:$0xff]
  %v342 = vld [vmem:[%s1 + $0x9c0] sm:$0xff]
  %v343 = vld [vmem:[%s1 + $0x9c8] sm:$0xff]
  %v344 = vld [vmem:[%s1 + $0x9d0] sm:$0xff]
  %v345 = vld [vmem:[%s1 + $0x9d8] sm:$0xff]
  %v346 = vld [vmem:[%s1 + $0x9e0] sm:$0xff]
  %v347 = vld [vmem:[%s1 + $0x9e8] sm:$0xff]
  %v348 = vld [vmem:[%s1 + $0x9f0] sm:$0xff]
  %v349 = vld [vmem:[%s1 + $0x9f8] sm:$0xff]
  %v350 = vld [vmem:[%s1 + $0xa00] sm:$0xff]
  %v351 = vld [vmem:[%s1 + $0xa08] sm:$0xff]
  %v352 = vld [vmem:[%s1 + $0xa10] sm:$0xff]
  %v353 = vld [vmem:[%s1 + $0xa18] sm:$0xff]
  %v354 = vld [vmem:[%s1 + $0xa20] sm:$0xff]
  %v355 = vld [vmem:[%s1 + $0xa28] sm:$0xff]
  %v356 = vld [vmem:[%s1 + $0xa30] sm:$0xff]
  %v357 = vld [vmem:[%s1 + $0xa38] sm:$0xff]
  %v358 = vld [vmem:[%s1 + $0xa40] sm:$0xff]
  %v359 = vld [vmem:[%s1 + $0xa48] sm:$0xff]
  %v360 = vld [vmem:[%s1 + $0xa50] sm:$0xff]
  %v361 = vld [vmem:[%s1 + $0xa58] sm:$0xff]
  %v362 = vld [vmem:[%s1 + $0xa60] sm:$0xff]
  %v363 = vld [vmem:[%s1 + $0xa68] sm:$0xff]
  %v364 = vld [vmem:[%s1 + $0xa70] sm:$0xff]
  %v365 = vld [vmem:[%s1 + $0xa78] sm:$0xff]
  %v366 = vld [vmem:[%s1 + $0xa80] sm:$0xff]
  %v367 = vld [vmem:[%s1 + $0xa88] sm:$0xff]
  %v368 = vld [vmem:[%s1 + $0xa90] sm:$0xff]
  %v369 = vld [vmem:[%s1 + $0xa98] sm:$0xff]
  %v370 = vld [vmem:[%s1 + $0xaa0] sm:$0xff]
  %v371 = vld [vmem:[%s1 + $0xaa8] sm:$0xff]
  %v372 = vld [vmem:[%s1 + $0xab0] sm:$0xff]
  %v373 = vld [vmem:[%s1 + $0xab8] sm:$0xff]
  %v374 = vld [vmem:[%s1 + $0xac0] sm:$0xff]
  %v375 = vld [vmem:[%s1 + $0xac8] sm:$0xff]
  %v376 = vld [vmem:[%s1 + $0xad0] sm:$0xff]
  %v377 = vld [vmem:[%s1 + $0xad8] sm:$0xff]
  %v378 = vld [vmem:[%s1 + $0xae0] sm:$0xff]
  %v379 = vld [vmem:[%s1 + $0xae8] sm:$0xff]
  %v380 = vld [vmem:[%s1 + $0xaf0] sm:$0xff]
  %v381 = vld [vmem:[%s1 + $0xaf8] sm:$0xff]
  %v382 = vld [vmem:[%s1 + $0xb00] sm:$0xff]
  %v383 = vld [vmem:[%s1 + $0xb08] sm:$0xff]
  %v384 = vld [vmem:[%s1 + $0xb10] sm:$0xff]
  %v385 = vld [vmem:[%s1 + $0xb18] sm:$0xff]
  %v386 = vld [vmem:[%s1 + $0xb20] sm:$0xff]
  %v387 = vld [vmem:[%s1 + $0xb28] sm:$0xff]
  %v388 = vld [vmem:[%s1 + $0xb30] sm:$0xff]
  %v389 = vld [vmem:[%s1 + $0xb38] sm:$0xff]
  %v390 = vld [vmem:[%s1 + $0xb40] sm:$0xff]
  %v391 = vld [vmem:[%s1 + $0xb48] sm:$0xff]
  %v392 = vld [vmem:[%s1 + $0xb50] sm:$0xff]
  %v393 = vld [vmem:[%s1 + $0xb58] sm:$0xff]
  %v394 = vld [vmem:[%s1 + $0xb60] sm:$0xff]
  %v395 = vld [vmem:[%s1 + $0xb68] sm:$0xff]
  %v396 = vld [vmem:[%s1 + $0xb70] sm:$0xff]
  %v397 = vld [vmem:[%s1 + $0xb78] sm:$0xff]
  %v398 = vld [vmem:[%s1 + $0xb80] sm:$0xff]
  %v399 = vld [vmem:[%s1 + $0xb88] sm:$0xff]
  %v400 = vld [vmem:[%s1 + $0xb90] sm:$0xff]
  %v401 = vld [vmem:[%s1 + $0xb98] sm:$0xff]
  %v402 = vld [vmem:[%s1 + $0xba0] sm:$0xff]
  %v403 = vld [vmem:[%s1 + $0xba8] sm:$0xff]
  %v404 = vld [vmem:[%s1 + $0xbb0] sm:$0xff]
  %v405 = vld [vmem:[%s1 + $0xbb8] sm:$0xff]
  %v406 = vld [vmem:[%s1 + $0xbc0] sm:$0xff]
  %v407 = vld [vmem:[%s1 + $0xbc8] sm:$0xff]
  %v408 = vld [vmem:[%s1 + $0xbd0] sm:$0xff]
  %v409 = vld [vmem:[%s1 + $0xbd8] sm:$0xff]
  %v410 = vld [vmem:[%s1 + $0xbe0] sm:$0xff]
  %v411 = vld [vmem:[%s1 + $0xbe8] sm:$0xff]
  %v412 = vld [vmem:[%s1 + $0xbf0] sm:$0xff]
  %v413 = vld [vmem:[%s1 + $0xbf8] sm:$0xff]
  %v414 = vld [vmem:[%s1 + $0xc00] sm:$0xff]
  %v415 = vld [vmem:[%s1 + $0xc08] sm:$0xff]
  %v416 = vld [vmem:[%s1 + $0xc10] sm:$0xff]
  %v417 = vld [vmem:[%s1 + $0xc18] sm:$0xff]
  %v418 = vld [vmem:[%s1 + $0xc20] sm:$0xff]
  %v419 = vld [vmem:[%s1 + $0xc28] sm:$0xff]
  %v420 = vld [vmem:[%s1 + $0xc30] sm:$0xff]
  %v421 = vld [vmem:[%s1 + $0xc38] sm:$0xff]
  %v422 = vld [vmem:[%s1 + $0xc40] sm:$0xff]
  %v423 = vld [vmem:[%s1 + $0xc48] sm:$0xff]
  %v424 = vld [vmem:[%s1 + $0xc50] sm:$0xff]
  %v425 = vld [vmem:[%s1 + $0xc58] sm:$0xff]
  %v426 = vld [vmem:[%s1 + $0xc60] sm:$0xff]
  %v427 = vld [vmem:[%s1 + $0xc68] sm:$0xff]
  %v428 = vld [vmem:[%s1 + $0xc70] sm:$0xff]
  %v429 = vld [vmem:[%s1 + $0xc78] sm:$0xff]
  %v430 = vld [vmem:[%s1 + $0xc80] sm:$0xff]
  %v431 = vld [vmem:[%s1 + $0xc88] sm:$0xff]
  %v432 = vld [vmem:[%s1 + $0xc90] sm:$0xff]
  %v433 = vld [vmem:[%s1 + $0xc98] sm:$0xff]
  %v434 = vld [vmem:[%s1 + $0xca0] sm:$0xff]
  %v435 = vld [vmem:[%s1 + $0xca8] sm:$0xff]
  %v436 = vld [vmem:[%s1 + $0xcb0] sm:$0xff]
  %v437 = vld [vmem:[%s1 + $0xcb8] sm:$0xff]
  %v438 = vld [vmem:[%s1 + $0xcc0] sm:$0xff]
  %v439 = vld [vmem:[%s1 + $0xcc8] sm:$0xff]
  %v440 = vld [vmem:[%s1 + $0xcd0] sm:$0xff]
  %v441 = vld [vmem:[%s1 + $0xcd8] sm:$0xff]
  %v442 = vld [vmem:[%s1 + $0xce0] sm:$0xff]
  %v443 = vld [vmem:[%s1 + $0xce8] sm:$0xff]
  %v444 = vld [vmem:[%s1 + $0xcf0] sm:$0xff]
  %v445 = vld [vmem:[%s1 + $0xcf8] sm:$0xff]
  %v446 = vld [vmem:[%s1 + $0xd00] sm:$0xff]
  %v447 = vld [vmem:[%s1 + $0xd08] sm:$0xff]
  %v448 = vld [vmem:[%s1 + $0xd10] sm:$0xff]
  %v449 = vld [vmem:[%s1 + $0xd18] sm:$0xff]
  %v450 = vld [vmem:[%s1 + $0xd20] sm:$0xff]
  %v451 = vld [vmem:[%s1 + $0xd28] sm:$0xff]
  %v452 = vld [vmem:[%s1 + $0xd30] sm:$0xff]
  %v453 = vld [vmem:[%s1 + $0xd38] sm:$0xff]
  %v454 = vld [vmem:[%s1 + $0xd40] sm:$0xff]
  %v455 = vld [vmem:[%s1 + $0xd48] sm:$0xff]
  %v456 = vld [vmem:[%s1 + $0xd50] sm:$0xff]
  %v457 = vld [vmem:[%s1 + $0xd58] sm:$0xff]
  %v458 = vld [vmem:[%s1 + $0xd60] sm:$0xff]
  %v459 = vld [vmem:[%s1 + $0xd68] sm:$0xff]
  %v460 = vld [vmem:[%s1 + $0xd70] sm:$0xff]
  %v461 = vld [vmem:[%s1 + $0xd78] sm:$0xff]
  %v462 = vld [vmem:[%s1 + $0xd80] sm:$0xff]
  %v463 = vld [vmem:[%s1 + $0xd88] sm:$0xff]
  %v464 = vld [vmem:[%s1 + $0xd90] sm:$0xff]
  %v465 = vld [vmem:[%s1 + $0xd98] sm:$0xff]
  %v466 = vld [vmem:[%s1 + $0xda0] sm:$0xff]
  %v467 = vld [vmem:[%s1 + $0xda8] sm:$0xff]
  %v468 = vld [vmem:[%s1 + $0xdb0] sm:$0xff]
  %v469 = vld [vmem:[%s1 + $0xdb8] sm:$0xff]
  %v470 = vld [vmem:[%s1 + $0xdc0] sm:$0xff]
  %v471 = vld [vmem:[%s1 + $0xdc8] sm:$0xff]
  %v472 = vld [vmem:[%s1 + $0xdd0] sm:$0xff]
  %v473 = vld [vmem:[%s1 + $0xdd8] sm:$0xff]
  %v474 = vld [vmem:[%s1 + $0xde0] sm:$0xff]
  %v475 = vld [vmem:[%s1 + $0xde8] sm:$0xff]
  %v476 = vld [vmem:[%s1 + $0xdf0] sm:$0xff]
  %v477 = vld [vmem:[%s1 + $0xdf8] sm:$0xff]
  %v478 = vld [vmem:[%s1 + $0xe00] sm:$0xff]
  %v479 = vld [vmem:[%s1 + $0xe08] sm:$0xff]
  %v480 = vld [vmem:[%s1 + $0xe10] sm:$0xff]
  %v481 = vld [vmem:[%s1 + $0xe18] sm:$0xff]
  %v482 = vld [vmem:[%s1 + $0xe20] sm:$0xff]
  %v483 = vld [vmem:[%s1 + $0xe28] sm:$0xff]
  %v484 = vld [vmem:[%s1 + $0xe30] sm:$0xff]
  %v485 = vld [vmem:[%s1 + $0xe38] sm:$0xff]
  %v486 = vld [vmem:[%s1 + $0xe40] sm:$0xff]
  %v487 = vld [vmem:[%s1 + $0xe48] sm:$0xff]
  %v488 = vld [vmem:[%s1 + $0xe50] sm:$0xff]
  %v489 = vld [vmem:[%s1 + $0xe58] sm:$0xff]
  %v490 = vld [vmem:[%s1 + $0xe60] sm:$0xff]
  %v491 = vld [vmem:[%s1 + $0xe68] sm:$0xff]
  %v492 = vld [vmem:[%s1 + $0xe70] sm:$0xff]
  %v493 = vld [vmem:[%s1 + $0xe78] sm:$0xff]
  %v494 = vld [vmem:[%s1 + $0xe80] sm:$0xff]
  %v495 = vld [vmem:[%s1 + $0xe88] sm:$0xff]
  %v496 = vld [vmem:[%s1 + $0xe90] sm:$0xff]
  %v497 = vld [vmem:[%s1 + $0xe98] sm:$0xff]
  %v498 = vld [vmem:[%s1 + $0xea0] sm:$0xff]
  %v499 = vld [vmem:[%s1 + $0xea8] sm:$0xff]
  %v500 = vld [vmem:[%s1 + $0xeb0] sm:$0xff]
  %v501 = vld [vmem:[%s1 + $0xeb8] sm:$0xff]
  %v502 = vld [vmem:[%s1 + $0xec0] sm:$0xff]
  %v503 = vld [vmem:[%s1 + $0xec8] sm:$0xff]
  %v504 = vld [vmem:[%s1 + $0xed0] sm:$0xff]
  %v505 = vld [vmem:[%s1 + $0xed8] sm:$0xff]
  %v506 = vld [vmem:[%s1 + $0xee0] sm:$0xff]
  %v507 = vld [vmem:[%s1 + $0xee8] sm:$0xff]
  %v508 = vld [vmem:[%s1 + $0xef0] sm:$0xff]
  %v509 = vld [vmem:[%s1 + $0xef8] sm:$0xff]
  %v510 = vld [vmem:[%s1 + $0xf00] sm:$0xff]
  %v511 = vld [vmem:[%s1 + $0xf08] sm:$0xff]
  %v512 = vld [vmem:[%s1 + $0xf10] sm:$0xff]
  %v513 = vld [vmem:[%s1 + $0xf18] sm:$0xff]
  %v514 = vld [vmem:[%s1 + $0xf20] sm:$0xff]
  %v515 = vld [vmem:[%s1 + $0xf28] sm:$0xff]
  %v516 = vld [vmem:[%s1 + $0xf30] sm:$0xff]
  %v517 = vld [vmem:[%s1 + $0xf38] sm:$0xff]
  %v518 = vld [vmem:[%s1 + $0xf40] sm:$0xff]
  %v519 = vld [vmem:[%s1 + $0xf48] sm:$0xff]
  %v520 = vld [vmem:[%s1 + $0xf50] sm:$0xff]
  %v521 = vld [vmem:[%s1 + $0xf58] sm:$0xff]
  %v522 = vld [vmem:[%s1 + $0xf60] sm:$0xff]
  %v523 = vld [vmem:[%s1 + $0xf68] sm:$0xff]
  %v524 = vld [vmem:[%s1 + $0xf70] sm:$0xff]
  %v525 = vld [vmem:[%s1 + $0xf78] sm:$0xff]
  %v526 = vld [vmem:[%s1 + $0xf80] sm:$0xff]
  %v527 = vld [vmem:[%s1 + $0xf88] sm:$0xff]
  %v528 = vld [vmem:[%s1 + $0xf90] sm:$0xff]
  %v529 = vld [vmem:[%s1 + $0xf98] sm:$0xff]
  %v530 = vld [vmem:[%s1 + $0xfa0] sm:$0xff]
  %v531 = vld [vmem:[%s1 + $0xfa8] sm:$0xff]
  %v532 = vld [vmem:[%s1 + $0xfb0] sm:$0xff]
  %v533 = vld [vmem:[%s1 + $0xfb8] sm:$0xff]
  %v534 = vld [vmem:[%s1 + $0xfc0] sm:$0xff]
  %v535 = vld [vmem:[%s1 + $0xfc8] sm:$0xff]
  %v536 = vld [vmem:[%s1 + $0xfd0] sm:$0xff]
  %v537 = vld [vmem:[%s1 + $0xfd8] sm:$0xff]
  %v538 = vld [vmem:[%s1 + $0xfe0] sm:$0xff]
  %v539 = vld [vmem:[%s1 + $0xfe8] sm:$0xff]
  %v540 = vld [vmem:[%s1 + $0xff0] sm:$0xff]
  %v541 = vld [vmem:[%s1 + $0xff8] sm:$0xff]
  %v542 = vld [vmem:[%s1 + $0x1000] sm:$0xff]
  %v543 = vld [vmem:[%s1 + $0x1008] sm:$0xff]
  %v544 = vld [vmem:[%s1 + $0x1010] sm:$0xff]
  %v545 = vld [vmem:[%s1 + $0x1018] sm:$0xff]
  %v546 = vld [vmem:[%s1 + $0x1020] sm:$0xff]
  %v547 = vld [vmem:[%s1 + $0x1028] sm:$0xff]
  %v548 = vld [vmem:[%s1 + $0x1030] sm:$0xff]
  %v549 = vld [vmem:[%s1 + $0x1038] sm:$0xff]
  %v550 = vld [vmem:[%s1 + $0x1040] sm:$0xff]
  %v551 = vld [vmem:[%s1 + $0x1048] sm:$0xff]
  %v552 = vld [vmem:[%s1 + $0x1050] sm:$0xff]
  %v553 = vld [vmem:[%s1 + $0x1058] sm:$0xff]
  %v554 = vld [vmem:[%s1 + $0x1060] sm:$0xff]
  %v555 = vld [vmem:[%s1 + $0x1068] sm:$0xff]
  %v556 = vld [vmem:[%s1 + $0x1070] sm:$0xff]
  %v557 = vld [vmem:[%s1 + $0x1078] sm:$0xff]
  %v558 = vld [vmem:[%s1 + $0x1080] sm:$0xff]
  %v559 = vld [vmem:[%s1 + $0x1088] sm:$0xff]
  %v560 = vld [vmem:[%s1 + $0x1090] sm:$0xff]
  %v561 = vld [vmem:[%s1 + $0x1098] sm:$0xff]
  %v562 = vld [vmem:[%s1 + $0x10a0] sm:$0xff]
  %v563 = vld [vmem:[%s1 + $0x10a8] sm:$0xff]
  %v564 = vld [vmem:[%s1 + $0x10b0] sm:$0xff]
  %v565 = vld [vmem:[%s1 + $0x10b8] sm:$0xff]
  %v566 = vld [vmem:[%s1 + $0x10c0] sm:$0xff]
  %v567 = vld [vmem:[%s1 + $0x10c8] sm:$0xff]
  %v568 = vld [vmem:[%s1 + $0x10d0] sm:$0xff]
  %v569 = vld [vmem:[%s1 + $0x10d8] sm:$0xff]
  %v570 = vld [vmem:[%s1 + $0x10e0] sm:$0xff]
  %v571 = vld [vmem:[%s1 + $0x10e8] sm:$0xff]
  %v572 = vld [vmem:[%s1 + $0x10f0] sm:$0xff]
  %v573 = vld [vmem:[%s1 + $0x10f8] sm:$0xff]
  %v574 = vld [vmem:[%s1 + $0x1100] sm:$0xff]
  %v575 = vld [vmem:[%s1 + $0x1108] sm:$0xff]
  %v576 = vld [vmem:[%s1 + $0x1110] sm:$0xff]
  %v577 = vld [vmem:[%s1 + $0x1118] sm:$0xff]
  %v578 = vld [vmem:[%s1 + $0x1120] sm:$0xff]
  %v579 = vld [vmem:[%s1 + $0x1128] sm:$0xff]
  %v580 = vld [vmem:[%s1 + $0x1130] sm:$0xff]
  %v581 = vld [vmem:[%s1 + $0x1138] sm:$0xff]
  %v582 = vld [vmem:[%s1 + $0x1140] sm:$0xff]
  %v583 = vld [vmem:[%s1 + $0x1148] sm:$0xff]
  %v584 = vld [vmem:[%s1 + $0x1150] sm:$0xff]
  %v585 = vld [vmem:[%s1 + $0x1158] sm:$0xff]
  %v586 = vld [vmem:[%s1 + $0x1160] sm:$0xff]
  %v587 = vld [vmem:[%s1 + $0x1168] sm:$0xff]
  %v588 = vld [vmem:[%s1 + $0x1170] sm:$0xff]
  %v589 = vld [vmem:[%s1 + $0x1178] sm:$0xff]
  %v590 = vld [vmem:[%s1 + $0x1180] sm:$0xff]
  %v591 = vld [vmem:[%s1 + $0x1188] sm:$0xff]
  %v592 = vld [vmem:[%s1 + $0x1190] sm:$0xff]
  %v593 = vld [vmem:[%s1 + $0x1198] sm:$0xff]
  %v594 = vld [vmem:[%s1 + $0x11a0] sm:$0xff]
  %v595 = vld [vmem:[%s1 + $0x11a8] sm:$0xff]
  %v596 = vld [vmem:[%s1 + $0x11b0] sm:$0xff]
  %v597 = vld [vmem:[%s1 + $0x11b8] sm:$0xff]
  %v598 = vld [vmem:[%s1 + $0x11c0] sm:$0xff]
  %v599 = vld [vmem:[%s1 + $0x11c8] sm:$0xff]
  %v600 = vld [vmem:[%s1 + $0x11d0] sm:$0xff]
  %v601 = vld [vmem:[%s1 + $0x11d8] sm:$0xff]
  %v602 = vld [vmem:[%s1 + $0x11e0] sm:$0xff]
  %v603 = vld [vmem:[%s1 + $0x11e8] sm:$0xff]
  %v604 = vld [vmem:[%s1 + $0x11f0] sm:$0xff]
  %v605 = vld [vmem:[%s1 + $0x11f8] sm:$0xff]
  %v606 = vld [vmem:[%s2] sm:$0xf]
  %v608 = vlaneseq
  %v609 = vshrl.u32 %v608, 7
  %v610 = vsub.s32 0, %v609
  %v611 = vrot.slane %v606, %v610
  %v612 = vlaneseq
  %v613 = vshrl.u32 %v612, 7
  %v614 = vsub.s32 1, %v613
  %v615 = vrot.slane %v606, %v614
  %v616 = vlaneseq
  %v617 = vshrl.u32 %v616, 7
  %v618 = vsub.s32 2, %v617
  %v619 = vrot.slane %v606, %v618
  %v620 = vlaneseq
  %v621 = vshrl.u32 %v620, 7
  %v622 = vsub.s32 3, %v621
  %v623 = vrot.slane %v606, %v622
  %v637 = vunpack.c.l.b16 %v21
  %v638 = vunpack.c.h.b16 %v21
  %v639 = vunpack.c.l.b16 %v22
  %v640 = vunpack.c.h.b16 %v22
  %v641 = vunpack.c.l.b16 %v23
  %v642 = vunpack.c.h.b16 %v23
  %v643 = vunpack.c.l.b16 %v24
  %v644 = vunpack.c.h.b16 %v24
  %v645 = vunpack.c.l.b16 %v25
  %v646 = vunpack.c.h.b16 %v25
  %v647 = vunpack.c.l.b16 %v26
  %v648 = vunpack.c.h.b16 %v26
  %v649 = vunpack.c.l.b16 %v27
  %v650 = vunpack.c.h.b16 %v27
  %v651 = vunpack.c.l.b16 %v28
  %v652 = vunpack.c.h.b16 %v28
  %v653 = vunpack.c.l.b16 %v29
  %v654 = vunpack.c.h.b16 %v29
  %v655 = vpack.c.b16 %v637, %v637
  %v656 = vpack.c.b16 %v638, %v638
  %v657 = vpack.c.b16 %v639, %v639
  %v658 = vpack.c.b16 %v640, %v640
  %v659 = vpack.c.b16 %v641, %v641
  %v660 = vpack.c.b16 %v642, %v642
  %v661 = vpack.c.b16 %v643, %v643
  %v662 = vpack.c.b16 %v644, %v644
  %v663 = vpack.c.b16 %v645, %v645
  %v664 = vpack.c.b16 %v646, %v646
  %v665 = vpack.c.b16 %v647, %v647
  %v666 = vpack.c.b16 %v648, %v648
  %v667 = vpack.c.b16 %v649, %v649
  %v668 = vpack.c.b16 %v650, %v650
  %v669 = vpack.c.b16 %v651, %v651
  %v670 = vpack.c.b16 %v652, %v652
  %v671 = vpack.c.b16 %v653, %v653
  %v672 = vpack.c.b16 %v654, %v654
  %v1267 = vunpack.c.l.b16 %v30
  %v1268 = vunpack.c.h.b16 %v30
  %v1269 = vunpack.c.l.b16 %v31
  %v1270 = vunpack.c.h.b16 %v31
  %v1271 = vunpack.c.l.b16 %v32
  %v1272 = vunpack.c.h.b16 %v32
  %v1273 = vunpack.c.l.b16 %v33
  %v1274 = vunpack.c.h.b16 %v33
  %v1275 = vunpack.c.l.b16 %v34
  %v1276 = vunpack.c.h.b16 %v34
  %v1277 = vunpack.c.l.b16 %v35
  %v1278 = vunpack.c.h.b16 %v35
  %v1279 = vunpack.c.l.b16 %v36
  %v1280 = vunpack.c.h.b16 %v36
  %v1281 = vunpack.c.l.b16 %v37
  %v1282 = vunpack.c.h.b16 %v37
  %v1283 = vunpack.c.l.b16 %v38
  %v1284 = vunpack.c.h.b16 %v38
  %v1285 = vunpack.c.l.b16 %v39
  %v1286 = vunpack.c.h.b16 %v39
  %v1287 = vunpack.c.l.b16 %v40
  %v1288 = vunpack.c.h.b16 %v40
  %v1289 = vunpack.c.l.b16 %v41
  %v1290 = vunpack.c.h.b16 %v41
  %v1291 = vunpack.c.l.b16 %v42
  %v1292 = vunpack.c.h.b16 %v42
  %v1293 = vunpack.c.l.b16 %v43
  %v1294 = vunpack.c.h.b16 %v43
  %v1295 = vunpack.c.l.b16 %v44
  %v1296 = vunpack.c.h.b16 %v44
  %v1297 = vunpack.c.l.b16 %v45
  %v1298 = vunpack.c.h.b16 %v45
  %v1299 = vunpack.c.l.b16 %v46
  %v1300 = vunpack.c.h.b16 %v46
  %v1301 = vunpack.c.l.b16 %v47
  %v1302 = vunpack.c.h.b16 %v47
  %v1303 = vunpack.c.l.b16 %v48
  %v1304 = vunpack.c.h.b16 %v48
  %v1305 = vunpack.c.l.b16 %v49
  %v1306 = vunpack.c.h.b16 %v49
  %v1307 = vunpack.c.l.b16 %v50
  %v1308 = vunpack.c.h.b16 %v50
  %v1309 = vunpack.c.l.b16 %v51
  %v1310 = vunpack.c.h.b16 %v51
  %v1311 = vunpack.c.l.b16 %v52
  %v1312 = vunpack.c.h.b16 %v52
  %v1313 = vunpack.c.l.b16 %v53
  %v1314 = vunpack.c.h.b16 %v53
  %v1315 = vunpack.c.l.b16 %v54
  %v1316 = vunpack.c.h.b16 %v54
  %v1317 = vunpack.c.l.b16 %v55
  %v1318 = vunpack.c.h.b16 %v55
  %v1319 = vunpack.c.l.b16 %v56
  %v1320 = vunpack.c.h.b16 %v56
  %v1321 = vunpack.c.l.b16 %v57
  %v1322 = vunpack.c.h.b16 %v57
  %v1323 = vunpack.c.l.b16 %v58
  %v1324 = vunpack.c.h.b16 %v58
  %v1325 = vunpack.c.l.b16 %v59
  %v1326 = vunpack.c.h.b16 %v59
  %v1327 = vunpack.c.l.b16 %v60
  %v1328 = vunpack.c.h.b16 %v60
  %v1329 = vunpack.c.l.b16 %v61
  %v1330 = vunpack.c.h.b16 %v61
  %v1331 = vunpack.c.l.b16 %v62
  %v1332 = vunpack.c.h.b16 %v62
  %v1333 = vunpack.c.l.b16 %v63
  %v1334 = vunpack.c.h.b16 %v63
  %v1335 = vunpack.c.l.b16 %v64
  %v1336 = vunpack.c.h.b16 %v64
  %v1337 = vunpack.c.l.b16 %v65
  %v1338 = vunpack.c.h.b16 %v65
  %v1339 = vunpack.c.l.b16 %v66
  %v1340 = vunpack.c.h.b16 %v66
  %v1341 = vunpack.c.l.b16 %v67
  %v1342 = vunpack.c.h.b16 %v67
  %v1343 = vunpack.c.l.b16 %v68
  %v1344 = vunpack.c.h.b16 %v68
  %v1345 = vunpack.c.l.b16 %v69
  %v1346 = vunpack.c.h.b16 %v69
  %v1347 = vunpack.c.l.b16 %v70
  %v1348 = vunpack.c.h.b16 %v70
  %v1349 = vunpack.c.l.b16 %v71
  %v1350 = vunpack.c.h.b16 %v71
  %v1351 = vunpack.c.l.b16 %v72
  %v1352 = vunpack.c.h.b16 %v72
  %v1353 = vunpack.c.l.b16 %v73
  %v1354 = vunpack.c.h.b16 %v73
  %v1355 = vunpack.c.l.b16 %v74
  %v1356 = vunpack.c.h.b16 %v74
  %v1357 = vunpack.c.l.b16 %v75
  %v1358 = vunpack.c.h.b16 %v75
  %v1359 = vunpack.c.l.b16 %v76
  %v1360 = vunpack.c.h.b16 %v76
  %v1361 = vunpack.c.l.b16 %v77
  %v1362 = vunpack.c.h.b16 %v77
  %v1363 = vunpack.c.l.b16 %v78
  %v1364 = vunpack.c.h.b16 %v78
  %v1365 = vunpack.c.l.b16 %v79
  %v1366 = vunpack.c.h.b16 %v79
  %v1367 = vunpack.c.l.b16 %v80
  %v1368 = vunpack.c.h.b16 %v80
  %v1369 = vunpack.c.l.b16 %v81
  %v1370 = vunpack.c.h.b16 %v81
  %v1371 = vunpack.c.l.b16 %v82
  %v1372 = vunpack.c.h.b16 %v82
  %v1373 = vunpack.c.l.b16 %v83
  %v1374 = vunpack.c.h.b16 %v83
  %v1375 = vunpack.c.l.b16 %v84
  %v1376 = vunpack.c.h.b16 %v84
  %v1377 = vunpack.c.l.b16 %v85
  %v1378 = vunpack.c.h.b16 %v85
  %v1379 = vunpack.c.l.b16 %v86
  %v1380 = vunpack.c.h.b16 %v86
  %v1381 = vunpack.c.l.b16 %v87
  %v1382 = vunpack.c.h.b16 %v87
  %v1383 = vunpack.c.l.b16 %v88
  %v1384 = vunpack.c.h.b16 %v88
  %v1385 = vunpack.c.l.b16 %v89
  %v1386 = vunpack.c.h.b16 %v89
  %v1387 = vunpack.c.l.b16 %v90
  %v1388 = vunpack.c.h.b16 %v90
  %v1389 = vunpack.c.l.b16 %v91
  %v1390 = vunpack.c.h.b16 %v91
  %v1391 = vunpack.c.l.b16 %v92
  %v1392 = vunpack.c.h.b16 %v92
  %v1393 = vunpack.c.l.b16 %v93
  %v1394 = vunpack.c.h.b16 %v93
  %v1395 = vunpack.c.l.b16 %v94
  %v1396 = vunpack.c.h.b16 %v94
  %v1397 = vunpack.c.l.b16 %v95
  %v1398 = vunpack.c.h.b16 %v95
  %v1399 = vunpack.c.l.b16 %v96
  %v1400 = vunpack.c.h.b16 %v96
  %v1401 = vunpack.c.l.b16 %v97
  %v1402 = vunpack.c.h.b16 %v97
  %v1403 = vunpack.c.l.b16 %v98
  %v1404 = vunpack.c.h.b16 %v98
  %v1405 = vunpack.c.l.b16 %v99
  %v1406 = vunpack.c.h.b16 %v99
  %v1407 = vunpack.c.l.b16 %v100
  %v1408 = vunpack.c.h.b16 %v100
  %v1409 = vunpack.c.l.b16 %v101
  %v1410 = vunpack.c.h.b16 %v101
  %v1411 = vunpack.c.l.b16 %v102
  %v1412 = vunpack.c.h.b16 %v102
  %v1413 = vunpack.c.l.b16 %v103
  %v1414 = vunpack.c.h.b16 %v103
  %v1415 = vunpack.c.l.b16 %v104
  %v1416 = vunpack.c.h.b16 %v104
  %v1417 = vunpack.c.l.b16 %v105
  %v1418 = vunpack.c.h.b16 %v105
  %v1419 = vunpack.c.l.b16 %v106
  %v1420 = vunpack.c.h.b16 %v106
  %v1421 = vunpack.c.l.b16 %v107
  %v1422 = vunpack.c.h.b16 %v107
  %v1423 = vunpack.c.l.b16 %v108
  %v1424 = vunpack.c.h.b16 %v108
  %v1425 = vunpack.c.l.b16 %v109
  %v1426 = vunpack.c.h.b16 %v109
  %v1427 = vunpack.c.l.b16 %v110
  %v1428 = vunpack.c.h.b16 %v110
  %v1429 = vunpack.c.l.b16 %v111
  %v1430 = vunpack.c.h.b16 %v111
  %v1431 = vunpack.c.l.b16 %v112
  %v1432 = vunpack.c.h.b16 %v112
  %v1433 = vunpack.c.l.b16 %v113
  %v1434 = vunpack.c.h.b16 %v113
  %v1435 = vunpack.c.l.b16 %v114
  %v1436 = vunpack.c.h.b16 %v114
  %v1437 = vunpack.c.l.b16 %v115
  %v1438 = vunpack.c.h.b16 %v115
  %v1439 = vunpack.c.l.b16 %v116
  %v1440 = vunpack.c.h.b16 %v116
  %v1441 = vunpack.c.l.b16 %v117
  %v1442 = vunpack.c.h.b16 %v117
  %v1443 = vunpack.c.l.b16 %v118
  %v1444 = vunpack.c.h.b16 %v118
  %v1445 = vunpack.c.l.b16 %v119
  %v1446 = vunpack.c.h.b16 %v119
  %v1447 = vunpack.c.l.b16 %v120
  %v1448 = vunpack.c.h.b16 %v120
  %v1449 = vunpack.c.l.b16 %v121
  %v1450 = vunpack.c.h.b16 %v121
  %v1451 = vunpack.c.l.b16 %v122
  %v1452 = vunpack.c.h.b16 %v122
  %v1453 = vunpack.c.l.b16 %v123
  %v1454 = vunpack.c.h.b16 %v123
  %v1455 = vunpack.c.l.b16 %v124
  %v1456 = vunpack.c.h.b16 %v124
  %v1457 = vunpack.c.l.b16 %v125
  %v1458 = vunpack.c.h.b16 %v125
  %v1459 = vunpack.c.l.b16 %v126
  %v1460 = vunpack.c.h.b16 %v126
  %v1461 = vunpack.c.l.b16 %v127
  %v1462 = vunpack.c.h.b16 %v127
  %v1463 = vunpack.c.l.b16 %v128
  %v1464 = vunpack.c.h.b16 %v128
  %v1465 = vunpack.c.l.b16 %v129
  %v1466 = vunpack.c.h.b16 %v129
  %v1467 = vunpack.c.l.b16 %v130
  %v1468 = vunpack.c.h.b16 %v130
  %v1469 = vunpack.c.l.b16 %v131
  %v1470 = vunpack.c.h.b16 %v131
  %v1471 = vunpack.c.l.b16 %v132
  %v1472 = vunpack.c.h.b16 %v132
  %v1473 = vunpack.c.l.b16 %v133
  %v1474 = vunpack.c.h.b16 %v133
  %v1475 = vunpack.c.l.b16 %v134
  %v1476 = vunpack.c.h.b16 %v134
  %v1477 = vunpack.c.l.b16 %v135
  %v1478 = vunpack.c.h.b16 %v135
  %v1479 = vunpack.c.l.b16 %v136
  %v1480 = vunpack.c.h.b16 %v136
  %v1481 = vunpack.c.l.b16 %v137
  %v1482 = vunpack.c.h.b16 %v137
  %v1483 = vunpack.c.l.b16 %v138
  %v1484 = vunpack.c.h.b16 %v138
  %v1485 = vunpack.c.l.b16 %v139
  %v1486 = vunpack.c.h.b16 %v139
  %v1487 = vunpack.c.l.b16 %v140
  %v1488 = vunpack.c.h.b16 %v140
  %v1489 = vunpack.c.l.b16 %v141
  %v1490 = vunpack.c.h.b16 %v141
  %v1491 = vunpack.c.l.b16 %v142
  %v1492 = vunpack.c.h.b16 %v142
  %v1493 = vunpack.c.l.b16 %v143
  %v1494 = vunpack.c.h.b16 %v143
  %v1495 = vunpack.c.l.b16 %v144
  %v1496 = vunpack.c.h.b16 %v144
  %v1497 = vunpack.c.l.b16 %v145
  %v1498 = vunpack.c.h.b16 %v145
  %v1499 = vunpack.c.l.b16 %v146
  %v1500 = vunpack.c.h.b16 %v146
  %v1501 = vunpack.c.l.b16 %v147
  %v1502 = vunpack.c.h.b16 %v147
  %v1503 = vunpack.c.l.b16 %v148
  %v1504 = vunpack.c.h.b16 %v148
  %v1505 = vunpack.c.l.b16 %v149
  %v1506 = vunpack.c.h.b16 %v149
  %v1507 = vunpack.c.l.b16 %v150
  %v1508 = vunpack.c.h.b16 %v150
  %v1509 = vunpack.c.l.b16 %v151
  %v1510 = vunpack.c.h.b16 %v151
  %v1511 = vunpack.c.l.b16 %v152
  %v1512 = vunpack.c.h.b16 %v152
  %v1513 = vunpack.c.l.b16 %v153
  %v1514 = vunpack.c.h.b16 %v153
  %v1515 = vunpack.c.l.b16 %v154
  %v1516 = vunpack.c.h.b16 %v154
  %v1517 = vunpack.c.l.b16 %v155
  %v1518 = vunpack.c.h.b16 %v155
  %v1519 = vunpack.c.l.b16 %v156
  %v1520 = vunpack.c.h.b16 %v156
  %v1521 = vunpack.c.l.b16 %v157
  %v1522 = vunpack.c.h.b16 %v157
  %v1523 = vunpack.c.l.b16 %v158
  %v1524 = vunpack.c.h.b16 %v158
  %v1525 = vunpack.c.l.b16 %v159
  %v1526 = vunpack.c.h.b16 %v159
  %v1527 = vunpack.c.l.b16 %v160
  %v1528 = vunpack.c.h.b16 %v160
  %v1529 = vunpack.c.l.b16 %v161
  %v1530 = vunpack.c.h.b16 %v161
  %v1531 = vunpack.c.l.b16 %v162
  %v1532 = vunpack.c.h.b16 %v162
  %v1533 = vunpack.c.l.b16 %v163
  %v1534 = vunpack.c.h.b16 %v163
  %v1535 = vunpack.c.l.b16 %v164
  %v1536 = vunpack.c.h.b16 %v164
  %v1537 = vunpack.c.l.b16 %v165
  %v1538 = vunpack.c.h.b16 %v165
  %v1539 = vunpack.c.l.b16 %v166
  %v1540 = vunpack.c.h.b16 %v166
  %v1541 = vunpack.c.l.b16 %v167
  %v1542 = vunpack.c.h.b16 %v167
  %v1543 = vunpack.c.l.b16 %v168
  %v1544 = vunpack.c.h.b16 %v168
  %v1545 = vunpack.c.l.b16 %v169
  %v1546 = vunpack.c.h.b16 %v169
  %v1547 = vunpack.c.l.b16 %v170
  %v1548 = vunpack.c.h.b16 %v170
  %v1549 = vunpack.c.l.b16 %v171
  %v1550 = vunpack.c.h.b16 %v171
  %v1551 = vunpack.c.l.b16 %v172
  %v1552 = vunpack.c.h.b16 %v172
  %v1553 = vunpack.c.l.b16 %v173
  %v1554 = vunpack.c.h.b16 %v173
  %v1555 = vunpack.c.l.b16 %v174
  %v1556 = vunpack.c.h.b16 %v174
  %v1557 = vunpack.c.l.b16 %v175
  %v1558 = vunpack.c.h.b16 %v175
  %v1559 = vunpack.c.l.b16 %v176
  %v1560 = vunpack.c.h.b16 %v176
  %v1561 = vunpack.c.l.b16 %v177
  %v1562 = vunpack.c.h.b16 %v177
  %v1563 = vunpack.c.l.b16 %v178
  %v1564 = vunpack.c.h.b16 %v178
  %v1565 = vunpack.c.l.b16 %v179
  %v1566 = vunpack.c.h.b16 %v179
  %v1567 = vunpack.c.l.b16 %v180
  %v1568 = vunpack.c.h.b16 %v180
  %v1569 = vunpack.c.l.b16 %v181
  %v1570 = vunpack.c.h.b16 %v181
  %v1571 = vunpack.c.l.b16 %v182
  %v1572 = vunpack.c.h.b16 %v182
  %v1573 = vunpack.c.l.b16 %v183
  %v1574 = vunpack.c.h.b16 %v183
  %v1575 = vunpack.c.l.b16 %v184
  %v1576 = vunpack.c.h.b16 %v184
  %v1577 = vunpack.c.l.b16 %v185
  %v1578 = vunpack.c.h.b16 %v185
  %v1579 = vunpack.c.l.b16 %v186
  %v1580 = vunpack.c.h.b16 %v186
  %v1581 = vunpack.c.l.b16 %v187
  %v1582 = vunpack.c.h.b16 %v187
  %v1583 = vunpack.c.l.b16 %v188
  %v1584 = vunpack.c.h.b16 %v188
  %v1585 = vunpack.c.l.b16 %v189
  %v1586 = vunpack.c.h.b16 %v189
  %v1587 = vunpack.c.l.b16 %v190
  %v1588 = vunpack.c.h.b16 %v190
  %v1589 = vunpack.c.l.b16 %v191
  %v1590 = vunpack.c.h.b16 %v191
  %v1591 = vunpack.c.l.b16 %v192
  %v1592 = vunpack.c.h.b16 %v192
  %v1593 = vunpack.c.l.b16 %v193
  %v1594 = vunpack.c.h.b16 %v193
  %v1595 = vunpack.c.l.b16 %v194
  %v1596 = vunpack.c.h.b16 %v194
  %v1597 = vunpack.c.l.b16 %v195
  %v1598 = vunpack.c.h.b16 %v195
  %v1599 = vunpack.c.l.b16 %v196
  %v1600 = vunpack.c.h.b16 %v196
  %v1601 = vunpack.c.l.b16 %v197
  %v1602 = vunpack.c.h.b16 %v197
  %v1603 = vunpack.c.l.b16 %v198
  %v1604 = vunpack.c.h.b16 %v198
  %v1605 = vunpack.c.l.b16 %v199
  %v1606 = vunpack.c.h.b16 %v199
  %v1607 = vunpack.c.l.b16 %v200
  %v1608 = vunpack.c.h.b16 %v200
  %v1609 = vunpack.c.l.b16 %v201
  %v1610 = vunpack.c.h.b16 %v201
  %v1611 = vunpack.c.l.b16 %v202
  %v1612 = vunpack.c.h.b16 %v202
  %v1613 = vunpack.c.l.b16 %v203
  %v1614 = vunpack.c.h.b16 %v203
  %v1615 = vunpack.c.l.b16 %v204
  %v1616 = vunpack.c.h.b16 %v204
  %v1617 = vunpack.c.l.b16 %v205
  %v1618 = vunpack.c.h.b16 %v205
  %v1619 = vunpack.c.l.b16 %v206
  %v1620 = vunpack.c.h.b16 %v206
  %v1621 = vunpack.c.l.b16 %v207
  %v1622 = vunpack.c.h.b16 %v207
  %v1623 = vunpack.c.l.b16 %v208
  %v1624 = vunpack.c.h.b16 %v208
  %v1625 = vunpack.c.l.b16 %v209
  %v1626 = vunpack.c.h.b16 %v209
  %v1627 = vunpack.c.l.b16 %v210
  %v1628 = vunpack.c.h.b16 %v210
  %v1629 = vunpack.c.l.b16 %v211
  %v1630 = vunpack.c.h.b16 %v211
  %v1631 = vunpack.c.l.b16 %v212
  %v1632 = vunpack.c.h.b16 %v212
  %v1633 = vunpack.c.l.b16 %v213
  %v1634 = vunpack.c.h.b16 %v213
  %v1635 = vunpack.c.l.b16 %v214
  %v1636 = vunpack.c.h.b16 %v214
  %v1637 = vunpack.c.l.b16 %v215
  %v1638 = vunpack.c.h.b16 %v215
  %v1639 = vunpack.c.l.b16 %v216
  %v1640 = vunpack.c.h.b16 %v216
  %v1641 = vunpack.c.l.b16 %v217
  %v1642 = vunpack.c.h.b16 %v217
  %v1643 = vunpack.c.l.b16 %v218
  %v1644 = vunpack.c.h.b16 %v218
  %v1645 = vunpack.c.l.b16 %v219
  %v1646 = vunpack.c.h.b16 %v219
  %v1647 = vunpack.c.l.b16 %v220
  %v1648 = vunpack.c.h.b16 %v220
  %v1649 = vunpack.c.l.b16 %v221
  %v1650 = vunpack.c.h.b16 %v221
  %v1651 = vunpack.c.l.b16 %v222
  %v1652 = vunpack.c.h.b16 %v222
  %v1653 = vunpack.c.l.b16 %v223
  %v1654 = vunpack.c.h.b16 %v223
  %v1655 = vunpack.c.l.b16 %v224
  %v1656 = vunpack.c.h.b16 %v224
  %v1657 = vunpack.c.l.b16 %v225
  %v1658 = vunpack.c.h.b16 %v225
  %v1659 = vunpack.c.l.b16 %v226
  %v1660 = vunpack.c.h.b16 %v226
  %v1661 = vunpack.c.l.b16 %v227
  %v1662 = vunpack.c.h.b16 %v227
  %v1663 = vunpack.c.l.b16 %v228
  %v1664 = vunpack.c.h.b16 %v228
  %v1665 = vunpack.c.l.b16 %v229
  %v1666 = vunpack.c.h.b16 %v229
  %v1667 = vunpack.c.l.b16 %v230
  %v1668 = vunpack.c.h.b16 %v230
  %v1669 = vunpack.c.l.b16 %v231
  %v1670 = vunpack.c.h.b16 %v231
  %v1671 = vunpack.c.l.b16 %v232
  %v1672 = vunpack.c.h.b16 %v232
  %v1673 = vunpack.c.l.b16 %v233
  %v1674 = vunpack.c.h.b16 %v233
  %v1675 = vunpack.c.l.b16 %v234
  %v1676 = vunpack.c.h.b16 %v234
  %v1677 = vunpack.c.l.b16 %v235
  %v1678 = vunpack.c.h.b16 %v235
  %v1679 = vunpack.c.l.b16 %v236
  %v1680 = vunpack.c.h.b16 %v236
  %v1681 = vunpack.c.l.b16 %v237
  %v1682 = vunpack.c.h.b16 %v237
  %v1683 = vunpack.c.l.b16 %v238
  %v1684 = vunpack.c.h.b16 %v238
  %v1685 = vunpack.c.l.b16 %v239
  %v1686 = vunpack.c.h.b16 %v239
  %v1687 = vunpack.c.l.b16 %v240
  %v1688 = vunpack.c.h.b16 %v240
  %v1689 = vunpack.c.l.b16 %v241
  %v1690 = vunpack.c.h.b16 %v241
  %v1691 = vunpack.c.l.b16 %v242
  %v1692 = vunpack.c.h.b16 %v242
  %v1693 = vunpack.c.l.b16 %v243
  %v1694 = vunpack.c.h.b16 %v243
  %v1695 = vunpack.c.l.b16 %v244
  %v1696 = vunpack.c.h.b16 %v244
  %v1697 = vunpack.c.l.b16 %v245
  %v1698 = vunpack.c.h.b16 %v245
  %v1699 = vunpack.c.l.b16 %v246
  %v1700 = vunpack.c.h.b16 %v246
  %v1701 = vunpack.c.l.b16 %v247
  %v1702 = vunpack.c.h.b16 %v247
  %v1703 = vunpack.c.l.b16 %v248
  %v1704 = vunpack.c.h.b16 %v248
  %v1705 = vunpack.c.l.b16 %v249
  %v1706 = vunpack.c.h.b16 %v249
  %v1707 = vunpack.c.l.b16 %v250
  %v1708 = vunpack.c.h.b16 %v250
  %v1709 = vunpack.c.l.b16 %v251
  %v1710 = vunpack.c.h.b16 %v251
  %v1711 = vunpack.c.l.b16 %v252
  %v1712 = vunpack.c.h.b16 %v252
  %v1713 = vunpack.c.l.b16 %v253
  %v1714 = vunpack.c.h.b16 %v253
  %v1715 = vunpack.c.l.b16 %v254
  %v1716 = vunpack.c.h.b16 %v254
  %v1717 = vunpack.c.l.b16 %v255
  %v1718 = vunpack.c.h.b16 %v255
  %v1719 = vunpack.c.l.b16 %v256
  %v1720 = vunpack.c.h.b16 %v256
  %v1721 = vunpack.c.l.b16 %v257
  %v1722 = vunpack.c.h.b16 %v257
  %v1723 = vunpack.c.l.b16 %v258
  %v1724 = vunpack.c.h.b16 %v258
  %v1725 = vunpack.c.l.b16 %v259
  %v1726 = vunpack.c.h.b16 %v259
  %v1727 = vunpack.c.l.b16 %v260
  %v1728 = vunpack.c.h.b16 %v260
  %v1729 = vunpack.c.l.b16 %v261
  %v1730 = vunpack.c.h.b16 %v261
  %v1731 = vunpack.c.l.b16 %v262
  %v1732 = vunpack.c.h.b16 %v262
  %v1733 = vunpack.c.l.b16 %v263
  %v1734 = vunpack.c.h.b16 %v263
  %v1735 = vunpack.c.l.b16 %v264
  %v1736 = vunpack.c.h.b16 %v264
  %v1737 = vunpack.c.l.b16 %v265
  %v1738 = vunpack.c.h.b16 %v265
  %v1739 = vunpack.c.l.b16 %v266
  %v1740 = vunpack.c.h.b16 %v266
  %v1741 = vunpack.c.l.b16 %v267
  %v1742 = vunpack.c.h.b16 %v267
  %v1743 = vunpack.c.l.b16 %v268
  %v1744 = vunpack.c.h.b16 %v268
  %v1745 = vunpack.c.l.b16 %v269
  %v1746 = vunpack.c.h.b16 %v269
  %v1747 = vunpack.c.l.b16 %v270
  %v1748 = vunpack.c.h.b16 %v270
  %v1749 = vunpack.c.l.b16 %v271
  %v1750 = vunpack.c.h.b16 %v271
  %v1751 = vunpack.c.l.b16 %v272
  %v1752 = vunpack.c.h.b16 %v272
  %v1753 = vunpack.c.l.b16 %v273
  %v1754 = vunpack.c.h.b16 %v273
  %v1755 = vunpack.c.l.b16 %v274
  %v1756 = vunpack.c.h.b16 %v274
  %v1757 = vunpack.c.l.b16 %v275
  %v1758 = vunpack.c.h.b16 %v275
  %v1759 = vunpack.c.l.b16 %v276
  %v1760 = vunpack.c.h.b16 %v276
  %v1761 = vunpack.c.l.b16 %v277
  %v1762 = vunpack.c.h.b16 %v277
  %v1763 = vunpack.c.l.b16 %v278
  %v1764 = vunpack.c.h.b16 %v278
  %v1765 = vunpack.c.l.b16 %v279
  %v1766 = vunpack.c.h.b16 %v279
  %v1767 = vunpack.c.l.b16 %v280
  %v1768 = vunpack.c.h.b16 %v280
  %v1769 = vunpack.c.l.b16 %v281
  %v1770 = vunpack.c.h.b16 %v281
  %v1771 = vunpack.c.l.b16 %v282
  %v1772 = vunpack.c.h.b16 %v282
  %v1773 = vunpack.c.l.b16 %v283
  %v1774 = vunpack.c.h.b16 %v283
  %v1775 = vunpack.c.l.b16 %v284
  %v1776 = vunpack.c.h.b16 %v284
  %v1777 = vunpack.c.l.b16 %v285
  %v1778 = vunpack.c.h.b16 %v285
  %v1779 = vunpack.c.l.b16 %v286
  %v1780 = vunpack.c.h.b16 %v286
  %v1781 = vunpack.c.l.b16 %v287
  %v1782 = vunpack.c.h.b16 %v287
  %v1783 = vunpack.c.l.b16 %v288
  %v1784 = vunpack.c.h.b16 %v288
  %v1785 = vunpack.c.l.b16 %v289
  %v1786 = vunpack.c.h.b16 %v289
  %v1787 = vunpack.c.l.b16 %v290
  %v1788 = vunpack.c.h.b16 %v290
  %v1789 = vunpack.c.l.b16 %v291
  %v1790 = vunpack.c.h.b16 %v291
  %v1791 = vunpack.c.l.b16 %v292
  %v1792 = vunpack.c.h.b16 %v292
  %v1793 = vunpack.c.l.b16 %v293
  %v1794 = vunpack.c.h.b16 %v293
  %v1795 = vunpack.c.l.b16 %v294
  %v1796 = vunpack.c.h.b16 %v294
  %v1797 = vunpack.c.l.b16 %v295
  %v1798 = vunpack.c.h.b16 %v295
  %v1799 = vunpack.c.l.b16 %v296
  %v1800 = vunpack.c.h.b16 %v296
  %v1801 = vunpack.c.l.b16 %v297
  %v1802 = vunpack.c.h.b16 %v297
  %v1803 = vunpack.c.l.b16 %v298
  %v1804 = vunpack.c.h.b16 %v298
  %v1805 = vunpack.c.l.b16 %v299
  %v1806 = vunpack.c.h.b16 %v299
  %v1807 = vunpack.c.l.b16 %v300
  %v1808 = vunpack.c.h.b16 %v300
  %v1809 = vunpack.c.l.b16 %v301
  %v1810 = vunpack.c.h.b16 %v301
  %v1811 = vunpack.c.l.b16 %v302
  %v1812 = vunpack.c.h.b16 %v302
  %v1813 = vunpack.c.l.b16 %v303
  %v1814 = vunpack.c.h.b16 %v303
  %v1815 = vunpack.c.l.b16 %v304
  %v1816 = vunpack.c.h.b16 %v304
  %v1817 = vunpack.c.l.b16 %v305
  %v1818 = vunpack.c.h.b16 %v305
  %v1819 = vunpack.c.l.b16 %v306
  %v1820 = vunpack.c.h.b16 %v306
  %v1821 = vunpack.c.l.b16 %v307
  %v1822 = vunpack.c.h.b16 %v307
  %v1823 = vunpack.c.l.b16 %v308
  %v1824 = vunpack.c.h.b16 %v308
  %v1825 = vunpack.c.l.b16 %v309
  %v1826 = vunpack.c.h.b16 %v309
  %v1827 = vunpack.c.l.b16 %v310
  %v1828 = vunpack.c.h.b16 %v310
  %v1829 = vunpack.c.l.b16 %v311
  %v1830 = vunpack.c.h.b16 %v311
  %v1831 = vunpack.c.l.b16 %v312
  %v1832 = vunpack.c.h.b16 %v312
  %v1833 = vunpack.c.l.b16 %v313
  %v1834 = vunpack.c.h.b16 %v313
  %v1835 = vunpack.c.l.b16 %v314
  %v1836 = vunpack.c.h.b16 %v314
  %v1837 = vunpack.c.l.b16 %v315
  %v1838 = vunpack.c.h.b16 %v315
  %v1839 = vunpack.c.l.b16 %v316
  %v1840 = vunpack.c.h.b16 %v316
  %v1841 = vunpack.c.l.b16 %v317
  %v1842 = vunpack.c.h.b16 %v317
  %v1843 = vunpack.c.l.b16 %v318
  %v1844 = vunpack.c.h.b16 %v318
  %v1845 = vunpack.c.l.b16 %v319
  %v1846 = vunpack.c.h.b16 %v319
  %v1847 = vunpack.c.l.b16 %v320
  %v1848 = vunpack.c.h.b16 %v320
  %v1849 = vunpack.c.l.b16 %v321
  %v1850 = vunpack.c.h.b16 %v321
  %v1851 = vunpack.c.l.b16 %v322
  %v1852 = vunpack.c.h.b16 %v322
  %v1853 = vunpack.c.l.b16 %v323
  %v1854 = vunpack.c.h.b16 %v323
  %v1855 = vunpack.c.l.b16 %v324
  %v1856 = vunpack.c.h.b16 %v324
  %v1857 = vunpack.c.l.b16 %v325
  %v1858 = vunpack.c.h.b16 %v325
  %v1859 = vunpack.c.l.b16 %v326
  %v1860 = vunpack.c.h.b16 %v326
  %v1861 = vunpack.c.l.b16 %v327
  %v1862 = vunpack.c.h.b16 %v327
  %v1863 = vunpack.c.l.b16 %v328
  %v1864 = vunpack.c.h.b16 %v328
  %v1865 = vunpack.c.l.b16 %v329
  %v1866 = vunpack.c.h.b16 %v329
  %v1867 = vunpack.c.l.b16 %v330
  %v1868 = vunpack.c.h.b16 %v330
  %v1869 = vunpack.c.l.b16 %v331
  %v1870 = vunpack.c.h.b16 %v331
  %v1871 = vunpack.c.l.b16 %v332
  %v1872 = vunpack.c.h.b16 %v332
  %v1873 = vunpack.c.l.b16 %v333
  %v1874 = vunpack.c.h.b16 %v333
  %v1875 = vunpack.c.l.b16 %v334
  %v1876 = vunpack.c.h.b16 %v334
  %v1877 = vunpack.c.l.b16 %v335
  %v1878 = vunpack.c.h.b16 %v335
  %v1879 = vunpack.c.l.b16 %v336
  %v1880 = vunpack.c.h.b16 %v336
  %v1881 = vunpack.c.l.b16 %v337
  %v1882 = vunpack.c.h.b16 %v337
  %v1883 = vunpack.c.l.b16 %v338
  %v1884 = vunpack.c.h.b16 %v338
  %v1885 = vunpack.c.l.b16 %v339
  %v1886 = vunpack.c.h.b16 %v339
  %v1887 = vunpack.c.l.b16 %v340
  %v1888 = vunpack.c.h.b16 %v340
  %v1889 = vunpack.c.l.b16 %v341
  %v1890 = vunpack.c.h.b16 %v341
  %v1891 = vunpack.c.l.b16 %v342
  %v1892 = vunpack.c.h.b16 %v342
  %v1893 = vunpack.c.l.b16 %v343
  %v1894 = vunpack.c.h.b16 %v343
  %v1895 = vunpack.c.l.b16 %v344
  %v1896 = vunpack.c.h.b16 %v344
  %v1897 = vunpack.c.l.b16 %v345
  %v1898 = vunpack.c.h.b16 %v345
  %v1899 = vunpack.c.l.b16 %v346
  %v1900 = vunpack.c.h.b16 %v346
  %v1901 = vunpack.c.l.b16 %v347
  %v1902 = vunpack.c.h.b16 %v347
  %v1903 = vunpack.c.l.b16 %v348
  %v1904 = vunpack.c.h.b16 %v348
  %v1905 = vunpack.c.l.b16 %v349
  %v1906 = vunpack.c.h.b16 %v349
  %v1907 = vunpack.c.l.b16 %v350
  %v1908 = vunpack.c.h.b16 %v350
  %v1909 = vunpack.c.l.b16 %v351
  %v1910 = vunpack.c.h.b16 %v351
  %v1911 = vunpack.c.l.b16 %v352
  %v1912 = vunpack.c.h.b16 %v352
  %v1913 = vunpack.c.l.b16 %v353
  %v1914 = vunpack.c.h.b16 %v353
  %v1915 = vunpack.c.l.b16 %v354
  %v1916 = vunpack.c.h.b16 %v354
  %v1917 = vunpack.c.l.b16 %v355
  %v1918 = vunpack.c.h.b16 %v355
  %v1919 = vunpack.c.l.b16 %v356
  %v1920 = vunpack.c.h.b16 %v356
  %v1921 = vunpack.c.l.b16 %v357
  %v1922 = vunpack.c.h.b16 %v357
  %v1923 = vunpack.c.l.b16 %v358
  %v1924 = vunpack.c.h.b16 %v358
  %v1925 = vunpack.c.l.b16 %v359
  %v1926 = vunpack.c.h.b16 %v359
  %v1927 = vunpack.c.l.b16 %v360
  %v1928 = vunpack.c.h.b16 %v360
  %v1929 = vunpack.c.l.b16 %v361
  %v1930 = vunpack.c.h.b16 %v361
  %v1931 = vunpack.c.l.b16 %v362
  %v1932 = vunpack.c.h.b16 %v362
  %v1933 = vunpack.c.l.b16 %v363
  %v1934 = vunpack.c.h.b16 %v363
  %v1935 = vunpack.c.l.b16 %v364
  %v1936 = vunpack.c.h.b16 %v364
  %v1937 = vunpack.c.l.b16 %v365
  %v1938 = vunpack.c.h.b16 %v365
  %v1939 = vunpack.c.l.b16 %v366
  %v1940 = vunpack.c.h.b16 %v366
  %v1941 = vunpack.c.l.b16 %v367
  %v1942 = vunpack.c.h.b16 %v367
  %v1943 = vunpack.c.l.b16 %v368
  %v1944 = vunpack.c.h.b16 %v368
  %v1945 = vunpack.c.l.b16 %v369
  %v1946 = vunpack.c.h.b16 %v369
  %v1947 = vunpack.c.l.b16 %v370
  %v1948 = vunpack.c.h.b16 %v370
  %v1949 = vunpack.c.l.b16 %v371
  %v1950 = vunpack.c.h.b16 %v371
  %v1951 = vunpack.c.l.b16 %v372
  %v1952 = vunpack.c.h.b16 %v372
  %v1953 = vunpack.c.l.b16 %v373
  %v1954 = vunpack.c.h.b16 %v373
  %v1955 = vunpack.c.l.b16 %v374
  %v1956 = vunpack.c.h.b16 %v374
  %v1957 = vunpack.c.l.b16 %v375
  %v1958 = vunpack.c.h.b16 %v375
  %v1959 = vunpack.c.l.b16 %v376
  %v1960 = vunpack.c.h.b16 %v376
  %v1961 = vunpack.c.l.b16 %v377
  %v1962 = vunpack.c.h.b16 %v377
  %v1963 = vunpack.c.l.b16 %v378
  %v1964 = vunpack.c.h.b16 %v378
  %v1965 = vunpack.c.l.b16 %v379
  %v1966 = vunpack.c.h.b16 %v379
  %v1967 = vunpack.c.l.b16 %v380
  %v1968 = vunpack.c.h.b16 %v380
  %v1969 = vunpack.c.l.b16 %v381
  %v1970 = vunpack.c.h.b16 %v381
  %v1971 = vunpack.c.l.b16 %v382
  %v1972 = vunpack.c.h.b16 %v382
  %v1973 = vunpack.c.l.b16 %v383
  %v1974 = vunpack.c.h.b16 %v383
  %v1975 = vunpack.c.l.b16 %v384
  %v1976 = vunpack.c.h.b16 %v384
  %v1977 = vunpack.c.l.b16 %v385
  %v1978 = vunpack.c.h.b16 %v385
  %v1979 = vunpack.c.l.b16 %v386
  %v1980 = vunpack.c.h.b16 %v386
  %v1981 = vunpack.c.l.b16 %v387
  %v1982 = vunpack.c.h.b16 %v387
  %v1983 = vunpack.c.l.b16 %v388
  %v1984 = vunpack.c.h.b16 %v388
  %v1985 = vunpack.c.l.b16 %v389
  %v1986 = vunpack.c.h.b16 %v389
  %v1987 = vunpack.c.l.b16 %v390
  %v1988 = vunpack.c.h.b16 %v390
  %v1989 = vunpack.c.l.b16 %v391
  %v1990 = vunpack.c.h.b16 %v391
  %v1991 = vunpack.c.l.b16 %v392
  %v1992 = vunpack.c.h.b16 %v392
  %v1993 = vunpack.c.l.b16 %v393
  %v1994 = vunpack.c.h.b16 %v393
  %v1995 = vunpack.c.l.b16 %v394
  %v1996 = vunpack.c.h.b16 %v394
  %v1997 = vunpack.c.l.b16 %v395
  %v1998 = vunpack.c.h.b16 %v395
  %v1999 = vunpack.c.l.b16 %v396
  %v2000 = vunpack.c.h.b16 %v396
  %v2001 = vunpack.c.l.b16 %v397
  %v2002 = vunpack.c.h.b16 %v397
  %v2003 = vunpack.c.l.b16 %v398
  %v2004 = vunpack.c.h.b16 %v398
  %v2005 = vunpack.c.l.b16 %v399
  %v2006 = vunpack.c.h.b16 %v399
  %v2007 = vunpack.c.l.b16 %v400
  %v2008 = vunpack.c.h.b16 %v400
  %v2009 = vunpack.c.l.b16 %v401
  %v2010 = vunpack.c.h.b16 %v401
  %v2011 = vunpack.c.l.b16 %v402
  %v2012 = vunpack.c.h.b16 %v402
  %v2013 = vunpack.c.l.b16 %v403
  %v2014 = vunpack.c.h.b16 %v403
  %v2015 = vunpack.c.l.b16 %v404
  %v2016 = vunpack.c.h.b16 %v404
  %v2017 = vunpack.c.l.b16 %v405
  %v2018 = vunpack.c.h.b16 %v405
  %v2019 = vunpack.c.l.b16 %v406
  %v2020 = vunpack.c.h.b16 %v406
  %v2021 = vunpack.c.l.b16 %v407
  %v2022 = vunpack.c.h.b16 %v407
  %v2023 = vunpack.c.l.b16 %v408
  %v2024 = vunpack.c.h.b16 %v408
  %v2025 = vunpack.c.l.b16 %v409
  %v2026 = vunpack.c.h.b16 %v409
  %v2027 = vunpack.c.l.b16 %v410
  %v2028 = vunpack.c.h.b16 %v410
  %v2029 = vunpack.c.l.b16 %v411
  %v2030 = vunpack.c.h.b16 %v411
  %v2031 = vunpack.c.l.b16 %v412
  %v2032 = vunpack.c.h.b16 %v412
  %v2033 = vunpack.c.l.b16 %v413
  %v2034 = vunpack.c.h.b16 %v413
  %v2035 = vunpack.c.l.b16 %v414
  %v2036 = vunpack.c.h.b16 %v414
  %v2037 = vunpack.c.l.b16 %v415
  %v2038 = vunpack.c.h.b16 %v415
  %v2039 = vunpack.c.l.b16 %v416
  %v2040 = vunpack.c.h.b16 %v416
  %v2041 = vunpack.c.l.b16 %v417
  %v2042 = vunpack.c.h.b16 %v417
  %v2043 = vunpack.c.l.b16 %v418
  %v2044 = vunpack.c.h.b16 %v418
  %v2045 = vunpack.c.l.b16 %v419
  %v2046 = vunpack.c.h.b16 %v419
  %v2047 = vunpack.c.l.b16 %v420
  %v2048 = vunpack.c.h.b16 %v420
  %v2049 = vunpack.c.l.b16 %v421
  %v2050 = vunpack.c.h.b16 %v421
  %v2051 = vunpack.c.l.b16 %v422
  %v2052 = vunpack.c.h.b16 %v422
  %v2053 = vunpack.c.l.b16 %v423
  %v2054 = vunpack.c.h.b16 %v423
  %v2055 = vunpack.c.l.b16 %v424
  %v2056 = vunpack.c.h.b16 %v424
  %v2057 = vunpack.c.l.b16 %v425
  %v2058 = vunpack.c.h.b16 %v425
  %v2059 = vunpack.c.l.b16 %v426
  %v2060 = vunpack.c.h.b16 %v426
  %v2061 = vunpack.c.l.b16 %v427
  %v2062 = vunpack.c.h.b16 %v427
  %v2063 = vunpack.c.l.b16 %v428
  %v2064 = vunpack.c.h.b16 %v428
  %v2065 = vunpack.c.l.b16 %v429
  %v2066 = vunpack.c.h.b16 %v429
  %v2067 = vunpack.c.l.b16 %v430
  %v2068 = vunpack.c.h.b16 %v430
  %v2069 = vunpack.c.l.b16 %v431
  %v2070 = vunpack.c.h.b16 %v431
  %v2071 = vunpack.c.l.b16 %v432
  %v2072 = vunpack.c.h.b16 %v432
  %v2073 = vunpack.c.l.b16 %v433
  %v2074 = vunpack.c.h.b16 %v433
  %v2075 = vunpack.c.l.b16 %v434
  %v2076 = vunpack.c.h.b16 %v434
  %v2077 = vunpack.c.l.b16 %v435
  %v2078 = vunpack.c.h.b16 %v435
  %v2079 = vunpack.c.l.b16 %v436
  %v2080 = vunpack.c.h.b16 %v436
  %v2081 = vunpack.c.l.b16 %v437
  %v2082 = vunpack.c.h.b16 %v437
  %v2083 = vunpack.c.l.b16 %v438
  %v2084 = vunpack.c.h.b16 %v438
  %v2085 = vunpack.c.l.b16 %v439
  %v2086 = vunpack.c.h.b16 %v439
  %v2087 = vunpack.c.l.b16 %v440
  %v2088 = vunpack.c.h.b16 %v440
  %v2089 = vunpack.c.l.b16 %v441
  %v2090 = vunpack.c.h.b16 %v441
  %v2091 = vunpack.c.l.b16 %v442
  %v2092 = vunpack.c.h.b16 %v442
  %v2093 = vunpack.c.l.b16 %v443
  %v2094 = vunpack.c.h.b16 %v443
  %v2095 = vunpack.c.l.b16 %v444
  %v2096 = vunpack.c.h.b16 %v444
  %v2097 = vunpack.c.l.b16 %v445
  %v2098 = vunpack.c.h.b16 %v445
  %v2099 = vunpack.c.l.b16 %v446
  %v2100 = vunpack.c.h.b16 %v446
  %v2101 = vunpack.c.l.b16 %v447
  %v2102 = vunpack.c.h.b16 %v447
  %v2103 = vunpack.c.l.b16 %v448
  %v2104 = vunpack.c.h.b16 %v448
  %v2105 = vunpack.c.l.b16 %v449
  %v2106 = vunpack.c.h.b16 %v449
  %v2107 = vunpack.c.l.b16 %v450
  %v2108 = vunpack.c.h.b16 %v450
  %v2109 = vunpack.c.l.b16 %v451
  %v2110 = vunpack.c.h.b16 %v451
  %v2111 = vunpack.c.l.b16 %v452
  %v2112 = vunpack.c.h.b16 %v452
  %v2113 = vunpack.c.l.b16 %v453
  %v2114 = vunpack.c.h.b16 %v453
  %v2115 = vunpack.c.l.b16 %v454
  %v2116 = vunpack.c.h.b16 %v454
  %v2117 = vunpack.c.l.b16 %v455
  %v2118 = vunpack.c.h.b16 %v455
  %v2119 = vunpack.c.l.b16 %v456
  %v2120 = vunpack.c.h.b16 %v456
  %v2121 = vunpack.c.l.b16 %v457
  %v2122 = vunpack.c.h.b16 %v457
  %v2123 = vunpack.c.l.b16 %v458
  %v2124 = vunpack.c.h.b16 %v458
  %v2125 = vunpack.c.l.b16 %v459
  %v2126 = vunpack.c.h.b16 %v459
  %v2127 = vunpack.c.l.b16 %v460
  %v2128 = vunpack.c.h.b16 %v460
  %v2129 = vunpack.c.l.b16 %v461
  %v2130 = vunpack.c.h.b16 %v461
  %v2131 = vunpack.c.l.b16 %v462
  %v2132 = vunpack.c.h.b16 %v462
  %v2133 = vunpack.c.l.b16 %v463
  %v2134 = vunpack.c.h.b16 %v463
  %v2135 = vunpack.c.l.b16 %v464
  %v2136 = vunpack.c.h.b16 %v464
  %v2137 = vunpack.c.l.b16 %v465
  %v2138 = vunpack.c.h.b16 %v465
  %v2139 = vunpack.c.l.b16 %v466
  %v2140 = vunpack.c.h.b16 %v466
  %v2141 = vunpack.c.l.b16 %v467
  %v2142 = vunpack.c.h.b16 %v467
  %v2143 = vunpack.c.l.b16 %v468
  %v2144 = vunpack.c.h.b16 %v468
  %v2145 = vunpack.c.l.b16 %v469
  %v2146 = vunpack.c.h.b16 %v469
  %v2147 = vunpack.c.l.b16 %v470
  %v2148 = vunpack.c.h.b16 %v470
  %v2149 = vunpack.c.l.b16 %v471
  %v2150 = vunpack.c.h.b16 %v471
  %v2151 = vunpack.c.l.b16 %v472
  %v2152 = vunpack.c.h.b16 %v472
  %v2153 = vunpack.c.l.b16 %v473
  %v2154 = vunpack.c.h.b16 %v473
  %v2155 = vunpack.c.l.b16 %v474
  %v2156 = vunpack.c.h.b16 %v474
  %v2157 = vunpack.c.l.b16 %v475
  %v2158 = vunpack.c.h.b16 %v475
  %v2159 = vunpack.c.l.b16 %v476
  %v2160 = vunpack.c.h.b16 %v476
  %v2161 = vunpack.c.l.b16 %v477
  %v2162 = vunpack.c.h.b16 %v477
  %v2163 = vunpack.c.l.b16 %v478
  %v2164 = vunpack.c.h.b16 %v478
  %v2165 = vunpack.c.l.b16 %v479
  %v2166 = vunpack.c.h.b16 %v479
  %v2167 = vunpack.c.l.b16 %v480
  %v2168 = vunpack.c.h.b16 %v480
  %v2169 = vunpack.c.l.b16 %v481
  %v2170 = vunpack.c.h.b16 %v481
  %v2171 = vunpack.c.l.b16 %v482
  %v2172 = vunpack.c.h.b16 %v482
  %v2173 = vunpack.c.l.b16 %v483
  %v2174 = vunpack.c.h.b16 %v483
  %v2175 = vunpack.c.l.b16 %v484
  %v2176 = vunpack.c.h.b16 %v484
  %v2177 = vunpack.c.l.b16 %v485
  %v2178 = vunpack.c.h.b16 %v485
  %v2179 = vunpack.c.l.b16 %v486
  %v2180 = vunpack.c.h.b16 %v486
  %v2181 = vunpack.c.l.b16 %v487
  %v2182 = vunpack.c.h.b16 %v487
  %v2183 = vunpack.c.l.b16 %v488
  %v2184 = vunpack.c.h.b16 %v488
  %v2185 = vunpack.c.l.b16 %v489
  %v2186 = vunpack.c.h.b16 %v489
  %v2187 = vunpack.c.l.b16 %v490
  %v2188 = vunpack.c.h.b16 %v490
  %v2189 = vunpack.c.l.b16 %v491
  %v2190 = vunpack.c.h.b16 %v491
  %v2191 = vunpack.c.l.b16 %v492
  %v2192 = vunpack.c.h.b16 %v492
  %v2193 = vunpack.c.l.b16 %v493
  %v2194 = vunpack.c.h.b16 %v493
  %v2195 = vunpack.c.l.b16 %v494
  %v2196 = vunpack.c.h.b16 %v494
  %v2197 = vunpack.c.l.b16 %v495
  %v2198 = vunpack.c.h.b16 %v495
  %v2199 = vunpack.c.l.b16 %v496
  %v2200 = vunpack.c.h.b16 %v496
  %v2201 = vunpack.c.l.b16 %v497
  %v2202 = vunpack.c.h.b16 %v497
  %v2203 = vunpack.c.l.b16 %v498
  %v2204 = vunpack.c.h.b16 %v498
  %v2205 = vunpack.c.l.b16 %v499
  %v2206 = vunpack.c.h.b16 %v499
  %v2207 = vunpack.c.l.b16 %v500
  %v2208 = vunpack.c.h.b16 %v500
  %v2209 = vunpack.c.l.b16 %v501
  %v2210 = vunpack.c.h.b16 %v501
  %v2211 = vunpack.c.l.b16 %v502
  %v2212 = vunpack.c.h.b16 %v502
  %v2213 = vunpack.c.l.b16 %v503
  %v2214 = vunpack.c.h.b16 %v503
  %v2215 = vunpack.c.l.b16 %v504
  %v2216 = vunpack.c.h.b16 %v504
  %v2217 = vunpack.c.l.b16 %v505
  %v2218 = vunpack.c.h.b16 %v505
  %v2219 = vunpack.c.l.b16 %v506
  %v2220 = vunpack.c.h.b16 %v506
  %v2221 = vunpack.c.l.b16 %v507
  %v2222 = vunpack.c.h.b16 %v507
  %v2223 = vunpack.c.l.b16 %v508
  %v2224 = vunpack.c.h.b16 %v508
  %v2225 = vunpack.c.l.b16 %v509
  %v2226 = vunpack.c.h.b16 %v509
  %v2227 = vunpack.c.l.b16 %v510
  %v2228 = vunpack.c.h.b16 %v510
  %v2229 = vunpack.c.l.b16 %v511
  %v2230 = vunpack.c.h.b16 %v511
  %v2231 = vunpack.c.l.b16 %v512
  %v2232 = vunpack.c.h.b16 %v512
  %v2233 = vunpack.c.l.b16 %v513
  %v2234 = vunpack.c.h.b16 %v513
  %v2235 = vunpack.c.l.b16 %v514
  %v2236 = vunpack.c.h.b16 %v514
  %v2237 = vunpack.c.l.b16 %v515
  %v2238 = vunpack.c.h.b16 %v515
  %v2239 = vunpack.c.l.b16 %v516
  %v2240 = vunpack.c.h.b16 %v516
  %v2241 = vunpack.c.l.b16 %v517
  %v2242 = vunpack.c.h.b16 %v517
  %v2243 = vunpack.c.l.b16 %v518
  %v2244 = vunpack.c.h.b16 %v518
  %v2245 = vunpack.c.l.b16 %v519
  %v2246 = vunpack.c.h.b16 %v519
  %v2247 = vunpack.c.l.b16 %v520
  %v2248 = vunpack.c.h.b16 %v520
  %v2249 = vunpack.c.l.b16 %v521
  %v2250 = vunpack.c.h.b16 %v521
  %v2251 = vunpack.c.l.b16 %v522
  %v2252 = vunpack.c.h.b16 %v522
  %v2253 = vunpack.c.l.b16 %v523
  %v2254 = vunpack.c.h.b16 %v523
  %v2255 = vunpack.c.l.b16 %v524
  %v2256 = vunpack.c.h.b16 %v524
  %v2257 = vunpack.c.l.b16 %v525
  %v2258 = vunpack.c.h.b16 %v525
  %v2259 = vunpack.c.l.b16 %v526
  %v2260 = vunpack.c.h.b16 %v526
  %v2261 = vunpack.c.l.b16 %v527
  %v2262 = vunpack.c.h.b16 %v527
  %v2263 = vunpack.c.l.b16 %v528
  %v2264 = vunpack.c.h.b16 %v528
  %v2265 = vunpack.c.l.b16 %v529
  %v2266 = vunpack.c.h.b16 %v529
  %v2267 = vunpack.c.l.b16 %v530
  %v2268 = vunpack.c.h.b16 %v530
  %v2269 = vunpack.c.l.b16 %v531
  %v2270 = vunpack.c.h.b16 %v531
  %v2271 = vunpack.c.l.b16 %v532
  %v2272 = vunpack.c.h.b16 %v532
  %v2273 = vunpack.c.l.b16 %v533
  %v2274 = vunpack.c.h.b16 %v533
  %v2275 = vunpack.c.l.b16 %v534
  %v2276 = vunpack.c.h.b16 %v534
  %v2277 = vunpack.c.l.b16 %v535
  %v2278 = vunpack.c.h.b16 %v535
  %v2279 = vunpack.c.l.b16 %v536
  %v2280 = vunpack.c.h.b16 %v536
  %v2281 = vunpack.c.l.b16 %v537
  %v2282 = vunpack.c.h.b16 %v537
  %v2283 = vunpack.c.l.b16 %v538
  %v2284 = vunpack.c.h.b16 %v538
  %v2285 = vunpack.c.l.b16 %v539
  %v2286 = vunpack.c.h.b16 %v539
  %v2287 = vunpack.c.l.b16 %v540
  %v2288 = vunpack.c.h.b16 %v540
  %v2289 = vunpack.c.l.b16 %v541
  %v2290 = vunpack.c.h.b16 %v541
  %v2291 = vunpack.c.l.b16 %v542
  %v2292 = vunpack.c.h.b16 %v542
  %v2293 = vunpack.c.l.b16 %v543
  %v2294 = vunpack.c.h.b16 %v543
  %v2295 = vunpack.c.l.b16 %v544
  %v2296 = vunpack.c.h.b16 %v544
  %v2297 = vunpack.c.l.b16 %v545
  %v2298 = vunpack.c.h.b16 %v545
  %v2299 = vunpack.c.l.b16 %v546
  %v2300 = vunpack.c.h.b16 %v546
  %v2301 = vunpack.c.l.b16 %v547
  %v2302 = vunpack.c.h.b16 %v547
  %v2303 = vunpack.c.l.b16 %v548
  %v2304 = vunpack.c.h.b16 %v548
  %v2305 = vunpack.c.l.b16 %v549
  %v2306 = vunpack.c.h.b16 %v549
  %v2307 = vunpack.c.l.b16 %v550
  %v2308 = vunpack.c.h.b16 %v550
  %v2309 = vunpack.c.l.b16 %v551
  %v2310 = vunpack.c.h.b16 %v551
  %v2311 = vunpack.c.l.b16 %v552
  %v2312 = vunpack.c.h.b16 %v552
  %v2313 = vunpack.c.l.b16 %v553
  %v2314 = vunpack.c.h.b16 %v553
  %v2315 = vunpack.c.l.b16 %v554
  %v2316 = vunpack.c.h.b16 %v554
  %v2317 = vunpack.c.l.b16 %v555
  %v2318 = vunpack.c.h.b16 %v555
  %v2319 = vunpack.c.l.b16 %v556
  %v2320 = vunpack.c.h.b16 %v556
  %v2321 = vunpack.c.l.b16 %v557
  %v2322 = vunpack.c.h.b16 %v557
  %v2323 = vunpack.c.l.b16 %v558
  %v2324 = vunpack.c.h.b16 %v558
  %v2325 = vunpack.c.l.b16 %v559
  %v2326 = vunpack.c.h.b16 %v559
  %v2327 = vunpack.c.l.b16 %v560
  %v2328 = vunpack.c.h.b16 %v560
  %v2329 = vunpack.c.l.b16 %v561
  %v2330 = vunpack.c.h.b16 %v561
  %v2331 = vunpack.c.l.b16 %v562
  %v2332 = vunpack.c.h.b16 %v562
  %v2333 = vunpack.c.l.b16 %v563
  %v2334 = vunpack.c.h.b16 %v563
  %v2335 = vunpack.c.l.b16 %v564
  %v2336 = vunpack.c.h.b16 %v564
  %v2337 = vunpack.c.l.b16 %v565
  %v2338 = vunpack.c.h.b16 %v565
  %v2339 = vunpack.c.l.b16 %v566
  %v2340 = vunpack.c.h.b16 %v566
  %v2341 = vunpack.c.l.b16 %v567
  %v2342 = vunpack.c.h.b16 %v567
  %v2343 = vunpack.c.l.b16 %v568
  %v2344 = vunpack.c.h.b16 %v568
  %v2345 = vunpack.c.l.b16 %v569
  %v2346 = vunpack.c.h.b16 %v569
  %v2347 = vunpack.c.l.b16 %v570
  %v2348 = vunpack.c.h.b16 %v570
  %v2349 = vunpack.c.l.b16 %v571
  %v2350 = vunpack.c.h.b16 %v571
  %v2351 = vunpack.c.l.b16 %v572
  %v2352 = vunpack.c.h.b16 %v572
  %v2353 = vunpack.c.l.b16 %v573
  %v2354 = vunpack.c.h.b16 %v573
  %v2355 = vunpack.c.l.b16 %v574
  %v2356 = vunpack.c.h.b16 %v574
  %v2357 = vunpack.c.l.b16 %v575
  %v2358 = vunpack.c.h.b16 %v575
  %v2359 = vunpack.c.l.b16 %v576
  %v2360 = vunpack.c.h.b16 %v576
  %v2361 = vunpack.c.l.b16 %v577
  %v2362 = vunpack.c.h.b16 %v577
  %v2363 = vunpack.c.l.b16 %v578
  %v2364 = vunpack.c.h.b16 %v578
  %v2365 = vunpack.c.l.b16 %v579
  %v2366 = vunpack.c.h.b16 %v579
  %v2367 = vunpack.c.l.b16 %v580
  %v2368 = vunpack.c.h.b16 %v580
  %v2369 = vunpack.c.l.b16 %v581
  %v2370 = vunpack.c.h.b16 %v581
  %v2371 = vunpack.c.l.b16 %v582
  %v2372 = vunpack.c.h.b16 %v582
  %v2373 = vunpack.c.l.b16 %v583
  %v2374 = vunpack.c.h.b16 %v583
  %v2375 = vunpack.c.l.b16 %v584
  %v2376 = vunpack.c.h.b16 %v584
  %v2377 = vunpack.c.l.b16 %v585
  %v2378 = vunpack.c.h.b16 %v585
  %v2379 = vunpack.c.l.b16 %v586
  %v2380 = vunpack.c.h.b16 %v586
  %v2381 = vunpack.c.l.b16 %v587
  %v2382 = vunpack.c.h.b16 %v587
  %v2383 = vunpack.c.l.b16 %v588
  %v2384 = vunpack.c.h.b16 %v588
  %v2385 = vunpack.c.l.b16 %v589
  %v2386 = vunpack.c.h.b16 %v589
  %v2387 = vunpack.c.l.b16 %v590
  %v2388 = vunpack.c.h.b16 %v590
  %v2389 = vunpack.c.l.b16 %v591
  %v2390 = vunpack.c.h.b16 %v591
  %v2391 = vunpack.c.l.b16 %v592
  %v2392 = vunpack.c.h.b16 %v592
  %v2393 = vunpack.c.l.b16 %v593
  %v2394 = vunpack.c.h.b16 %v593
  %v2395 = vunpack.c.l.b16 %v594
  %v2396 = vunpack.c.h.b16 %v594
  %v2397 = vunpack.c.l.b16 %v595
  %v2398 = vunpack.c.h.b16 %v595
  %v2399 = vunpack.c.l.b16 %v596
  %v2400 = vunpack.c.h.b16 %v596
  %v2401 = vunpack.c.l.b16 %v597
  %v2402 = vunpack.c.h.b16 %v597
  %v2403 = vunpack.c.l.b16 %v598
  %v2404 = vunpack.c.h.b16 %v598
  %v2405 = vunpack.c.l.b16 %v599
  %v2406 = vunpack.c.h.b16 %v599
  %v2407 = vunpack.c.l.b16 %v600
  %v2408 = vunpack.c.h.b16 %v600
  %v2409 = vunpack.c.l.b16 %v601
  %v2410 = vunpack.c.h.b16 %v601
  %v2411 = vunpack.c.l.b16 %v602
  %v2412 = vunpack.c.h.b16 %v602
  %v2413 = vunpack.c.l.b16 %v603
  %v2414 = vunpack.c.h.b16 %v603
  %v2415 = vunpack.c.l.b16 %v604
  %v2416 = vunpack.c.h.b16 %v604
  %v2417 = vunpack.c.l.b16 %v605
  %v2418 = vunpack.c.h.b16 %v605
  %v2419 = vpack.c.b16 %v1271, %v1267
  %v2420 = vpack.c.b16 %v1272, %v1268
  %v2421 = vpack.c.b16 %v1273, %v1269
  %v2422 = vpack.c.b16 %v1274, %v1270
  %v2423 = vpack.c.b16 %v1279, %v1275
  %v2424 = vpack.c.b16 %v1280, %v1276
  %v2425 = vpack.c.b16 %v1281, %v1277
  %v2426 = vpack.c.b16 %v1282, %v1278
  %v2427 = vpack.c.b16 %v1287, %v1283
  %v2428 = vpack.c.b16 %v1288, %v1284
  %v2429 = vpack.c.b16 %v1289, %v1285
  %v2430 = vpack.c.b16 %v1290, %v1286
  %v2431 = vpack.c.b16 %v1295, %v1291
  %v2432 = vpack.c.b16 %v1296, %v1292
  %v2433 = vpack.c.b16 %v1297, %v1293
  %v2434 = vpack.c.b16 %v1298, %v1294
  %v2435 = vpack.c.b16 %v1303, %v1299
  %v2436 = vpack.c.b16 %v1304, %v1300
  %v2437 = vpack.c.b16 %v1305, %v1301
  %v2438 = vpack.c.b16 %v1306, %v1302
  %v2439 = vpack.c.b16 %v1311, %v1307
  %v2440 = vpack.c.b16 %v1312, %v1308
  %v2441 = vpack.c.b16 %v1313, %v1309
  %v2442 = vpack.c.b16 %v1314, %v1310
  %v2443 = vpack.c.b16 %v1319, %v1315
  %v2444 = vpack.c.b16 %v1320, %v1316
  %v2445 = vpack.c.b16 %v1321, %v1317
  %v2446 = vpack.c.b16 %v1322, %v1318
  %v2447 = vpack.c.b16 %v1327, %v1323
  %v2448 = vpack.c.b16 %v1328, %v1324
  %v2449 = vpack.c.b16 %v1329, %v1325
  %v2450 = vpack.c.b16 %v1330, %v1326
  %v2451 = vpack.c.b16 %v1335, %v1331
  %v2452 = vpack.c.b16 %v1336, %v1332
  %v2453 = vpack.c.b16 %v1337, %v1333
  %v2454 = vpack.c.b16 %v1338, %v1334
  %v2455 = vpack.c.b16 %v1343, %v1339
  %v2456 = vpack.c.b16 %v1344, %v1340
  %v2457 = vpack.c.b16 %v1345, %v1341
  %v2458 = vpack.c.b16 %v1346, %v1342
  %v2459 = vpack.c.b16 %v1351, %v1347
  %v2460 = vpack.c.b16 %v1352, %v1348
  %v2461 = vpack.c.b16 %v1353, %v1349
  %v2462 = vpack.c.b16 %v1354, %v1350
  %v2463 = vpack.c.b16 %v1359, %v1355
  %v2464 = vpack.c.b16 %v1360, %v1356
  %v2465 = vpack.c.b16 %v1361, %v1357
  %v2466 = vpack.c.b16 %v1362, %v1358
  %v2467 = vpack.c.b16 %v1367, %v1363
  %v2468 = vpack.c.b16 %v1368, %v1364
  %v2469 = vpack.c.b16 %v1369, %v1365
  %v2470 = vpack.c.b16 %v1370, %v1366
  %v2471 = vpack.c.b16 %v1375, %v1371
  %v2472 = vpack.c.b16 %v1376, %v1372
  %v2473 = vpack.c.b16 %v1377, %v1373
  %v2474 = vpack.c.b16 %v1378, %v1374
  %v2475 = vpack.c.b16 %v1383, %v1379
  %v2476 = vpack.c.b16 %v1384, %v1380
  %v2477 = vpack.c.b16 %v1385, %v1381
  %v2478 = vpack.c.b16 %v1386, %v1382
  %v2479 = vpack.c.b16 %v1391, %v1387
  %v2480 = vpack.c.b16 %v1392, %v1388
  %v2481 = vpack.c.b16 %v1393, %v1389
  %v2482 = vpack.c.b16 %v1394, %v1390
  %v2483 = vpack.c.b16 %v1399, %v1395
  %v2484 = vpack.c.b16 %v1400, %v1396
  %v2485 = vpack.c.b16 %v1401, %v1397
  %v2486 = vpack.c.b16 %v1402, %v1398
  %v2487 = vpack.c.b16 %v1407, %v1403
  %v2488 = vpack.c.b16 %v1408, %v1404
  %v2489 = vpack.c.b16 %v1409, %v1405
  %v2490 = vpack.c.b16 %v1410, %v1406
  %v2491 = vpack.c.b16 %v1415, %v1411
  %v2492 = vpack.c.b16 %v1416, %v1412
  %v2493 = vpack.c.b16 %v1417, %v1413
  %v2494 = vpack.c.b16 %v1418, %v1414
  %v2495 = vpack.c.b16 %v1423, %v1419
  %v2496 = vpack.c.b16 %v1424, %v1420
  %v2497 = vpack.c.b16 %v1425, %v1421
  %v2498 = vpack.c.b16 %v1426, %v1422
  %v2499 = vpack.c.b16 %v1431, %v1427
  %v2500 = vpack.c.b16 %v1432, %v1428
  %v2501 = vpack.c.b16 %v1433, %v1429
  %v2502 = vpack.c.b16 %v1434, %v1430
  %v2503 = vpack.c.b16 %v1439, %v1435
  %v2504 = vpack.c.b16 %v1440, %v1436
  %v2505 = vpack.c.b16 %v1441, %v1437
  %v2506 = vpack.c.b16 %v1442, %v1438
  %v2507 = vpack.c.b16 %v1447, %v1443
  %v2508 = vpack.c.b16 %v1448, %v1444
  %v2509 = vpack.c.b16 %v1449, %v1445
  %v2510 = vpack.c.b16 %v1450, %v1446
  %v2511 = vpack.c.b16 %v1455, %v1451
  %v2512 = vpack.c.b16 %v1456, %v1452
  %v2513 = vpack.c.b16 %v1457, %v1453
  %v2514 = vpack.c.b16 %v1458, %v1454
  %v2515 = vpack.c.b16 %v1463, %v1459
  %v2516 = vpack.c.b16 %v1464, %v1460
  %v2517 = vpack.c.b16 %v1465, %v1461
  %v2518 = vpack.c.b16 %v1466, %v1462
  %v2519 = vpack.c.b16 %v1471, %v1467
  %v2520 = vpack.c.b16 %v1472, %v1468
  %v2521 = vpack.c.b16 %v1473, %v1469
  %v2522 = vpack.c.b16 %v1474, %v1470
  %v2523 = vpack.c.b16 %v1479, %v1475
  %v2524 = vpack.c.b16 %v1480, %v1476
  %v2525 = vpack.c.b16 %v1481, %v1477
  %v2526 = vpack.c.b16 %v1482, %v1478
  %v2527 = vpack.c.b16 %v1487, %v1483
  %v2528 = vpack.c.b16 %v1488, %v1484
  %v2529 = vpack.c.b16 %v1489, %v1485
  %v2530 = vpack.c.b16 %v1490, %v1486
  %v2531 = vpack.c.b16 %v1495, %v1491
  %v2532 = vpack.c.b16 %v1496, %v1492
  %v2533 = vpack.c.b16 %v1497, %v1493
  %v2534 = vpack.c.b16 %v1498, %v1494
  %v2535 = vpack.c.b16 %v1503, %v1499
  %v2536 = vpack.c.b16 %v1504, %v1500
  %v2537 = vpack.c.b16 %v1505, %v1501
  %v2538 = vpack.c.b16 %v1506, %v1502
  %v2539 = vpack.c.b16 %v1511, %v1507
  %v2540 = vpack.c.b16 %v1512, %v1508
  %v2541 = vpack.c.b16 %v1513, %v1509
  %v2542 = vpack.c.b16 %v1514, %v1510
  %v2543 = vpack.c.b16 %v1519, %v1515
  %v2544 = vpack.c.b16 %v1520, %v1516
  %v2545 = vpack.c.b16 %v1521, %v1517
  %v2546 = vpack.c.b16 %v1522, %v1518
  %v2547 = vpack.c.b16 %v1527, %v1523
  %v2548 = vpack.c.b16 %v1528, %v1524
  %v2549 = vpack.c.b16 %v1529, %v1525
  %v2550 = vpack.c.b16 %v1530, %v1526
  %v2551 = vpack.c.b16 %v1535, %v1531
  %v2552 = vpack.c.b16 %v1536, %v1532
  %v2553 = vpack.c.b16 %v1537, %v1533
  %v2554 = vpack.c.b16 %v1538, %v1534
  %v2555 = vpack.c.b16 %v1543, %v1539
  %v2556 = vpack.c.b16 %v1544, %v1540
  %v2557 = vpack.c.b16 %v1545, %v1541
  %v2558 = vpack.c.b16 %v1546, %v1542
  %v2559 = vpack.c.b16 %v1551, %v1547
  %v2560 = vpack.c.b16 %v1552, %v1548
  %v2561 = vpack.c.b16 %v1553, %v1549
  %v2562 = vpack.c.b16 %v1554, %v1550
  %v2563 = vpack.c.b16 %v1559, %v1555
  %v2564 = vpack.c.b16 %v1560, %v1556
  %v2565 = vpack.c.b16 %v1561, %v1557
  %v2566 = vpack.c.b16 %v1562, %v1558
  %v2567 = vpack.c.b16 %v1567, %v1563
  %v2568 = vpack.c.b16 %v1568, %v1564
  %v2569 = vpack.c.b16 %v1569, %v1565
  %v2570 = vpack.c.b16 %v1570, %v1566
  %v2571 = vpack.c.b16 %v1575, %v1571
  %v2572 = vpack.c.b16 %v1576, %v1572
  %v2573 = vpack.c.b16 %v1577, %v1573
  %v2574 = vpack.c.b16 %v1578, %v1574
  %v2575 = vpack.c.b16 %v1583, %v1579
  %v2576 = vpack.c.b16 %v1584, %v1580
  %v2577 = vpack.c.b16 %v1585, %v1581
  %v2578 = vpack.c.b16 %v1586, %v1582
  %v2579 = vpack.c.b16 %v1591, %v1587
  %v2580 = vpack.c.b16 %v1592, %v1588
  %v2581 = vpack.c.b16 %v1593, %v1589
  %v2582 = vpack.c.b16 %v1594, %v1590
  %v2583 = vpack.c.b16 %v1599, %v1595
  %v2584 = vpack.c.b16 %v1600, %v1596
  %v2585 = vpack.c.b16 %v1601, %v1597
  %v2586 = vpack.c.b16 %v1602, %v1598
  %v2587 = vpack.c.b16 %v1607, %v1603
  %v2588 = vpack.c.b16 %v1608, %v1604
  %v2589 = vpack.c.b16 %v1609, %v1605
  %v2590 = vpack.c.b16 %v1610, %v1606
  %v2591 = vpack.c.b16 %v1615, %v1611
  %v2592 = vpack.c.b16 %v1616, %v1612
  %v2593 = vpack.c.b16 %v1617, %v1613
  %v2594 = vpack.c.b16 %v1618, %v1614
  %v2595 = vpack.c.b16 %v1623, %v1619
  %v2596 = vpack.c.b16 %v1624, %v1620
  %v2597 = vpack.c.b16 %v1625, %v1621
  %v2598 = vpack.c.b16 %v1626, %v1622
  %v2599 = vpack.c.b16 %v1631, %v1627
  %v2600 = vpack.c.b16 %v1632, %v1628
  %v2601 = vpack.c.b16 %v1633, %v1629
  %v2602 = vpack.c.b16 %v1634, %v1630
  %v2603 = vpack.c.b16 %v1639, %v1635
  %v2604 = vpack.c.b16 %v1640, %v1636
  %v2605 = vpack.c.b16 %v1641, %v1637
  %v2606 = vpack.c.b16 %v1642, %v1638
  %v2607 = vpack.c.b16 %v1647, %v1643
  %v2608 = vpack.c.b16 %v1648, %v1644
  %v2609 = vpack.c.b16 %v1649, %v1645
  %v2610 = vpack.c.b16 %v1650, %v1646
  %v2611 = vpack.c.b16 %v1655, %v1651
  %v2612 = vpack.c.b16 %v1656, %v1652
  %v2613 = vpack.c.b16 %v1657, %v1653
  %v2614 = vpack.c.b16 %v1658, %v1654
  %v2615 = vpack.c.b16 %v1663, %v1659
  %v2616 = vpack.c.b16 %v1664, %v1660
  %v2617 = vpack.c.b16 %v1665, %v1661
  %v2618 = vpack.c.b16 %v1666, %v1662
  %v2619 = vpack.c.b16 %v1671, %v1667
  %v2620 = vpack.c.b16 %v1672, %v1668
  %v2621 = vpack.c.b16 %v1673, %v1669
  %v2622 = vpack.c.b16 %v1674, %v1670
  %v2623 = vpack.c.b16 %v1679, %v1675
  %v2624 = vpack.c.b16 %v1680, %v1676
  %v2625 = vpack.c.b16 %v1681, %v1677
  %v2626 = vpack.c.b16 %v1682, %v1678
  %v2627 = vpack.c.b16 %v1687, %v1683
  %v2628 = vpack.c.b16 %v1688, %v1684
  %v2629 = vpack.c.b16 %v1689, %v1685
  %v2630 = vpack.c.b16 %v1690, %v1686
  %v2631 = vpack.c.b16 %v1695, %v1691
  %v2632 = vpack.c.b16 %v1696, %v1692
  %v2633 = vpack.c.b16 %v1697, %v1693
  %v2634 = vpack.c.b16 %v1698, %v1694
  %v2635 = vpack.c.b16 %v1703, %v1699
  %v2636 = vpack.c.b16 %v1704, %v1700
  %v2637 = vpack.c.b16 %v1705, %v1701
  %v2638 = vpack.c.b16 %v1706, %v1702
  %v2639 = vpack.c.b16 %v1711, %v1707
  %v2640 = vpack.c.b16 %v1712, %v1708
  %v2641 = vpack.c.b16 %v1713, %v1709
  %v2642 = vpack.c.b16 %v1714, %v1710
  %v2643 = vpack.c.b16 %v1719, %v1715
  %v2644 = vpack.c.b16 %v1720, %v1716
  %v2645 = vpack.c.b16 %v1721, %v1717
  %v2646 = vpack.c.b16 %v1722, %v1718
  %v2647 = vpack.c.b16 %v1727, %v1723
  %v2648 = vpack.c.b16 %v1728, %v1724
  %v2649 = vpack.c.b16 %v1729, %v1725
  %v2650 = vpack.c.b16 %v1730, %v1726
  %v2651 = vpack.c.b16 %v1735, %v1731
  %v2652 = vpack.c.b16 %v1736, %v1732
  %v2653 = vpack.c.b16 %v1737, %v1733
  %v2654 = vpack.c.b16 %v1738, %v1734
  %v2655 = vpack.c.b16 %v1743, %v1739
  %v2656 = vpack.c.b16 %v1744, %v1740
  %v2657 = vpack.c.b16 %v1745, %v1741
  %v2658 = vpack.c.b16 %v1746, %v1742
  %v2659 = vpack.c.b16 %v1751, %v1747
  %v2660 = vpack.c.b16 %v1752, %v1748
  %v2661 = vpack.c.b16 %v1753, %v1749
  %v2662 = vpack.c.b16 %v1754, %v1750
  %v2663 = vpack.c.b16 %v1759, %v1755
  %v2664 = vpack.c.b16 %v1760, %v1756
  %v2665 = vpack.c.b16 %v1761, %v1757
  %v2666 = vpack.c.b16 %v1762, %v1758
  %v2667 = vpack.c.b16 %v1767, %v1763
  %v2668 = vpack.c.b16 %v1768, %v1764
  %v2669 = vpack.c.b16 %v1769, %v1765
  %v2670 = vpack.c.b16 %v1770, %v1766
  %v2671 = vpack.c.b16 %v1775, %v1771
  %v2672 = vpack.c.b16 %v1776, %v1772
  %v2673 = vpack.c.b16 %v1777, %v1773
  %v2674 = vpack.c.b16 %v1778, %v1774
  %v2675 = vpack.c.b16 %v1783, %v1779
  %v2676 = vpack.c.b16 %v1784, %v1780
  %v2677 = vpack.c.b16 %v1785, %v1781
  %v2678 = vpack.c.b16 %v1786, %v1782
  %v2679 = vpack.c.b16 %v1791, %v1787
  %v2680 = vpack.c.b16 %v1792, %v1788
  %v2681 = vpack.c.b16 %v1793, %v1789
  %v2682 = vpack.c.b16 %v1794, %v1790
  %v2683 = vpack.c.b16 %v1799, %v1795
  %v2684 = vpack.c.b16 %v1800, %v1796
  %v2685 = vpack.c.b16 %v1801, %v1797
  %v2686 = vpack.c.b16 %v1802, %v1798
  %v2687 = vpack.c.b16 %v1807, %v1803
  %v2688 = vpack.c.b16 %v1808, %v1804
  %v2689 = vpack.c.b16 %v1809, %v1805
  %v2690 = vpack.c.b16 %v1810, %v1806
  %v2691 = vpack.c.b16 %v1815, %v1811
  %v2692 = vpack.c.b16 %v1816, %v1812
  %v2693 = vpack.c.b16 %v1817, %v1813
  %v2694 = vpack.c.b16 %v1818, %v1814
  %v2695 = vpack.c.b16 %v1823, %v1819
  %v2696 = vpack.c.b16 %v1824, %v1820
  %v2697 = vpack.c.b16 %v1825, %v1821
  %v2698 = vpack.c.b16 %v1826, %v1822
  %v2699 = vpack.c.b16 %v1831, %v1827
  %v2700 = vpack.c.b16 %v1832, %v1828
  %v2701 = vpack.c.b16 %v1833, %v1829
  %v2702 = vpack.c.b16 %v1834, %v1830
  %v2703 = vpack.c.b16 %v1839, %v1835
  %v2704 = vpack.c.b16 %v1840, %v1836
  %v2705 = vpack.c.b16 %v1841, %v1837
  %v2706 = vpack.c.b16 %v1842, %v1838
  %v2707 = vpack.c.b16 %v1847, %v1843
  %v2708 = vpack.c.b16 %v1848, %v1844
  %v2709 = vpack.c.b16 %v1849, %v1845
  %v2710 = vpack.c.b16 %v1850, %v1846
  %v2711 = vpack.c.b16 %v1855, %v1851
  %v2712 = vpack.c.b16 %v1856, %v1852
  %v2713 = vpack.c.b16 %v1857, %v1853
  %v2714 = vpack.c.b16 %v1858, %v1854
  %v2715 = vpack.c.b16 %v1863, %v1859
  %v2716 = vpack.c.b16 %v1864, %v1860
  %v2717 = vpack.c.b16 %v1865, %v1861
  %v2718 = vpack.c.b16 %v1866, %v1862
  %v2719 = vpack.c.b16 %v1871, %v1867
  %v2720 = vpack.c.b16 %v1872, %v1868
  %v2721 = vpack.c.b16 %v1873, %v1869
  %v2722 = vpack.c.b16 %v1874, %v1870
  %v2723 = vpack.c.b16 %v1879, %v1875
  %v2724 = vpack.c.b16 %v1880, %v1876
  %v2725 = vpack.c.b16 %v1881, %v1877
  %v2726 = vpack.c.b16 %v1882, %v1878
  %v2727 = vpack.c.b16 %v1887, %v1883
  %v2728 = vpack.c.b16 %v1888, %v1884
  %v2729 = vpack.c.b16 %v1889, %v1885
  %v2730 = vpack.c.b16 %v1890, %v1886
  %v2731 = vpack.c.b16 %v1895, %v1891
  %v2732 = vpack.c.b16 %v1896, %v1892
  %v2733 = vpack.c.b16 %v1897, %v1893
  %v2734 = vpack.c.b16 %v1898, %v1894
  %v2735 = vpack.c.b16 %v1903, %v1899
  %v2736 = vpack.c.b16 %v1904, %v1900
  %v2737 = vpack.c.b16 %v1905, %v1901
  %v2738 = vpack.c.b16 %v1906, %v1902
  %v2739 = vpack.c.b16 %v1911, %v1907
  %v2740 = vpack.c.b16 %v1912, %v1908
  %v2741 = vpack.c.b16 %v1913, %v1909
  %v2742 = vpack.c.b16 %v1914, %v1910
  %v2743 = vpack.c.b16 %v1919, %v1915
  %v2744 = vpack.c.b16 %v1920, %v1916
  %v2745 = vpack.c.b16 %v1921, %v1917
  %v2746 = vpack.c.b16 %v1922, %v1918
  %v2747 = vpack.c.b16 %v1927, %v1923
  %v2748 = vpack.c.b16 %v1928, %v1924
  %v2749 = vpack.c.b16 %v1929, %v1925
  %v2750 = vpack.c.b16 %v1930, %v1926
  %v2751 = vpack.c.b16 %v1935, %v1931
  %v2752 = vpack.c.b16 %v1936, %v1932
  %v2753 = vpack.c.b16 %v1937, %v1933
  %v2754 = vpack.c.b16 %v1938, %v1934
  %v2755 = vpack.c.b16 %v1943, %v1939
  %v2756 = vpack.c.b16 %v1944, %v1940
  %v2757 = vpack.c.b16 %v1945, %v1941
  %v2758 = vpack.c.b16 %v1946, %v1942
  %v2759 = vpack.c.b16 %v1951, %v1947
  %v2760 = vpack.c.b16 %v1952, %v1948
  %v2761 = vpack.c.b16 %v1953, %v1949
  %v2762 = vpack.c.b16 %v1954, %v1950
  %v2763 = vpack.c.b16 %v1959, %v1955
  %v2764 = vpack.c.b16 %v1960, %v1956
  %v2765 = vpack.c.b16 %v1961, %v1957
  %v2766 = vpack.c.b16 %v1962, %v1958
  %v2767 = vpack.c.b16 %v1967, %v1963
  %v2768 = vpack.c.b16 %v1968, %v1964
  %v2769 = vpack.c.b16 %v1969, %v1965
  %v2770 = vpack.c.b16 %v1970, %v1966
  %v2771 = vpack.c.b16 %v1975, %v1971
  %v2772 = vpack.c.b16 %v1976, %v1972
  %v2773 = vpack.c.b16 %v1977, %v1973
  %v2774 = vpack.c.b16 %v1978, %v1974
  %v2775 = vpack.c.b16 %v1983, %v1979
  %v2776 = vpack.c.b16 %v1984, %v1980
  %v2777 = vpack.c.b16 %v1985, %v1981
  %v2778 = vpack.c.b16 %v1986, %v1982
  %v2779 = vpack.c.b16 %v1991, %v1987
  %v2780 = vpack.c.b16 %v1992, %v1988
  %v2781 = vpack.c.b16 %v1993, %v1989
  %v2782 = vpack.c.b16 %v1994, %v1990
  %v2783 = vpack.c.b16 %v1999, %v1995
  %v2784 = vpack.c.b16 %v2000, %v1996
  %v2785 = vpack.c.b16 %v2001, %v1997
  %v2786 = vpack.c.b16 %v2002, %v1998
  %v2787 = vpack.c.b16 %v2007, %v2003
  %v2788 = vpack.c.b16 %v2008, %v2004
  %v2789 = vpack.c.b16 %v2009, %v2005
  %v2790 = vpack.c.b16 %v2010, %v2006
  %v2791 = vpack.c.b16 %v2015, %v2011
  %v2792 = vpack.c.b16 %v2016, %v2012
  %v2793 = vpack.c.b16 %v2017, %v2013
  %v2794 = vpack.c.b16 %v2018, %v2014
  %v2795 = vpack.c.b16 %v2023, %v2019
  %v2796 = vpack.c.b16 %v2024, %v2020
  %v2797 = vpack.c.b16 %v2025, %v2021
  %v2798 = vpack.c.b16 %v2026, %v2022
  %v2799 = vpack.c.b16 %v2031, %v2027
  %v2800 = vpack.c.b16 %v2032, %v2028
  %v2801 = vpack.c.b16 %v2033, %v2029
  %v2802 = vpack.c.b16 %v2034, %v2030
  %v2803 = vpack.c.b16 %v2039, %v2035
  %v2804 = vpack.c.b16 %v2040, %v2036
  %v2805 = vpack.c.b16 %v2041, %v2037
  %v2806 = vpack.c.b16 %v2042, %v2038
  %v2807 = vpack.c.b16 %v2047, %v2043
  %v2808 = vpack.c.b16 %v2048, %v2044
  %v2809 = vpack.c.b16 %v2049, %v2045
  %v2810 = vpack.c.b16 %v2050, %v2046
  %v2811 = vpack.c.b16 %v2055, %v2051
  %v2812 = vpack.c.b16 %v2056, %v2052
  %v2813 = vpack.c.b16 %v2057, %v2053
  %v2814 = vpack.c.b16 %v2058, %v2054
  %v2815 = vpack.c.b16 %v2063, %v2059
  %v2816 = vpack.c.b16 %v2064, %v2060
  %v2817 = vpack.c.b16 %v2065, %v2061
  %v2818 = vpack.c.b16 %v2066, %v2062
  %v2819 = vpack.c.b16 %v2071, %v2067
  %v2820 = vpack.c.b16 %v2072, %v2068
  %v2821 = vpack.c.b16 %v2073, %v2069
  %v2822 = vpack.c.b16 %v2074, %v2070
  %v2823 = vpack.c.b16 %v2079, %v2075
  %v2824 = vpack.c.b16 %v2080, %v2076
  %v2825 = vpack.c.b16 %v2081, %v2077
  %v2826 = vpack.c.b16 %v2082, %v2078
  %v2827 = vpack.c.b16 %v2087, %v2083
  %v2828 = vpack.c.b16 %v2088, %v2084
  %v2829 = vpack.c.b16 %v2089, %v2085
  %v2830 = vpack.c.b16 %v2090, %v2086
  %v2831 = vpack.c.b16 %v2095, %v2091
  %v2832 = vpack.c.b16 %v2096, %v2092
  %v2833 = vpack.c.b16 %v2097, %v2093
  %v2834 = vpack.c.b16 %v2098, %v2094
  %v2835 = vpack.c.b16 %v2103, %v2099
  %v2836 = vpack.c.b16 %v2104, %v2100
  %v2837 = vpack.c.b16 %v2105, %v2101
  %v2838 = vpack.c.b16 %v2106, %v2102
  %v2839 = vpack.c.b16 %v2111, %v2107
  %v2840 = vpack.c.b16 %v2112, %v2108
  %v2841 = vpack.c.b16 %v2113, %v2109
  %v2842 = vpack.c.b16 %v2114, %v2110
  %v2843 = vpack.c.b16 %v2119, %v2115
  %v2844 = vpack.c.b16 %v2120, %v2116
  %v2845 = vpack.c.b16 %v2121, %v2117
  %v2846 = vpack.c.b16 %v2122, %v2118
  %v2847 = vpack.c.b16 %v2127, %v2123
  %v2848 = vpack.c.b16 %v2128, %v2124
  %v2849 = vpack.c.b16 %v2129, %v2125
  %v2850 = vpack.c.b16 %v2130, %v2126
  %v2851 = vpack.c.b16 %v2135, %v2131
  %v2852 = vpack.c.b16 %v2136, %v2132
  %v2853 = vpack.c.b16 %v2137, %v2133
  %v2854 = vpack.c.b16 %v2138, %v2134
  %v2855 = vpack.c.b16 %v2143, %v2139
  %v2856 = vpack.c.b16 %v2144, %v2140
  %v2857 = vpack.c.b16 %v2145, %v2141
  %v2858 = vpack.c.b16 %v2146, %v2142
  %v2859 = vpack.c.b16 %v2151, %v2147
  %v2860 = vpack.c.b16 %v2152, %v2148
  %v2861 = vpack.c.b16 %v2153, %v2149
  %v2862 = vpack.c.b16 %v2154, %v2150
  %v2863 = vpack.c.b16 %v2159, %v2155
  %v2864 = vpack.c.b16 %v2160, %v2156
  %v2865 = vpack.c.b16 %v2161, %v2157
  %v2866 = vpack.c.b16 %v2162, %v2158
  %v2867 = vpack.c.b16 %v2167, %v2163
  %v2868 = vpack.c.b16 %v2168, %v2164
  %v2869 = vpack.c.b16 %v2169, %v2165
  %v2870 = vpack.c.b16 %v2170, %v2166
  %v2871 = vpack.c.b16 %v2175, %v2171
  %v2872 = vpack.c.b16 %v2176, %v2172
  %v2873 = vpack.c.b16 %v2177, %v2173
  %v2874 = vpack.c.b16 %v2178, %v2174
  %v2875 = vpack.c.b16 %v2183, %v2179
  %v2876 = vpack.c.b16 %v2184, %v2180
  %v2877 = vpack.c.b16 %v2185, %v2181
  %v2878 = vpack.c.b16 %v2186, %v2182
  %v2879 = vpack.c.b16 %v2191, %v2187
  %v2880 = vpack.c.b16 %v2192, %v2188
  %v2881 = vpack.c.b16 %v2193, %v2189
  %v2882 = vpack.c.b16 %v2194, %v2190
  %v2883 = vpack.c.b16 %v2199, %v2195
  %v2884 = vpack.c.b16 %v2200, %v2196
  %v2885 = vpack.c.b16 %v2201, %v2197
  %v2886 = vpack.c.b16 %v2202, %v2198
  %v2887 = vpack.c.b16 %v2207, %v2203
  %v2888 = vpack.c.b16 %v2208, %v2204
  %v2889 = vpack.c.b16 %v2209, %v2205
  %v2890 = vpack.c.b16 %v2210, %v2206
  %v2891 = vpack.c.b16 %v2215, %v2211
  %v2892 = vpack.c.b16 %v2216, %v2212
  %v2893 = vpack.c.b16 %v2217, %v2213
  %v2894 = vpack.c.b16 %v2218, %v2214
  %v2895 = vpack.c.b16 %v2223, %v2219
  %v2896 = vpack.c.b16 %v2224, %v2220
  %v2897 = vpack.c.b16 %v2225, %v2221
  %v2898 = vpack.c.b16 %v2226, %v2222
  %v2899 = vpack.c.b16 %v2231, %v2227
  %v2900 = vpack.c.b16 %v2232, %v2228
  %v2901 = vpack.c.b16 %v2233, %v2229
  %v2902 = vpack.c.b16 %v2234, %v2230
  %v2903 = vpack.c.b16 %v2239, %v2235
  %v2904 = vpack.c.b16 %v2240, %v2236
  %v2905 = vpack.c.b16 %v2241, %v2237
  %v2906 = vpack.c.b16 %v2242, %v2238
  %v2907 = vpack.c.b16 %v2247, %v2243
  %v2908 = vpack.c.b16 %v2248, %v2244
  %v2909 = vpack.c.b16 %v2249, %v2245
  %v2910 = vpack.c.b16 %v2250, %v2246
  %v2911 = vpack.c.b16 %v2255, %v2251
  %v2912 = vpack.c.b16 %v2256, %v2252
  %v2913 = vpack.c.b16 %v2257, %v2253
  %v2914 = vpack.c.b16 %v2258, %v2254
  %v2915 = vpack.c.b16 %v2263, %v2259
  %v2916 = vpack.c.b16 %v2264, %v2260
  %v2917 = vpack.c.b16 %v2265, %v2261
  %v2918 = vpack.c.b16 %v2266, %v2262
  %v2919 = vpack.c.b16 %v2271, %v2267
  %v2920 = vpack.c.b16 %v2272, %v2268
  %v2921 = vpack.c.b16 %v2273, %v2269
  %v2922 = vpack.c.b16 %v2274, %v2270
  %v2923 = vpack.c.b16 %v2279, %v2275
  %v2924 = vpack.c.b16 %v2280, %v2276
  %v2925 = vpack.c.b16 %v2281, %v2277
  %v2926 = vpack.c.b16 %v2282, %v2278
  %v2927 = vpack.c.b16 %v2287, %v2283
  %v2928 = vpack.c.b16 %v2288, %v2284
  %v2929 = vpack.c.b16 %v2289, %v2285
  %v2930 = vpack.c.b16 %v2290, %v2286
  %v2931 = vpack.c.b16 %v2295, %v2291
  %v2932 = vpack.c.b16 %v2296, %v2292
  %v2933 = vpack.c.b16 %v2297, %v2293
  %v2934 = vpack.c.b16 %v2298, %v2294
  %v2935 = vpack.c.b16 %v2303, %v2299
  %v2936 = vpack.c.b16 %v2304, %v2300
  %v2937 = vpack.c.b16 %v2305, %v2301
  %v2938 = vpack.c.b16 %v2306, %v2302
  %v2939 = vpack.c.b16 %v2311, %v2307
  %v2940 = vpack.c.b16 %v2312, %v2308
  %v2941 = vpack.c.b16 %v2313, %v2309
  %v2942 = vpack.c.b16 %v2314, %v2310
  %v2943 = vpack.c.b16 %v2319, %v2315
  %v2944 = vpack.c.b16 %v2320, %v2316
  %v2945 = vpack.c.b16 %v2321, %v2317
  %v2946 = vpack.c.b16 %v2322, %v2318
  %v2947 = vpack.c.b16 %v2327, %v2323
  %v2948 = vpack.c.b16 %v2328, %v2324
  %v2949 = vpack.c.b16 %v2329, %v2325
  %v2950 = vpack.c.b16 %v2330, %v2326
  %v2951 = vpack.c.b16 %v2335, %v2331
  %v2952 = vpack.c.b16 %v2336, %v2332
  %v2953 = vpack.c.b16 %v2337, %v2333
  %v2954 = vpack.c.b16 %v2338, %v2334
  %v2955 = vpack.c.b16 %v2343, %v2339
  %v2956 = vpack.c.b16 %v2344, %v2340
  %v2957 = vpack.c.b16 %v2345, %v2341
  %v2958 = vpack.c.b16 %v2346, %v2342
  %v2959 = vpack.c.b16 %v2351, %v2347
  %v2960 = vpack.c.b16 %v2352, %v2348
  %v2961 = vpack.c.b16 %v2353, %v2349
  %v2962 = vpack.c.b16 %v2354, %v2350
  %v2963 = vpack.c.b16 %v2359, %v2355
  %v2964 = vpack.c.b16 %v2360, %v2356
  %v2965 = vpack.c.b16 %v2361, %v2357
  %v2966 = vpack.c.b16 %v2362, %v2358
  %v2967 = vpack.c.b16 %v2367, %v2363
  %v2968 = vpack.c.b16 %v2368, %v2364
  %v2969 = vpack.c.b16 %v2369, %v2365
  %v2970 = vpack.c.b16 %v2370, %v2366
  %v2971 = vpack.c.b16 %v2375, %v2371
  %v2972 = vpack.c.b16 %v2376, %v2372
  %v2973 = vpack.c.b16 %v2377, %v2373
  %v2974 = vpack.c.b16 %v2378, %v2374
  %v2975 = vpack.c.b16 %v2383, %v2379
  %v2976 = vpack.c.b16 %v2384, %v2380
  %v2977 = vpack.c.b16 %v2385, %v2381
  %v2978 = vpack.c.b16 %v2386, %v2382
  %v2979 = vpack.c.b16 %v2391, %v2387
  %v2980 = vpack.c.b16 %v2392, %v2388
  %v2981 = vpack.c.b16 %v2393, %v2389
  %v2982 = vpack.c.b16 %v2394, %v2390
  %v2983 = vpack.c.b16 %v2399, %v2395
  %v2984 = vpack.c.b16 %v2400, %v2396
  %v2985 = vpack.c.b16 %v2401, %v2397
  %v2986 = vpack.c.b16 %v2402, %v2398
  %v2987 = vpack.c.b16 %v2407, %v2403
  %v2988 = vpack.c.b16 %v2408, %v2404
  %v2989 = vpack.c.b16 %v2409, %v2405
  %v2990 = vpack.c.b16 %v2410, %v2406
  %v2991 = vpack.c.b16 %v2415, %v2411
  %v2992 = vpack.c.b16 %v2416, %v2412
  %v2993 = vpack.c.b16 %v2417, %v2413
  %v2994 = vpack.c.b16 %v2418, %v2414
  %3571 = vmatprep.subr.bf16.mxu0 %v2420
  %3572 = vmatpush1.bf16.msra.mxu0 %v2419
  %3573 = vmatprep.subr.bf16.mxu0 %v2424
  %3574 = vmatpush1.bf16.msra.mxu0 %v2423
  %3575 = vmatprep.subr.bf16.mxu0 %v2428
  %3576 = vmatpush1.bf16.msra.mxu0 %v2427
  %3577 = vmatprep.subr.bf16.mxu0 %v2432
  %3578 = vmatpush1.bf16.msra.mxu0 %v2431
  %3579 = vmatprep.subr.bf16.mxu0 %v2436
  %3580 = vmatpush1.bf16.msra.mxu0 %v2435
  %3581 = vmatprep.subr.bf16.mxu0 %v2440
  %3582 = vmatpush1.bf16.msra.mxu0 %v2439
  %3583 = vmatprep.subr.bf16.mxu0 %v2444
  %3584 = vmatpush1.bf16.msra.mxu0 %v2443
  %3585 = vmatprep.subr.bf16.mxu0 %v2448
  %3586 = vmatpush1.bf16.msra.mxu0 %v2447
  %3587 = vmatprep.subr.bf16.mxu0 %v2452
  %3588 = vmatpush1.bf16.msra.mxu0 %v2451
  %3589 = vmatprep.subr.bf16.mxu0 %v2456
  %3590 = vmatpush1.bf16.msra.mxu0 %v2455
  %3591 = vmatprep.subr.bf16.mxu0 %v2460
  %3592 = vmatpush1.bf16.msra.mxu0 %v2459
  %3593 = vmatprep.subr.bf16.mxu0 %v2464
  %3594 = vmatpush1.bf16.msra.mxu0 %v2463
  %3595 = vmatprep.subr.bf16.mxu0 %v2468
  %3596 = vmatpush1.bf16.msra.mxu0 %v2467
  %3597 = vmatprep.subr.bf16.mxu0 %v2472
  %3598 = vmatpush1.bf16.msra.mxu0 %v2471
  %3599 = vmatprep.subr.bf16.mxu0 %v2476
  %3600 = vmatpush1.bf16.msra.mxu0 %v2475
  %3601 = vmatprep.subr.bf16.mxu0 %v2480
  %3602 = vmatpush1.bf16.msra.mxu0 %v2479
  %3603 = vmatprep.mubr.bf16.mxu0 %v656
  %3604 = vmatmul.mubr.bf16.gmra.mrb[0].mxu0 %v655
  %v3605 = vpop.f32.mrb[0].mxu0
  %v3606 = vadd.f32 %v611, %v3605
  %v3607 = vpop.f32.mrb[0].mxu0
  %v3608 = vadd.f32 %v615, %v3607
  %v3609 = vpop.f32.mrb[0].mxu0
  %v3610 = vpop.f32.mrb[0].mxu0
  %3611 = vdwg.mxu0
  %3612 = vmatprep.subr.bf16.mxu0 %v2484
  %3613 = vmatpush1.bf16.msra.mxu0 %v2483
  %3614 = vmatprep.subr.bf16.mxu0 %v2488
  %3615 = vmatpush1.bf16.msra.mxu0 %v2487
  %3616 = vmatprep.subr.bf16.mxu0 %v2492
  %3617 = vmatpush1.bf16.msra.mxu0 %v2491
  %3618 = vmatprep.subr.bf16.mxu0 %v2496
  %3619 = vmatpush1.bf16.msra.mxu0 %v2495
  %3620 = vmatprep.subr.bf16.mxu0 %v2500
  %3621 = vmatpush1.bf16.msra.mxu0 %v2499
  %3622 = vmatprep.subr.bf16.mxu0 %v2504
  %3623 = vmatpush1.bf16.msra.mxu0 %v2503
  %3624 = vmatprep.subr.bf16.mxu0 %v2508
  %3625 = vmatpush1.bf16.msra.mxu0 %v2507
  %3626 = vmatprep.subr.bf16.mxu0 %v2512
  %3627 = vmatpush1.bf16.msra.mxu0 %v2511
  %3628 = vmatprep.subr.bf16.mxu0 %v2516
  %3629 = vmatpush1.bf16.msra.mxu0 %v2515
  %3630 = vmatprep.subr.bf16.mxu0 %v2520
  %3631 = vmatpush1.bf16.msra.mxu0 %v2519
  %3632 = vmatprep.subr.bf16.mxu0 %v2524
  %3633 = vmatpush1.bf16.msra.mxu0 %v2523
  %3634 = vmatprep.subr.bf16.mxu0 %v2528
  %3635 = vmatpush1.bf16.msra.mxu0 %v2527
  %3636 = vmatprep.subr.bf16.mxu0 %v2532
  %3637 = vmatpush1.bf16.msra.mxu0 %v2531
  %3638 = vmatprep.subr.bf16.mxu0 %v2536
  %3639 = vmatpush1.bf16.msra.mxu0 %v2535
  %3640 = vmatprep.subr.bf16.mxu0 %v2540
  %3641 = vmatpush1.bf16.msra.mxu0 %v2539
  %3642 = vmatprep.subr.bf16.mxu0 %v2544
  %3643 = vmatpush1.bf16.msra.mxu0 %v2543
  %3644 = vmatprep.mubr.bf16.mxu0 %v658
  %3645 = vmatmul.mubr.bf16.gmra.mrb[0].mxu0 %v657
  %v3646 = vpop.f32.mrb[0].mxu0
  %v3647 = vadd.f32 %v3606, %v3646
  %v3648 = vpop.f32.mrb[0].mxu0
  %v3649 = vadd.f32 %v3608, %v3648
  %v3650 = vpop.f32.mrb[0].mxu0
  %v3651 = vpop.f32.mrb[0].mxu0
  %3652 = vdwg.mxu0
  %3653 = vmatprep.subr.bf16.mxu0 %v2548
  %3654 = vmatpush1.bf16.msra.mxu0 %v2547
  %3655 = vmatprep.subr.bf16.mxu0 %v2552
  %3656 = vmatpush1.bf16.msra.mxu0 %v2551
  %3657 = vmatprep.subr.bf16.mxu0 %v2556
  %3658 = vmatpush1.bf16.msra.mxu0 %v2555
  %3659 = vmatprep.subr.bf16.mxu0 %v2560
  %3660 = vmatpush1.bf16.msra.mxu0 %v2559
  %3661 = vmatprep.subr.bf16.mxu0 %v2564
  %3662 = vmatpush1.bf16.msra.mxu0 %v2563
  %3663 = vmatprep.subr.bf16.mxu0 %v2568
  %3664 = vmatpush1.bf16.msra.mxu0 %v2567
  %3665 = vmatprep.subr.bf16.mxu0 %v2572
  %3666 = vmatpush1.bf16.msra.mxu0 %v2571
  %3667 = vmatprep.subr.bf16.mxu0 %v2576
  %3668 = vmatpush1.bf16.msra.mxu0 %v2575
  %3669 = vmatprep.subr.bf16.mxu0 %v2580
  %3670 = vmatpush1.bf16.msra.mxu0 %v2579
  %3671 = vmatprep.subr.bf16.mxu0 %v2584
  %3672 = vmatpush1.bf16.msra.mxu0 %v2583
  %3673 = vmatprep.subr.bf16.mxu0 %v2588
  %3674 = vmatpush1.bf16.msra.mxu0 %v2587
  %3675 = vmatprep.subr.bf16.mxu0 %v2592
  %3676 = vmatpush1.bf16.msra.mxu0 %v2591
  %3677 = vmatprep.subr.bf16.mxu0 %v2596
  %3678 = vmatpush1.bf16.msra.mxu0 %v2595
  %3679 = vmatprep.subr.bf16.mxu0 %v2600
  %3680 = vmatpush1.bf16.msra.mxu0 %v2599
  %3681 = vmatprep.subr.bf16.mxu0 %v2604
  %3682 = vmatpush1.bf16.msra.mxu0 %v2603
  %3683 = vmatprep.subr.bf16.mxu0 %v2608
  %3684 = vmatpush1.bf16.msra.mxu0 %v2607
  %3685 = vmatprep.mubr.bf16.mxu0 %v660
  %3686 = vmatmul.mubr.bf16.gmra.mrb[0].mxu0 %v659
  %v3687 = vpop.f32.mrb[0].mxu0
  %v3688 = vadd.f32 %v3647, %v3687
  %v3689 = vpop.f32.mrb[0].mxu0
  %v3690 = vadd.f32 %v3649, %v3689
  %v3691 = vpop.f32.mrb[0].mxu0
  %v3692 = vpop.f32.mrb[0].mxu0
  %3693 = vdwg.mxu0
  %3694 = vmatprep.subr.bf16.mxu0 %v2612
  %3695 = vmatpush1.bf16.msra.mxu0 %v2611
  %3696 = vmatprep.subr.bf16.mxu0 %v2616
  %3697 = vmatpush1.bf16.msra.mxu0 %v2615
  %3698 = vmatprep.subr.bf16.mxu0 %v2620
  %3699 = vmatpush1.bf16.msra.mxu0 %v2619
  %3700 = vmatprep.subr.bf16.mxu0 %v2624
  %3701 = vmatpush1.bf16.msra.mxu0 %v2623
  %3702 = vmatprep.subr.bf16.mxu0 %v2628
  %3703 = vmatpush1.bf16.msra.mxu0 %v2627
  %3704 = vmatprep.subr.bf16.mxu0 %v2632
  %3705 = vmatpush1.bf16.msra.mxu0 %v2631
  %3706 = vmatprep.subr.bf16.mxu0 %v2636
  %3707 = vmatpush1.bf16.msra.mxu0 %v2635
  %3708 = vmatprep.subr.bf16.mxu0 %v2640
  %3709 = vmatpush1.bf16.msra.mxu0 %v2639
  %3710 = vmatprep.subr.bf16.mxu0 %v2644
  %3711 = vmatpush1.bf16.msra.mxu0 %v2643
  %3712 = vmatprep.subr.bf16.mxu0 %v2648
  %3713 = vmatpush1.bf16.msra.mxu0 %v2647
  %3714 = vmatprep.subr.bf16.mxu0 %v2652
  %3715 = vmatpush1.bf16.msra.mxu0 %v2651
  %3716 = vmatprep.subr.bf16.mxu0 %v2656
  %3717 = vmatpush1.bf16.msra.mxu0 %v2655
  %3718 = vmatprep.subr.bf16.mxu0 %v2660
  %3719 = vmatpush1.bf16.msra.mxu0 %v2659
  %3720 = vmatprep.subr.bf16.mxu0 %v2664
  %3721 = vmatpush1.bf16.msra.mxu0 %v2663
  %3722 = vmatprep.subr.bf16.mxu0 %v2668
  %3723 = vmatpush1.bf16.msra.mxu0 %v2667
  %3724 = vmatprep.subr.bf16.mxu0 %v2672
  %3725 = vmatpush1.bf16.msra.mxu0 %v2671
  %3726 = vmatprep.mubr.bf16.mxu0 %v662
  %3727 = vmatmul.mubr.bf16.gmra.mrb[0].mxu0 %v661
  %v3728 = vpop.f32.mrb[0].mxu0
  %v3729 = vadd.f32 %v3688, %v3728
  %v3730 = vpop.f32.mrb[0].mxu0
  %v3731 = vadd.f32 %v3690, %v3730
  %v3732 = vpop.f32.mrb[0].mxu0
  %v3733 = vpop.f32.mrb[0].mxu0
  %3734 = vdwg.mxu0
  %3735 = vmatprep.subr.bf16.mxu0 %v2676
  %3736 = vmatpush1.bf16.msra.mxu0 %v2675
  %3737 = vmatprep.subr.bf16.mxu0 %v2680
  %3738 = vmatpush1.bf16.msra.mxu0 %v2679
  %3739 = vmatprep.subr.bf16.mxu0 %v2684
  %3740 = vmatpush1.bf16.msra.mxu0 %v2683
  %3741 = vmatprep.subr.bf16.mxu0 %v2688
  %3742 = vmatpush1.bf16.msra.mxu0 %v2687
  %3743 = vmatprep.subr.bf16.mxu0 %v2692
  %3744 = vmatpush1.bf16.msra.mxu0 %v2691
  %3745 = vmatprep.subr.bf16.mxu0 %v2696
  %3746 = vmatpush1.bf16.msra.mxu0 %v2695
  %3747 = vmatprep.subr.bf16.mxu0 %v2700
  %3748 = vmatpush1.bf16.msra.mxu0 %v2699
  %3749 = vmatprep.subr.bf16.mxu0 %v2704
  %3750 = vmatpush1.bf16.msra.mxu0 %v2703
  %3751 = vmatprep.subr.bf16.mxu0 %v2708
  %3752 = vmatpush1.bf16.msra.mxu0 %v2707
  %3753 = vmatprep.subr.bf16.mxu0 %v2712
  %3754 = vmatpush1.bf16.msra.mxu0 %v2711
  %3755 = vmatprep.subr.bf16.mxu0 %v2716
  %3756 = vmatpush1.bf16.msra.mxu0 %v2715
  %3757 = vmatprep.subr.bf16.mxu0 %v2720
  %3758 = vmatpush1.bf16.msra.mxu0 %v2719
  %3759 = vmatprep.subr.bf16.mxu0 %v2724
  %3760 = vmatpush1.bf16.msra.mxu0 %v2723
  %3761 = vmatprep.subr.bf16.mxu0 %v2728
  %3762 = vmatpush1.bf16.msra.mxu0 %v2727
  %3763 = vmatprep.subr.bf16.mxu0 %v2732
  %3764 = vmatpush1.bf16.msra.mxu0 %v2731
  %3765 = vmatprep.subr.bf16.mxu0 %v2736
  %3766 = vmatpush1.bf16.msra.mxu0 %v2735
  %3767 = vmatprep.mubr.bf16.mxu0 %v664
  %3768 = vmatmul.mubr.bf16.gmra.mrb[0].mxu0 %v663
  %v3769 = vpop.f32.mrb[0].mxu0
  %v3770 = vadd.f32 %v3729, %v3769
  %v3771 = vpop.f32.mrb[0].mxu0
  %v3772 = vadd.f32 %v3731, %v3771
  %v3773 = vpop.f32.mrb[0].mxu0
  %v3774 = vpop.f32.mrb[0].mxu0
  %3775 = vdwg.mxu0
  %3776 = vmatprep.subr.bf16.mxu0 %v2740
  %3777 = vmatpush1.bf16.msra.mxu0 %v2739
  %3778 = vmatprep.subr.bf16.mxu0 %v2744
  %3779 = vmatpush1.bf16.msra.mxu0 %v2743
  %3780 = vmatprep.subr.bf16.mxu0 %v2748
  %3781 = vmatpush1.bf16.msra.mxu0 %v2747
  %3782 = vmatprep.subr.bf16.mxu0 %v2752
  %3783 = vmatpush1.bf16.msra.mxu0 %v2751
  %3784 = vmatprep.subr.bf16.mxu0 %v2756
  %3785 = vmatpush1.bf16.msra.mxu0 %v2755
  %3786 = vmatprep.subr.bf16.mxu0 %v2760
  %3787 = vmatpush1.bf16.msra.mxu0 %v2759
  %3788 = vmatprep.subr.bf16.mxu0 %v2764
  %3789 = vmatpush1.bf16.msra.mxu0 %v2763
  %3790 = vmatprep.subr.bf16.mxu0 %v2768
  %3791 = vmatpush1.bf16.msra.mxu0 %v2767
  %3792 = vmatprep.subr.bf16.mxu0 %v2772
  %3793 = vmatpush1.bf16.msra.mxu0 %v2771
  %3794 = vmatprep.subr.bf16.mxu0 %v2776
  %3795 = vmatpush1.bf16.msra.mxu0 %v2775
  %3796 = vmatprep.subr.bf16.mxu0 %v2780
  %3797 = vmatpush1.bf16.msra.mxu0 %v2779
  %3798 = vmatprep.subr.bf16.mxu0 %v2784
  %3799 = vmatpush1.bf16.msra.mxu0 %v2783
  %3800 = vmatprep.subr.bf16.mxu0 %v2788
  %3801 = vmatpush1.bf16.msra.mxu0 %v2787
  %3802 = vmatprep.subr.bf16.mxu0 %v2792
  %3803 = vmatpush1.bf16.msra.mxu0 %v2791
  %3804 = vmatprep.subr.bf16.mxu0 %v2796
  %3805 = vmatpush1.bf16.msra.mxu0 %v2795
  %3806 = vmatprep.subr.bf16.mxu0 %v2800
  %3807 = vmatpush1.bf16.msra.mxu0 %v2799
  %3808 = vmatprep.mubr.bf16.mxu0 %v666
  %3809 = vmatmul.mubr.bf16.gmra.mrb[0].mxu0 %v665
  %v3810 = vpop.f32.mrb[0].mxu0
  %v3811 = vadd.f32 %v3770, %v3810
  %v3812 = vpop.f32.mrb[0].mxu0
  %v3813 = vadd.f32 %v3772, %v3812
  %v3814 = vpop.f32.mrb[0].mxu0
  %v3815 = vpop.f32.mrb[0].mxu0
  %3816 = vdwg.mxu0
  %3817 = vmatprep.subr.bf16.mxu0 %v2804
  %3818 = vmatpush1.bf16.msra.mxu0 %v2803
  %3819 = vmatprep.subr.bf16.mxu0 %v2808
  %3820 = vmatpush1.bf16.msra.mxu0 %v2807
  %3821 = vmatprep.subr.bf16.mxu0 %v2812
  %3822 = vmatpush1.bf16.msra.mxu0 %v2811
  %3823 = vmatprep.subr.bf16.mxu0 %v2816
  %3824 = vmatpush1.bf16.msra.mxu0 %v2815
  %3825 = vmatprep.subr.bf16.mxu0 %v2820
  %3826 = vmatpush1.bf16.msra.mxu0 %v2819
  %3827 = vmatprep.subr.bf16.mxu0 %v2824
  %3828 = vmatpush1.bf16.msra.mxu0 %v2823
  %3829 = vmatprep.subr.bf16.mxu0 %v2828
  %3830 = vmatpush1.bf16.msra.mxu0 %v2827
  %3831 = vmatprep.subr.bf16.mxu0 %v2832
  %3832 = vmatpush1.bf16.msra.mxu0 %v2831
  %3833 = vmatprep.subr.bf16.mxu0 %v2836
  %3834 = vmatpush1.bf16.msra.mxu0 %v2835
  %3835 = vmatprep.subr.bf16.mxu0 %v2840
  %3836 = vmatpush1.bf16.msra.mxu0 %v2839
  %3837 = vmatprep.subr.bf16.mxu0 %v2844
  %3838 = vmatpush1.bf16.msra.mxu0 %v2843
  %3839 = vmatprep.subr.bf16.mxu0 %v2848
  %3840 = vmatpush1.bf16.msra.mxu0 %v2847
  %3841 = vmatprep.subr.bf16.mxu0 %v2852
  %3842 = vmatpush1.bf16.msra.mxu0 %v2851
  %3843 = vmatprep.subr.bf16.mxu0 %v2856
  %3844 = vmatpush1.bf16.msra.mxu0 %v2855
  %3845 = vmatprep.subr.bf16.mxu0 %v2860
  %3846 = vmatpush1.bf16.msra.mxu0 %v2859
  %3847 = vmatprep.subr.bf16.mxu0 %v2864
  %3848 = vmatpush1.bf16.msra.mxu0 %v2863
  %3849 = vmatprep.mubr.bf16.mxu0 %v668
  %3850 = vmatmul.mubr.bf16.gmra.mrb[0].mxu0 %v667
  %v3851 = vpop.f32.mrb[0].mxu0
  %v3852 = vadd.f32 %v3811, %v3851
  %v3853 = vpop.f32.mrb[0].mxu0
  %v3854 = vadd.f32 %v3813, %v3853
  %v3855 = vpop.f32.mrb[0].mxu0
  %v3856 = vpop.f32.mrb[0].mxu0
  %3857 = vdwg.mxu0
  %3858 = vmatprep.subr.bf16.mxu0 %v2868
  %3859 = vmatpush1.bf16.msra.mxu0 %v2867
  %3860 = vmatprep.subr.bf16.mxu0 %v2872
  %3861 = vmatpush1.bf16.msra.mxu0 %v2871
  %3862 = vmatprep.subr.bf16.mxu0 %v2876
  %3863 = vmatpush1.bf16.msra.mxu0 %v2875
  %3864 = vmatprep.subr.bf16.mxu0 %v2880
  %3865 = vmatpush1.bf16.msra.mxu0 %v2879
  %3866 = vmatprep.subr.bf16.mxu0 %v2884
  %3867 = vmatpush1.bf16.msra.mxu0 %v2883
  %3868 = vmatprep.subr.bf16.mxu0 %v2888
  %3869 = vmatpush1.bf16.msra.mxu0 %v2887
  %3870 = vmatprep.subr.bf16.mxu0 %v2892
  %3871 = vmatpush1.bf16.msra.mxu0 %v2891
  %3872 = vmatprep.subr.bf16.mxu0 %v2896
  %3873 = vmatpush1.bf16.msra.mxu0 %v2895
  %3874 = vmatprep.subr.bf16.mxu0 %v2900
  %3875 = vmatpush1.bf16.msra.mxu0 %v2899
  %3876 = vmatprep.subr.bf16.mxu0 %v2904
  %3877 = vmatpush1.bf16.msra.mxu0 %v2903
  %3878 = vmatprep.subr.bf16.mxu0 %v2908
  %3879 = vmatpush1.bf16.msra.mxu0 %v2907
  %3880 = vmatprep.subr.bf16.mxu0 %v2912
  %3881 = vmatpush1.bf16.msra.mxu0 %v2911
  %3882 = vmatprep.subr.bf16.mxu0 %v2916
  %3883 = vmatpush1.bf16.msra.mxu0 %v2915
  %3884 = vmatprep.subr.bf16.mxu0 %v2920
  %3885 = vmatpush1.bf16.msra.mxu0 %v2919
  %3886 = vmatprep.subr.bf16.mxu0 %v2924
  %3887 = vmatpush1.bf16.msra.mxu0 %v2923
  %3888 = vmatprep.subr.bf16.mxu0 %v2928
  %3889 = vmatpush1.bf16.msra.mxu0 %v2927
  %3890 = vmatprep.mubr.bf16.mxu0 %v670
  %3891 = vmatmul.mubr.bf16.gmra.mrb[0].mxu0 %v669
  %v3892 = vpop.f32.mrb[0].mxu0
  %v3893 = vadd.f32 %v3852, %v3892
  %v3894 = vpop.f32.mrb[0].mxu0
  %v3895 = vadd.f32 %v3854, %v3894
  %v3896 = vpop.f32.mrb[0].mxu0
  %v3897 = vpop.f32.mrb[0].mxu0
  %3898 = vdwg.mxu0
  %3899 = vmatprep.subr.bf16.mxu0 %v2932
  %3900 = vmatpush1.bf16.msra.mxu0 %v2931
  %3901 = vmatprep.subr.bf16.mxu0 %v2936
  %3902 = vmatpush1.bf16.msra.mxu0 %v2935
  %3903 = vmatprep.subr.bf16.mxu0 %v2940
  %3904 = vmatpush1.bf16.msra.mxu0 %v2939
  %3905 = vmatprep.subr.bf16.mxu0 %v2944
  %3906 = vmatpush1.bf16.msra.mxu0 %v2943
  %3907 = vmatprep.subr.bf16.mxu0 %v2948
  %3908 = vmatpush1.bf16.msra.mxu0 %v2947
  %3909 = vmatprep.subr.bf16.mxu0 %v2952
  %3910 = vmatpush1.bf16.msra.mxu0 %v2951
  %3911 = vmatprep.subr.bf16.mxu0 %v2956
  %3912 = vmatpush1.bf16.msra.mxu0 %v2955
  %3913 = vmatprep.subr.bf16.mxu0 %v2960
  %3914 = vmatpush1.bf16.msra.mxu0 %v2959
  %3915 = vmatprep.subr.bf16.mxu0 %v2964
  %3916 = vmatpush1.bf16.msra.mxu0 %v2963
  %3917 = vmatprep.subr.bf16.mxu0 %v2968
  %3918 = vmatpush1.bf16.msra.mxu0 %v2967
  %3919 = vmatprep.subr.bf16.mxu0 %v2972
  %3920 = vmatpush1.bf16.msra.mxu0 %v2971
  %3921 = vmatprep.subr.bf16.mxu0 %v2976
  %3922 = vmatpush1.bf16.msra.mxu0 %v2975
  %3923 = vmatprep.subr.bf16.mxu0 %v2980
  %3924 = vmatpush1.bf16.msra.mxu0 %v2979
  %3925 = vmatprep.subr.bf16.mxu0 %v2984
  %3926 = vmatpush1.bf16.msra.mxu0 %v2983
  %3927 = vmatprep.subr.bf16.mxu0 %v2988
  %3928 = vmatpush1.bf16.msra.mxu0 %v2987
  %3929 = vmatprep.subr.bf16.mxu0 %v2992
  %3930 = vmatpush1.bf16.msra.mxu0 %v2991
  %3931 = vmatprep.mubr.bf16.mxu0 %v672
  %3932 = vmatmul.mubr.bf16.gmra.mrb[0].mxu0 %v671
  %v3933 = vpop.f32.mrb[0].mxu0
  %v3934 = vadd.f32 %v3893, %v3933
  %v3935 = vpop.f32.mrb[0].mxu0
  %v3936 = vadd.f32 %v3895, %v3935
  %v3937 = vpop.f32.mrb[0].mxu0
  %v3938 = vpop.f32.mrb[0].mxu0
  %3939 = vdwg.mxu0
  %3940 = vmatprep.subr.bf16.mxu0 %v2422
  %3941 = vmatpush1.bf16.msra.mxu0 %v2421
  %3942 = vmatprep.subr.bf16.mxu0 %v2426
  %3943 = vmatpush1.bf16.msra.mxu0 %v2425
  %3944 = vmatprep.subr.bf16.mxu0 %v2430
  %3945 = vmatpush1.bf16.msra.mxu0 %v2429
  %3946 = vmatprep.subr.bf16.mxu0 %v2434
  %3947 = vmatpush1.bf16.msra.mxu0 %v2433
  %3948 = vmatprep.subr.bf16.mxu0 %v2438
  %3949 = vmatpush1.bf16.msra.mxu0 %v2437
  %3950 = vmatprep.subr.bf16.mxu0 %v2442
  %3951 = vmatpush1.bf16.msra.mxu0 %v2441
  %3952 = vmatprep.subr.bf16.mxu0 %v2446
  %3953 = vmatpush1.bf16.msra.mxu0 %v2445
  %3954 = vmatprep.subr.bf16.mxu0 %v2450
  %3955 = vmatpush1.bf16.msra.mxu0 %v2449
  %3956 = vmatprep.subr.bf16.mxu0 %v2454
  %3957 = vmatpush1.bf16.msra.mxu0 %v2453
  %3958 = vmatprep.subr.bf16.mxu0 %v2458
  %3959 = vmatpush1.bf16.msra.mxu0 %v2457
  %3960 = vmatprep.subr.bf16.mxu0 %v2462
  %3961 = vmatpush1.bf16.msra.mxu0 %v2461
  %3962 = vmatprep.subr.bf16.mxu0 %v2466
  %3963 = vmatpush1.bf16.msra.mxu0 %v2465
  %3964 = vmatprep.subr.bf16.mxu0 %v2470
  %3965 = vmatpush1.bf16.msra.mxu0 %v2469
  %3966 = vmatprep.subr.bf16.mxu0 %v2474
  %3967 = vmatpush1.bf16.msra.mxu0 %v2473
  %3968 = vmatprep.subr.bf16.mxu0 %v2478
  %3969 = vmatpush1.bf16.msra.mxu0 %v2477
  %3970 = vmatprep.subr.bf16.mxu0 %v2482
  %3971 = vmatpush1.bf16.msra.mxu0 %v2481
  %3972 = vmatprep.mubr.bf16.mxu0 %v656
  %3973 = vmatmul.mubr.bf16.gmra.mrb[0].mxu0 %v655
  %v3974 = vpop.f32.mrb[0].mxu0
  %v3975 = vadd.f32 %v619, %v3974
  %v3976 = vpop.f32.mrb[0].mxu0
  %v3977 = vadd.f32 %v623, %v3976
  %v3978 = vpop.f32.mrb[0].mxu0
  %v3979 = vpop.f32.mrb[0].mxu0
  %3980 = vdwg.mxu0
  %3981 = vmatprep.subr.bf16.mxu0 %v2486
  %3982 = vmatpush1.bf16.msra.mxu0 %v2485
  %3983 = vmatprep.subr.bf16.mxu0 %v2490
  %3984 = vmatpush1.bf16.msra.mxu0 %v2489
  %3985 = vmatprep.subr.bf16.mxu0 %v2494
  %3986 = vmatpush1.bf16.msra.mxu0 %v2493
  %3987 = vmatprep.subr.bf16.mxu0 %v2498
  %3988 = vmatpush1.bf16.msra.mxu0 %v2497
  %3989 = vmatprep.subr.bf16.mxu0 %v2502
  %3990 = vmatpush1.bf16.msra.mxu0 %v2501
  %3991 = vmatprep.subr.bf16.mxu0 %v2506
  %3992 = vmatpush1.bf16.msra.mxu0 %v2505
  %3993 = vmatprep.subr.bf16.mxu0 %v2510
  %3994 = vmatpush1.bf16.msra.mxu0 %v2509
  %3995 = vmatprep.subr.bf16.mxu0 %v2514
  %3996 = vmatpush1.bf16.msra.mxu0 %v2513
  %3997 = vmatprep.subr.bf16.mxu0 %v2518
  %3998 = vmatpush1.bf16.msra.mxu0 %v2517
  %3999 = vmatprep.subr.bf16.mxu0 %v2522
  %4000 = vmatpush1.bf16.msra.mxu0 %v2521
  %4001 = vmatprep.subr.bf16.mxu0 %v2526
  %4002 = vmatpush1.bf16.msra.mxu0 %v2525
  %4003 = vmatprep.subr.bf16.mxu0 %v2530
  %4004 = vmatpush1.bf16.msra.mxu0 %v2529
  %4005 = vmatprep.subr.bf16.mxu0 %v2534
  %4006 = vmatpush1.bf16.msra.mxu0 %v2533
  %4007 = vmatprep.subr.bf16.mxu0 %v2538
  %4008 = vmatpush1.bf16.msra.mxu0 %v2537
  %4009 = vmatprep.subr.bf16.mxu0 %v2542
  %4010 = vmatpush1.bf16.msra.mxu0 %v2541
  %4011 = vmatprep.subr.bf16.mxu0 %v2546
  %4012 = vmatpush1.bf16.msra.mxu0 %v2545
  %4013 = vmatprep.mubr.bf16.mxu0 %v658
  %4014 = vmatmul.mubr.bf16.gmra.mrb[0].mxu0 %v657
  %v4015 = vpop.f32.mrb[0].mxu0
  %v4016 = vadd.f32 %v3975, %v4015
  %v4017 = vpop.f32.mrb[0].mxu0
  %v4018 = vadd.f32 %v3977, %v4017
  %v4019 = vpop.f32.mrb[0].mxu0
  %v4020 = vpop.f32.mrb[0].mxu0
  %4021 = vdwg.mxu0
  %4022 = vmatprep.subr.bf16.mxu0 %v2550
  %4023 = vmatpush1.bf16.msra.mxu0 %v2549
  %4024 = vmatprep.subr.bf16.mxu0 %v2554
  %4025 = vmatpush1.bf16.msra.mxu0 %v2553
  %4026 = vmatprep.subr.bf16.mxu0 %v2558
  %4027 = vmatpush1.bf16.msra.mxu0 %v2557
  %4028 = vmatprep.subr.bf16.mxu0 %v2562
  %4029 = vmatpush1.bf16.msra.mxu0 %v2561
  %4030 = vmatprep.subr.bf16.mxu0 %v2566
  %4031 = vmatpush1.bf16.msra.mxu0 %v2565
  %4032 = vmatprep.subr.bf16.mxu0 %v2570
  %4033 = vmatpush1.bf16.msra.mxu0 %v2569
  %4034 = vmatprep.subr.bf16.mxu0 %v2574
  %4035 = vmatpush1.bf16.msra.mxu0 %v2573
  %4036 = vmatprep.subr.bf16.mxu0 %v2578
  %4037 = vmatpush1.bf16.msra.mxu0 %v2577
  %4038 = vmatprep.subr.bf16.mxu0 %v2582
  %4039 = vmatpush1.bf16.msra.mxu0 %v2581
  %4040 = vmatprep.subr.bf16.mxu0 %v2586
  %4041 = vmatpush1.bf16.msra.mxu0 %v2585
  %4042 = vmatprep.subr.bf16.mxu0 %v2590
  %4043 = vmatpush1.bf16.msra.mxu0 %v2589
  %4044 = vmatprep.subr.bf16.mxu0 %v2594
  %4045 = vmatpush1.bf16.msra.mxu0 %v2593
  %4046 = vmatprep.subr.bf16.mxu0 %v2598
  %4047 = vmatpush1.bf16.msra.mxu0 %v2597
  %4048 = vmatprep.subr.bf16.mxu0 %v2602
  %4049 = vmatpush1.bf16.msra.mxu0 %v2601
  %4050 = vmatprep.subr.bf16.mxu0 %v2606
  %4051 = vmatpush1.bf16.msra.mxu0 %v2605
  %4052 = vmatprep.subr.bf16.mxu0 %v2610
  %4053 = vmatpush1.bf16.msra.mxu0 %v2609
  %4054 = vmatprep.mubr.bf16.mxu0 %v660
  %4055 = vmatmul.mubr.bf16.gmra.mrb[0].mxu0 %v659
  %v4056 = vpop.f32.mrb[0].mxu0
  %v4057 = vadd.f32 %v4016, %v4056
  %v4058 = vpop.f32.mrb[0].mxu0
  %v4059 = vadd.f32 %v4018, %v4058
  %v4060 = vpop.f32.mrb[0].mxu0
  %v4061 = vpop.f32.mrb[0].mxu0
  %4062 = vdwg.mxu0
  %4063 = vmatprep.subr.bf16.mxu0 %v2614
  %4064 = vmatpush1.bf16.msra.mxu0 %v2613
  %4065 = vmatprep.subr.bf16.mxu0 %v2618
  %4066 = vmatpush1.bf16.msra.mxu0 %v2617
  %4067 = vmatprep.subr.bf16.mxu0 %v2622
  %4068 = vmatpush1.bf16.msra.mxu0 %v2621
  %4069 = vmatprep.subr.bf16.mxu0 %v2626
  %4070 = vmatpush1.bf16.msra.mxu0 %v2625
  %4071 = vmatprep.subr.bf16.mxu0 %v2630
  %4072 = vmatpush1.bf16.msra.mxu0 %v2629
  %4073 = vmatprep.subr.bf16.mxu0 %v2634
  %4074 = vmatpush1.bf16.msra.mxu0 %v2633
  %4075 = vmatprep.subr.bf16.mxu0 %v2638
  %4076 = vmatpush1.bf16.msra.mxu0 %v2637
  %4077 = vmatprep.subr.bf16.mxu0 %v2642
  %4078 = vmatpush1.bf16.msra.mxu0 %v2641
  %4079 = vmatprep.subr.bf16.mxu0 %v2646
  %4080 = vmatpush1.bf16.msra.mxu0 %v2645
  %4081 = vmatprep.subr.bf16.mxu0 %v2650
  %4082 = vmatpush1.bf16.msra.mxu0 %v2649
  %4083 = vmatprep.subr.bf16.mxu0 %v2654
  %4084 = vmatpush1.bf16.msra.mxu0 %v2653
  %4085 = vmatprep.subr.bf16.mxu0 %v2658
  %4086 = vmatpush1.bf16.msra.mxu0 %v2657
  %4087 = vmatprep.subr.bf16.mxu0 %v2662
  %4088 = vmatpush1.bf16.msra.mxu0 %v2661
  %4089 = vmatprep.subr.bf16.mxu0 %v2666
  %4090 = vmatpush1.bf16.msra.mxu0 %v2665
  %4091 = vmatprep.subr.bf16.mxu0 %v2670
  %4092 = vmatpush1.bf16.msra.mxu0 %v2669
  %4093 = vmatprep.subr.bf16.mxu0 %v2674
  %4094 = vmatpush1.bf16.msra.mxu0 %v2673
  %4095 = vmatprep.mubr.bf16.mxu0 %v662
  %4096 = vmatmul.mubr.bf16.gmra.mrb[0].mxu0 %v661
  %v4097 = vpop.f32.mrb[0].mxu0
  %v4098 = vadd.f32 %v4057, %v4097
  %v4099 = vpop.f32.mrb[0].mxu0
  %v4100 = vadd.f32 %v4059, %v4099
  %v4101 = vpop.f32.mrb[0].mxu0
  %v4102 = vpop.f32.mrb[0].mxu0
  %4103 = vdwg.mxu0
  %4104 = vmatprep.subr.bf16.mxu0 %v2678
  %4105 = vmatpush1.bf16.msra.mxu0 %v2677
  %4106 = vmatprep.subr.bf16.mxu0 %v2682
  %4107 = vmatpush1.bf16.msra.mxu0 %v2681
  %4108 = vmatprep.subr.bf16.mxu0 %v2686
  %4109 = vmatpush1.bf16.msra.mxu0 %v2685
  %4110 = vmatprep.subr.bf16.mxu0 %v2690
  %4111 = vmatpush1.bf16.msra.mxu0 %v2689
  %4112 = vmatprep.subr.bf16.mxu0 %v2694
  %4113 = vmatpush1.bf16.msra.mxu0 %v2693
  %4114 = vmatprep.subr.bf16.mxu0 %v2698
  %4115 = vmatpush1.bf16.msra.mxu0 %v2697
  %4116 = vmatprep.subr.bf16.mxu0 %v2702
  %4117 = vmatpush1.bf16.msra.mxu0 %v2701
  %4118 = vmatprep.subr.bf16.mxu0 %v2706
  %4119 = vmatpush1.bf16.msra.mxu0 %v2705
  %4120 = vmatprep.subr.bf16.mxu0 %v2710
  %4121 = vmatpush1.bf16.msra.mxu0 %v2709
  %4122 = vmatprep.subr.bf16.mxu0 %v2714
  %4123 = vmatpush1.bf16.msra.mxu0 %v2713
  %4124 = vmatprep.subr.bf16.mxu0 %v2718
  %4125 = vmatpush1.bf16.msra.mxu0 %v2717
  %4126 = vmatprep.subr.bf16.mxu0 %v2722
  %4127 = vmatpush1.bf16.msra.mxu0 %v2721
  %4128 = vmatprep.subr.bf16.mxu0 %v2726
  %4129 = vmatpush1.bf16.msra.mxu0 %v2725
  %4130 = vmatprep.subr.bf16.mxu0 %v2730
  %4131 = vmatpush1.bf16.msra.mxu0 %v2729
  %4132 = vmatprep.subr.bf16.mxu0 %v2734
  %4133 = vmatpush1.bf16.msra.mxu0 %v2733
  %4134 = vmatprep.subr.bf16.mxu0 %v2738
  %4135 = vmatpush1.bf16.msra.mxu0 %v2737
  %4136 = vmatprep.mubr.bf16.mxu0 %v664
  %4137 = vmatmul.mubr.bf16.gmra.mrb[0].mxu0 %v663
  %v4138 = vpop.f32.mrb[0].mxu0
  %v4139 = vadd.f32 %v4098, %v4138
  %v4140 = vpop.f32.mrb[0].mxu0
  %v4141 = vadd.f32 %v4100, %v4140
  %v4142 = vpop.f32.mrb[0].mxu0
  %v4143 = vpop.f32.mrb[0].mxu0
  %4144 = vdwg.mxu0
  %4145 = vmatprep.subr.bf16.mxu0 %v2742
  %4146 = vmatpush1.bf16.msra.mxu0 %v2741
  %4147 = vmatprep.subr.bf16.mxu0 %v2746
  %4148 = vmatpush1.bf16.msra.mxu0 %v2745
  %4149 = vmatprep.subr.bf16.mxu0 %v2750
  %4150 = vmatpush1.bf16.msra.mxu0 %v2749
  %4151 = vmatprep.subr.bf16.mxu0 %v2754
  %4152 = vmatpush1.bf16.msra.mxu0 %v2753
  %4153 = vmatprep.subr.bf16.mxu0 %v2758
  %4154 = vmatpush1.bf16.msra.mxu0 %v2757
  %4155 = vmatprep.subr.bf16.mxu0 %v2762
  %4156 = vmatpush1.bf16.msra.mxu0 %v2761
  %4157 = vmatprep.subr.bf16.mxu0 %v2766
  %4158 = vmatpush1.bf16.msra.mxu0 %v2765
  %4159 = vmatprep.subr.bf16.mxu0 %v2770
  %4160 = vmatpush1.bf16.msra.mxu0 %v2769
  %4161 = vmatprep.subr.bf16.mxu0 %v2774
  %4162 = vmatpush1.bf16.msra.mxu0 %v2773
  %4163 = vmatprep.subr.bf16.mxu0 %v2778
  %4164 = vmatpush1.bf16.msra.mxu0 %v2777
  %4165 = vmatprep.subr.bf16.mxu0 %v2782
  %4166 = vmatpush1.bf16.msra.mxu0 %v2781
  %4167 = vmatprep.subr.bf16.mxu0 %v2786
  %4168 = vmatpush1.bf16.msra.mxu0 %v2785
  %4169 = vmatprep.subr.bf16.mxu0 %v2790
  %4170 = vmatpush1.bf16.msra.mxu0 %v2789
  %4171 = vmatprep.subr.bf16.mxu0 %v2794
  %4172 = vmatpush1.bf16.msra.mxu0 %v2793
  %4173 = vmatprep.subr.bf16.mxu0 %v2798
  %4174 = vmatpush1.bf16.msra.mxu0 %v2797
  %4175 = vmatprep.subr.bf16.mxu0 %v2802
  %4176 = vmatpush1.bf16.msra.mxu0 %v2801
  %4177 = vmatprep.mubr.bf16.mxu0 %v666
  %4178 = vmatmul.mubr.bf16.gmra.mrb[0].mxu0 %v665
  %v4179 = vpop.f32.mrb[0].mxu0
  %v4180 = vadd.f32 %v4139, %v4179
  %v4181 = vpop.f32.mrb[0].mxu0
  %v4182 = vadd.f32 %v4141, %v4181
  %v4183 = vpop.f32.mrb[0].mxu0
  %v4184 = vpop.f32.mrb[0].mxu0
  %4185 = vdwg.mxu0
  %4186 = vmatprep.subr.bf16.mxu0 %v2806
  %4187 = vmatpush1.bf16.msra.mxu0 %v2805
  %4188 = vmatprep.subr.bf16.mxu0 %v2810
  %4189 = vmatpush1.bf16.msra.mxu0 %v2809
  %4190 = vmatprep.subr.bf16.mxu0 %v2814
  %4191 = vmatpush1.bf16.msra.mxu0 %v2813
  %4192 = vmatprep.subr.bf16.mxu0 %v2818
  %4193 = vmatpush1.bf16.msra.mxu0 %v2817
  %4194 = vmatprep.subr.bf16.mxu0 %v2822
  %4195 = vmatpush1.bf16.msra.mxu0 %v2821
  %4196 = vmatprep.subr.bf16.mxu0 %v2826
  %4197 = vmatpush1.bf16.msra.mxu0 %v2825
  %4198 = vmatprep.subr.bf16.mxu0 %v2830
  %4199 = vmatpush1.bf16.msra.mxu0 %v2829
  %4200 = vmatprep.subr.bf16.mxu0 %v2834
  %4201 = vmatpush1.bf16.msra.mxu0 %v2833
  %4202 = vmatprep.subr.bf16.mxu0 %v2838
  %4203 = vmatpush1.bf16.msra.mxu0 %v2837
  %4204 = vmatprep.subr.bf16.mxu0 %v2842
  %4205 = vmatpush1.bf16.msra.mxu0 %v2841
  %4206 = vmatprep.subr.bf16.mxu0 %v2846
  %4207 = vmatpush1.bf16.msra.mxu0 %v2845
  %4208 = vmatprep.subr.bf16.mxu0 %v2850
  %4209 = vmatpush1.bf16.msra.mxu0 %v2849
  %4210 = vmatprep.subr.bf16.mxu0 %v2854
  %4211 = vmatpush1.bf16.msra.mxu0 %v2853
  %4212 = vmatprep.subr.bf16.mxu0 %v2858
  %4213 = vmatpush1.bf16.msra.mxu0 %v2857
  %4214 = vmatprep.subr.bf16.mxu0 %v2862
  %4215 = vmatpush1.bf16.msra.mxu0 %v2861
  %4216 = vmatprep.subr.bf16.mxu0 %v2866
  %4217 = vmatpush1.bf16.msra.mxu0 %v2865
  %4218 = vmatprep.mubr.bf16.mxu0 %v668
  %4219 = vmatmul.mubr.bf16.gmra.mrb[0].mxu0 %v667
  %v4220 = vpop.f32.mrb[0].mxu0
  %v4221 = vadd.f32 %v4180, %v4220
  %v4222 = vpop.f32.mrb[0].mxu0
  %v4223 = vadd.f32 %v4182, %v4222
  %v4224 = vpop.f32.mrb[0].mxu0
  %v4225 = vpop.f32.mrb[0].mxu0
  %4226 = vdwg.mxu0
  %4227 = vmatprep.subr.bf16.mxu0 %v2870
  %4228 = vmatpush1.bf16.msra.mxu0 %v2869
  %4229 = vmatprep.subr.bf16.mxu0 %v2874
  %4230 = vmatpush1.bf16.msra.mxu0 %v2873
  %4231 = vmatprep.subr.bf16.mxu0 %v2878
  %4232 = vmatpush1.bf16.msra.mxu0 %v2877
  %4233 = vmatprep.subr.bf16.mxu0 %v2882
  %4234 = vmatpush1.bf16.msra.mxu0 %v2881
  %4235 = vmatprep.subr.bf16.mxu0 %v2886
  %4236 = vmatpush1.bf16.msra.mxu0 %v2885
  %4237 = vmatprep.subr.bf16.mxu0 %v2890
  %4238 = vmatpush1.bf16.msra.mxu0 %v2889
  %4239 = vmatprep.subr.bf16.mxu0 %v2894
  %4240 = vmatpush1.bf16.msra.mxu0 %v2893
  %4241 = vmatprep.subr.bf16.mxu0 %v2898
  %4242 = vmatpush1.bf16.msra.mxu0 %v2897
  %4243 = vmatprep.subr.bf16.mxu0 %v2902
  %4244 = vmatpush1.bf16.msra.mxu0 %v2901
  %4245 = vmatprep.subr.bf16.mxu0 %v2906
  %4246 = vmatpush1.bf16.msra.mxu0 %v2905
  %4247 = vmatprep.subr.bf16.mxu0 %v2910
  %4248 = vmatpush1.bf16.msra.mxu0 %v2909
  %4249 = vmatprep.subr.bf16.mxu0 %v2914
  %4250 = vmatpush1.bf16.msra.mxu0 %v2913
  %4251 = vmatprep.subr.bf16.mxu0 %v2918
  %4252 = vmatpush1.bf16.msra.mxu0 %v2917
  %4253 = vmatprep.subr.bf16.mxu0 %v2922
  %4254 = vmatpush1.bf16.msra.mxu0 %v2921
  %4255 = vmatprep.subr.bf16.mxu0 %v2926
  %4256 = vmatpush1.bf16.msra.mxu0 %v2925
  %4257 = vmatprep.subr.bf16.mxu0 %v2930
  %4258 = vmatpush1.bf16.msra.mxu0 %v2929
  %4259 = vmatprep.mubr.bf16.mxu0 %v670
  %4260 = vmatmul.mubr.bf16.gmra.mrb[0].mxu0 %v669
  %v4261 = vpop.f32.mrb[0].mxu0
  %v4262 = vadd.f32 %v4221, %v4261
  %v4263 = vpop.f32.mrb[0].mxu0
  %v4264 = vadd.f32 %v4223, %v4263
  %v4265 = vpop.f32.mrb[0].mxu0
  %v4266 = vpop.f32.mrb[0].mxu0
  %4267 = vdwg.mxu0
  %4268 = vmatprep.subr.bf16.mxu0 %v2934
  %4269 = vmatpush1.bf16.msra.mxu0 %v2933
  %4270 = vmatprep.subr.bf16.mxu0 %v2938
  %4271 = vmatpush1.bf16.msra.mxu0 %v2937
  %4272 = vmatprep.subr.bf16.mxu0 %v2942
  %4273 = vmatpush1.bf16.msra.mxu0 %v2941
  %4274 = vmatprep.subr.bf16.mxu0 %v2946
  %4275 = vmatpush1.bf16.msra.mxu0 %v2945
  %4276 = vmatprep.subr.bf16.mxu0 %v2950
  %4277 = vmatpush1.bf16.msra.mxu0 %v2949
  %4278 = vmatprep.subr.bf16.mxu0 %v2954
  %4279 = vmatpush1.bf16.msra.mxu0 %v2953
  %4280 = vmatprep.subr.bf16.mxu0 %v2958
  %4281 = vmatpush1.bf16.msra.mxu0 %v2957
  %4282 = vmatprep.subr.bf16.mxu0 %v2962
  %4283 = vmatpush1.bf16.msra.mxu0 %v2961
  %4284 = vmatprep.subr.bf16.mxu0 %v2966
  %4285 = vmatpush1.bf16.msra.mxu0 %v2965
  %4286 = vmatprep.subr.bf16.mxu0 %v2970
  %4287 = vmatpush1.bf16.msra.mxu0 %v2969
  %4288 = vmatprep.subr.bf16.mxu0 %v2974
  %4289 = vmatpush1.bf16.msra.mxu0 %v2973
  %4290 = vmatprep.subr.bf16.mxu0 %v2978
  %4291 = vmatpush1.bf16.msra.mxu0 %v2977
  %4292 = vmatprep.subr.bf16.mxu0 %v2982
  %4293 = vmatpush1.bf16.msra.mxu0 %v2981
  %4294 = vmatprep.subr.bf16.mxu0 %v2986
  %4295 = vmatpush1.bf16.msra.mxu0 %v2985
  %4296 = vmatprep.subr.bf16.mxu0 %v2990
  %4297 = vmatpush1.bf16.msra.mxu0 %v2989
  %4298 = vmatprep.subr.bf16.mxu0 %v2994
  %4299 = vmatpush1.bf16.msra.mxu0 %v2993
  %4300 = vmatprep.mubr.bf16.mxu0 %v672
  %4301 = vmatmul.mubr.bf16.gmra.mrb[0].mxu0 %v671
  %v4302 = vpop.f32.mrb[0].mxu0
  %v4303 = vadd.f32 %v4262, %v4302
  %v4304 = vpop.f32.mrb[0].mxu0
  %v4305 = vadd.f32 %v4264, %v4304
  %v4306 = vpop.f32.mrb[0].mxu0
  %v4307 = vpop.f32.mrb[0].mxu0
  %4308 = vdwg.mxu0
  %v4309 = vmax.f32 %v3934, 0.0
  %v4310 = vmax.f32 %v3936, 0.0
  %v4311 = vmax.f32 %v4303, 0.0
  %v4312 = vmax.f32 %v4305, 0.0
  %v4313 = vpack.c.bf16 %v4309, %v4309
  %v4314 = vpack.c.bf16 %v4310, %v4310
  %v4315 = vpack.c.bf16 %v4311, %v4311
  %v4316 = vpack.c.bf16 %v4312, %v4312
  %v4317 = vld [vmem:[%s3] sm:$0xf]
  %v4318 = vld [vmem:[%s3 + $0x4] sm:$0xf]
  %v4319 = vld [vmem:[%s3 + $0x8] sm:$0xf]
  %v4320 = vld [vmem:[%s3 + $0xc] sm:$0xf]
  %v4321 = vld [vmem:[%s3 + $0x10] sm:$0xf]
  %v4322 = vld [vmem:[%s3 + $0x14] sm:$0xf]
  %v4323 = vld [vmem:[%s3 + $0x18] sm:$0xf]
  %v4324 = vld [vmem:[%s3 + $0x1c] sm:$0xf]
  %v4325 = vld [vmem:[%s3 + $0x20] sm:$0xf]
  %v4326 = vld [vmem:[%s3 + $0x24] sm:$0xf]
  %v4327 = vld [vmem:[%s3 + $0x28] sm:$0xf]
  %v4328 = vld [vmem:[%s3 + $0x2c] sm:$0xf]
  %v4329 = vld [vmem:[%s3 + $0x30] sm:$0xf]
  %v4330 = vld [vmem:[%s3 + $0x34] sm:$0xf]
  %v4331 = vld [vmem:[%s3 + $0x38] sm:$0xf]
  %v4332 = vld [vmem:[%s3 + $0x3c] sm:$0xf]
  %v4333 = vld [vmem:[%s3 + $0x40] sm:$0xf]
  %v4334 = vld [vmem:[%s3 + $0x44] sm:$0xf]
  %v4335 = vld [vmem:[%s3 + $0x48] sm:$0xf]
  %v4336 = vld [vmem:[%s3 + $0x4c] sm:$0xf]
  %v4337 = vld [vmem:[%s3 + $0x50] sm:$0xf]
  %v4338 = vld [vmem:[%s3 + $0x54] sm:$0xf]
  %v4339 = vld [vmem:[%s3 + $0x58] sm:$0xf]
  %v4340 = vld [vmem:[%s3 + $0x5c] sm:$0xf]
  %v4341 = vld [vmem:[%s3 + $0x60] sm:$0xf]
  %v4342 = vld [vmem:[%s3 + $0x64] sm:$0xf]
  %v4343 = vld [vmem:[%s3 + $0x68] sm:$0xf]
  %v4344 = vld [vmem:[%s3 + $0x6c] sm:$0xf]
  %v4345 = vld [vmem:[%s3 + $0x70] sm:$0xf]
  %v4346 = vld [vmem:[%s3 + $0x74] sm:$0xf]
  %v4347 = vld [vmem:[%s3 + $0x78] sm:$0xf]
  %v4348 = vld [vmem:[%s3 + $0x7c] sm:$0xf]
  %v4349 = vld [vmem:[%s3 + $0x80] sm:$0xf]
  %v4350 = vld [vmem:[%s3 + $0x84] sm:$0xf]
  %v4351 = vld [vmem:[%s3 + $0x88] sm:$0xf]
  %v4352 = vld [vmem:[%s3 + $0x8c] sm:$0xf]
  %v4353 = vld [vmem:[%s3 + $0x90] sm:$0xf]
  %v4354 = vld [vmem:[%s3 + $0x94] sm:$0xf]
  %v4355 = vld [vmem:[%s3 + $0x98] sm:$0xf]
  %v4356 = vld [vmem:[%s3 + $0x9c] sm:$0xf]
  %v4357 = vld [vmem:[%s3 + $0xa0] sm:$0xf]
  %v4358 = vld [vmem:[%s3 + $0xa4] sm:$0xf]
  %v4359 = vld [vmem:[%s3 + $0xa8] sm:$0xf]
  %v4360 = vld [vmem:[%s3 + $0xac] sm:$0xf]
  %v4361 = vld [vmem:[%s3 + $0xb0] sm:$0xf]
  %v4362 = vld [vmem:[%s3 + $0xb4] sm:$0xf]
  %v4363 = vld [vmem:[%s3 + $0xb8] sm:$0xf]
  %v4364 = vld [vmem:[%s3 + $0xbc] sm:$0xf]
  %v4365 = vld [vmem:[%s3 + $0xc0] sm:$0xf]
  %v4366 = vld [vmem:[%s3 + $0xc4] sm:$0xf]
  %v4367 = vld [vmem:[%s3 + $0xc8] sm:$0xf]
  %v4368 = vld [vmem:[%s3 + $0xcc] sm:$0xf]
  %v4369 = vld [vmem:[%s3 + $0xd0] sm:$0xf]
  %v4370 = vld [vmem:[%s3 + $0xd4] sm:$0xf]
  %v4371 = vld [vmem:[%s3 + $0xd8] sm:$0xf]
  %v4372 = vld [vmem:[%s3 + $0xdc] sm:$0xf]
  %v4373 = vld [vmem:[%s3 + $0xe0] sm:$0xf]
  %v4374 = vld [vmem:[%s3 + $0xe4] sm:$0xf]
  %v4375 = vld [vmem:[%s3 + $0xe8] sm:$0xf]
  %v4376 = vld [vmem:[%s3 + $0xec] sm:$0xf]
  %v4377 = vld [vmem:[%s3 + $0xf0] sm:$0xf]
  %v4378 = vld [vmem:[%s3 + $0xf4] sm:$0xf]
  %v4379 = vld [vmem:[%s3 + $0xf8] sm:$0xf]
  %v4380 = vld [vmem:[%s3 + $0xfc] sm:$0xf]
  %v4381 = vld [vmem:[%s4] sm:$0x1]
  %v4383 = vlaneseq
  %v4384 = vshrl.u32 %v4383, 7
  %v4385 = vsub.s32 0, %v4384
  %v4386 = vrot.slane %v4381, %v4385
  %v4452 = vunpack.c.l.b16 %v4317
  %v4453 = vunpack.c.l.b16 %v4318
  %v4454 = vunpack.c.l.b16 %v4319
  %v4455 = vunpack.c.l.b16 %v4320
  %v4456 = vunpack.c.l.b16 %v4321
  %v4457 = vunpack.c.l.b16 %v4322
  %v4458 = vunpack.c.l.b16 %v4323
  %v4459 = vunpack.c.l.b16 %v4324
  %v4460 = vunpack.c.l.b16 %v4325
  %v4461 = vunpack.c.l.b16 %v4326
  %v4462 = vunpack.c.l.b16 %v4327
  %v4463 = vunpack.c.l.b16 %v4328
  %v4464 = vunpack.c.l.b16 %v4329
  %v4465 = vunpack.c.l.b16 %v4330
  %v4466 = vunpack.c.l.b16 %v4331
  %v4467 = vunpack.c.l.b16 %v4332
  %v4468 = vunpack.c.l.b16 %v4333
  %v4469 = vunpack.c.l.b16 %v4334
  %v4470 = vunpack.c.l.b16 %v4335
  %v4471 = vunpack.c.l.b16 %v4336
  %v4472 = vunpack.c.l.b16 %v4337
  %v4473 = vunpack.c.l.b16 %v4338
  %v4474 = vunpack.c.l.b16 %v4339
  %v4475 = vunpack.c.l.b16 %v4340
  %v4476 = vunpack.c.l.b16 %v4341
  %v4477 = vunpack.c.l.b16 %v4342
  %v4478 = vunpack.c.l.b16 %v4343
  %v4479 = vunpack.c.l.b16 %v4344
  %v4480 = vunpack.c.l.b16 %v4345
  %v4481 = vunpack.c.l.b16 %v4346
  %v4482 = vunpack.c.l.b16 %v4347
  %v4483 = vunpack.c.l.b16 %v4348
  %v4484 = vunpack.c.l.b16 %v4349
  %v4485 = vunpack.c.l.b16 %v4350
  %v4486 = vunpack.c.l.b16 %v4351
  %v4487 = vunpack.c.l.b16 %v4352
  %v4488 = vunpack.c.l.b16 %v4353
  %v4489 = vunpack.c.l.b16 %v4354
  %v4490 = vunpack.c.l.b16 %v4355
  %v4491 = vunpack.c.l.b16 %v4356
  %v4492 = vunpack.c.l.b16 %v4357
  %v4493 = vunpack.c.l.b16 %v4358
  %v4494 = vunpack.c.l.b16 %v4359
  %v4495 = vunpack.c.l.b16 %v4360
  %v4496 = vunpack.c.l.b16 %v4361
  %v4497 = vunpack.c.l.b16 %v4362
  %v4498 = vunpack.c.l.b16 %v4363
  %v4499 = vunpack.c.l.b16 %v4364
  %v4500 = vunpack.c.l.b16 %v4365
  %v4501 = vunpack.c.l.b16 %v4366
  %v4502 = vunpack.c.l.b16 %v4367
  %v4503 = vunpack.c.l.b16 %v4368
  %v4504 = vunpack.c.l.b16 %v4369
  %v4505 = vunpack.c.l.b16 %v4370
  %v4506 = vunpack.c.l.b16 %v4371
  %v4507 = vunpack.c.l.b16 %v4372
  %v4508 = vunpack.c.l.b16 %v4373
  %v4509 = vunpack.c.l.b16 %v4374
  %v4510 = vunpack.c.l.b16 %v4375
  %v4511 = vunpack.c.l.b16 %v4376
  %v4512 = vunpack.c.l.b16 %v4377
  %v4513 = vunpack.c.l.b16 %v4378
  %v4514 = vunpack.c.l.b16 %v4379
  %v4515 = vunpack.c.l.b16 %v4380
  %v4516 = vpack.c.b16 %v4453, %v4452
  %v4517 = vpack.c.b16 %v4455, %v4454
  %v4518 = vpack.c.b16 %v4457, %v4456
  %v4519 = vpack.c.b16 %v4459, %v4458
  %v4520 = vpack.c.b16 %v4461, %v4460
  %v4521 = vpack.c.b16 %v4463, %v4462
  %v4522 = vpack.c.b16 %v4465, %v4464
  %v4523 = vpack.c.b16 %v4467, %v4466
  %v4524 = vpack.c.b16 %v4469, %v4468
  %v4525 = vpack.c.b16 %v4471, %v4470
  %v4526 = vpack.c.b16 %v4473, %v4472
  %v4527 = vpack.c.b16 %v4475, %v4474
  %v4528 = vpack.c.b16 %v4477, %v4476
  %v4529 = vpack.c.b16 %v4479, %v4478
  %v4530 = vpack.c.b16 %v4481, %v4480
  %v4531 = vpack.c.b16 %v4483, %v4482
  %v4532 = vpack.c.b16 %v4485, %v4484
  %v4533 = vpack.c.b16 %v4487, %v4486
  %v4534 = vpack.c.b16 %v4489, %v4488
  %v4535 = vpack.c.b16 %v4491, %v4490
  %v4536 = vpack.c.b16 %v4493, %v4492
  %v4537 = vpack.c.b16 %v4495, %v4494
  %v4538 = vpack.c.b16 %v4497, %v4496
  %v4539 = vpack.c.b16 %v4499, %v4498
  %v4540 = vpack.c.b16 %v4501, %v4500
  %v4541 = vpack.c.b16 %v4503, %v4502
  %v4542 = vpack.c.b16 %v4505, %v4504
  %v4543 = vpack.c.b16 %v4507, %v4506
  %v4544 = vpack.c.b16 %v4509, %v4508
  %v4545 = vpack.c.b16 %v4511, %v4510
  %v4546 = vpack.c.b16 %v4513, %v4512
  %v4547 = vpack.c.b16 %v4515, %v4514
  %4580 = vmatprep.subr.bf16.mxu0 0
  %4581 = vmatpush1.bf16.msra.mxu0 %v4516
  %4582 = vmatprep.subr.bf16.mxu0 0
  %4583 = vmatpush1.bf16.msra.mxu0 %v4517
  %4584 = vmatprep.subr.bf16.mxu0 0
  %4585 = vmatpush1.bf16.msra.mxu0 %v4518
  %4586 = vmatprep.subr.bf16.mxu0 0
  %4587 = vmatpush1.bf16.msra.mxu0 %v4519
  %4588 = vmatprep.subr.bf16.mxu0 0
  %4589 = vmatpush1.bf16.msra.mxu0 %v4520
  %4590 = vmatprep.subr.bf16.mxu0 0
  %4591 = vmatpush1.bf16.msra.mxu0 %v4521
  %4592 = vmatprep.subr.bf16.mxu0 0
  %4593 = vmatpush1.bf16.msra.mxu0 %v4522
  %4594 = vmatprep.subr.bf16.mxu0 0
  %4595 = vmatpush1.bf16.msra.mxu0 %v4523
  %4596 = vmatprep.subr.bf16.mxu0 0
  %4597 = vmatpush1.bf16.msra.mxu0 %v4524
  %4598 = vmatprep.subr.bf16.mxu0 0
  %4599 = vmatpush1.bf16.msra.mxu0 %v4525
  %4600 = vmatprep.subr.bf16.mxu0 0
  %4601 = vmatpush1.bf16.msra.mxu0 %v4526
  %4602 = vmatprep.subr.bf16.mxu0 0
  %4603 = vmatpush1.bf16.msra.mxu0 %v4527
  %4604 = vmatprep.subr.bf16.mxu0 0
  %4605 = vmatpush1.bf16.msra.mxu0 %v4528
  %4606 = vmatprep.subr.bf16.mxu0 0
  %4607 = vmatpush1.bf16.msra.mxu0 %v4529
  %4608 = vmatprep.subr.bf16.mxu0 0
  %4609 = vmatpush1.bf16.msra.mxu0 %v4530
  %4610 = vmatprep.subr.bf16.mxu0 0
  %4611 = vmatpush1.bf16.msra.mxu0 %v4531
  %4612 = vmatprep.mubr.bf16.mxu0 %v4314
  %4613 = vmatmul.mubr.bf16.gmra.mrb[0].mxu0 %v4313
  %v4614 = vpop.f32.mrb[0].mxu0
  %v4615 = vadd.f32 %v4386, %v4614
  %v4616 = vpop.f32.mrb[0].mxu0
  %v4617 = vpop.f32.mrb[0].mxu0
  %v4618 = vpop.f32.mrb[0].mxu0
  %4619 = vdwg.mxu0
  %4620 = vmatprep.subr.bf16.mxu0 0
  %4621 = vmatpush1.bf16.msra.mxu0 %v4532
  %4622 = vmatprep.subr.bf16.mxu0 0
  %4623 = vmatpush1.bf16.msra.mxu0 %v4533
  %4624 = vmatprep.subr.bf16.mxu0 0
  %4625 = vmatpush1.bf16.msra.mxu0 %v4534
  %4626 = vmatprep.subr.bf16.mxu0 0
  %4627 = vmatpush1.bf16.msra.mxu0 %v4535
  %4628 = vmatprep.subr.bf16.mxu0 0
  %4629 = vmatpush1.bf16.msra.mxu0 %v4536
  %4630 = vmatprep.subr.bf16.mxu0 0
  %4631 = vmatpush1.bf16.msra.mxu0 %v4537
  %4632 = vmatprep.subr.bf16.mxu0 0
  %4633 = vmatpush1.bf16.msra.mxu0 %v4538
  %4634 = vmatprep.subr.bf16.mxu0 0
  %4635 = vmatpush1.bf16.msra.mxu0 %v4539
  %4636 = vmatprep.subr.bf16.mxu0 0
  %4637 = vmatpush1.bf16.msra.mxu0 %v4540
  %4638 = vmatprep.subr.bf16.mxu0 0
  %4639 = vmatpush1.bf16.msra.mxu0 %v4541
  %4640 = vmatprep.subr.bf16.mxu0 0
  %4641 = vmatpush1.bf16.msra.mxu0 %v4542
  %4642 = vmatprep.subr.bf16.mxu0 0
  %4643 = vmatpush1.bf16.msra.mxu0 %v4543
  %4644 = vmatprep.subr.bf16.mxu0 0
  %4645 = vmatpush1.bf16.msra.mxu0 %v4544
  %4646 = vmatprep.subr.bf16.mxu0 0
  %4647 = vmatpush1.bf16.msra.mxu0 %v4545
  %4648 = vmatprep.subr.bf16.mxu0 0
  %4649 = vmatpush1.bf16.msra.mxu0 %v4546
  %4650 = vmatprep.subr.bf16.mxu0 0
  %4651 = vmatpush1.bf16.msra.mxu0 %v4547
  %4652 = vmatprep.mubr.bf16.mxu0 %v4316
  %4653 = vmatmul.mubr.bf16.gmra.mrb[0].mxu0 %v4315
  %v4654 = vpop.f32.mrb[0].mxu0
  %v4655 = vadd.f32 %v4615, %v4654
  %v4656 = vpop.f32.mrb[0].mxu0
  %v4657 = vpop.f32.mrb[0].mxu0
  %v4658 = vpop.f32.mrb[0].mxu0
  %4659 = vdwg.mxu0
  %v4660 = vmax.f32 %v4655, 0.0
  %4661 = vst [vmem:[%s5] sm:$0xff] %v4660
  // Predicated region
  $region22: #{cnn_forward.5} parent=0 // pred_check
    _
  $region23: #{cnn_forward.5} parent=0 // pred_check_branch
    %4663 = sbr.rel (0) target = $region25
  $region24: #{cnn_forward.5} parent=0 // pred_region
    _
  $region25: #{cnn_forward.5} parent=0 // pred_fallthru
    _
  // Predicated region
  $region26: #{cnn_forward.5} parent=0 // pred_check
    _
  $region27: #{cnn_forward.5} parent=0 // pred_check_branch
    %4665 = sbr.rel (0) target = $region29
  $region28: #{cnn_forward.5} parent=0 // pred_region
    _
  $region29: #{cnn_forward.5} parent=0 // pred_fallthru
    _

</llo_original>
